<compile_context>
chip_gen: v5e
topology: v5e:2x2
jax: 0.10.0
libtpu: 0.0.40
codegen_flags: <defaults>
</compile_context>

<pallas_src>
import numpy as np
import jax
import jax.numpy as jnp
from jax import lax
from jax.experimental import pallas as pl
from jax.experimental.pallas import tpu as pltpu

NB = 64  # batch tile; grid iterates over batch tiles (parallel across cores)


# ---------------------------------------------------------------------------
# Fused forward kernel (one batch tile per grid step)
# ---------------------------------------------------------------------------
def _net_kernel(x_ref, w1_ref, b1_ref, w2_ref, b2_ref,
                wf1_ref, bf1_ref, wf2_ref, bf2_ref, o_ref):
    f32 = jnp.float32
    bf16 = jnp.bfloat16

    # ---- conv1 (k=5) with width max-pool folded into even/odd weight halves --
    # x rows: h*NB + n (h in 0..27), lanes: w (28)
    acc = jnp.zeros((24 * NB, 256), f32)
    for kh in range(5):
        xk = x_ref[kh * NB: (kh + 24) * NB, :]               # (24*NB, 28) bf16
        acc = acc + jnp.dot(xk, w1_ref[kh], preferred_element_type=f32)
    # width pool = max(even, odd); bias hoisted out of the max
    pooled_w = jnp.maximum(acc[:, :128], acc[:, 128:]) + b1_ref[...]  # (24*NB,128)

    # ---- height max-pool (2) + ReLU -> h1 rows: ph*NB+n, lanes: w*10+c -------
    h1 = pooled_w.reshape(12, 2, NB, 128).max(axis=1).reshape(12 * NB, 128)
    h1 = jnp.maximum(h1, 0.0).astype(bf16)

    # ---- conv2 (Dropout2d = identity, eval) + folded width max-pool ----------
    acc2 = jnp.zeros((8 * NB, 256), f32)
    for kh in range(5):
        hk = h1[kh * NB: (kh + 8) * NB, :]                   # (8*NB, 128)
        acc2 = acc2 + jnp.dot(hk, w2_ref[kh], preferred_element_type=f32)
    pooled2 = jnp.maximum(acc2[:, :128], acc2[:, 128:]) + b2_ref[...]  # (8*NB,128)

    # ---- height max-pool + ReLU -> h2 rows: ph2*NB+n, lanes: w2*20+c ---------
    h2 = pooled2.reshape(4, 2, NB, 128).max(axis=1).reshape(4 * NB, 128)
    h2 = jnp.maximum(h2, 0.0).astype(bf16)

    # ---- fc1 + ReLU (NCHW-flatten permutation baked into wf1) ----------------
    z = jnp.zeros((NB, 128), f32)
    for p in range(4):
        z = z + jnp.dot(h2[p * NB:(p + 1) * NB, :], wf1_ref[p],
                        preferred_element_type=f32)
    z = jnp.maximum(z + bf1_ref[...], 0.0).astype(bf16)      # F.dropout = identity

    # ---- fc2 + log_softmax (pad lanes biased to -1e30 -> exp underflows to 0)
    logits = jnp.dot(z, wf2_ref[...], preferred_element_type=f32) + bf2_ref[...]
    m = jnp.max(logits, axis=-1, keepdims=True)
    s = logits - m
    lse = jnp.log(jnp.sum(jnp.exp(s), axis=-1, keepdims=True))
    o_ref[...] = s - lse                                      # (NB, 128) f32


# ---------------------------------------------------------------------------
# Host-side weight packing (done once at init)
# ---------------------------------------------------------------------------
def _pack_conv_pool_merged(w, b, pooled_w, in_lanes):
    """w: [cout, cin, 5, 5] (PyTorch), b: [cout].
    Returns (slab, bias):
      slab: [5, in_lanes, 256] -- per kernel-row Toeplitz slab. Columns 0:128
            produce the conv output at even width positions (lane = pw*cout+co,
            zero-padded to 128), columns 128:256 the odd positions, so the
            width max-pool is max(acc[:, :128], acc[:, 128:]).
      bias: [1, 128] tiled bias (lane pw*cout+co = b[co]); pad lanes zero.
    Input lane packing: w*cin + ci (matches x / h1 layouts)."""
    w = np.asarray(w, np.float32)
    b = np.asarray(b, np.float32)
    cout, cin, k, _ = w.shape
    slab = np.zeros((k, in_lanes, 256), np.float32)
    for kh in range(k):
        for pw in range(pooled_w):
            ce = slice(pw * cout, (pw + 1) * cout)
            co = slice(128 + pw * cout, 128 + (pw + 1) * cout)
            for kw in range(k):
                for ci in range(cin):
                    slab[kh, (2 * pw + kw) * cin + ci, ce] = w[:, ci, kh, kw]
                    slab[kh, (2 * pw + 1 + kw) * cin + ci, co] = w[:, ci, kh, kw]
    bias = np.zeros((1, 128), np.float32)
    bias[0, :pooled_w * cout] = np.tile(b, pooled_w)
    return slab, bias


def _pack_fc1(w):
    """fc1.weight [50, 320] with feature order c*16 + h*4 + w (PyTorch NCHW
    flatten) -> [4, 128, 128] blocks indexed by pooled-h; input lane packing
    w*20 + c (matches h2), input lanes 80:128 zero, output lanes 50:128 zero."""
    w = np.asarray(w, np.float32)
    out = np.zeros((4, 128, 128), np.float32)
    for h in range(4):
        for wp in range(4):
            for c in range(20):
                out[h, wp * 20 + c, :50] = w[:, c * 16 + h * 4 + wp]
    return out


def pack_params(raw):
    w1, b1 = _pack_conv_pool_merged(raw["conv1_w"], raw["conv1_b"],
                                    pooled_w=12, in_lanes=28)
    w2, b2 = _pack_conv_pool_merged(raw["conv2_w"], raw["conv2_b"],
                                    pooled_w=4, in_lanes=128)
    wf1 = _pack_fc1(raw["fc1_w"])
    bf1 = np.zeros((1, 128), np.float32)
    bf1[0, :50] = np.asarray(raw["fc1_b"], np.float32)
    wf2 = np.zeros((128, 128), np.float32)
    wf2[:50, :10] = np.asarray(raw["fc2_w"], np.float32).T
    bf2 = np.full((1, 128), -1e30, np.float32)   # pad logits -> exp() == 0
    bf2[0, :10] = np.asarray(raw["fc2_b"], np.float32)
    return dict(
        w1=jnp.asarray(w1, jnp.bfloat16), b1=jnp.asarray(b1, jnp.float32),
        w2=jnp.asarray(w2, jnp.bfloat16), b2=jnp.asarray(b2, jnp.float32),
        wf1=jnp.asarray(wf1, jnp.bfloat16), bf1=jnp.asarray(bf1, jnp.float32),
        wf2=jnp.asarray(wf2, jnp.bfloat16), bf2=jnp.asarray(bf2, jnp.float32),
    )


# ---------------------------------------------------------------------------
# Wrapper: batch tiling + packed input layout + pallas_call
# ---------------------------------------------------------------------------
def net_forward(x_nchw, p):
    N = x_nchw.shape[0]
    T = -(-N // NB)            # number of batch tiles
    Np = T * NB

    x = x_nchw.reshape(N, 28, 28)
    if Np != N:
        x = jnp.pad(x, ((0, Np - N), (0, 0), (0, 0)))
    # per tile: rows packed as h*NB + n_local, lanes = w; bf16 operands for MXU
    x = (x.reshape(T, NB, 28, 28).transpose(0, 2, 1, 3)
           .reshape(T * 28 * NB, 28).astype(jnp.bfloat16))

    flops_per_img = 2 * (144_000 + 320_000 + 16_000 + 500)
    weight_bytes = sum(int(v.size) * v.dtype.itemsize for v in p.values())
    cost = pl.CostEstimate(
        flops=Np * flops_per_img,
        transcendentals=Np * 10,
        bytes_accessed=int(x.size) * 2 + Np * 128 * 4 + weight_bytes)

    out = pl.pallas_call(
        _net_kernel,
        out_shape=jax.ShapeDtypeStruct((Np, 128), jnp.float32),
        grid=(T,),
        in_specs=[
            pl.BlockSpec((28 * NB, 28), lambda i: (i, 0)),
            pl.BlockSpec(p["w1"].shape, lambda i: (0, 0, 0)),
            pl.BlockSpec(p["b1"].shape, lambda i: (0, 0)),
            pl.BlockSpec(p["w2"].shape, lambda i: (0, 0, 0)),
            pl.BlockSpec(p["b2"].shape, lambda i: (0, 0)),
            pl.BlockSpec(p["wf1"].shape, lambda i: (0, 0, 0)),
            pl.BlockSpec(p["bf1"].shape, lambda i: (0, 0)),
            pl.BlockSpec(p["wf2"].shape, lambda i: (0, 0)),
            pl.BlockSpec(p["bf2"].shape, lambda i: (0, 0)),
        ],
        out_specs=pl.BlockSpec((NB, 128), lambda i: (i, 0)),
        compiler_params=pltpu.CompilerParams(
            dimension_semantics=("parallel",)),
        cost_estimate=cost,
    )(x, p["w1"], p["b1"], p["w2"], p["b2"],
      p["wf1"], p["bf1"], p["wf2"], p["bf2"])
    return out[:N, :10]


# ---------------------------------------------------------------------------
# Pure-JAX reference (numerical self-check) and deterministic init
# ---------------------------------------------------------------------------
def net_forward_reference(x_nchw, raw):
    def conv(x, w, b):
        y = lax.conv_general_dilated(
            x, w, window_strides=(1, 1), padding="VALID",
            dimension_numbers=("NCHW", "OIHW", "NCHW"))
        return y + b[None, :, None, None]

    def pool2(x):
        n, c, h, w = x.shape
        return x.reshape(n, c, h // 2, 2, w // 2, 2).max(axis=(3, 5))

    x = jnp.maximum(pool2(conv(x_nchw, raw["conv1_w"], raw["conv1_b"])), 0.0)
    x = jnp.maximum(pool2(conv(x, raw["conv2_w"], raw["conv2_b"])), 0.0)
    x = x.reshape(x.shape[0], 320)
    x = jnp.maximum(x @ raw["fc1_w"].T + raw["fc1_b"], 0.0)
    x = x @ raw["fc2_w"].T + raw["fc2_b"]
    return jax.nn.log_softmax(x, axis=-1)


def init_params(key):
    ks = jax.random.split(key, 8)

    def uniform(k, shape, fan_in):
        bound = 1.0 / np.sqrt(fan_in)
        return jax.random.uniform(k, shape, jnp.float32, -bound, bound)

    return dict(
        conv1_w=uniform(ks[0], (10, 1, 5, 5), 25),
        conv1_b=uniform(ks[1], (10,), 25),
        conv2_w=uniform(ks[2], (20, 10, 5, 5), 250),
        conv2_b=uniform(ks[3], (20,), 250),
        fc1_w=uniform(ks[4], (50, 320), 320),
        fc1_b=uniform(ks[5], (50,), 320),
        fc2_w=uniform(ks[6], (10, 50), 50),
        fc2_b=uniform(ks[7], (10,), 50),
    )


if __name__ == "__main__":
    raw = init_params(jax.random.PRNGKey(42))
    packed = pack_params(raw)
    fwd = jax.jit(net_forward)

    # small batch (T=1, padded to NB)
    x = jax.random.normal(jax.random.PRNGKey(0), (2, 1, 28, 28), dtype=jnp.float32)
    out = jax.block_until_ready(fwd(x, packed))
    assert out.shape == (2, 10)
    ref = jax.block_until_ready(net_forward_reference(x, raw))
    err = float(jnp.max(jnp.abs(out - ref)))
    # bf16 MXU operands -> tolerance loosened vs. the pure-f32 version
    assert jnp.allclose(out, ref, atol=5e-2, rtol=5e-2), err
    assert jnp.allclose(jnp.sum(jnp.exp(out), axis=1), 1.0, atol=1e-3)

    # exercise the multi-tile grid (T=3) + batch-padding path
    x2 = jax.random.normal(jax.random.PRNGKey(1), (130, 1, 28, 28), dtype=jnp.float32)
    out2 = jax.block_until_ready(fwd(x2, packed))
    ref2 = jax.block_until_ready(net_forward_reference(x2, raw))
    assert out2.shape == (130, 10)
    err2 = float(jnp.max(jnp.abs(out2 - ref2)))
    assert jnp.allclose(out2, ref2, atol=5e-2, rtol=5e-2), err2

    print("KERNEL_OK")
</pallas_src>

<mosaic_0001>
module attributes {stable_mosaic.version = 11 : i64} {
  func.func @_net_kernel(%arg0: i32, %arg1: memref<1792x28xbf16, #tpu.memory_space<vmem>>, %arg2: memref<5x28x256xbf16, #tpu.memory_space<vmem>>, %arg3: memref<1x128xf32, #tpu.memory_space<vmem>>, %arg4: memref<5x128x256xbf16, #tpu.memory_space<vmem>>, %arg5: memref<1x128xf32, #tpu.memory_space<vmem>>, %arg6: memref<4x128x128xbf16, #tpu.memory_space<vmem>>, %arg7: memref<1x128xf32, #tpu.memory_space<vmem>>, %arg8: memref<128x128xbf16, #tpu.memory_space<vmem>>, %arg9: memref<1x128xf32, #tpu.memory_space<vmem>>, %arg10: memref<64x128xf32, #tpu.memory_space<vmem>>) attributes {dimension_semantics = [#tpu.dimension_semantics<parallel>], iteration_bounds = array<i64: 1>, scalar_prefetch = 0 : i64, scratch_operands = 0 : i64, tpu.core_type = #tpu.core_type<tc>, window_params = [{transform_indices = @transform_0, window_bounds = array<i64: 1792, 28>}, {pipeline_mode = #tpu.pipeline_mode<synchronous>, transform_indices = @transform_1, window_bounds = array<i64: 5, 28, 256>}, {pipeline_mode = #tpu.pipeline_mode<synchronous>, transform_indices = @transform_2, window_bounds = array<i64: 1, 128>}, {pipeline_mode = #tpu.pipeline_mode<synchronous>, transform_indices = @transform_3, window_bounds = array<i64: 5, 128, 256>}, {pipeline_mode = #tpu.pipeline_mode<synchronous>, transform_indices = @transform_4, window_bounds = array<i64: 1, 128>}, {pipeline_mode = #tpu.pipeline_mode<synchronous>, transform_indices = @transform_5, window_bounds = array<i64: 4, 128, 128>}, {pipeline_mode = #tpu.pipeline_mode<synchronous>, transform_indices = @transform_6, window_bounds = array<i64: 1, 128>}, {pipeline_mode = #tpu.pipeline_mode<synchronous>, transform_indices = @transform_7, window_bounds = array<i64: 128, 128>}, {pipeline_mode = #tpu.pipeline_mode<synchronous>, transform_indices = @transform_8, window_bounds = array<i64: 1, 128>}, {transform_indices = @transform_9, window_bounds = array<i64: 64, 128>}]} {
    %cst = arith.constant 0.000000e+00 : f32
    %0 = vector.broadcast %cst : f32 to vector<1536x256xf32>
    %c0 = arith.constant 0 : index
    %c0_0 = arith.constant 0 : index
    %1 = vector.load %arg1[%c0, %c0_0] : memref<1792x28xbf16, #tpu.memory_space<vmem>>, vector<1536x28xbf16>
    %c0_1 = arith.constant 0 : index
    %c0_2 = arith.constant 0 : index
    %c0_3 = arith.constant 0 : index
    %2 = vector.load %arg2[%c0_1, %c0_2, %c0_3] : memref<5x28x256xbf16, #tpu.memory_space<vmem>>, vector<1x28x256xbf16>
    %3 = vector.shape_cast %2 : vector<1x28x256xbf16> to vector<28x256xbf16>
    %cst_4 = arith.constant dense<0.000000e+00> : vector<1536x256xf32>
    %4 = tpu.matmul %1, %3, %cst_4 {dimension_numbers = #tpu.dot_dimension_numbers<[1], [0], [0], [1], [0, 0, 1, 1], [], []>} : vector<1536x28xbf16>, vector<28x256xbf16>, vector<1536x256xf32> -> vector<1536x256xf32>
    %5 = arith.addf %0, %4 : vector<1536x256xf32>
    %c64 = arith.constant 64 : index
    %c0_5 = arith.constant 0 : index
    %6 = vector.load %arg1[%c64, %c0_5] : memref<1792x28xbf16, #tpu.memory_space<vmem>>, vector<1536x28xbf16>
    %c1 = arith.constant 1 : index
    %c0_6 = arith.constant 0 : index
    %c0_7 = arith.constant 0 : index
    %7 = vector.load %arg2[%c1, %c0_6, %c0_7] : memref<5x28x256xbf16, #tpu.memory_space<vmem>>, vector<1x28x256xbf16>
    %8 = vector.shape_cast %7 : vector<1x28x256xbf16> to vector<28x256xbf16>
    %cst_8 = arith.constant dense<0.000000e+00> : vector<1536x256xf32>
    %9 = tpu.matmul %6, %8, %cst_8 {dimension_numbers = #tpu.dot_dimension_numbers<[1], [0], [0], [1], [0, 0, 1, 1], [], []>} : vector<1536x28xbf16>, vector<28x256xbf16>, vector<1536x256xf32> -> vector<1536x256xf32>
    %10 = arith.addf %5, %9 : vector<1536x256xf32>
    %c128 = arith.constant 128 : index
    %c0_9 = arith.constant 0 : index
    %11 = vector.load %arg1[%c128, %c0_9] : memref<1792x28xbf16, #tpu.memory_space<vmem>>, vector<1536x28xbf16>
    %c2 = arith.constant 2 : index
    %c0_10 = arith.constant 0 : index
    %c0_11 = arith.constant 0 : index
    %12 = vector.load %arg2[%c2, %c0_10, %c0_11] : memref<5x28x256xbf16, #tpu.memory_space<vmem>>, vector<1x28x256xbf16>
    %13 = vector.shape_cast %12 : vector<1x28x256xbf16> to vector<28x256xbf16>
    %cst_12 = arith.constant dense<0.000000e+00> : vector<1536x256xf32>
    %14 = tpu.matmul %11, %13, %cst_12 {dimension_numbers = #tpu.dot_dimension_numbers<[1], [0], [0], [1], [0, 0, 1, 1], [], []>} : vector<1536x28xbf16>, vector<28x256xbf16>, vector<1536x256xf32> -> vector<1536x256xf32>
    %15 = arith.addf %10, %14 : vector<1536x256xf32>
    %c192 = arith.constant 192 : index
    %c0_13 = arith.constant 0 : index
    %16 = vector.load %arg1[%c192, %c0_13] : memref<1792x28xbf16, #tpu.memory_space<vmem>>, vector<1536x28xbf16>
    %c3 = arith.constant 3 : index
    %c0_14 = arith.constant 0 : index
    %c0_15 = arith.constant 0 : index
    %17 = vector.load %arg2[%c3, %c0_14, %c0_15] : memref<5x28x256xbf16, #tpu.memory_space<vmem>>, vector<1x28x256xbf16>
    %18 = vector.shape_cast %17 : vector<1x28x256xbf16> to vector<28x256xbf16>
    %cst_16 = arith.constant dense<0.000000e+00> : vector<1536x256xf32>
    %19 = tpu.matmul %16, %18, %cst_16 {dimension_numbers = #tpu.dot_dimension_numbers<[1], [0], [0], [1], [0, 0, 1, 1], [], []>} : vector<1536x28xbf16>, vector<28x256xbf16>, vector<1536x256xf32> -> vector<1536x256xf32>
    %20 = arith.addf %15, %19 : vector<1536x256xf32>
    %c256 = arith.constant 256 : index
    %c0_17 = arith.constant 0 : index
    %21 = vector.load %arg1[%c256, %c0_17] : memref<1792x28xbf16, #tpu.memory_space<vmem>>, vector<1536x28xbf16>
    %c4 = arith.constant 4 : index
    %c0_18 = arith.constant 0 : index
    %c0_19 = arith.constant 0 : index
    %22 = vector.load %arg2[%c4, %c0_18, %c0_19] : memref<5x28x256xbf16, #tpu.memory_space<vmem>>, vector<1x28x256xbf16>
    %23 = vector.shape_cast %22 : vector<1x28x256xbf16> to vector<28x256xbf16>
    %cst_20 = arith.constant dense<0.000000e+00> : vector<1536x256xf32>
    %24 = tpu.matmul %21, %23, %cst_20 {dimension_numbers = #tpu.dot_dimension_numbers<[1], [0], [0], [1], [0, 0, 1, 1], [], []>} : vector<1536x28xbf16>, vector<28x256xbf16>, vector<1536x256xf32> -> vector<1536x256xf32>
    %25 = arith.addf %20, %24 : vector<1536x256xf32>
    %26 = vector.extract_strided_slice %25 {offsets = [0, 0], sizes = [1536, 128], strides = [1, 1]} : vector<1536x256xf32> to vector<1536x128xf32>
    %27 = vector.extract_strided_slice %25 {offsets = [0, 128], sizes = [1536, 128], strides = [1, 1]} : vector<1536x256xf32> to vector<1536x128xf32>
    %28 = arith.maximumf %26, %27 : vector<1536x128xf32>
    %c0_21 = arith.constant 0 : index
    %c0_22 = arith.constant 0 : index
    %29 = vector.load %arg3[%c0_21, %c0_22] : memref<1x128xf32, #tpu.memory_space<vmem>>, vector<1x128xf32>
    %30 = vector.broadcast %29 : vector<1x128xf32> to vector<1536x128xf32>
    %31 = arith.addf %28, %30 : vector<1536x128xf32>
    %32 = vector.shape_cast %31 : vector<1536x128xf32> to vector<12x2x64x128xf32>
    %cst_23 = arith.constant dense<0xFF800000> : vector<12x64x128xf32>
    %33 = vector.multi_reduction <maximumf>, %32, %cst_23 [1] : vector<12x2x64x128xf32> to vector<12x64x128xf32>
    %34 = vector.shape_cast %33 : vector<12x64x128xf32> to vector<768x128xf32>
    %cst_24 = arith.constant 0.000000e+00 : f32
    %35 = vector.broadcast %cst_24 : f32 to vector<768x128xf32>
    %36 = arith.maximumf %34, %35 : vector<768x128xf32>
    %37 = arith.truncf %36 : vector<768x128xf32> to vector<768x128xbf16>
    %cst_25 = arith.constant 0.000000e+00 : f32
    %38 = vector.broadcast %cst_25 : f32 to vector<512x256xf32>
    %39 = vector.extract_strided_slice %37 {offsets = [0, 0], sizes = [512, 128], strides = [1, 1]} : vector<768x128xbf16> to vector<512x128xbf16>
    %c0_26 = arith.constant 0 : index
    %c0_27 = arith.constant 0 : index
    %c0_28 = arith.constant 0 : index
    %40 = vector.load %arg4[%c0_26, %c0_27, %c0_28] : memref<5x128x256xbf16, #tpu.memory_space<vmem>>, vector<1x128x256xbf16>
    %41 = vector.shape_cast %40 : vector<1x128x256xbf16> to vector<128x256xbf16>
    %cst_29 = arith.constant dense<0.000000e+00> : vector<512x256xf32>
    %42 = tpu.matmul %39, %41, %cst_29 {dimension_numbers = #tpu.dot_dimension_numbers<[1], [0], [0], [1], [0, 0, 1, 1], [], []>} : vector<512x128xbf16>, vector<128x256xbf16>, vector<512x256xf32> -> vector<512x256xf32>
    %43 = arith.addf %38, %42 : vector<512x256xf32>
    %44 = vector.extract_strided_slice %37 {offsets = [64, 0], sizes = [512, 128], strides = [1, 1]} : vector<768x128xbf16> to vector<512x128xbf16>
    %c1_30 = arith.constant 1 : index
    %c0_31 = arith.constant 0 : index
    %c0_32 = arith.constant 0 : index
    %45 = vector.load %arg4[%c1_30, %c0_31, %c0_32] : memref<5x128x256xbf16, #tpu.memory_space<vmem>>, vector<1x128x256xbf16>
    %46 = vector.shape_cast %45 : vector<1x128x256xbf16> to vector<128x256xbf16>
    %cst_33 = arith.constant dense<0.000000e+00> : vector<512x256xf32>
    %47 = tpu.matmul %44, %46, %cst_33 {dimension_numbers = #tpu.dot_dimension_numbers<[1], [0], [0], [1], [0, 0, 1, 1], [], []>} : vector<512x128xbf16>, vector<128x256xbf16>, vector<512x256xf32> -> vector<512x256xf32>
    %48 = arith.addf %43, %47 : vector<512x256xf32>
    %49 = vector.extract_strided_slice %37 {offsets = [128, 0], sizes = [512, 128], strides = [1, 1]} : vector<768x128xbf16> to vector<512x128xbf16>
    %c2_34 = arith.constant 2 : index
    %c0_35 = arith.constant 0 : index
    %c0_36 = arith.constant 0 : index
    %50 = vector.load %arg4[%c2_34, %c0_35, %c0_36] : memref<5x128x256xbf16, #tpu.memory_space<vmem>>, vector<1x128x256xbf16>
    %51 = vector.shape_cast %50 : vector<1x128x256xbf16> to vector<128x256xbf16>
    %cst_37 = arith.constant dense<0.000000e+00> : vector<512x256xf32>
    %52 = tpu.matmul %49, %51, %cst_37 {dimension_numbers = #tpu.dot_dimension_numbers<[1], [0], [0], [1], [0, 0, 1, 1], [], []>} : vector<512x128xbf16>, vector<128x256xbf16>, vector<512x256xf32> -> vector<512x256xf32>
    %53 = arith.addf %48, %52 : vector<512x256xf32>
    %54 = vector.extract_strided_slice %37 {offsets = [192, 0], sizes = [512, 128], strides = [1, 1]} : vector<768x128xbf16> to vector<512x128xbf16>
    %c3_38 = arith.constant 3 : index
    %c0_39 = arith.constant 0 : index
    %c0_40 = arith.constant 0 : index
    %55 = vector.load %arg4[%c3_38, %c0_39, %c0_40] : memref<5x128x256xbf16, #tpu.memory_space<vmem>>, vector<1x128x256xbf16>
    %56 = vector.shape_cast %55 : vector<1x128x256xbf16> to vector<128x256xbf16>
    %cst_41 = arith.constant dense<0.000000e+00> : vector<512x256xf32>
    %57 = tpu.matmul %54, %56, %cst_41 {dimension_numbers = #tpu.dot_dimension_numbers<[1], [0], [0], [1], [0, 0, 1, 1], [], []>} : vector<512x128xbf16>, vector<128x256xbf16>, vector<512x256xf32> -> vector<512x256xf32>
    %58 = arith.addf %53, %57 : vector<512x256xf32>
    %59 = vector.extract_strided_slice %37 {offsets = [256, 0], sizes = [512, 128], strides = [1, 1]} : vector<768x128xbf16> to vector<512x128xbf16>
    %c4_42 = arith.constant 4 : index
    %c0_43 = arith.constant 0 : index
    %c0_44 = arith.constant 0 : index
    %60 = vector.load %arg4[%c4_42, %c0_43, %c0_44] : memref<5x128x256xbf16, #tpu.memory_space<vmem>>, vector<1x128x256xbf16>
    %61 = vector.shape_cast %60 : vector<1x128x256xbf16> to vector<128x256xbf16>
    %cst_45 = arith.constant dense<0.000000e+00> : vector<512x256xf32>
    %62 = tpu.matmul %59, %61, %cst_45 {dimension_numbers = #tpu.dot_dimension_numbers<[1], [0], [0], [1], [0, 0, 1, 1], [], []>} : vector<512x128xbf16>, vector<128x256xbf16>, vector<512x256xf32> -> vector<512x256xf32>
    %63 = arith.addf %58, %62 : vector<512x256xf32>
    %64 = vector.extract_strided_slice %63 {offsets = [0, 0], sizes = [512, 128], strides = [1, 1]} : vector<512x256xf32> to vector<512x128xf32>
    %65 = vector.extract_strided_slice %63 {offsets = [0, 128], sizes = [512, 128], strides = [1, 1]} : vector<512x256xf32> to vector<512x128xf32>
    %66 = arith.maximumf %64, %65 : vector<512x128xf32>
    %c0_46 = arith.constant 0 : index
    %c0_47 = arith.constant 0 : index
    %67 = vector.load %arg5[%c0_46, %c0_47] : memref<1x128xf32, #tpu.memory_space<vmem>>, vector<1x128xf32>
    %68 = vector.broadcast %67 : vector<1x128xf32> to vector<512x128xf32>
    %69 = arith.addf %66, %68 : vector<512x128xf32>
    %70 = vector.shape_cast %69 : vector<512x128xf32> to vector<4x2x64x128xf32>
    %cst_48 = arith.constant dense<0xFF800000> : vector<4x64x128xf32>
    %71 = vector.multi_reduction <maximumf>, %70, %cst_48 [1] : vector<4x2x64x128xf32> to vector<4x64x128xf32>
    %72 = vector.shape_cast %71 : vector<4x64x128xf32> to vector<256x128xf32>
    %cst_49 = arith.constant 0.000000e+00 : f32
    %73 = vector.broadcast %cst_49 : f32 to vector<256x128xf32>
    %74 = arith.maximumf %72, %73 : vector<256x128xf32>
    %75 = arith.truncf %74 : vector<256x128xf32> to vector<256x128xbf16>
    %cst_50 = arith.constant 0.000000e+00 : f32
    %76 = vector.broadcast %cst_50 : f32 to vector<64x128xf32>
    %77 = vector.extract_strided_slice %75 {offsets = [0, 0], sizes = [64, 128], strides = [1, 1]} : vector<256x128xbf16> to vector<64x128xbf16>
    %c0_51 = arith.constant 0 : index
    %c0_52 = arith.constant 0 : index
    %c0_53 = arith.constant 0 : index
    %78 = vector.load %arg6[%c0_51, %c0_52, %c0_53] : memref<4x128x128xbf16, #tpu.memory_space<vmem>>, vector<1x128x128xbf16>
    %79 = vector.shape_cast %78 : vector<1x128x128xbf16> to vector<128x128xbf16>
    %cst_54 = arith.constant dense<0.000000e+00> : vector<64x128xf32>
    %80 = tpu.matmul %77, %79, %cst_54 {dimension_numbers = #tpu.dot_dimension_numbers<[1], [0], [0], [1], [0, 0, 1, 1], [], []>} : vector<64x128xbf16>, vector<128x128xbf16>, vector<64x128xf32> -> vector<64x128xf32>
    %81 = arith.addf %76, %80 : vector<64x128xf32>
    %82 = vector.extract_strided_slice %75 {offsets = [64, 0], sizes = [64, 128], strides = [1, 1]} : vector<256x128xbf16> to vector<64x128xbf16>
    %c1_55 = arith.constant 1 : index
    %c0_56 = arith.constant 0 : index
    %c0_57 = arith.constant 0 : index
    %83 = vector.load %arg6[%c1_55, %c0_56, %c0_57] : memref<4x128x128xbf16, #tpu.memory_space<vmem>>, vector<1x128x128xbf16>
    %84 = vector.shape_cast %83 : vector<1x128x128xbf16> to vector<128x128xbf16>
    %cst_58 = arith.constant dense<0.000000e+00> : vector<64x128xf32>
    %85 = tpu.matmul %82, %84, %cst_58 {dimension_numbers = #tpu.dot_dimension_numbers<[1], [0], [0], [1], [0, 0, 1, 1], [], []>} : vector<64x128xbf16>, vector<128x128xbf16>, vector<64x128xf32> -> vector<64x128xf32>
    %86 = arith.addf %81, %85 : vector<64x128xf32>
    %87 = vector.extract_strided_slice %75 {offsets = [128, 0], sizes = [64, 128], strides = [1, 1]} : vector<256x128xbf16> to vector<64x128xbf16>
    %c2_59 = arith.constant 2 : index
    %c0_60 = arith.constant 0 : index
    %c0_61 = arith.constant 0 : index
    %88 = vector.load %arg6[%c2_59, %c0_60, %c0_61] : memref<4x128x128xbf16, #tpu.memory_space<vmem>>, vector<1x128x128xbf16>
    %89 = vector.shape_cast %88 : vector<1x128x128xbf16> to vector<128x128xbf16>
    %cst_62 = arith.constant dense<0.000000e+00> : vector<64x128xf32>
    %90 = tpu.matmul %87, %89, %cst_62 {dimension_numbers = #tpu.dot_dimension_numbers<[1], [0], [0], [1], [0, 0, 1, 1], [], []>} : vector<64x128xbf16>, vector<128x128xbf16>, vector<64x128xf32> -> vector<64x128xf32>
    %91 = arith.addf %86, %90 : vector<64x128xf32>
    %92 = vector.extract_strided_slice %75 {offsets = [192, 0], sizes = [64, 128], strides = [1, 1]} : vector<256x128xbf16> to vector<64x128xbf16>
    %c3_63 = arith.constant 3 : index
    %c0_64 = arith.constant 0 : index
    %c0_65 = arith.constant 0 : index
    %93 = vector.load %arg6[%c3_63, %c0_64, %c0_65] : memref<4x128x128xbf16, #tpu.memory_space<vmem>>, vector<1x128x128xbf16>
    %94 = vector.shape_cast %93 : vector<1x128x128xbf16> to vector<128x128xbf16>
    %cst_66 = arith.constant dense<0.000000e+00> : vector<64x128xf32>
    %95 = tpu.matmul %92, %94, %cst_66 {dimension_numbers = #tpu.dot_dimension_numbers<[1], [0], [0], [1], [0, 0, 1, 1], [], []>} : vector<64x128xbf16>, vector<128x128xbf16>, vector<64x128xf32> -> vector<64x128xf32>
    %96 = arith.addf %91, %95 : vector<64x128xf32>
    %c0_67 = arith.constant 0 : index
    %c0_68 = arith.constant 0 : index
    %97 = vector.load %arg7[%c0_67, %c0_68] : memref<1x128xf32, #tpu.memory_space<vmem>>, vector<1x128xf32>
    %98 = vector.broadcast %97 : vector<1x128xf32> to vector<64x128xf32>
    %99 = arith.addf %96, %98 : vector<64x128xf32>
    %cst_69 = arith.constant 0.000000e+00 : f32
    %100 = vector.broadcast %cst_69 : f32 to vector<64x128xf32>
    %101 = arith.maximumf %99, %100 : vector<64x128xf32>
    %102 = arith.truncf %101 : vector<64x128xf32> to vector<64x128xbf16>
    %c0_70 = arith.constant 0 : index
    %c0_71 = arith.constant 0 : index
    %103 = vector.load %arg8[%c0_70, %c0_71] : memref<128x128xbf16, #tpu.memory_space<vmem>>, vector<128x128xbf16>
    %cst_72 = arith.constant dense<0.000000e+00> : vector<64x128xf32>
    %104 = tpu.matmul %102, %103, %cst_72 {dimension_numbers = #tpu.dot_dimension_numbers<[1], [0], [0], [1], [0, 0, 1, 1], [], []>} : vector<64x128xbf16>, vector<128x128xbf16>, vector<64x128xf32> -> vector<64x128xf32>
    %c0_73 = arith.constant 0 : index
    %c0_74 = arith.constant 0 : index
    %105 = vector.load %arg9[%c0_73, %c0_74] : memref<1x128xf32, #tpu.memory_space<vmem>>, vector<1x128xf32>
    %106 = vector.broadcast %105 : vector<1x128xf32> to vector<64x128xf32>
    %107 = arith.addf %104, %106 : vector<64x128xf32>
    %cst_75 = arith.constant dense<0xFF800000> : vector<64xf32>
    %108 = vector.multi_reduction <maximumf>, %107, %cst_75 [1] : vector<64x128xf32> to vector<64xf32>
    %109 = vector.shape_cast %108 : vector<64xf32> to vector<64x1xf32>
    %110 = vector.broadcast %109 : vector<64x1xf32> to vector<64x128xf32>
    %111 = arith.subf %107, %110 : vector<64x128xf32>
    %112 = math.exp %111 : vector<64x128xf32>
    %cst_76 = arith.constant dense<0.000000e+00> : vector<64xf32>
    %113 = vector.multi_reduction <add>, %112, %cst_76 [1] : vector<64x128xf32> to vector<64xf32>
    %114 = vector.shape_cast %113 : vector<64xf32> to vector<64x1xf32>
    %115 = math.log %114 : vector<64x1xf32>
    %116 = vector.broadcast %115 : vector<64x1xf32> to vector<64x128xf32>
    %117 = arith.subf %111, %116 : vector<64x128xf32>
    %c0_77 = arith.constant 0 : index
    %c0_78 = arith.constant 0 : index
    %118 = vector.load %arg10[%c0_77, %c0_78] : memref<64x128xf32, #tpu.memory_space<vmem>>, vector<64x128xf32>
    tpu.vector_store %arg10[%c0_77, %c0_78], %117 {strides = array<i32>} : memref<64x128xf32, #tpu.memory_space<vmem>>, vector<64x128xf32>,
    return
  }
  func.func @transform_0(%arg0: i32) -> (i32, i32) {
    %c0_i32 = arith.constant 0 : i32
    %c0_i32_0 = arith.constant 0 : i32
    return %arg0, %c0_i32 : i32, i32
  }
  func.func @transform_1(%arg0: i32) -> (i32, i32, i32) {
    %c0_i32 = arith.constant 0 : i32
    %c0_i32_0 = arith.constant 0 : i32
    %c0_i32_1 = arith.constant 0 : i32
    %c0_i32_2 = arith.constant 0 : i32
    return %c0_i32, %c0_i32_0, %c0_i32_1 : i32, i32, i32
  }
  func.func @transform_2(%arg0: i32) -> (i32, i32) {
    %c0_i32 = arith.constant 0 : i32
    %c0_i32_0 = arith.constant 0 : i32
    %c0_i32_1 = arith.constant 0 : i32
    return %c0_i32, %c0_i32_0 : i32, i32
  }
  func.func @transform_3(%arg0: i32) -> (i32, i32, i32) {
    %c0_i32 = arith.constant 0 : i32
    %c0_i32_0 = arith.constant 0 : i32
    %c0_i32_1 = arith.constant 0 : i32
    %c0_i32_2 = arith.constant 0 : i32
    return %c0_i32, %c0_i32_0, %c0_i32_1 : i32, i32, i32
  }
  func.func @transform_4(%arg0: i32) -> (i32, i32) {
    %c0_i32 = arith.constant 0 : i32
    %c0_i32_0 = arith.constant 0 : i32
    %c0_i32_1 = arith.constant 0 : i32
    return %c0_i32, %c0_i32_0 : i32, i32
  }
  func.func @transform_5(%arg0: i32) -> (i32, i32, i32) {
    %c0_i32 = arith.constant 0 : i32
    %c0_i32_0 = arith.constant 0 : i32
    %c0_i32_1 = arith.constant 0 : i32
    %c0_i32_2 = arith.constant 0 : i32
    return %c0_i32, %c0_i32_0, %c0_i32_1 : i32, i32, i32
  }
  func.func @transform_6(%arg0: i32) -> (i32, i32) {
    %c0_i32 = arith.constant 0 : i32
    %c0_i32_0 = arith.constant 0 : i32
    %c0_i32_1 = arith.constant 0 : i32
    return %c0_i32, %c0_i32_0 : i32, i32
  }
  func.func @transform_7(%arg0: i32) -> (i32, i32) {
    %c0_i32 = arith.constant 0 : i32
    %c0_i32_0 = arith.constant 0 : i32
    %c0_i32_1 = arith.constant 0 : i32
    return %c0_i32, %c0_i32_0 : i32, i32
  }
  func.func @transform_8(%arg0: i32) -> (i32, i32) {
    %c0_i32 = arith.constant 0 : i32
    %c0_i32_0 = arith.constant 0 : i32
    %c0_i32_1 = arith.constant 0 : i32
    return %c0_i32, %c0_i32_0 : i32, i32
  }
  func.func @transform_9(%arg0: i32) -> (i32, i32) {
    %c0_i32 = arith.constant 0 : i32
    %c0_i32_0 = arith.constant 0 : i32
    return %arg0, %c0_i32 : i32, i32
  }
}

</mosaic_0001>

<llo_original>
// kernel: net_forward.1
$region0: #{net_forward.1}
  #allocation0 [shape = 'u32[]', space=smem, size = 0x4, offset = 0x4, fixed_abs, tag = 'smem constant byte address 0x4 - core index']
  #allocation1 [shape = 'u32[72,128]{1,0:T(1,128)}', space=vmem, size = 0x9000, scoped, tag = 'internal scratch']
  %s0 = inlined_call_operand.vmem [shape: bf16[1792,28], index: 0, kind: input, shape index: {}]
  %s1 = inlined_call_operand.vmem [shape: bf16[5,28,256], index: 1, kind: input, shape index: {}]
  %s2 = inlined_call_operand.vmem [shape: f32[1,128], index: 2, kind: input, shape index: {}]
  %s3 = inlined_call_operand.vmem [shape: bf16[5,128,256], index: 3, kind: input, shape index: {}]
  %s4 = inlined_call_operand.vmem [shape: f32[1,128], index: 4, kind: input, shape index: {}]
  %s5 = inlined_call_operand.vmem [shape: bf16[4,128,128], index: 5, kind: input, shape index: {}]
  %s6 = inlined_call_operand.vmem [shape: f32[1,128], index: 6, kind: input, shape index: {}]
  %s7 = inlined_call_operand.vmem [shape: bf16[128,128], index: 7, kind: input, shape index: {}]
  %s8 = inlined_call_operand.vmem [shape: f32[1,128], index: 8, kind: input, shape index: {}]
  %s9 = inlined_call_operand.vmem [shape: f32[64,128], index: 9, kind: output, shape index: {}]
  %s10 = sld [smem:[#allocation0]]
  $region46: #{net_forward.1} parent=0
    _
  %s12 = ssub.s32 1, %s10
  %s13 = scalar_select 0, %s12, %s10
  // Predicated region
  $region2: #{net_forward.1} parent=0 // pred_check
    _
  $region3: #{net_forward.1} parent=0 // pred_check_branch
    %15 = sbr.rel (0) target = $region5
  $region4: #{net_forward.1} parent=0 // pred_region
    _
  $region5: #{net_forward.1} parent=0 // pred_fallthru
    _
  // Predicated region
  $region6: #{net_forward.1} parent=0 // pred_check
    _
  $region7: #{net_forward.1} parent=0 // pred_check_branch
    %17 = sbr.rel (0) target = $region9
  $region8: #{net_forward.1} parent=0 // pred_region
    _
  $region9: #{net_forward.1} parent=0 // pred_fallthru
    _
  // Predicated region
  $region10: #{net_forward.1} parent=0 // pred_check
    _
  $region11: #{net_forward.1} parent=0 // pred_check_branch
    %19 = sbr.rel (0) target = $region13
  $region12: #{net_forward.1} parent=0 // pred_region
    _
  $region13: #{net_forward.1} parent=0 // pred_fallthru
    _
  // Predicated region
  $region14: #{net_forward.1} parent=0 // pred_check
    _
  $region15: #{net_forward.1} parent=0 // pred_check_branch
    %21 = sbr.rel (0) target = $region17
  $region16: #{net_forward.1} parent=0 // pred_region
    _
  $region17: #{net_forward.1} parent=0 // pred_fallthru
    _
  // Predicated region
  $region18: #{net_forward.1} parent=0 // pred_check
    _
  $region19: #{net_forward.1} parent=0 // pred_check_branch
    %23 = sbr.rel (0) target = $region21
  $region20: #{net_forward.1} parent=0 // pred_region
    _
  $region21: #{net_forward.1} parent=0 // pred_fallthru
    _
  // Predicated region
  $region22: #{net_forward.1} parent=0 // pred_check
    _
  $region23: #{net_forward.1} parent=0 // pred_check_branch
    %25 = sbr.rel (0) target = $region25
  $region24: #{net_forward.1} parent=0 // pred_region
    _
  $region25: #{net_forward.1} parent=0 // pred_fallthru
    _
  // Predicated region
  $region26: #{net_forward.1} parent=0 // pred_check
    _
  $region27: #{net_forward.1} parent=0 // pred_check_branch
    %27 = sbr.rel (0) target = $region29
  $region28: #{net_forward.1} parent=0 // pred_region
    _
  $region29: #{net_forward.1} parent=0 // pred_fallthru
    _
  // Predicated region
  $region30: #{net_forward.1} parent=0 // pred_check
    _
  $region31: #{net_forward.1} parent=0 // pred_check_branch
    %29 = sbr.rel (0) target = $region33
  $region32: #{net_forward.1} parent=0 // pred_region
    _
  $region33: #{net_forward.1} parent=0 // pred_fallthru
    _
  // Predicated region
  $region34: #{net_forward.1} parent=0 // pred_check
    _
  $region35: #{net_forward.1} parent=0 // pred_check_branch
    %31 = sbr.rel (0) target = $region37
  $region36: #{net_forward.1} parent=0 // pred_region
    _
  $region37: #{net_forward.1} parent=0 // pred_fallthru
    _
  %v33 = vld [vmem:[%s0] sm:$0xf]
  %v34 = vld [vmem:[%s0 + $0x4] sm:$0xf]
  %v35 = vld [vmem:[%s0 + $0x8] sm:$0xf]
  %v36 = vld [vmem:[%s0 + $0xc] sm:$0xf]
  %v37 = vld [vmem:[%s0 + $0x10] sm:$0xf]
  %v38 = vld [vmem:[%s0 + $0x14] sm:$0xf]
  %v39 = vld [vmem:[%s0 + $0x18] sm:$0xf]
  %v40 = vld [vmem:[%s0 + $0x1c] sm:$0xf]
  %v41 = vld [vmem:[%s0 + $0x20] sm:$0xf]
  %v42 = vld [vmem:[%s0 + $0x24] sm:$0xf]
  %v43 = vld [vmem:[%s0 + $0x28] sm:$0xf]
  %v44 = vld [vmem:[%s0 + $0x2c] sm:$0xf]
  %v45 = vld [vmem:[%s0 + $0x30] sm:$0xf]
  %v46 = vld [vmem:[%s0 + $0x34] sm:$0xf]
  %v47 = vld [vmem:[%s0 + $0x38] sm:$0xf]
  %v48 = vld [vmem:[%s0 + $0x3c] sm:$0xf]
  %v49 = vld [vmem:[%s0 + $0x40] sm:$0xf]
  %v50 = vld [vmem:[%s0 + $0x44] sm:$0xf]
  %v51 = vld [vmem:[%s0 + $0x48] sm:$0xf]
  %v52 = vld [vmem:[%s0 + $0x4c] sm:$0xf]
  %v53 = vld [vmem:[%s0 + $0x50] sm:$0xf]
  %v54 = vld [vmem:[%s0 + $0x54] sm:$0xf]
  %v55 = vld [vmem:[%s0 + $0x58] sm:$0xf]
  %v56 = vld [vmem:[%s0 + $0x5c] sm:$0xf]
  %v57 = vld [vmem:[%s0 + $0x60] sm:$0xf]
  %v58 = vld [vmem:[%s0 + $0x64] sm:$0xf]
  %v59 = vld [vmem:[%s0 + $0x68] sm:$0xf]
  %v60 = vld [vmem:[%s0 + $0x6c] sm:$0xf]
  %v61 = vld [vmem:[%s0 + $0x70] sm:$0xf]
  %v62 = vld [vmem:[%s0 + $0x74] sm:$0xf]
  %v63 = vld [vmem:[%s0 + $0x78] sm:$0xf]
  %v64 = vld [vmem:[%s0 + $0x7c] sm:$0xf]
  %v65 = vld [vmem:[%s0 + $0x80] sm:$0xf]
  %v66 = vld [vmem:[%s0 + $0x84] sm:$0xf]
  %v67 = vld [vmem:[%s0 + $0x88] sm:$0xf]
  %v68 = vld [vmem:[%s0 + $0x8c] sm:$0xf]
  %v69 = vld [vmem:[%s0 + $0x90] sm:$0xf]
  %v70 = vld [vmem:[%s0 + $0x94] sm:$0xf]
  %v71 = vld [vmem:[%s0 + $0x98] sm:$0xf]
  %v72 = vld [vmem:[%s0 + $0x9c] sm:$0xf]
  %v73 = vld [vmem:[%s0 + $0xa0] sm:$0xf]
  %v74 = vld [vmem:[%s0 + $0xa4] sm:$0xf]
  %v75 = vld [vmem:[%s0 + $0xa8] sm:$0xf]
  %v76 = vld [vmem:[%s0 + $0xac] sm:$0xf]
  %v77 = vld [vmem:[%s0 + $0xb0] sm:$0xf]
  %v78 = vld [vmem:[%s0 + $0xb4] sm:$0xf]
  %v79 = vld [vmem:[%s0 + $0xb8] sm:$0xf]
  %v80 = vld [vmem:[%s0 + $0xbc] sm:$0xf]
  %v81 = vld [vmem:[%s0 + $0xc0] sm:$0xf]
  %v82 = vld [vmem:[%s0 + $0xc4] sm:$0xf]
  %v83 = vld [vmem:[%s0 + $0xc8] sm:$0xf]
  %v84 = vld [vmem:[%s0 + $0xcc] sm:$0xf]
  %v85 = vld [vmem:[%s0 + $0xd0] sm:$0xf]
  %v86 = vld [vmem:[%s0 + $0xd4] sm:$0xf]
  %v87 = vld [vmem:[%s0 + $0xd8] sm:$0xf]
  %v88 = vld [vmem:[%s0 + $0xdc] sm:$0xf]
  %v89 = vld [vmem:[%s0 + $0xe0] sm:$0xf]
  %v90 = vld [vmem:[%s0 + $0xe4] sm:$0xf]
  %v91 = vld [vmem:[%s0 + $0xe8] sm:$0xf]
  %v92 = vld [vmem:[%s0 + $0xec] sm:$0xf]
  %v93 = vld [vmem:[%s0 + $0xf0] sm:$0xf]
  %v94 = vld [vmem:[%s0 + $0xf4] sm:$0xf]
  %v95 = vld [vmem:[%s0 + $0xf8] sm:$0xf]
  %v96 = vld [vmem:[%s0 + $0xfc] sm:$0xf]
  %v97 = vld [vmem:[%s0 + $0x100] sm:$0xf]
  %v98 = vld [vmem:[%s0 + $0x104] sm:$0xf]
  %v99 = vld [vmem:[%s0 + $0x108] sm:$0xf]
  %v100 = vld [vmem:[%s0 + $0x10c] sm:$0xf]
  %v101 = vld [vmem:[%s0 + $0x110] sm:$0xf]
  %v102 = vld [vmem:[%s0 + $0x114] sm:$0xf]
  %v103 = vld [vmem:[%s0 + $0x118] sm:$0xf]
  %v104 = vld [vmem:[%s0 + $0x11c] sm:$0xf]
  %v105 = vld [vmem:[%s0 + $0x120] sm:$0xf]
  %v106 = vld [vmem:[%s0 + $0x124] sm:$0xf]
  %v107 = vld [vmem:[%s0 + $0x128] sm:$0xf]
  %v108 = vld [vmem:[%s0 + $0x12c] sm:$0xf]
  %v109 = vld [vmem:[%s0 + $0x130] sm:$0xf]
  %v110 = vld [vmem:[%s0 + $0x134] sm:$0xf]
  %v111 = vld [vmem:[%s0 + $0x138] sm:$0xf]
  %v112 = vld [vmem:[%s0 + $0x13c] sm:$0xf]
  %v113 = vld [vmem:[%s0 + $0x140] sm:$0xf]
  %v114 = vld [vmem:[%s0 + $0x144] sm:$0xf]
  %v115 = vld [vmem:[%s0 + $0x148] sm:$0xf]
  %v116 = vld [vmem:[%s0 + $0x14c] sm:$0xf]
  %v117 = vld [vmem:[%s0 + $0x150] sm:$0xf]
  %v118 = vld [vmem:[%s0 + $0x154] sm:$0xf]
  %v119 = vld [vmem:[%s0 + $0x158] sm:$0xf]
  %v120 = vld [vmem:[%s0 + $0x15c] sm:$0xf]
  %v121 = vld [vmem:[%s0 + $0x160] sm:$0xf]
  %v122 = vld [vmem:[%s0 + $0x164] sm:$0xf]
  %v123 = vld [vmem:[%s0 + $0x168] sm:$0xf]
  %v124 = vld [vmem:[%s0 + $0x16c] sm:$0xf]
  %v125 = vld [vmem:[%s0 + $0x170] sm:$0xf]
  %v126 = vld [vmem:[%s0 + $0x174] sm:$0xf]
  %v127 = vld [vmem:[%s0 + $0x178] sm:$0xf]
  %v128 = vld [vmem:[%s0 + $0x17c] sm:$0xf]
  %v129 = vld [vmem:[%s0 + $0x180] sm:$0xf]
  %v130 = vld [vmem:[%s0 + $0x184] sm:$0xf]
  %v131 = vld [vmem:[%s0 + $0x188] sm:$0xf]
  %v132 = vld [vmem:[%s0 + $0x18c] sm:$0xf]
  %v133 = vld [vmem:[%s0 + $0x190] sm:$0xf]
  %v134 = vld [vmem:[%s0 + $0x194] sm:$0xf]
  %v135 = vld [vmem:[%s0 + $0x198] sm:$0xf]
  %v136 = vld [vmem:[%s0 + $0x19c] sm:$0xf]
  %v137 = vld [vmem:[%s0 + $0x1a0] sm:$0xf]
  %v138 = vld [vmem:[%s0 + $0x1a4] sm:$0xf]
  %v139 = vld [vmem:[%s0 + $0x1a8] sm:$0xf]
  %v140 = vld [vmem:[%s0 + $0x1ac] sm:$0xf]
  %v141 = vld [vmem:[%s0 + $0x1b0] sm:$0xf]
  %v142 = vld [vmem:[%s0 + $0x1b4] sm:$0xf]
  %v143 = vld [vmem:[%s0 + $0x1b8] sm:$0xf]
  %v144 = vld [vmem:[%s0 + $0x1bc] sm:$0xf]
  %v145 = vld [vmem:[%s0 + $0x1c0] sm:$0xf]
  %v146 = vld [vmem:[%s0 + $0x1c4] sm:$0xf]
  %v147 = vld [vmem:[%s0 + $0x1c8] sm:$0xf]
  %v148 = vld [vmem:[%s0 + $0x1cc] sm:$0xf]
  %v149 = vld [vmem:[%s0 + $0x1d0] sm:$0xf]
  %v150 = vld [vmem:[%s0 + $0x1d4] sm:$0xf]
  %v151 = vld [vmem:[%s0 + $0x1d8] sm:$0xf]
  %v152 = vld [vmem:[%s0 + $0x1dc] sm:$0xf]
  %v153 = vld [vmem:[%s0 + $0x1e0] sm:$0xf]
  %v154 = vld [vmem:[%s0 + $0x1e4] sm:$0xf]
  %v155 = vld [vmem:[%s0 + $0x1e8] sm:$0xf]
  %v156 = vld [vmem:[%s0 + $0x1ec] sm:$0xf]
  %v157 = vld [vmem:[%s0 + $0x1f0] sm:$0xf]
  %v158 = vld [vmem:[%s0 + $0x1f4] sm:$0xf]
  %v159 = vld [vmem:[%s0 + $0x1f8] sm:$0xf]
  %v160 = vld [vmem:[%s0 + $0x1fc] sm:$0xf]
  %v161 = vld [vmem:[%s0 + $0x200] sm:$0xf]
  %v162 = vld [vmem:[%s0 + $0x204] sm:$0xf]
  %v163 = vld [vmem:[%s0 + $0x208] sm:$0xf]
  %v164 = vld [vmem:[%s0 + $0x20c] sm:$0xf]
  %v165 = vld [vmem:[%s0 + $0x210] sm:$0xf]
  %v166 = vld [vmem:[%s0 + $0x214] sm:$0xf]
  %v167 = vld [vmem:[%s0 + $0x218] sm:$0xf]
  %v168 = vld [vmem:[%s0 + $0x21c] sm:$0xf]
  %v169 = vld [vmem:[%s0 + $0x220] sm:$0xf]
  %v170 = vld [vmem:[%s0 + $0x224] sm:$0xf]
  %v171 = vld [vmem:[%s0 + $0x228] sm:$0xf]
  %v172 = vld [vmem:[%s0 + $0x22c] sm:$0xf]
  %v173 = vld [vmem:[%s0 + $0x230] sm:$0xf]
  %v174 = vld [vmem:[%s0 + $0x234] sm:$0xf]
  %v175 = vld [vmem:[%s0 + $0x238] sm:$0xf]
  %v176 = vld [vmem:[%s0 + $0x23c] sm:$0xf]
  %v177 = vld [vmem:[%s0 + $0x240] sm:$0xf]
  %v178 = vld [vmem:[%s0 + $0x244] sm:$0xf]
  %v179 = vld [vmem:[%s0 + $0x248] sm:$0xf]
  %v180 = vld [vmem:[%s0 + $0x24c] sm:$0xf]
  %v181 = vld [vmem:[%s0 + $0x250] sm:$0xf]
  %v182 = vld [vmem:[%s0 + $0x254] sm:$0xf]
  %v183 = vld [vmem:[%s0 + $0x258] sm:$0xf]
  %v184 = vld [vmem:[%s0 + $0x25c] sm:$0xf]
  %v185 = vld [vmem:[%s0 + $0x260] sm:$0xf]
  %v186 = vld [vmem:[%s0 + $0x264] sm:$0xf]
  %v187 = vld [vmem:[%s0 + $0x268] sm:$0xf]
  %v188 = vld [vmem:[%s0 + $0x26c] sm:$0xf]
  %v189 = vld [vmem:[%s0 + $0x270] sm:$0xf]
  %v190 = vld [vmem:[%s0 + $0x274] sm:$0xf]
  %v191 = vld [vmem:[%s0 + $0x278] sm:$0xf]
  %v192 = vld [vmem:[%s0 + $0x27c] sm:$0xf]
  %v193 = vld [vmem:[%s0 + $0x280] sm:$0xf]
  %v194 = vld [vmem:[%s0 + $0x284] sm:$0xf]
  %v195 = vld [vmem:[%s0 + $0x288] sm:$0xf]
  %v196 = vld [vmem:[%s0 + $0x28c] sm:$0xf]
  %v197 = vld [vmem:[%s0 + $0x290] sm:$0xf]
  %v198 = vld [vmem:[%s0 + $0x294] sm:$0xf]
  %v199 = vld [vmem:[%s0 + $0x298] sm:$0xf]
  %v200 = vld [vmem:[%s0 + $0x29c] sm:$0xf]
  %v201 = vld [vmem:[%s0 + $0x2a0] sm:$0xf]
  %v202 = vld [vmem:[%s0 + $0x2a4] sm:$0xf]
  %v203 = vld [vmem:[%s0 + $0x2a8] sm:$0xf]
  %v204 = vld [vmem:[%s0 + $0x2ac] sm:$0xf]
  %v205 = vld [vmem:[%s0 + $0x2b0] sm:$0xf]
  %v206 = vld [vmem:[%s0 + $0x2b4] sm:$0xf]
  %v207 = vld [vmem:[%s0 + $0x2b8] sm:$0xf]
  %v208 = vld [vmem:[%s0 + $0x2bc] sm:$0xf]
  %v209 = vld [vmem:[%s0 + $0x2c0] sm:$0xf]
  %v210 = vld [vmem:[%s0 + $0x2c4] sm:$0xf]
  %v211 = vld [vmem:[%s0 + $0x2c8] sm:$0xf]
  %v212 = vld [vmem:[%s0 + $0x2cc] sm:$0xf]
  %v213 = vld [vmem:[%s0 + $0x2d0] sm:$0xf]
  %v214 = vld [vmem:[%s0 + $0x2d4] sm:$0xf]
  %v215 = vld [vmem:[%s0 + $0x2d8] sm:$0xf]
  %v216 = vld [vmem:[%s0 + $0x2dc] sm:$0xf]
  %v217 = vld [vmem:[%s0 + $0x2e0] sm:$0xf]
  %v218 = vld [vmem:[%s0 + $0x2e4] sm:$0xf]
  %v219 = vld [vmem:[%s0 + $0x2e8] sm:$0xf]
  %v220 = vld [vmem:[%s0 + $0x2ec] sm:$0xf]
  %v221 = vld [vmem:[%s0 + $0x2f0] sm:$0xf]
  %v222 = vld [vmem:[%s0 + $0x2f4] sm:$0xf]
  %v223 = vld [vmem:[%s0 + $0x2f8] sm:$0xf]
  %v224 = vld [vmem:[%s0 + $0x2fc] sm:$0xf]
  %v225 = vld [vmem:[%s1] sm:$0xff]
  %v226 = vld [vmem:[%s1 + $0x8] sm:$0xff]
  %v227 = vld [vmem:[%s1 + $0x10] sm:$0xff]
  %v228 = vld [vmem:[%s1 + $0x18] sm:$0x33]
  %v229 = vld [vmem:[%s0 + $0x300] sm:$0xf]
  %v230 = vld [vmem:[%s0 + $0x304] sm:$0xf]
  %v231 = vld [vmem:[%s0 + $0x308] sm:$0xf]
  %v232 = vld [vmem:[%s0 + $0x30c] sm:$0xf]
  %v233 = vld [vmem:[%s0 + $0x310] sm:$0xf]
  %v234 = vld [vmem:[%s0 + $0x314] sm:$0xf]
  %v235 = vld [vmem:[%s0 + $0x318] sm:$0xf]
  %v236 = vld [vmem:[%s0 + $0x31c] sm:$0xf]
  %s237 = scalar_lea.vmem %s1, 32
  %v238 = vld [vmem:[%s237] sm:$0xff]
  %v239 = vld [vmem:[%s237 + $0x8] sm:$0xff]
  %v240 = vld [vmem:[%s237 + $0x10] sm:$0xff]
  %v241 = vld [vmem:[%s237 + $0x18] sm:$0x33]
  %v434 = vunpack.c.l.b16 %v41
  %v435 = vunpack.c.l.b16 %v42
  %v436 = vunpack.c.l.b16 %v43
  %v437 = vunpack.c.l.b16 %v44
  %v438 = vunpack.c.l.b16 %v45
  %v439 = vunpack.c.l.b16 %v46
  %v440 = vunpack.c.l.b16 %v47
  %v441 = vunpack.c.l.b16 %v48
  %v442 = vunpack.c.l.b16 %v49
  %v443 = vunpack.c.l.b16 %v50
  %v444 = vunpack.c.l.b16 %v51
  %v445 = vunpack.c.l.b16 %v52
  %v446 = vunpack.c.l.b16 %v53
  %v447 = vunpack.c.l.b16 %v54
  %v448 = vunpack.c.l.b16 %v55
  %v449 = vunpack.c.l.b16 %v56
  %v450 = vunpack.c.l.b16 %v57
  %v451 = vunpack.c.l.b16 %v58
  %v452 = vunpack.c.l.b16 %v59
  %v453 = vunpack.c.l.b16 %v60
  %v454 = vunpack.c.l.b16 %v61
  %v455 = vunpack.c.l.b16 %v62
  %v456 = vunpack.c.l.b16 %v63
  %v457 = vunpack.c.l.b16 %v64
  %v458 = vunpack.c.l.b16 %v65
  %v459 = vunpack.c.l.b16 %v66
  %v460 = vunpack.c.l.b16 %v67
  %v461 = vunpack.c.l.b16 %v68
  %v462 = vunpack.c.l.b16 %v69
  %v463 = vunpack.c.l.b16 %v70
  %v464 = vunpack.c.l.b16 %v71
  %v465 = vunpack.c.l.b16 %v72
  %v466 = vunpack.c.l.b16 %v73
  %v467 = vunpack.c.l.b16 %v74
  %v468 = vunpack.c.l.b16 %v75
  %v469 = vunpack.c.l.b16 %v76
  %v470 = vunpack.c.l.b16 %v77
  %v471 = vunpack.c.l.b16 %v78
  %v472 = vunpack.c.l.b16 %v79
  %v473 = vunpack.c.l.b16 %v80
  %v474 = vunpack.c.l.b16 %v81
  %v475 = vunpack.c.l.b16 %v82
  %v476 = vunpack.c.l.b16 %v83
  %v477 = vunpack.c.l.b16 %v84
  %v478 = vunpack.c.l.b16 %v85
  %v479 = vunpack.c.l.b16 %v86
  %v480 = vunpack.c.l.b16 %v87
  %v481 = vunpack.c.l.b16 %v88
  %v482 = vunpack.c.l.b16 %v89
  %v483 = vunpack.c.l.b16 %v90
  %v484 = vunpack.c.l.b16 %v91
  %v485 = vunpack.c.l.b16 %v92
  %v486 = vunpack.c.l.b16 %v93
  %v487 = vunpack.c.l.b16 %v94
  %v488 = vunpack.c.l.b16 %v95
  %v489 = vunpack.c.l.b16 %v96
  %v490 = vunpack.c.l.b16 %v97
  %v491 = vunpack.c.l.b16 %v98
  %v492 = vunpack.c.l.b16 %v99
  %v493 = vunpack.c.l.b16 %v100
  %v494 = vunpack.c.l.b16 %v101
  %v495 = vunpack.c.l.b16 %v102
  %v496 = vunpack.c.l.b16 %v103
  %v497 = vunpack.c.l.b16 %v104
  %v498 = vunpack.c.l.b16 %v105
  %v499 = vunpack.c.l.b16 %v106
  %v500 = vunpack.c.l.b16 %v107
  %v501 = vunpack.c.l.b16 %v108
  %v502 = vunpack.c.l.b16 %v109
  %v503 = vunpack.c.l.b16 %v110
  %v504 = vunpack.c.l.b16 %v111
  %v505 = vunpack.c.l.b16 %v112
  %v506 = vunpack.c.l.b16 %v113
  %v507 = vunpack.c.l.b16 %v114
  %v508 = vunpack.c.l.b16 %v115
  %v509 = vunpack.c.l.b16 %v116
  %v510 = vunpack.c.l.b16 %v117
  %v511 = vunpack.c.l.b16 %v118
  %v512 = vunpack.c.l.b16 %v119
  %v513 = vunpack.c.l.b16 %v120
  %v514 = vunpack.c.l.b16 %v121
  %v515 = vunpack.c.l.b16 %v122
  %v516 = vunpack.c.l.b16 %v123
  %v517 = vunpack.c.l.b16 %v124
  %v518 = vunpack.c.l.b16 %v125
  %v519 = vunpack.c.l.b16 %v126
  %v520 = vunpack.c.l.b16 %v127
  %v521 = vunpack.c.l.b16 %v128
  %v522 = vunpack.c.l.b16 %v129
  %v523 = vunpack.c.l.b16 %v130
  %v524 = vunpack.c.l.b16 %v131
  %v525 = vunpack.c.l.b16 %v132
  %v526 = vunpack.c.l.b16 %v133
  %v527 = vunpack.c.l.b16 %v134
  %v528 = vunpack.c.l.b16 %v135
  %v529 = vunpack.c.l.b16 %v136
  %v530 = vunpack.c.l.b16 %v137
  %v531 = vunpack.c.l.b16 %v138
  %v532 = vunpack.c.l.b16 %v139
  %v533 = vunpack.c.l.b16 %v140
  %v534 = vunpack.c.l.b16 %v141
  %v535 = vunpack.c.l.b16 %v142
  %v536 = vunpack.c.l.b16 %v143
  %v537 = vunpack.c.l.b16 %v144
  %v538 = vunpack.c.l.b16 %v145
  %v539 = vunpack.c.l.b16 %v146
  %v540 = vunpack.c.l.b16 %v147
  %v541 = vunpack.c.l.b16 %v148
  %v542 = vunpack.c.l.b16 %v149
  %v543 = vunpack.c.l.b16 %v150
  %v544 = vunpack.c.l.b16 %v151
  %v545 = vunpack.c.l.b16 %v152
  %v546 = vunpack.c.l.b16 %v153
  %v547 = vunpack.c.l.b16 %v154
  %v548 = vunpack.c.l.b16 %v155
  %v549 = vunpack.c.l.b16 %v156
  %v550 = vunpack.c.l.b16 %v157
  %v551 = vunpack.c.l.b16 %v158
  %v552 = vunpack.c.l.b16 %v159
  %v553 = vunpack.c.l.b16 %v160
  %v554 = vunpack.c.l.b16 %v161
  %v555 = vunpack.c.l.b16 %v162
  %v556 = vunpack.c.l.b16 %v163
  %v557 = vunpack.c.l.b16 %v164
  %v558 = vunpack.c.l.b16 %v165
  %v559 = vunpack.c.l.b16 %v166
  %v560 = vunpack.c.l.b16 %v167
  %v561 = vunpack.c.l.b16 %v168
  %v562 = vunpack.c.l.b16 %v169
  %v563 = vunpack.c.l.b16 %v170
  %v564 = vunpack.c.l.b16 %v171
  %v565 = vunpack.c.l.b16 %v172
  %v566 = vunpack.c.l.b16 %v173
  %v567 = vunpack.c.l.b16 %v174
  %v568 = vunpack.c.l.b16 %v175
  %v569 = vunpack.c.l.b16 %v176
  %v570 = vunpack.c.l.b16 %v177
  %v571 = vunpack.c.l.b16 %v178
  %v572 = vunpack.c.l.b16 %v179
  %v573 = vunpack.c.l.b16 %v180
  %v574 = vunpack.c.l.b16 %v181
  %v575 = vunpack.c.l.b16 %v182
  %v576 = vunpack.c.l.b16 %v183
  %v577 = vunpack.c.l.b16 %v184
  %v578 = vunpack.c.l.b16 %v185
  %v579 = vunpack.c.l.b16 %v186
  %v580 = vunpack.c.l.b16 %v187
  %v581 = vunpack.c.l.b16 %v188
  %v582 = vunpack.c.l.b16 %v189
  %v583 = vunpack.c.l.b16 %v190
  %v584 = vunpack.c.l.b16 %v191
  %v585 = vunpack.c.l.b16 %v192
  %v586 = vunpack.c.l.b16 %v193
  %v587 = vunpack.c.l.b16 %v194
  %v588 = vunpack.c.l.b16 %v195
  %v589 = vunpack.c.l.b16 %v196
  %v590 = vunpack.c.l.b16 %v197
  %v591 = vunpack.c.l.b16 %v198
  %v592 = vunpack.c.l.b16 %v199
  %v593 = vunpack.c.l.b16 %v200
  %v594 = vunpack.c.l.b16 %v201
  %v595 = vunpack.c.l.b16 %v202
  %v596 = vunpack.c.l.b16 %v203
  %v597 = vunpack.c.l.b16 %v204
  %v598 = vunpack.c.l.b16 %v205
  %v599 = vunpack.c.l.b16 %v206
  %v600 = vunpack.c.l.b16 %v207
  %v601 = vunpack.c.l.b16 %v208
  %v602 = vunpack.c.l.b16 %v209
  %v603 = vunpack.c.l.b16 %v210
  %v604 = vunpack.c.l.b16 %v211
  %v605 = vunpack.c.l.b16 %v212
  %v606 = vunpack.c.l.b16 %v213
  %v607 = vunpack.c.l.b16 %v214
  %v608 = vunpack.c.l.b16 %v215
  %v609 = vunpack.c.l.b16 %v216
  %v610 = vunpack.c.l.b16 %v217
  %v611 = vunpack.c.l.b16 %v218
  %v612 = vunpack.c.l.b16 %v219
  %v613 = vunpack.c.l.b16 %v220
  %v614 = vunpack.c.l.b16 %v221
  %v615 = vunpack.c.l.b16 %v222
  %v616 = vunpack.c.l.b16 %v223
  %v617 = vunpack.c.l.b16 %v224
  %v618 = vunpack.c.l.b16 %v229
  %v619 = vunpack.c.l.b16 %v230
  %v620 = vunpack.c.l.b16 %v231
  %v621 = vunpack.c.l.b16 %v232
  %v622 = vunpack.c.l.b16 %v233
  %v623 = vunpack.c.l.b16 %v234
  %v624 = vunpack.c.l.b16 %v235
  %v625 = vunpack.c.l.b16 %v236
  %v626 = vpack.c.b16 %v435, %v434
  %v627 = vpack.c.b16 %v437, %v436
  %v628 = vpack.c.b16 %v439, %v438
  %v629 = vpack.c.b16 %v441, %v440
  %v630 = vpack.c.b16 %v443, %v442
  %v631 = vpack.c.b16 %v445, %v444
  %v632 = vpack.c.b16 %v447, %v446
  %v633 = vpack.c.b16 %v449, %v448
  %v634 = vpack.c.b16 %v451, %v450
  %v635 = vpack.c.b16 %v453, %v452
  %v636 = vpack.c.b16 %v455, %v454
  %v637 = vpack.c.b16 %v457, %v456
  %v638 = vpack.c.b16 %v459, %v458
  %v639 = vpack.c.b16 %v461, %v460
  %v640 = vpack.c.b16 %v463, %v462
  %v641 = vpack.c.b16 %v465, %v464
  %v642 = vpack.c.b16 %v467, %v466
  %v643 = vpack.c.b16 %v469, %v468
  %v644 = vpack.c.b16 %v471, %v470
  %v645 = vpack.c.b16 %v473, %v472
  %v646 = vpack.c.b16 %v475, %v474
  %v647 = vpack.c.b16 %v477, %v476
  %v648 = vpack.c.b16 %v479, %v478
  %v649 = vpack.c.b16 %v481, %v480
  %v650 = vpack.c.b16 %v483, %v482
  %v651 = vpack.c.b16 %v485, %v484
  %v652 = vpack.c.b16 %v487, %v486
  %v653 = vpack.c.b16 %v489, %v488
  %v654 = vpack.c.b16 %v491, %v490
  %v655 = vpack.c.b16 %v493, %v492
  %v656 = vpack.c.b16 %v495, %v494
  %v657 = vpack.c.b16 %v497, %v496
  %v658 = vpack.c.b16 %v499, %v498
  %v659 = vpack.c.b16 %v501, %v500
  %v660 = vpack.c.b16 %v503, %v502
  %v661 = vpack.c.b16 %v505, %v504
  %v662 = vpack.c.b16 %v507, %v506
  %v663 = vpack.c.b16 %v509, %v508
  %v664 = vpack.c.b16 %v511, %v510
  %v665 = vpack.c.b16 %v513, %v512
  %v666 = vpack.c.b16 %v515, %v514
  %v667 = vpack.c.b16 %v517, %v516
  %v668 = vpack.c.b16 %v519, %v518
  %v669 = vpack.c.b16 %v521, %v520
  %v670 = vpack.c.b16 %v523, %v522
  %v671 = vpack.c.b16 %v525, %v524
  %v672 = vpack.c.b16 %v527, %v526
  %v673 = vpack.c.b16 %v529, %v528
  %v674 = vpack.c.b16 %v531, %v530
  %v675 = vpack.c.b16 %v533, %v532
  %v676 = vpack.c.b16 %v535, %v534
  %v677 = vpack.c.b16 %v537, %v536
  %v678 = vpack.c.b16 %v539, %v538
  %v679 = vpack.c.b16 %v541, %v540
  %v680 = vpack.c.b16 %v543, %v542
  %v681 = vpack.c.b16 %v545, %v544
  %v682 = vpack.c.b16 %v547, %v546
  %v683 = vpack.c.b16 %v549, %v548
  %v684 = vpack.c.b16 %v551, %v550
  %v685 = vpack.c.b16 %v553, %v552
  %v686 = vpack.c.b16 %v555, %v554
  %v687 = vpack.c.b16 %v557, %v556
  %v688 = vpack.c.b16 %v559, %v558
  %v689 = vpack.c.b16 %v561, %v560
  %v690 = vpack.c.b16 %v563, %v562
  %v691 = vpack.c.b16 %v565, %v564
  %v692 = vpack.c.b16 %v567, %v566
  %v693 = vpack.c.b16 %v569, %v568
  %v694 = vpack.c.b16 %v571, %v570
  %v695 = vpack.c.b16 %v573, %v572
  %v696 = vpack.c.b16 %v575, %v574
  %v697 = vpack.c.b16 %v577, %v576
  %v698 = vpack.c.b16 %v579, %v578
  %v699 = vpack.c.b16 %v581, %v580
  %v700 = vpack.c.b16 %v583, %v582
  %v701 = vpack.c.b16 %v585, %v584
  %v702 = vpack.c.b16 %v587, %v586
  %v703 = vpack.c.b16 %v589, %v588
  %v704 = vpack.c.b16 %v591, %v590
  %v705 = vpack.c.b16 %v593, %v592
  %v706 = vpack.c.b16 %v595, %v594
  %v707 = vpack.c.b16 %v597, %v596
  %v708 = vpack.c.b16 %v599, %v598
  %v709 = vpack.c.b16 %v601, %v600
  %v710 = vpack.c.b16 %v603, %v602
  %v711 = vpack.c.b16 %v605, %v604
  %v712 = vpack.c.b16 %v607, %v606
  %v713 = vpack.c.b16 %v609, %v608
  %v714 = vpack.c.b16 %v611, %v610
  %v715 = vpack.c.b16 %v613, %v612
  %v716 = vpack.c.b16 %v615, %v614
  %v717 = vpack.c.b16 %v617, %v616
  %v718 = vpack.c.b16 %v619, %v618
  %v719 = vpack.c.b16 %v621, %v620
  %v720 = vpack.c.b16 %v623, %v622
  %v721 = vpack.c.b16 %v625, %v624
  %v726 = vunpack.c.l.b16 %v238
  %v727 = vunpack.c.h.b16 %v238
  %v728 = vunpack.c.l.b16 %v239
  %v729 = vunpack.c.h.b16 %v239
  %v730 = vunpack.c.l.b16 %v240
  %v731 = vunpack.c.h.b16 %v240
  %v732 = vunpack.c.l.b16 %v241
  %v733 = vunpack.c.h.b16 %v241
  %v734 = vpack.c.b16 %v728, %v726
  %v735 = vpack.c.b16 %v729, %v727
  %v736 = vpack.c.b16 %v732, %v730
  %v737 = vpack.c.b16 %v733, %v731
  %vm740 = vcmask 228352
  %v742 = vsel %vm740, %v626, 0
  %v745 = vsel %vm740, %v627, 0
  %v748 = vsel %vm740, %v628, 0
  %v751 = vsel %vm740, %v629, 0
  %v754 = vsel %vm740, %v630, 0
  %v757 = vsel %vm740, %v631, 0
  %v760 = vsel %vm740, %v632, 0
  %v763 = vsel %vm740, %v633, 0
  %v766 = vsel %vm740, %v634, 0
  %v769 = vsel %vm740, %v635, 0
  %v772 = vsel %vm740, %v636, 0
  %v775 = vsel %vm740, %v637, 0
  %v778 = vsel %vm740, %v638, 0
  %v781 = vsel %vm740, %v639, 0
  %v784 = vsel %vm740, %v640, 0
  %v787 = vsel %vm740, %v641, 0
  %v790 = vsel %vm740, %v642, 0
  %v793 = vsel %vm740, %v643, 0
  %v796 = vsel %vm740, %v644, 0
  %v799 = vsel %vm740, %v645, 0
  %v802 = vsel %vm740, %v646, 0
  %v805 = vsel %vm740, %v647, 0
  %v808 = vsel %vm740, %v648, 0
  %v811 = vsel %vm740, %v649, 0
  %v814 = vsel %vm740, %v650, 0
  %v817 = vsel %vm740, %v651, 0
  %v820 = vsel %vm740, %v652, 0
  %v823 = vsel %vm740, %v653, 0
  %v826 = vsel %vm740, %v654, 0
  %v829 = vsel %vm740, %v655, 0
  %v832 = vsel %vm740, %v656, 0
  %v835 = vsel %vm740, %v657, 0
  %v838 = vsel %vm740, %v658, 0
  %v841 = vsel %vm740, %v659, 0
  %v844 = vsel %vm740, %v660, 0
  %v847 = vsel %vm740, %v661, 0
  %v850 = vsel %vm740, %v662, 0
  %v853 = vsel %vm740, %v663, 0
  %v856 = vsel %vm740, %v664, 0
  %v859 = vsel %vm740, %v665, 0
  %v862 = vsel %vm740, %v666, 0
  %v865 = vsel %vm740, %v667, 0
  %v868 = vsel %vm740, %v668, 0
  %v871 = vsel %vm740, %v669, 0
  %v874 = vsel %vm740, %v670, 0
  %v877 = vsel %vm740, %v671, 0
  %v880 = vsel %vm740, %v672, 0
  %v883 = vsel %vm740, %v673, 0
  %v886 = vsel %vm740, %v674, 0
  %v889 = vsel %vm740, %v675, 0
  %v892 = vsel %vm740, %v676, 0
  %v895 = vsel %vm740, %v677, 0
  %v898 = vsel %vm740, %v678, 0
  %v901 = vsel %vm740, %v679, 0
  %v904 = vsel %vm740, %v680, 0
  %v907 = vsel %vm740, %v681, 0
  %v910 = vsel %vm740, %v682, 0
  %v913 = vsel %vm740, %v683, 0
  %v916 = vsel %vm740, %v684, 0
  %v919 = vsel %vm740, %v685, 0
  %v922 = vsel %vm740, %v686, 0
  %v925 = vsel %vm740, %v687, 0
  %v928 = vsel %vm740, %v688, 0
  %v931 = vsel %vm740, %v689, 0
  %v934 = vsel %vm740, %v690, 0
  %v937 = vsel %vm740, %v691, 0
  %v940 = vsel %vm740, %v692, 0
  %v943 = vsel %vm740, %v693, 0
  %v946 = vsel %vm740, %v694, 0
  %v949 = vsel %vm740, %v695, 0
  %v952 = vsel %vm740, %v696, 0
  %v955 = vsel %vm740, %v697, 0
  %v958 = vsel %vm740, %v698, 0
  %v961 = vsel %vm740, %v699, 0
  %v964 = vsel %vm740, %v700, 0
  %v967 = vsel %vm740, %v701, 0
  %v970 = vsel %vm740, %v702, 0
  %v973 = vsel %vm740, %v703, 0
  %v976 = vsel %vm740, %v704, 0
  %v979 = vsel %vm740, %v705, 0
  %v982 = vsel %vm740, %v706, 0
  %v985 = vsel %vm740, %v707, 0
  %v988 = vsel %vm740, %v708, 0
  %v991 = vsel %vm740, %v709, 0
  %v994 = vsel %vm740, %v710, 0
  %v997 = vsel %vm740, %v711, 0
  %v1000 = vsel %vm740, %v712, 0
  %v1003 = vsel %vm740, %v713, 0
  %v1006 = vsel %vm740, %v714, 0
  %v1009 = vsel %vm740, %v715, 0
  %v1012 = vsel %vm740, %v716, 0
  %v1015 = vsel %vm740, %v717, 0
  %v1018 = vsel %vm740, %v718, 0
  %v1021 = vsel %vm740, %v719, 0
  %v1024 = vsel %vm740, %v720, 0
  %v1027 = vsel %vm740, %v721, 0
  %vm1029 = vcmask 1045504
  %v1031 = vsel %vm1029, %v736, 0
  %v1034 = vsel %vm1029, %v737, 0
  %1036 = vmatpush.bf16.msra.mxu0 0
  %1037 = vmatpush.bf16.msra.mxu0 0
  %1038 = vmatpush.bf16.msra.mxu0 0
  %1039 = vmatpush.bf16.msra.mxu0 0
  %1040 = vmatpush.bf16.msra.mxu0 0
  %1041 = vmatpush.bf16.msra.mxu0 0
  %1042 = vmatpush.bf16.msra.mxu0 %v1031
  %1043 = vmatpush.bf16.msra.mxu0 %v734
  %1044 = vmatmul.bf16.gmra.mxu0 %v742
  %v1045 = vpop.f32.mrf.mxu0
  %v1046 = vadd.f32 0.0, %v1045
  %v1047 = vpop.f32.mrf.mxu0
  %v1048 = vadd.f32 0.0, %v1047
  %1049 = vmatmul.bf16.gmra.mxu0 %v745
  %v1050 = vpop.f32.mrf.mxu0
  %v1051 = vadd.f32 0.0, %v1050
  %v1052 = vpop.f32.mrf.mxu0
  %v1053 = vadd.f32 0.0, %v1052
  %1054 = vmatmul.bf16.gmra.mxu0 %v748
  %v1055 = vpop.f32.mrf.mxu0
  %v1056 = vadd.f32 0.0, %v1055
  %v1057 = vpop.f32.mrf.mxu0
  %v1058 = vadd.f32 0.0, %v1057
  %1059 = vmatmul.bf16.gmra.mxu0 %v751
  %v1060 = vpop.f32.mrf.mxu0
  %v1061 = vadd.f32 0.0, %v1060
  %v1062 = vpop.f32.mrf.mxu0
  %v1063 = vadd.f32 0.0, %v1062
  %1064 = vmatmul.bf16.gmra.mxu0 %v754
  %v1065 = vpop.f32.mrf.mxu0
  %v1066 = vadd.f32 0.0, %v1065
  %v1067 = vpop.f32.mrf.mxu0
  %v1068 = vadd.f32 0.0, %v1067
  %1069 = vmatmul.bf16.gmra.mxu0 %v757
  %v1070 = vpop.f32.mrf.mxu0
  %v1071 = vadd.f32 0.0, %v1070
  %v1072 = vpop.f32.mrf.mxu0
  %v1073 = vadd.f32 0.0, %v1072
  %1074 = vmatmul.bf16.gmra.mxu0 %v760
  %v1075 = vpop.f32.mrf.mxu0
  %v1076 = vadd.f32 0.0, %v1075
  %v1077 = vpop.f32.mrf.mxu0
  %v1078 = vadd.f32 0.0, %v1077
  %1079 = vmatmul.bf16.gmra.mxu0 %v763
  %v1080 = vpop.f32.mrf.mxu0
  %v1081 = vadd.f32 0.0, %v1080
  %v1082 = vpop.f32.mrf.mxu0
  %v1083 = vadd.f32 0.0, %v1082
  %1084 = vmatmul.bf16.gmra.mxu0 %v766
  %v1085 = vpop.f32.mrf.mxu0
  %v1086 = vadd.f32 0.0, %v1085
  %v1087 = vpop.f32.mrf.mxu0
  %v1088 = vadd.f32 0.0, %v1087
  %1089 = vmatmul.bf16.gmra.mxu0 %v769
  %v1090 = vpop.f32.mrf.mxu0
  %v1091 = vadd.f32 0.0, %v1090
  %v1092 = vpop.f32.mrf.mxu0
  %v1093 = vadd.f32 0.0, %v1092
  %1094 = vmatmul.bf16.gmra.mxu0 %v772
  %v1095 = vpop.f32.mrf.mxu0
  %v1096 = vadd.f32 0.0, %v1095
  %v1097 = vpop.f32.mrf.mxu0
  %v1098 = vadd.f32 0.0, %v1097
  %1099 = vmatmul.bf16.gmra.mxu0 %v775
  %v1100 = vpop.f32.mrf.mxu0
  %v1101 = vadd.f32 0.0, %v1100
  %v1102 = vpop.f32.mrf.mxu0
  %v1103 = vadd.f32 0.0, %v1102
  %1104 = vmatmul.bf16.gmra.mxu0 %v778
  %v1105 = vpop.f32.mrf.mxu0
  %v1106 = vadd.f32 0.0, %v1105
  %v1107 = vpop.f32.mrf.mxu0
  %v1108 = vadd.f32 0.0, %v1107
  %1109 = vmatmul.bf16.gmra.mxu0 %v781
  %v1110 = vpop.f32.mrf.mxu0
  %v1111 = vadd.f32 0.0, %v1110
  %v1112 = vpop.f32.mrf.mxu0
  %v1113 = vadd.f32 0.0, %v1112
  %1114 = vmatmul.bf16.gmra.mxu0 %v784
  %v1115 = vpop.f32.mrf.mxu0
  %v1116 = vadd.f32 0.0, %v1115
  %v1117 = vpop.f32.mrf.mxu0
  %v1118 = vadd.f32 0.0, %v1117
  %1119 = vmatmul.bf16.gmra.mxu0 %v787
  %v1120 = vpop.f32.mrf.mxu0
  %v1121 = vadd.f32 0.0, %v1120
  %v1122 = vpop.f32.mrf.mxu0
  %v1123 = vadd.f32 0.0, %v1122
  %1124 = vmatmul.bf16.gmra.mxu0 %v790
  %v1125 = vpop.f32.mrf.mxu0
  %v1126 = vadd.f32 0.0, %v1125
  %v1127 = vpop.f32.mrf.mxu0
  %v1128 = vadd.f32 0.0, %v1127
  %1129 = vmatmul.bf16.gmra.mxu0 %v793
  %v1130 = vpop.f32.mrf.mxu0
  %v1131 = vadd.f32 0.0, %v1130
  %v1132 = vpop.f32.mrf.mxu0
  %v1133 = vadd.f32 0.0, %v1132
  %1134 = vmatmul.bf16.gmra.mxu0 %v796
  %v1135 = vpop.f32.mrf.mxu0
  %v1136 = vadd.f32 0.0, %v1135
  %v1137 = vpop.f32.mrf.mxu0
  %v1138 = vadd.f32 0.0, %v1137
  %1139 = vmatmul.bf16.gmra.mxu0 %v799
  %v1140 = vpop.f32.mrf.mxu0
  %v1141 = vadd.f32 0.0, %v1140
  %v1142 = vpop.f32.mrf.mxu0
  %v1143 = vadd.f32 0.0, %v1142
  %1144 = vmatmul.bf16.gmra.mxu0 %v802
  %v1145 = vpop.f32.mrf.mxu0
  %v1146 = vadd.f32 0.0, %v1145
  %v1147 = vpop.f32.mrf.mxu0
  %v1148 = vadd.f32 0.0, %v1147
  %1149 = vmatmul.bf16.gmra.mxu0 %v805
  %v1150 = vpop.f32.mrf.mxu0
  %v1151 = vadd.f32 0.0, %v1150
  %v1152 = vpop.f32.mrf.mxu0
  %v1153 = vadd.f32 0.0, %v1152
  %1154 = vmatmul.bf16.gmra.mxu0 %v808
  %v1155 = vpop.f32.mrf.mxu0
  %v1156 = vadd.f32 0.0, %v1155
  %v1157 = vpop.f32.mrf.mxu0
  %v1158 = vadd.f32 0.0, %v1157
  %1159 = vmatmul.bf16.gmra.mxu0 %v811
  %v1160 = vpop.f32.mrf.mxu0
  %v1161 = vadd.f32 0.0, %v1160
  %v1162 = vpop.f32.mrf.mxu0
  %v1163 = vadd.f32 0.0, %v1162
  %1164 = vmatmul.bf16.gmra.mxu0 %v814
  %v1165 = vpop.f32.mrf.mxu0
  %v1166 = vadd.f32 0.0, %v1165
  %v1167 = vpop.f32.mrf.mxu0
  %v1168 = vadd.f32 0.0, %v1167
  %1169 = vmatmul.bf16.gmra.mxu0 %v817
  %v1170 = vpop.f32.mrf.mxu0
  %v1171 = vadd.f32 0.0, %v1170
  %v1172 = vpop.f32.mrf.mxu0
  %v1173 = vadd.f32 0.0, %v1172
  %1174 = vmatmul.bf16.gmra.mxu0 %v820
  %v1175 = vpop.f32.mrf.mxu0
  %v1176 = vadd.f32 0.0, %v1175
  %v1177 = vpop.f32.mrf.mxu0
  %v1178 = vadd.f32 0.0, %v1177
  %1179 = vmatmul.bf16.gmra.mxu0 %v823
  %v1180 = vpop.f32.mrf.mxu0
  %v1181 = vadd.f32 0.0, %v1180
  %v1182 = vpop.f32.mrf.mxu0
  %v1183 = vadd.f32 0.0, %v1182
  %1184 = vmatmul.bf16.gmra.mxu0 %v826
  %v1185 = vpop.f32.mrf.mxu0
  %v1186 = vadd.f32 0.0, %v1185
  %v1187 = vpop.f32.mrf.mxu0
  %v1188 = vadd.f32 0.0, %v1187
  %1189 = vmatmul.bf16.gmra.mxu0 %v829
  %v1190 = vpop.f32.mrf.mxu0
  %v1191 = vadd.f32 0.0, %v1190
  %v1192 = vpop.f32.mrf.mxu0
  %v1193 = vadd.f32 0.0, %v1192
  %1194 = vmatmul.bf16.gmra.mxu0 %v832
  %v1195 = vpop.f32.mrf.mxu0
  %v1196 = vadd.f32 0.0, %v1195
  %v1197 = vpop.f32.mrf.mxu0
  %v1198 = vadd.f32 0.0, %v1197
  %1199 = vmatmul.bf16.gmra.mxu0 %v835
  %v1200 = vpop.f32.mrf.mxu0
  %v1201 = vadd.f32 0.0, %v1200
  %v1202 = vpop.f32.mrf.mxu0
  %v1203 = vadd.f32 0.0, %v1202
  %1204 = vmatmul.bf16.gmra.mxu0 %v838
  %v1205 = vpop.f32.mrf.mxu0
  %v1206 = vadd.f32 0.0, %v1205
  %v1207 = vpop.f32.mrf.mxu0
  %v1208 = vadd.f32 0.0, %v1207
  %1209 = vmatmul.bf16.gmra.mxu0 %v841
  %v1210 = vpop.f32.mrf.mxu0
  %v1211 = vadd.f32 0.0, %v1210
  %v1212 = vpop.f32.mrf.mxu0
  %v1213 = vadd.f32 0.0, %v1212
  %1214 = vmatmul.bf16.gmra.mxu0 %v844
  %v1215 = vpop.f32.mrf.mxu0
  %v1216 = vadd.f32 0.0, %v1215
  %v1217 = vpop.f32.mrf.mxu0
  %v1218 = vadd.f32 0.0, %v1217
  %1219 = vmatmul.bf16.gmra.mxu0 %v847
  %v1220 = vpop.f32.mrf.mxu0
  %v1221 = vadd.f32 0.0, %v1220
  %v1222 = vpop.f32.mrf.mxu0
  %v1223 = vadd.f32 0.0, %v1222
  %1224 = vmatmul.bf16.gmra.mxu0 %v850
  %v1225 = vpop.f32.mrf.mxu0
  %v1226 = vadd.f32 0.0, %v1225
  %v1227 = vpop.f32.mrf.mxu0
  %v1228 = vadd.f32 0.0, %v1227
  %1229 = vmatmul.bf16.gmra.mxu0 %v853
  %v1230 = vpop.f32.mrf.mxu0
  %v1231 = vadd.f32 0.0, %v1230
  %v1232 = vpop.f32.mrf.mxu0
  %v1233 = vadd.f32 0.0, %v1232
  %1234 = vmatmul.bf16.gmra.mxu0 %v856
  %v1235 = vpop.f32.mrf.mxu0
  %v1236 = vadd.f32 0.0, %v1235
  %v1237 = vpop.f32.mrf.mxu0
  %v1238 = vadd.f32 0.0, %v1237
  %1239 = vmatmul.bf16.gmra.mxu0 %v859
  %v1240 = vpop.f32.mrf.mxu0
  %v1241 = vadd.f32 0.0, %v1240
  %v1242 = vpop.f32.mrf.mxu0
  %v1243 = vadd.f32 0.0, %v1242
  %1244 = vmatmul.bf16.gmra.mxu0 %v862
  %v1245 = vpop.f32.mrf.mxu0
  %v1246 = vadd.f32 0.0, %v1245
  %v1247 = vpop.f32.mrf.mxu0
  %v1248 = vadd.f32 0.0, %v1247
  %1249 = vmatmul.bf16.gmra.mxu0 %v865
  %v1250 = vpop.f32.mrf.mxu0
  %v1251 = vadd.f32 0.0, %v1250
  %v1252 = vpop.f32.mrf.mxu0
  %v1253 = vadd.f32 0.0, %v1252
  %1254 = vmatmul.bf16.gmra.mxu0 %v868
  %v1255 = vpop.f32.mrf.mxu0
  %v1256 = vadd.f32 0.0, %v1255
  %v1257 = vpop.f32.mrf.mxu0
  %v1258 = vadd.f32 0.0, %v1257
  %1259 = vmatmul.bf16.gmra.mxu0 %v871
  %v1260 = vpop.f32.mrf.mxu0
  %v1261 = vadd.f32 0.0, %v1260
  %v1262 = vpop.f32.mrf.mxu0
  %v1263 = vadd.f32 0.0, %v1262
  %1264 = vmatmul.bf16.gmra.mxu0 %v874
  %v1265 = vpop.f32.mrf.mxu0
  %v1266 = vadd.f32 0.0, %v1265
  %v1267 = vpop.f32.mrf.mxu0
  %v1268 = vadd.f32 0.0, %v1267
  %1269 = vmatmul.bf16.gmra.mxu0 %v877
  %v1270 = vpop.f32.mrf.mxu0
  %v1271 = vadd.f32 0.0, %v1270
  %v1272 = vpop.f32.mrf.mxu0
  %v1273 = vadd.f32 0.0, %v1272
  %1274 = vmatmul.bf16.gmra.mxu0 %v880
  %v1275 = vpop.f32.mrf.mxu0
  %v1276 = vadd.f32 0.0, %v1275
  %v1277 = vpop.f32.mrf.mxu0
  %v1278 = vadd.f32 0.0, %v1277
  %1279 = vmatmul.bf16.gmra.mxu0 %v883
  %v1280 = vpop.f32.mrf.mxu0
  %v1281 = vadd.f32 0.0, %v1280
  %v1282 = vpop.f32.mrf.mxu0
  %v1283 = vadd.f32 0.0, %v1282
  %1284 = vmatmul.bf16.gmra.mxu0 %v886
  %v1285 = vpop.f32.mrf.mxu0
  %v1286 = vadd.f32 0.0, %v1285
  %v1287 = vpop.f32.mrf.mxu0
  %v1288 = vadd.f32 0.0, %v1287
  %1289 = vmatmul.bf16.gmra.mxu0 %v889
  %v1290 = vpop.f32.mrf.mxu0
  %v1291 = vadd.f32 0.0, %v1290
  %v1292 = vpop.f32.mrf.mxu0
  %v1293 = vadd.f32 0.0, %v1292
  %1294 = vmatmul.bf16.gmra.mxu0 %v892
  %v1295 = vpop.f32.mrf.mxu0
  %v1296 = vadd.f32 0.0, %v1295
  %v1297 = vpop.f32.mrf.mxu0
  %v1298 = vadd.f32 0.0, %v1297
  %1299 = vmatmul.bf16.gmra.mxu0 %v895
  %v1300 = vpop.f32.mrf.mxu0
  %v1301 = vadd.f32 0.0, %v1300
  %v1302 = vpop.f32.mrf.mxu0
  %v1303 = vadd.f32 0.0, %v1302
  %1304 = vmatmul.bf16.gmra.mxu0 %v898
  %v1305 = vpop.f32.mrf.mxu0
  %v1306 = vadd.f32 0.0, %v1305
  %v1307 = vpop.f32.mrf.mxu0
  %v1308 = vadd.f32 0.0, %v1307
  %1309 = vmatmul.bf16.gmra.mxu0 %v901
  %v1310 = vpop.f32.mrf.mxu0
  %v1311 = vadd.f32 0.0, %v1310
  %v1312 = vpop.f32.mrf.mxu0
  %v1313 = vadd.f32 0.0, %v1312
  %1314 = vmatmul.bf16.gmra.mxu0 %v904
  %v1315 = vpop.f32.mrf.mxu0
  %v1316 = vadd.f32 0.0, %v1315
  %v1317 = vpop.f32.mrf.mxu0
  %v1318 = vadd.f32 0.0, %v1317
  %1319 = vmatmul.bf16.gmra.mxu0 %v907
  %v1320 = vpop.f32.mrf.mxu0
  %v1321 = vadd.f32 0.0, %v1320
  %v1322 = vpop.f32.mrf.mxu0
  %v1323 = vadd.f32 0.0, %v1322
  %1324 = vmatmul.bf16.gmra.mxu0 %v910
  %v1325 = vpop.f32.mrf.mxu0
  %v1326 = vadd.f32 0.0, %v1325
  %v1327 = vpop.f32.mrf.mxu0
  %v1328 = vadd.f32 0.0, %v1327
  %1329 = vmatmul.bf16.gmra.mxu0 %v913
  %v1330 = vpop.f32.mrf.mxu0
  %v1331 = vadd.f32 0.0, %v1330
  %v1332 = vpop.f32.mrf.mxu0
  %v1333 = vadd.f32 0.0, %v1332
  %1334 = vmatmul.bf16.gmra.mxu0 %v916
  %v1335 = vpop.f32.mrf.mxu0
  %v1336 = vadd.f32 0.0, %v1335
  %v1337 = vpop.f32.mrf.mxu0
  %v1338 = vadd.f32 0.0, %v1337
  %1339 = vmatmul.bf16.gmra.mxu0 %v919
  %v1340 = vpop.f32.mrf.mxu0
  %v1341 = vadd.f32 0.0, %v1340
  %v1342 = vpop.f32.mrf.mxu0
  %v1343 = vadd.f32 0.0, %v1342
  %1344 = vmatmul.bf16.gmra.mxu0 %v922
  %v1345 = vpop.f32.mrf.mxu0
  %v1346 = vadd.f32 0.0, %v1345
  %v1347 = vpop.f32.mrf.mxu0
  %v1348 = vadd.f32 0.0, %v1347
  %1349 = vmatmul.bf16.gmra.mxu0 %v925
  %v1350 = vpop.f32.mrf.mxu0
  %v1351 = vadd.f32 0.0, %v1350
  %v1352 = vpop.f32.mrf.mxu0
  %v1353 = vadd.f32 0.0, %v1352
  %1354 = vmatmul.bf16.gmra.mxu0 %v928
  %v1355 = vpop.f32.mrf.mxu0
  %v1356 = vadd.f32 0.0, %v1355
  %v1357 = vpop.f32.mrf.mxu0
  %v1358 = vadd.f32 0.0, %v1357
  %1359 = vmatmul.bf16.gmra.mxu0 %v931
  %v1360 = vpop.f32.mrf.mxu0
  %v1361 = vadd.f32 0.0, %v1360
  %v1362 = vpop.f32.mrf.mxu0
  %v1363 = vadd.f32 0.0, %v1362
  %1364 = vmatmul.bf16.gmra.mxu0 %v934
  %v1365 = vpop.f32.mrf.mxu0
  %v1366 = vadd.f32 0.0, %v1365
  %v1367 = vpop.f32.mrf.mxu0
  %v1368 = vadd.f32 0.0, %v1367
  %1369 = vmatmul.bf16.gmra.mxu0 %v937
  %v1370 = vpop.f32.mrf.mxu0
  %v1371 = vadd.f32 0.0, %v1370
  %v1372 = vpop.f32.mrf.mxu0
  %v1373 = vadd.f32 0.0, %v1372
  %1374 = vmatmul.bf16.gmra.mxu0 %v940
  %v1375 = vpop.f32.mrf.mxu0
  %v1376 = vadd.f32 0.0, %v1375
  %v1377 = vpop.f32.mrf.mxu0
  %v1378 = vadd.f32 0.0, %v1377
  %1379 = vmatmul.bf16.gmra.mxu0 %v943
  %v1380 = vpop.f32.mrf.mxu0
  %v1381 = vadd.f32 0.0, %v1380
  %v1382 = vpop.f32.mrf.mxu0
  %v1383 = vadd.f32 0.0, %v1382
  %1384 = vmatmul.bf16.gmra.mxu0 %v946
  %v1385 = vpop.f32.mrf.mxu0
  %v1386 = vadd.f32 0.0, %v1385
  %v1387 = vpop.f32.mrf.mxu0
  %v1388 = vadd.f32 0.0, %v1387
  %1389 = vmatmul.bf16.gmra.mxu0 %v949
  %v1390 = vpop.f32.mrf.mxu0
  %v1391 = vadd.f32 0.0, %v1390
  %v1392 = vpop.f32.mrf.mxu0
  %v1393 = vadd.f32 0.0, %v1392
  %1394 = vmatmul.bf16.gmra.mxu0 %v952
  %v1395 = vpop.f32.mrf.mxu0
  %v1396 = vadd.f32 0.0, %v1395
  %v1397 = vpop.f32.mrf.mxu0
  %v1398 = vadd.f32 0.0, %v1397
  %1399 = vmatmul.bf16.gmra.mxu0 %v955
  %v1400 = vpop.f32.mrf.mxu0
  %v1401 = vadd.f32 0.0, %v1400
  %v1402 = vpop.f32.mrf.mxu0
  %v1403 = vadd.f32 0.0, %v1402
  %1404 = vmatmul.bf16.gmra.mxu0 %v958
  %v1405 = vpop.f32.mrf.mxu0
  %v1406 = vadd.f32 0.0, %v1405
  %v1407 = vpop.f32.mrf.mxu0
  %v1408 = vadd.f32 0.0, %v1407
  %1409 = vmatmul.bf16.gmra.mxu0 %v961
  %v1410 = vpop.f32.mrf.mxu0
  %v1411 = vadd.f32 0.0, %v1410
  %v1412 = vpop.f32.mrf.mxu0
  %v1413 = vadd.f32 0.0, %v1412
  %1414 = vmatmul.bf16.gmra.mxu0 %v964
  %v1415 = vpop.f32.mrf.mxu0
  %v1416 = vadd.f32 0.0, %v1415
  %v1417 = vpop.f32.mrf.mxu0
  %v1418 = vadd.f32 0.0, %v1417
  %1419 = vmatmul.bf16.gmra.mxu0 %v967
  %v1420 = vpop.f32.mrf.mxu0
  %v1421 = vadd.f32 0.0, %v1420
  %v1422 = vpop.f32.mrf.mxu0
  %v1423 = vadd.f32 0.0, %v1422
  %1424 = vmatmul.bf16.gmra.mxu0 %v970
  %v1425 = vpop.f32.mrf.mxu0
  %v1426 = vadd.f32 0.0, %v1425
  %v1427 = vpop.f32.mrf.mxu0
  %v1428 = vadd.f32 0.0, %v1427
  %1429 = vmatmul.bf16.gmra.mxu0 %v973
  %v1430 = vpop.f32.mrf.mxu0
  %v1431 = vadd.f32 0.0, %v1430
  %v1432 = vpop.f32.mrf.mxu0
  %v1433 = vadd.f32 0.0, %v1432
  %1434 = vmatmul.bf16.gmra.mxu0 %v976
  %v1435 = vpop.f32.mrf.mxu0
  %v1436 = vadd.f32 0.0, %v1435
  %v1437 = vpop.f32.mrf.mxu0
  %v1438 = vadd.f32 0.0, %v1437
  %1439 = vmatmul.bf16.gmra.mxu0 %v979
  %v1440 = vpop.f32.mrf.mxu0
  %v1441 = vadd.f32 0.0, %v1440
  %v1442 = vpop.f32.mrf.mxu0
  %v1443 = vadd.f32 0.0, %v1442
  %1444 = vmatmul.bf16.gmra.mxu0 %v982
  %v1445 = vpop.f32.mrf.mxu0
  %v1446 = vadd.f32 0.0, %v1445
  %v1447 = vpop.f32.mrf.mxu0
  %v1448 = vadd.f32 0.0, %v1447
  %1449 = vmatmul.bf16.gmra.mxu0 %v985
  %v1450 = vpop.f32.mrf.mxu0
  %v1451 = vadd.f32 0.0, %v1450
  %v1452 = vpop.f32.mrf.mxu0
  %v1453 = vadd.f32 0.0, %v1452
  %1454 = vmatmul.bf16.gmra.mxu0 %v988
  %v1455 = vpop.f32.mrf.mxu0
  %v1456 = vadd.f32 0.0, %v1455
  %v1457 = vpop.f32.mrf.mxu0
  %v1458 = vadd.f32 0.0, %v1457
  %1459 = vmatmul.bf16.gmra.mxu0 %v991
  %v1460 = vpop.f32.mrf.mxu0
  %v1461 = vadd.f32 0.0, %v1460
  %v1462 = vpop.f32.mrf.mxu0
  %v1463 = vadd.f32 0.0, %v1462
  %1464 = vmatmul.bf16.gmra.mxu0 %v994
  %v1465 = vpop.f32.mrf.mxu0
  %v1466 = vadd.f32 0.0, %v1465
  %v1467 = vpop.f32.mrf.mxu0
  %v1468 = vadd.f32 0.0, %v1467
  %1469 = vmatmul.bf16.gmra.mxu0 %v997
  %v1470 = vpop.f32.mrf.mxu0
  %v1471 = vadd.f32 0.0, %v1470
  %v1472 = vpop.f32.mrf.mxu0
  %v1473 = vadd.f32 0.0, %v1472
  %1474 = vmatmul.bf16.gmra.mxu0 %v1000
  %v1475 = vpop.f32.mrf.mxu0
  %v1476 = vadd.f32 0.0, %v1475
  %v1477 = vpop.f32.mrf.mxu0
  %v1478 = vadd.f32 0.0, %v1477
  %1479 = vmatmul.bf16.gmra.mxu0 %v1003
  %v1480 = vpop.f32.mrf.mxu0
  %v1481 = vadd.f32 0.0, %v1480
  %v1482 = vpop.f32.mrf.mxu0
  %v1483 = vadd.f32 0.0, %v1482
  %1484 = vmatmul.bf16.gmra.mxu0 %v1006
  %v1485 = vpop.f32.mrf.mxu0
  %v1486 = vadd.f32 0.0, %v1485
  %v1487 = vpop.f32.mrf.mxu0
  %v1488 = vadd.f32 0.0, %v1487
  %1489 = vmatmul.bf16.gmra.mxu0 %v1009
  %v1490 = vpop.f32.mrf.mxu0
  %v1491 = vadd.f32 0.0, %v1490
  %v1492 = vpop.f32.mrf.mxu0
  %v1493 = vadd.f32 0.0, %v1492
  %1494 = vmatmul.bf16.gmra.mxu0 %v1012
  %v1495 = vpop.f32.mrf.mxu0
  %v1496 = vadd.f32 0.0, %v1495
  %v1497 = vpop.f32.mrf.mxu0
  %v1498 = vadd.f32 0.0, %v1497
  %1499 = vmatmul.bf16.gmra.mxu0 %v1015
  %v1500 = vpop.f32.mrf.mxu0
  %v1501 = vadd.f32 0.0, %v1500
  %v1502 = vpop.f32.mrf.mxu0
  %v1503 = vadd.f32 0.0, %v1502
  %1504 = vmatmul.bf16.gmra.mxu0 %v1018
  %v1505 = vpop.f32.mrf.mxu0
  %v1506 = vadd.f32 0.0, %v1505
  %v1507 = vpop.f32.mrf.mxu0
  %v1508 = vadd.f32 0.0, %v1507
  %1509 = vmatmul.bf16.gmra.mxu0 %v1021
  %v1510 = vpop.f32.mrf.mxu0
  %v1511 = vadd.f32 0.0, %v1510
  %v1512 = vpop.f32.mrf.mxu0
  %v1513 = vadd.f32 0.0, %v1512
  %1514 = vmatmul.bf16.gmra.mxu0 %v1024
  %v1515 = vpop.f32.mrf.mxu0
  %v1516 = vadd.f32 0.0, %v1515
  %v1517 = vpop.f32.mrf.mxu0
  %v1518 = vadd.f32 0.0, %v1517
  %1519 = vmatmul.bf16.gmra.mxu0 %v1027
  %v1520 = vpop.f32.mrf.mxu0
  %v1521 = vadd.f32 0.0, %v1520
  %v1522 = vpop.f32.mrf.mxu0
  %v1523 = vadd.f32 0.0, %v1522
  %1524 = vdwg.mxu0
  %1525 = vmatpush.bf16.msra.mxu0 0
  %1526 = vmatpush.bf16.msra.mxu0 0
  %1527 = vmatpush.bf16.msra.mxu0 0
  %1528 = vmatpush.bf16.msra.mxu0 0
  %1529 = vmatpush.bf16.msra.mxu0 0
  %1530 = vmatpush.bf16.msra.mxu0 0
  %1531 = vmatpush.bf16.msra.mxu0 %v1034
  %1532 = vmatpush.bf16.msra.mxu0 %v735
  %1533 = vmatmul.bf16.gmra.mxu0 %v742
  %v1534 = vpop.f32.mrf.mxu0
  %v1535 = vadd.f32 0.0, %v1534
  %v1536 = vpop.f32.mrf.mxu0
  %v1537 = vadd.f32 0.0, %v1536
  %1538 = vmatmul.bf16.gmra.mxu0 %v745
  %v1539 = vpop.f32.mrf.mxu0
  %v1540 = vadd.f32 0.0, %v1539
  %v1541 = vpop.f32.mrf.mxu0
  %v1542 = vadd.f32 0.0, %v1541
  %1543 = vmatmul.bf16.gmra.mxu0 %v748
  %v1544 = vpop.f32.mrf.mxu0
  %v1545 = vadd.f32 0.0, %v1544
  %v1546 = vpop.f32.mrf.mxu0
  %v1547 = vadd.f32 0.0, %v1546
  %1548 = vmatmul.bf16.gmra.mxu0 %v751
  %v1549 = vpop.f32.mrf.mxu0
  %v1550 = vadd.f32 0.0, %v1549
  %v1551 = vpop.f32.mrf.mxu0
  %v1552 = vadd.f32 0.0, %v1551
  %1553 = vmatmul.bf16.gmra.mxu0 %v754
  %v1554 = vpop.f32.mrf.mxu0
  %v1555 = vadd.f32 0.0, %v1554
  %v1556 = vpop.f32.mrf.mxu0
  %v1557 = vadd.f32 0.0, %v1556
  %1558 = vmatmul.bf16.gmra.mxu0 %v757
  %v1559 = vpop.f32.mrf.mxu0
  %v1560 = vadd.f32 0.0, %v1559
  %v1561 = vpop.f32.mrf.mxu0
  %v1562 = vadd.f32 0.0, %v1561
  %1563 = vmatmul.bf16.gmra.mxu0 %v760
  %v1564 = vpop.f32.mrf.mxu0
  %v1565 = vadd.f32 0.0, %v1564
  %v1566 = vpop.f32.mrf.mxu0
  %v1567 = vadd.f32 0.0, %v1566
  %1568 = vmatmul.bf16.gmra.mxu0 %v763
  %v1569 = vpop.f32.mrf.mxu0
  %v1570 = vadd.f32 0.0, %v1569
  %v1571 = vpop.f32.mrf.mxu0
  %v1572 = vadd.f32 0.0, %v1571
  %1573 = vmatmul.bf16.gmra.mxu0 %v766
  %v1574 = vpop.f32.mrf.mxu0
  %v1575 = vadd.f32 0.0, %v1574
  %v1576 = vpop.f32.mrf.mxu0
  %v1577 = vadd.f32 0.0, %v1576
  %1578 = vmatmul.bf16.gmra.mxu0 %v769
  %v1579 = vpop.f32.mrf.mxu0
  %v1580 = vadd.f32 0.0, %v1579
  %v1581 = vpop.f32.mrf.mxu0
  %v1582 = vadd.f32 0.0, %v1581
  %1583 = vmatmul.bf16.gmra.mxu0 %v772
  %v1584 = vpop.f32.mrf.mxu0
  %v1585 = vadd.f32 0.0, %v1584
  %v1586 = vpop.f32.mrf.mxu0
  %v1587 = vadd.f32 0.0, %v1586
  %1588 = vmatmul.bf16.gmra.mxu0 %v775
  %v1589 = vpop.f32.mrf.mxu0
  %v1590 = vadd.f32 0.0, %v1589
  %v1591 = vpop.f32.mrf.mxu0
  %v1592 = vadd.f32 0.0, %v1591
  %1593 = vmatmul.bf16.gmra.mxu0 %v778
  %v1594 = vpop.f32.mrf.mxu0
  %v1595 = vadd.f32 0.0, %v1594
  %v1596 = vpop.f32.mrf.mxu0
  %v1597 = vadd.f32 0.0, %v1596
  %1598 = vmatmul.bf16.gmra.mxu0 %v781
  %v1599 = vpop.f32.mrf.mxu0
  %v1600 = vadd.f32 0.0, %v1599
  %v1601 = vpop.f32.mrf.mxu0
  %v1602 = vadd.f32 0.0, %v1601
  %1603 = vmatmul.bf16.gmra.mxu0 %v784
  %v1604 = vpop.f32.mrf.mxu0
  %v1605 = vadd.f32 0.0, %v1604
  %v1606 = vpop.f32.mrf.mxu0
  %v1607 = vadd.f32 0.0, %v1606
  %1608 = vmatmul.bf16.gmra.mxu0 %v787
  %v1609 = vpop.f32.mrf.mxu0
  %v1610 = vadd.f32 0.0, %v1609
  %v1611 = vpop.f32.mrf.mxu0
  %v1612 = vadd.f32 0.0, %v1611
  %1613 = vmatmul.bf16.gmra.mxu0 %v790
  %v1614 = vpop.f32.mrf.mxu0
  %v1615 = vadd.f32 0.0, %v1614
  %v1616 = vpop.f32.mrf.mxu0
  %v1617 = vadd.f32 0.0, %v1616
  %1618 = vmatmul.bf16.gmra.mxu0 %v793
  %v1619 = vpop.f32.mrf.mxu0
  %v1620 = vadd.f32 0.0, %v1619
  %v1621 = vpop.f32.mrf.mxu0
  %v1622 = vadd.f32 0.0, %v1621
  %1623 = vmatmul.bf16.gmra.mxu0 %v796
  %v1624 = vpop.f32.mrf.mxu0
  %v1625 = vadd.f32 0.0, %v1624
  %v1626 = vpop.f32.mrf.mxu0
  %v1627 = vadd.f32 0.0, %v1626
  %1628 = vmatmul.bf16.gmra.mxu0 %v799
  %v1629 = vpop.f32.mrf.mxu0
  %v1630 = vadd.f32 0.0, %v1629
  %v1631 = vpop.f32.mrf.mxu0
  %v1632 = vadd.f32 0.0, %v1631
  %1633 = vmatmul.bf16.gmra.mxu0 %v802
  %v1634 = vpop.f32.mrf.mxu0
  %v1635 = vadd.f32 0.0, %v1634
  %v1636 = vpop.f32.mrf.mxu0
  %v1637 = vadd.f32 0.0, %v1636
  %1638 = vmatmul.bf16.gmra.mxu0 %v805
  %v1639 = vpop.f32.mrf.mxu0
  %v1640 = vadd.f32 0.0, %v1639
  %v1641 = vpop.f32.mrf.mxu0
  %v1642 = vadd.f32 0.0, %v1641
  %1643 = vmatmul.bf16.gmra.mxu0 %v808
  %v1644 = vpop.f32.mrf.mxu0
  %v1645 = vadd.f32 0.0, %v1644
  %v1646 = vpop.f32.mrf.mxu0
  %v1647 = vadd.f32 0.0, %v1646
  %1648 = vmatmul.bf16.gmra.mxu0 %v811
  %v1649 = vpop.f32.mrf.mxu0
  %v1650 = vadd.f32 0.0, %v1649
  %v1651 = vpop.f32.mrf.mxu0
  %v1652 = vadd.f32 0.0, %v1651
  %1653 = vmatmul.bf16.gmra.mxu0 %v814
  %v1654 = vpop.f32.mrf.mxu0
  %v1655 = vadd.f32 0.0, %v1654
  %v1656 = vpop.f32.mrf.mxu0
  %v1657 = vadd.f32 0.0, %v1656
  %1658 = vmatmul.bf16.gmra.mxu0 %v817
  %v1659 = vpop.f32.mrf.mxu0
  %v1660 = vadd.f32 0.0, %v1659
  %v1661 = vpop.f32.mrf.mxu0
  %v1662 = vadd.f32 0.0, %v1661
  %1663 = vmatmul.bf16.gmra.mxu0 %v820
  %v1664 = vpop.f32.mrf.mxu0
  %v1665 = vadd.f32 0.0, %v1664
  %v1666 = vpop.f32.mrf.mxu0
  %v1667 = vadd.f32 0.0, %v1666
  %1668 = vmatmul.bf16.gmra.mxu0 %v823
  %v1669 = vpop.f32.mrf.mxu0
  %v1670 = vadd.f32 0.0, %v1669
  %v1671 = vpop.f32.mrf.mxu0
  %v1672 = vadd.f32 0.0, %v1671
  %1673 = vmatmul.bf16.gmra.mxu0 %v826
  %v1674 = vpop.f32.mrf.mxu0
  %v1675 = vadd.f32 0.0, %v1674
  %v1676 = vpop.f32.mrf.mxu0
  %v1677 = vadd.f32 0.0, %v1676
  %1678 = vmatmul.bf16.gmra.mxu0 %v829
  %v1679 = vpop.f32.mrf.mxu0
  %v1680 = vadd.f32 0.0, %v1679
  %v1681 = vpop.f32.mrf.mxu0
  %v1682 = vadd.f32 0.0, %v1681
  %1683 = vmatmul.bf16.gmra.mxu0 %v832
  %v1684 = vpop.f32.mrf.mxu0
  %v1685 = vadd.f32 0.0, %v1684
  %v1686 = vpop.f32.mrf.mxu0
  %v1687 = vadd.f32 0.0, %v1686
  %1688 = vmatmul.bf16.gmra.mxu0 %v835
  %v1689 = vpop.f32.mrf.mxu0
  %v1690 = vadd.f32 0.0, %v1689
  %v1691 = vpop.f32.mrf.mxu0
  %v1692 = vadd.f32 0.0, %v1691
  %1693 = vmatmul.bf16.gmra.mxu0 %v838
  %v1694 = vpop.f32.mrf.mxu0
  %v1695 = vadd.f32 0.0, %v1694
  %v1696 = vpop.f32.mrf.mxu0
  %v1697 = vadd.f32 0.0, %v1696
  %1698 = vmatmul.bf16.gmra.mxu0 %v841
  %v1699 = vpop.f32.mrf.mxu0
  %v1700 = vadd.f32 0.0, %v1699
  %v1701 = vpop.f32.mrf.mxu0
  %v1702 = vadd.f32 0.0, %v1701
  %1703 = vmatmul.bf16.gmra.mxu0 %v844
  %v1704 = vpop.f32.mrf.mxu0
  %v1705 = vadd.f32 0.0, %v1704
  %v1706 = vpop.f32.mrf.mxu0
  %v1707 = vadd.f32 0.0, %v1706
  %1708 = vmatmul.bf16.gmra.mxu0 %v847
  %v1709 = vpop.f32.mrf.mxu0
  %v1710 = vadd.f32 0.0, %v1709
  %v1711 = vpop.f32.mrf.mxu0
  %v1712 = vadd.f32 0.0, %v1711
  %1713 = vmatmul.bf16.gmra.mxu0 %v850
  %v1714 = vpop.f32.mrf.mxu0
  %v1715 = vadd.f32 0.0, %v1714
  %v1716 = vpop.f32.mrf.mxu0
  %v1717 = vadd.f32 0.0, %v1716
  %1718 = vmatmul.bf16.gmra.mxu0 %v853
  %v1719 = vpop.f32.mrf.mxu0
  %v1720 = vadd.f32 0.0, %v1719
  %v1721 = vpop.f32.mrf.mxu0
  %v1722 = vadd.f32 0.0, %v1721
  %1723 = vmatmul.bf16.gmra.mxu0 %v856
  %v1724 = vpop.f32.mrf.mxu0
  %v1725 = vadd.f32 0.0, %v1724
  %v1726 = vpop.f32.mrf.mxu0
  %v1727 = vadd.f32 0.0, %v1726
  %1728 = vmatmul.bf16.gmra.mxu0 %v859
  %v1729 = vpop.f32.mrf.mxu0
  %v1730 = vadd.f32 0.0, %v1729
  %v1731 = vpop.f32.mrf.mxu0
  %v1732 = vadd.f32 0.0, %v1731
  %1733 = vmatmul.bf16.gmra.mxu0 %v862
  %v1734 = vpop.f32.mrf.mxu0
  %v1735 = vadd.f32 0.0, %v1734
  %v1736 = vpop.f32.mrf.mxu0
  %v1737 = vadd.f32 0.0, %v1736
  %1738 = vmatmul.bf16.gmra.mxu0 %v865
  %v1739 = vpop.f32.mrf.mxu0
  %v1740 = vadd.f32 0.0, %v1739
  %v1741 = vpop.f32.mrf.mxu0
  %v1742 = vadd.f32 0.0, %v1741
  %1743 = vmatmul.bf16.gmra.mxu0 %v868
  %v1744 = vpop.f32.mrf.mxu0
  %v1745 = vadd.f32 0.0, %v1744
  %v1746 = vpop.f32.mrf.mxu0
  %v1747 = vadd.f32 0.0, %v1746
  %1748 = vmatmul.bf16.gmra.mxu0 %v871
  %v1749 = vpop.f32.mrf.mxu0
  %v1750 = vadd.f32 0.0, %v1749
  %v1751 = vpop.f32.mrf.mxu0
  %v1752 = vadd.f32 0.0, %v1751
  %1753 = vmatmul.bf16.gmra.mxu0 %v874
  %v1754 = vpop.f32.mrf.mxu0
  %v1755 = vadd.f32 0.0, %v1754
  %v1756 = vpop.f32.mrf.mxu0
  %v1757 = vadd.f32 0.0, %v1756
  %1758 = vmatmul.bf16.gmra.mxu0 %v877
  %v1759 = vpop.f32.mrf.mxu0
  %v1760 = vadd.f32 0.0, %v1759
  %v1761 = vpop.f32.mrf.mxu0
  %v1762 = vadd.f32 0.0, %v1761
  %1763 = vmatmul.bf16.gmra.mxu0 %v880
  %v1764 = vpop.f32.mrf.mxu0
  %v1765 = vadd.f32 0.0, %v1764
  %v1766 = vpop.f32.mrf.mxu0
  %v1767 = vadd.f32 0.0, %v1766
  %1768 = vmatmul.bf16.gmra.mxu0 %v883
  %v1769 = vpop.f32.mrf.mxu0
  %v1770 = vadd.f32 0.0, %v1769
  %v1771 = vpop.f32.mrf.mxu0
  %v1772 = vadd.f32 0.0, %v1771
  %1773 = vmatmul.bf16.gmra.mxu0 %v886
  %v1774 = vpop.f32.mrf.mxu0
  %v1775 = vadd.f32 0.0, %v1774
  %v1776 = vpop.f32.mrf.mxu0
  %v1777 = vadd.f32 0.0, %v1776
  %1778 = vmatmul.bf16.gmra.mxu0 %v889
  %v1779 = vpop.f32.mrf.mxu0
  %v1780 = vadd.f32 0.0, %v1779
  %v1781 = vpop.f32.mrf.mxu0
  %v1782 = vadd.f32 0.0, %v1781
  %1783 = vmatmul.bf16.gmra.mxu0 %v892
  %v1784 = vpop.f32.mrf.mxu0
  %v1785 = vadd.f32 0.0, %v1784
  %v1786 = vpop.f32.mrf.mxu0
  %v1787 = vadd.f32 0.0, %v1786
  %1788 = vmatmul.bf16.gmra.mxu0 %v895
  %v1789 = vpop.f32.mrf.mxu0
  %v1790 = vadd.f32 0.0, %v1789
  %v1791 = vpop.f32.mrf.mxu0
  %v1792 = vadd.f32 0.0, %v1791
  %1793 = vmatmul.bf16.gmra.mxu0 %v898
  %v1794 = vpop.f32.mrf.mxu0
  %v1795 = vadd.f32 0.0, %v1794
  %v1796 = vpop.f32.mrf.mxu0
  %v1797 = vadd.f32 0.0, %v1796
  %1798 = vmatmul.bf16.gmra.mxu0 %v901
  %v1799 = vpop.f32.mrf.mxu0
  %v1800 = vadd.f32 0.0, %v1799
  %v1801 = vpop.f32.mrf.mxu0
  %v1802 = vadd.f32 0.0, %v1801
  %1803 = vmatmul.bf16.gmra.mxu0 %v904
  %v1804 = vpop.f32.mrf.mxu0
  %v1805 = vadd.f32 0.0, %v1804
  %v1806 = vpop.f32.mrf.mxu0
  %v1807 = vadd.f32 0.0, %v1806
  %1808 = vmatmul.bf16.gmra.mxu0 %v907
  %v1809 = vpop.f32.mrf.mxu0
  %v1810 = vadd.f32 0.0, %v1809
  %v1811 = vpop.f32.mrf.mxu0
  %v1812 = vadd.f32 0.0, %v1811
  %1813 = vmatmul.bf16.gmra.mxu0 %v910
  %v1814 = vpop.f32.mrf.mxu0
  %v1815 = vadd.f32 0.0, %v1814
  %v1816 = vpop.f32.mrf.mxu0
  %v1817 = vadd.f32 0.0, %v1816
  %1818 = vmatmul.bf16.gmra.mxu0 %v913
  %v1819 = vpop.f32.mrf.mxu0
  %v1820 = vadd.f32 0.0, %v1819
  %v1821 = vpop.f32.mrf.mxu0
  %v1822 = vadd.f32 0.0, %v1821
  %1823 = vmatmul.bf16.gmra.mxu0 %v916
  %v1824 = vpop.f32.mrf.mxu0
  %v1825 = vadd.f32 0.0, %v1824
  %v1826 = vpop.f32.mrf.mxu0
  %v1827 = vadd.f32 0.0, %v1826
  %1828 = vmatmul.bf16.gmra.mxu0 %v919
  %v1829 = vpop.f32.mrf.mxu0
  %v1830 = vadd.f32 0.0, %v1829
  %v1831 = vpop.f32.mrf.mxu0
  %v1832 = vadd.f32 0.0, %v1831
  %1833 = vmatmul.bf16.gmra.mxu0 %v922
  %v1834 = vpop.f32.mrf.mxu0
  %v1835 = vadd.f32 0.0, %v1834
  %v1836 = vpop.f32.mrf.mxu0
  %v1837 = vadd.f32 0.0, %v1836
  %1838 = vmatmul.bf16.gmra.mxu0 %v925
  %v1839 = vpop.f32.mrf.mxu0
  %v1840 = vadd.f32 0.0, %v1839
  %v1841 = vpop.f32.mrf.mxu0
  %v1842 = vadd.f32 0.0, %v1841
  %1843 = vmatmul.bf16.gmra.mxu0 %v928
  %v1844 = vpop.f32.mrf.mxu0
  %v1845 = vadd.f32 0.0, %v1844
  %v1846 = vpop.f32.mrf.mxu0
  %v1847 = vadd.f32 0.0, %v1846
  %1848 = vmatmul.bf16.gmra.mxu0 %v931
  %v1849 = vpop.f32.mrf.mxu0
  %v1850 = vadd.f32 0.0, %v1849
  %v1851 = vpop.f32.mrf.mxu0
  %v1852 = vadd.f32 0.0, %v1851
  %1853 = vmatmul.bf16.gmra.mxu0 %v934
  %v1854 = vpop.f32.mrf.mxu0
  %v1855 = vadd.f32 0.0, %v1854
  %v1856 = vpop.f32.mrf.mxu0
  %v1857 = vadd.f32 0.0, %v1856
  %1858 = vmatmul.bf16.gmra.mxu0 %v937
  %v1859 = vpop.f32.mrf.mxu0
  %v1860 = vadd.f32 0.0, %v1859
  %v1861 = vpop.f32.mrf.mxu0
  %v1862 = vadd.f32 0.0, %v1861
  %1863 = vmatmul.bf16.gmra.mxu0 %v940
  %v1864 = vpop.f32.mrf.mxu0
  %v1865 = vadd.f32 0.0, %v1864
  %v1866 = vpop.f32.mrf.mxu0
  %v1867 = vadd.f32 0.0, %v1866
  %1868 = vmatmul.bf16.gmra.mxu0 %v943
  %v1869 = vpop.f32.mrf.mxu0
  %v1870 = vadd.f32 0.0, %v1869
  %v1871 = vpop.f32.mrf.mxu0
  %v1872 = vadd.f32 0.0, %v1871
  %1873 = vmatmul.bf16.gmra.mxu0 %v946
  %v1874 = vpop.f32.mrf.mxu0
  %v1875 = vadd.f32 0.0, %v1874
  %v1876 = vpop.f32.mrf.mxu0
  %v1877 = vadd.f32 0.0, %v1876
  %1878 = vmatmul.bf16.gmra.mxu0 %v949
  %v1879 = vpop.f32.mrf.mxu0
  %v1880 = vadd.f32 0.0, %v1879
  %v1881 = vpop.f32.mrf.mxu0
  %v1882 = vadd.f32 0.0, %v1881
  %1883 = vmatmul.bf16.gmra.mxu0 %v952
  %v1884 = vpop.f32.mrf.mxu0
  %v1885 = vadd.f32 0.0, %v1884
  %v1886 = vpop.f32.mrf.mxu0
  %v1887 = vadd.f32 0.0, %v1886
  %1888 = vmatmul.bf16.gmra.mxu0 %v955
  %v1889 = vpop.f32.mrf.mxu0
  %v1890 = vadd.f32 0.0, %v1889
  %v1891 = vpop.f32.mrf.mxu0
  %v1892 = vadd.f32 0.0, %v1891
  %1893 = vmatmul.bf16.gmra.mxu0 %v958
  %v1894 = vpop.f32.mrf.mxu0
  %v1895 = vadd.f32 0.0, %v1894
  %v1896 = vpop.f32.mrf.mxu0
  %v1897 = vadd.f32 0.0, %v1896
  %1898 = vmatmul.bf16.gmra.mxu0 %v961
  %v1899 = vpop.f32.mrf.mxu0
  %v1900 = vadd.f32 0.0, %v1899
  %v1901 = vpop.f32.mrf.mxu0
  %v1902 = vadd.f32 0.0, %v1901
  %1903 = vmatmul.bf16.gmra.mxu0 %v964
  %v1904 = vpop.f32.mrf.mxu0
  %v1905 = vadd.f32 0.0, %v1904
  %v1906 = vpop.f32.mrf.mxu0
  %v1907 = vadd.f32 0.0, %v1906
  %1908 = vmatmul.bf16.gmra.mxu0 %v967
  %v1909 = vpop.f32.mrf.mxu0
  %v1910 = vadd.f32 0.0, %v1909
  %v1911 = vpop.f32.mrf.mxu0
  %v1912 = vadd.f32 0.0, %v1911
  %1913 = vmatmul.bf16.gmra.mxu0 %v970
  %v1914 = vpop.f32.mrf.mxu0
  %v1915 = vadd.f32 0.0, %v1914
  %v1916 = vpop.f32.mrf.mxu0
  %v1917 = vadd.f32 0.0, %v1916
  %1918 = vmatmul.bf16.gmra.mxu0 %v973
  %v1919 = vpop.f32.mrf.mxu0
  %v1920 = vadd.f32 0.0, %v1919
  %v1921 = vpop.f32.mrf.mxu0
  %v1922 = vadd.f32 0.0, %v1921
  %1923 = vmatmul.bf16.gmra.mxu0 %v976
  %v1924 = vpop.f32.mrf.mxu0
  %v1925 = vadd.f32 0.0, %v1924
  %v1926 = vpop.f32.mrf.mxu0
  %v1927 = vadd.f32 0.0, %v1926
  %1928 = vmatmul.bf16.gmra.mxu0 %v979
  %v1929 = vpop.f32.mrf.mxu0
  %v1930 = vadd.f32 0.0, %v1929
  %v1931 = vpop.f32.mrf.mxu0
  %v1932 = vadd.f32 0.0, %v1931
  %1933 = vmatmul.bf16.gmra.mxu0 %v982
  %v1934 = vpop.f32.mrf.mxu0
  %v1935 = vadd.f32 0.0, %v1934
  %v1936 = vpop.f32.mrf.mxu0
  %v1937 = vadd.f32 0.0, %v1936
  %1938 = vmatmul.bf16.gmra.mxu0 %v985
  %v1939 = vpop.f32.mrf.mxu0
  %v1940 = vadd.f32 0.0, %v1939
  %v1941 = vpop.f32.mrf.mxu0
  %v1942 = vadd.f32 0.0, %v1941
  %1943 = vmatmul.bf16.gmra.mxu0 %v988
  %v1944 = vpop.f32.mrf.mxu0
  %v1945 = vadd.f32 0.0, %v1944
  %v1946 = vpop.f32.mrf.mxu0
  %v1947 = vadd.f32 0.0, %v1946
  %1948 = vmatmul.bf16.gmra.mxu0 %v991
  %v1949 = vpop.f32.mrf.mxu0
  %v1950 = vadd.f32 0.0, %v1949
  %v1951 = vpop.f32.mrf.mxu0
  %v1952 = vadd.f32 0.0, %v1951
  %1953 = vmatmul.bf16.gmra.mxu0 %v994
  %v1954 = vpop.f32.mrf.mxu0
  %v1955 = vadd.f32 0.0, %v1954
  %v1956 = vpop.f32.mrf.mxu0
  %v1957 = vadd.f32 0.0, %v1956
  %1958 = vmatmul.bf16.gmra.mxu0 %v997
  %v1959 = vpop.f32.mrf.mxu0
  %v1960 = vadd.f32 0.0, %v1959
  %v1961 = vpop.f32.mrf.mxu0
  %v1962 = vadd.f32 0.0, %v1961
  %1963 = vmatmul.bf16.gmra.mxu0 %v1000
  %v1964 = vpop.f32.mrf.mxu0
  %v1965 = vadd.f32 0.0, %v1964
  %v1966 = vpop.f32.mrf.mxu0
  %v1967 = vadd.f32 0.0, %v1966
  %1968 = vmatmul.bf16.gmra.mxu0 %v1003
  %v1969 = vpop.f32.mrf.mxu0
  %v1970 = vadd.f32 0.0, %v1969
  %v1971 = vpop.f32.mrf.mxu0
  %v1972 = vadd.f32 0.0, %v1971
  %1973 = vmatmul.bf16.gmra.mxu0 %v1006
  %v1974 = vpop.f32.mrf.mxu0
  %v1975 = vadd.f32 0.0, %v1974
  %v1976 = vpop.f32.mrf.mxu0
  %v1977 = vadd.f32 0.0, %v1976
  %1978 = vmatmul.bf16.gmra.mxu0 %v1009
  %v1979 = vpop.f32.mrf.mxu0
  %v1980 = vadd.f32 0.0, %v1979
  %v1981 = vpop.f32.mrf.mxu0
  %v1982 = vadd.f32 0.0, %v1981
  %1983 = vmatmul.bf16.gmra.mxu0 %v1012
  %v1984 = vpop.f32.mrf.mxu0
  %v1985 = vadd.f32 0.0, %v1984
  %v1986 = vpop.f32.mrf.mxu0
  %v1987 = vadd.f32 0.0, %v1986
  %1988 = vmatmul.bf16.gmra.mxu0 %v1015
  %v1989 = vpop.f32.mrf.mxu0
  %v1990 = vadd.f32 0.0, %v1989
  %v1991 = vpop.f32.mrf.mxu0
  %v1992 = vadd.f32 0.0, %v1991
  %1993 = vmatmul.bf16.gmra.mxu0 %v1018
  %v1994 = vpop.f32.mrf.mxu0
  %v1995 = vadd.f32 0.0, %v1994
  %v1996 = vpop.f32.mrf.mxu0
  %v1997 = vadd.f32 0.0, %v1996
  %1998 = vmatmul.bf16.gmra.mxu0 %v1021
  %v1999 = vpop.f32.mrf.mxu0
  %v2000 = vadd.f32 0.0, %v1999
  %v2001 = vpop.f32.mrf.mxu0
  %v2002 = vadd.f32 0.0, %v2001
  %2003 = vmatmul.bf16.gmra.mxu0 %v1024
  %v2004 = vpop.f32.mrf.mxu0
  %v2005 = vadd.f32 0.0, %v2004
  %v2006 = vpop.f32.mrf.mxu0
  %v2007 = vadd.f32 0.0, %v2006
  %2008 = vmatmul.bf16.gmra.mxu0 %v1027
  %v2009 = vpop.f32.mrf.mxu0
  %v2010 = vadd.f32 0.0, %v2009
  %v2011 = vpop.f32.mrf.mxu0
  %v2012 = vadd.f32 0.0, %v2011
  %2013 = vdwg.mxu0
  %v2022 = vunpack.c.l.b16 %v33
  %v2023 = vunpack.c.l.b16 %v34
  %v2024 = vunpack.c.l.b16 %v35
  %v2025 = vunpack.c.l.b16 %v36
  %v2026 = vunpack.c.l.b16 %v37
  %v2027 = vunpack.c.l.b16 %v38
  %v2028 = vunpack.c.l.b16 %v39
  %v2029 = vunpack.c.l.b16 %v40
  %v2030 = vpack.c.b16 %v2023, %v2022
  %v2031 = vpack.c.b16 %v2025, %v2024
  %v2032 = vpack.c.b16 %v2027, %v2026
  %v2033 = vpack.c.b16 %v2029, %v2028
  %v2038 = vunpack.c.l.b16 %v225
  %v2039 = vunpack.c.h.b16 %v225
  %v2040 = vunpack.c.l.b16 %v226
  %v2041 = vunpack.c.h.b16 %v226
  %v2042 = vunpack.c.l.b16 %v227
  %v2043 = vunpack.c.h.b16 %v227
  %v2044 = vunpack.c.l.b16 %v228
  %v2045 = vunpack.c.h.b16 %v228
  %v2046 = vpack.c.b16 %v2040, %v2038
  %v2047 = vpack.c.b16 %v2041, %v2039
  %v2048 = vpack.c.b16 %v2044, %v2042
  %v2049 = vpack.c.b16 %v2045, %v2043
  %v2053 = vsel %vm740, %v2030, 0
  %v2056 = vsel %vm740, %v2031, 0
  %v2059 = vsel %vm740, %v2032, 0
  %v2062 = vsel %vm740, %v2033, 0
  %v2065 = vsel %vm1029, %v2048, 0
  %v2068 = vsel %vm1029, %v2049, 0
  %2070 = vmatpush.bf16.msra.mxu0 0
  %2071 = vmatpush.bf16.msra.mxu0 0
  %2072 = vmatpush.bf16.msra.mxu0 0
  %2073 = vmatpush.bf16.msra.mxu0 0
  %2074 = vmatpush.bf16.msra.mxu0 0
  %2075 = vmatpush.bf16.msra.mxu0 0
  %2076 = vmatpush.bf16.msra.mxu0 %v2065
  %2077 = vmatpush.bf16.msra.mxu0 %v2046
  %2078 = vmatmul.bf16.gmra.mxu0 %v2053
  %v2079 = vpop.f32.mrf.mxu0
  %v2080 = vadd.f32 %v1046, %v2079
  %v2081 = vpop.f32.mrf.mxu0
  %v2082 = vadd.f32 %v1048, %v2081
  %2083 = vmatmul.bf16.gmra.mxu0 %v2056
  %v2084 = vpop.f32.mrf.mxu0
  %v2085 = vadd.f32 %v1051, %v2084
  %v2086 = vpop.f32.mrf.mxu0
  %v2087 = vadd.f32 %v1053, %v2086
  %2088 = vmatmul.bf16.gmra.mxu0 %v2059
  %v2089 = vpop.f32.mrf.mxu0
  %v2090 = vadd.f32 %v1056, %v2089
  %v2091 = vpop.f32.mrf.mxu0
  %v2092 = vadd.f32 %v1058, %v2091
  %2093 = vmatmul.bf16.gmra.mxu0 %v2062
  %v2094 = vpop.f32.mrf.mxu0
  %v2095 = vadd.f32 %v1061, %v2094
  %v2096 = vpop.f32.mrf.mxu0
  %v2097 = vadd.f32 %v1063, %v2096
  %2098 = vmatmul.bf16.gmra.mxu0 %v742
  %v2099 = vpop.f32.mrf.mxu0
  %v2100 = vadd.f32 %v1066, %v2099
  %v2101 = vpop.f32.mrf.mxu0
  %v2102 = vadd.f32 %v1068, %v2101
  %2103 = vmatmul.bf16.gmra.mxu0 %v745
  %v2104 = vpop.f32.mrf.mxu0
  %v2105 = vadd.f32 %v1071, %v2104
  %v2106 = vpop.f32.mrf.mxu0
  %v2107 = vadd.f32 %v1073, %v2106
  %2108 = vmatmul.bf16.gmra.mxu0 %v748
  %v2109 = vpop.f32.mrf.mxu0
  %v2110 = vadd.f32 %v1076, %v2109
  %v2111 = vpop.f32.mrf.mxu0
  %v2112 = vadd.f32 %v1078, %v2111
  %2113 = vmatmul.bf16.gmra.mxu0 %v751
  %v2114 = vpop.f32.mrf.mxu0
  %v2115 = vadd.f32 %v1081, %v2114
  %v2116 = vpop.f32.mrf.mxu0
  %v2117 = vadd.f32 %v1083, %v2116
  %2118 = vmatmul.bf16.gmra.mxu0 %v754
  %v2119 = vpop.f32.mrf.mxu0
  %v2120 = vadd.f32 %v1086, %v2119
  %v2121 = vpop.f32.mrf.mxu0
  %v2122 = vadd.f32 %v1088, %v2121
  %2123 = vmatmul.bf16.gmra.mxu0 %v757
  %v2124 = vpop.f32.mrf.mxu0
  %v2125 = vadd.f32 %v1091, %v2124
  %v2126 = vpop.f32.mrf.mxu0
  %v2127 = vadd.f32 %v1093, %v2126
  %2128 = vmatmul.bf16.gmra.mxu0 %v760
  %v2129 = vpop.f32.mrf.mxu0
  %v2130 = vadd.f32 %v1096, %v2129
  %v2131 = vpop.f32.mrf.mxu0
  %v2132 = vadd.f32 %v1098, %v2131
  %2133 = vmatmul.bf16.gmra.mxu0 %v763
  %v2134 = vpop.f32.mrf.mxu0
  %v2135 = vadd.f32 %v1101, %v2134
  %v2136 = vpop.f32.mrf.mxu0
  %v2137 = vadd.f32 %v1103, %v2136
  %2138 = vmatmul.bf16.gmra.mxu0 %v766
  %v2139 = vpop.f32.mrf.mxu0
  %v2140 = vadd.f32 %v1106, %v2139
  %v2141 = vpop.f32.mrf.mxu0
  %v2142 = vadd.f32 %v1108, %v2141
  %2143 = vmatmul.bf16.gmra.mxu0 %v769
  %v2144 = vpop.f32.mrf.mxu0
  %v2145 = vadd.f32 %v1111, %v2144
  %v2146 = vpop.f32.mrf.mxu0
  %v2147 = vadd.f32 %v1113, %v2146
  %2148 = vmatmul.bf16.gmra.mxu0 %v772
  %v2149 = vpop.f32.mrf.mxu0
  %v2150 = vadd.f32 %v1116, %v2149
  %v2151 = vpop.f32.mrf.mxu0
  %v2152 = vadd.f32 %v1118, %v2151
  %2153 = vmatmul.bf16.gmra.mxu0 %v775
  %v2154 = vpop.f32.mrf.mxu0
  %v2155 = vadd.f32 %v1121, %v2154
  %v2156 = vpop.f32.mrf.mxu0
  %v2157 = vadd.f32 %v1123, %v2156
  %2158 = vmatmul.bf16.gmra.mxu0 %v778
  %v2159 = vpop.f32.mrf.mxu0
  %v2160 = vadd.f32 %v1126, %v2159
  %v2161 = vpop.f32.mrf.mxu0
  %v2162 = vadd.f32 %v1128, %v2161
  %2163 = vmatmul.bf16.gmra.mxu0 %v781
  %v2164 = vpop.f32.mrf.mxu0
  %v2165 = vadd.f32 %v1131, %v2164
  %v2166 = vpop.f32.mrf.mxu0
  %v2167 = vadd.f32 %v1133, %v2166
  %2168 = vmatmul.bf16.gmra.mxu0 %v784
  %v2169 = vpop.f32.mrf.mxu0
  %v2170 = vadd.f32 %v1136, %v2169
  %v2171 = vpop.f32.mrf.mxu0
  %v2172 = vadd.f32 %v1138, %v2171
  %2173 = vmatmul.bf16.gmra.mxu0 %v787
  %v2174 = vpop.f32.mrf.mxu0
  %v2175 = vadd.f32 %v1141, %v2174
  %v2176 = vpop.f32.mrf.mxu0
  %v2177 = vadd.f32 %v1143, %v2176
  %2178 = vmatmul.bf16.gmra.mxu0 %v790
  %v2179 = vpop.f32.mrf.mxu0
  %v2180 = vadd.f32 %v1146, %v2179
  %v2181 = vpop.f32.mrf.mxu0
  %v2182 = vadd.f32 %v1148, %v2181
  %2183 = vmatmul.bf16.gmra.mxu0 %v793
  %v2184 = vpop.f32.mrf.mxu0
  %v2185 = vadd.f32 %v1151, %v2184
  %v2186 = vpop.f32.mrf.mxu0
  %v2187 = vadd.f32 %v1153, %v2186
  %2188 = vmatmul.bf16.gmra.mxu0 %v796
  %v2189 = vpop.f32.mrf.mxu0
  %v2190 = vadd.f32 %v1156, %v2189
  %v2191 = vpop.f32.mrf.mxu0
  %v2192 = vadd.f32 %v1158, %v2191
  %2193 = vmatmul.bf16.gmra.mxu0 %v799
  %v2194 = vpop.f32.mrf.mxu0
  %v2195 = vadd.f32 %v1161, %v2194
  %v2196 = vpop.f32.mrf.mxu0
  %v2197 = vadd.f32 %v1163, %v2196
  %2198 = vmatmul.bf16.gmra.mxu0 %v802
  %v2199 = vpop.f32.mrf.mxu0
  %v2200 = vadd.f32 %v1166, %v2199
  %v2201 = vpop.f32.mrf.mxu0
  %v2202 = vadd.f32 %v1168, %v2201
  %2203 = vmatmul.bf16.gmra.mxu0 %v805
  %v2204 = vpop.f32.mrf.mxu0
  %v2205 = vadd.f32 %v1171, %v2204
  %v2206 = vpop.f32.mrf.mxu0
  %v2207 = vadd.f32 %v1173, %v2206
  %2208 = vmatmul.bf16.gmra.mxu0 %v808
  %v2209 = vpop.f32.mrf.mxu0
  %v2210 = vadd.f32 %v1176, %v2209
  %v2211 = vpop.f32.mrf.mxu0
  %v2212 = vadd.f32 %v1178, %v2211
  %2213 = vmatmul.bf16.gmra.mxu0 %v811
  %v2214 = vpop.f32.mrf.mxu0
  %v2215 = vadd.f32 %v1181, %v2214
  %v2216 = vpop.f32.mrf.mxu0
  %v2217 = vadd.f32 %v1183, %v2216
  %2218 = vmatmul.bf16.gmra.mxu0 %v814
  %v2219 = vpop.f32.mrf.mxu0
  %v2220 = vadd.f32 %v1186, %v2219
  %v2221 = vpop.f32.mrf.mxu0
  %v2222 = vadd.f32 %v1188, %v2221
  %2223 = vmatmul.bf16.gmra.mxu0 %v817
  %v2224 = vpop.f32.mrf.mxu0
  %v2225 = vadd.f32 %v1191, %v2224
  %v2226 = vpop.f32.mrf.mxu0
  %v2227 = vadd.f32 %v1193, %v2226
  %2228 = vmatmul.bf16.gmra.mxu0 %v820
  %v2229 = vpop.f32.mrf.mxu0
  %v2230 = vadd.f32 %v1196, %v2229
  %v2231 = vpop.f32.mrf.mxu0
  %v2232 = vadd.f32 %v1198, %v2231
  %2233 = vmatmul.bf16.gmra.mxu0 %v823
  %v2234 = vpop.f32.mrf.mxu0
  %v2235 = vadd.f32 %v1201, %v2234
  %v2236 = vpop.f32.mrf.mxu0
  %v2237 = vadd.f32 %v1203, %v2236
  %2238 = vmatmul.bf16.gmra.mxu0 %v826
  %v2239 = vpop.f32.mrf.mxu0
  %v2240 = vadd.f32 %v1206, %v2239
  %v2241 = vpop.f32.mrf.mxu0
  %v2242 = vadd.f32 %v1208, %v2241
  %2243 = vmatmul.bf16.gmra.mxu0 %v829
  %v2244 = vpop.f32.mrf.mxu0
  %v2245 = vadd.f32 %v1211, %v2244
  %v2246 = vpop.f32.mrf.mxu0
  %v2247 = vadd.f32 %v1213, %v2246
  %2248 = vmatmul.bf16.gmra.mxu0 %v832
  %v2249 = vpop.f32.mrf.mxu0
  %v2250 = vadd.f32 %v1216, %v2249
  %v2251 = vpop.f32.mrf.mxu0
  %v2252 = vadd.f32 %v1218, %v2251
  %2253 = vmatmul.bf16.gmra.mxu0 %v835
  %v2254 = vpop.f32.mrf.mxu0
  %v2255 = vadd.f32 %v1221, %v2254
  %v2256 = vpop.f32.mrf.mxu0
  %v2257 = vadd.f32 %v1223, %v2256
  %2258 = vmatmul.bf16.gmra.mxu0 %v838
  %v2259 = vpop.f32.mrf.mxu0
  %v2260 = vadd.f32 %v1226, %v2259
  %v2261 = vpop.f32.mrf.mxu0
  %v2262 = vadd.f32 %v1228, %v2261
  %2263 = vmatmul.bf16.gmra.mxu0 %v841
  %v2264 = vpop.f32.mrf.mxu0
  %v2265 = vadd.f32 %v1231, %v2264
  %v2266 = vpop.f32.mrf.mxu0
  %v2267 = vadd.f32 %v1233, %v2266
  %2268 = vmatmul.bf16.gmra.mxu0 %v844
  %v2269 = vpop.f32.mrf.mxu0
  %v2270 = vadd.f32 %v1236, %v2269
  %v2271 = vpop.f32.mrf.mxu0
  %v2272 = vadd.f32 %v1238, %v2271
  %2273 = vmatmul.bf16.gmra.mxu0 %v847
  %v2274 = vpop.f32.mrf.mxu0
  %v2275 = vadd.f32 %v1241, %v2274
  %v2276 = vpop.f32.mrf.mxu0
  %v2277 = vadd.f32 %v1243, %v2276
  %2278 = vmatmul.bf16.gmra.mxu0 %v850
  %v2279 = vpop.f32.mrf.mxu0
  %v2280 = vadd.f32 %v1246, %v2279
  %v2281 = vpop.f32.mrf.mxu0
  %v2282 = vadd.f32 %v1248, %v2281
  %2283 = vmatmul.bf16.gmra.mxu0 %v853
  %v2284 = vpop.f32.mrf.mxu0
  %v2285 = vadd.f32 %v1251, %v2284
  %v2286 = vpop.f32.mrf.mxu0
  %v2287 = vadd.f32 %v1253, %v2286
  %2288 = vmatmul.bf16.gmra.mxu0 %v856
  %v2289 = vpop.f32.mrf.mxu0
  %v2290 = vadd.f32 %v1256, %v2289
  %v2291 = vpop.f32.mrf.mxu0
  %v2292 = vadd.f32 %v1258, %v2291
  %2293 = vmatmul.bf16.gmra.mxu0 %v859
  %v2294 = vpop.f32.mrf.mxu0
  %v2295 = vadd.f32 %v1261, %v2294
  %v2296 = vpop.f32.mrf.mxu0
  %v2297 = vadd.f32 %v1263, %v2296
  %2298 = vmatmul.bf16.gmra.mxu0 %v862
  %v2299 = vpop.f32.mrf.mxu0
  %v2300 = vadd.f32 %v1266, %v2299
  %v2301 = vpop.f32.mrf.mxu0
  %v2302 = vadd.f32 %v1268, %v2301
  %2303 = vmatmul.bf16.gmra.mxu0 %v865
  %v2304 = vpop.f32.mrf.mxu0
  %v2305 = vadd.f32 %v1271, %v2304
  %v2306 = vpop.f32.mrf.mxu0
  %v2307 = vadd.f32 %v1273, %v2306
  %2308 = vmatmul.bf16.gmra.mxu0 %v868
  %v2309 = vpop.f32.mrf.mxu0
  %v2310 = vadd.f32 %v1276, %v2309
  %v2311 = vpop.f32.mrf.mxu0
  %v2312 = vadd.f32 %v1278, %v2311
  %2313 = vmatmul.bf16.gmra.mxu0 %v871
  %v2314 = vpop.f32.mrf.mxu0
  %v2315 = vadd.f32 %v1281, %v2314
  %v2316 = vpop.f32.mrf.mxu0
  %v2317 = vadd.f32 %v1283, %v2316
  %2318 = vmatmul.bf16.gmra.mxu0 %v874
  %v2319 = vpop.f32.mrf.mxu0
  %v2320 = vadd.f32 %v1286, %v2319
  %v2321 = vpop.f32.mrf.mxu0
  %v2322 = vadd.f32 %v1288, %v2321
  %2323 = vmatmul.bf16.gmra.mxu0 %v877
  %v2324 = vpop.f32.mrf.mxu0
  %v2325 = vadd.f32 %v1291, %v2324
  %v2326 = vpop.f32.mrf.mxu0
  %v2327 = vadd.f32 %v1293, %v2326
  %2328 = vmatmul.bf16.gmra.mxu0 %v880
  %v2329 = vpop.f32.mrf.mxu0
  %v2330 = vadd.f32 %v1296, %v2329
  %v2331 = vpop.f32.mrf.mxu0
  %v2332 = vadd.f32 %v1298, %v2331
  %2333 = vmatmul.bf16.gmra.mxu0 %v883
  %v2334 = vpop.f32.mrf.mxu0
  %v2335 = vadd.f32 %v1301, %v2334
  %v2336 = vpop.f32.mrf.mxu0
  %v2337 = vadd.f32 %v1303, %v2336
  %2338 = vmatmul.bf16.gmra.mxu0 %v886
  %v2339 = vpop.f32.mrf.mxu0
  %v2340 = vadd.f32 %v1306, %v2339
  %v2341 = vpop.f32.mrf.mxu0
  %v2342 = vadd.f32 %v1308, %v2341
  %2343 = vmatmul.bf16.gmra.mxu0 %v889
  %v2344 = vpop.f32.mrf.mxu0
  %v2345 = vadd.f32 %v1311, %v2344
  %v2346 = vpop.f32.mrf.mxu0
  %v2347 = vadd.f32 %v1313, %v2346
  %2348 = vmatmul.bf16.gmra.mxu0 %v892
  %v2349 = vpop.f32.mrf.mxu0
  %v2350 = vadd.f32 %v1316, %v2349
  %v2351 = vpop.f32.mrf.mxu0
  %v2352 = vadd.f32 %v1318, %v2351
  %2353 = vmatmul.bf16.gmra.mxu0 %v895
  %v2354 = vpop.f32.mrf.mxu0
  %v2355 = vadd.f32 %v1321, %v2354
  %v2356 = vpop.f32.mrf.mxu0
  %v2357 = vadd.f32 %v1323, %v2356
  %2358 = vmatmul.bf16.gmra.mxu0 %v898
  %v2359 = vpop.f32.mrf.mxu0
  %v2360 = vadd.f32 %v1326, %v2359
  %v2361 = vpop.f32.mrf.mxu0
  %v2362 = vadd.f32 %v1328, %v2361
  %2363 = vmatmul.bf16.gmra.mxu0 %v901
  %v2364 = vpop.f32.mrf.mxu0
  %v2365 = vadd.f32 %v1331, %v2364
  %v2366 = vpop.f32.mrf.mxu0
  %v2367 = vadd.f32 %v1333, %v2366
  %2368 = vmatmul.bf16.gmra.mxu0 %v904
  %v2369 = vpop.f32.mrf.mxu0
  %v2370 = vadd.f32 %v1336, %v2369
  %v2371 = vpop.f32.mrf.mxu0
  %v2372 = vadd.f32 %v1338, %v2371
  %2373 = vmatmul.bf16.gmra.mxu0 %v907
  %v2374 = vpop.f32.mrf.mxu0
  %v2375 = vadd.f32 %v1341, %v2374
  %v2376 = vpop.f32.mrf.mxu0
  %v2377 = vadd.f32 %v1343, %v2376
  %2378 = vmatmul.bf16.gmra.mxu0 %v910
  %v2379 = vpop.f32.mrf.mxu0
  %v2380 = vadd.f32 %v1346, %v2379
  %v2381 = vpop.f32.mrf.mxu0
  %v2382 = vadd.f32 %v1348, %v2381
  %2383 = vmatmul.bf16.gmra.mxu0 %v913
  %v2384 = vpop.f32.mrf.mxu0
  %v2385 = vadd.f32 %v1351, %v2384
  %v2386 = vpop.f32.mrf.mxu0
  %v2387 = vadd.f32 %v1353, %v2386
  %2388 = vmatmul.bf16.gmra.mxu0 %v916
  %v2389 = vpop.f32.mrf.mxu0
  %v2390 = vadd.f32 %v1356, %v2389
  %v2391 = vpop.f32.mrf.mxu0
  %v2392 = vadd.f32 %v1358, %v2391
  %2393 = vmatmul.bf16.gmra.mxu0 %v919
  %v2394 = vpop.f32.mrf.mxu0
  %v2395 = vadd.f32 %v1361, %v2394
  %v2396 = vpop.f32.mrf.mxu0
  %v2397 = vadd.f32 %v1363, %v2396
  %2398 = vmatmul.bf16.gmra.mxu0 %v922
  %v2399 = vpop.f32.mrf.mxu0
  %v2400 = vadd.f32 %v1366, %v2399
  %v2401 = vpop.f32.mrf.mxu0
  %v2402 = vadd.f32 %v1368, %v2401
  %2403 = vmatmul.bf16.gmra.mxu0 %v925
  %v2404 = vpop.f32.mrf.mxu0
  %v2405 = vadd.f32 %v1371, %v2404
  %v2406 = vpop.f32.mrf.mxu0
  %v2407 = vadd.f32 %v1373, %v2406
  %2408 = vmatmul.bf16.gmra.mxu0 %v928
  %v2409 = vpop.f32.mrf.mxu0
  %v2410 = vadd.f32 %v1376, %v2409
  %v2411 = vpop.f32.mrf.mxu0
  %v2412 = vadd.f32 %v1378, %v2411
  %2413 = vmatmul.bf16.gmra.mxu0 %v931
  %v2414 = vpop.f32.mrf.mxu0
  %v2415 = vadd.f32 %v1381, %v2414
  %v2416 = vpop.f32.mrf.mxu0
  %v2417 = vadd.f32 %v1383, %v2416
  %2418 = vmatmul.bf16.gmra.mxu0 %v934
  %v2419 = vpop.f32.mrf.mxu0
  %v2420 = vadd.f32 %v1386, %v2419
  %v2421 = vpop.f32.mrf.mxu0
  %v2422 = vadd.f32 %v1388, %v2421
  %2423 = vmatmul.bf16.gmra.mxu0 %v937
  %v2424 = vpop.f32.mrf.mxu0
  %v2425 = vadd.f32 %v1391, %v2424
  %v2426 = vpop.f32.mrf.mxu0
  %v2427 = vadd.f32 %v1393, %v2426
  %2428 = vmatmul.bf16.gmra.mxu0 %v940
  %v2429 = vpop.f32.mrf.mxu0
  %v2430 = vadd.f32 %v1396, %v2429
  %v2431 = vpop.f32.mrf.mxu0
  %v2432 = vadd.f32 %v1398, %v2431
  %2433 = vmatmul.bf16.gmra.mxu0 %v943
  %v2434 = vpop.f32.mrf.mxu0
  %v2435 = vadd.f32 %v1401, %v2434
  %v2436 = vpop.f32.mrf.mxu0
  %v2437 = vadd.f32 %v1403, %v2436
  %2438 = vmatmul.bf16.gmra.mxu0 %v946
  %v2439 = vpop.f32.mrf.mxu0
  %v2440 = vadd.f32 %v1406, %v2439
  %v2441 = vpop.f32.mrf.mxu0
  %v2442 = vadd.f32 %v1408, %v2441
  %2443 = vmatmul.bf16.gmra.mxu0 %v949
  %v2444 = vpop.f32.mrf.mxu0
  %v2445 = vadd.f32 %v1411, %v2444
  %v2446 = vpop.f32.mrf.mxu0
  %v2447 = vadd.f32 %v1413, %v2446
  %2448 = vmatmul.bf16.gmra.mxu0 %v952
  %v2449 = vpop.f32.mrf.mxu0
  %v2450 = vadd.f32 %v1416, %v2449
  %v2451 = vpop.f32.mrf.mxu0
  %v2452 = vadd.f32 %v1418, %v2451
  %2453 = vmatmul.bf16.gmra.mxu0 %v955
  %v2454 = vpop.f32.mrf.mxu0
  %v2455 = vadd.f32 %v1421, %v2454
  %v2456 = vpop.f32.mrf.mxu0
  %v2457 = vadd.f32 %v1423, %v2456
  %2458 = vmatmul.bf16.gmra.mxu0 %v958
  %v2459 = vpop.f32.mrf.mxu0
  %v2460 = vadd.f32 %v1426, %v2459
  %v2461 = vpop.f32.mrf.mxu0
  %v2462 = vadd.f32 %v1428, %v2461
  %2463 = vmatmul.bf16.gmra.mxu0 %v961
  %v2464 = vpop.f32.mrf.mxu0
  %v2465 = vadd.f32 %v1431, %v2464
  %v2466 = vpop.f32.mrf.mxu0
  %v2467 = vadd.f32 %v1433, %v2466
  %2468 = vmatmul.bf16.gmra.mxu0 %v964
  %v2469 = vpop.f32.mrf.mxu0
  %v2470 = vadd.f32 %v1436, %v2469
  %v2471 = vpop.f32.mrf.mxu0
  %v2472 = vadd.f32 %v1438, %v2471
  %2473 = vmatmul.bf16.gmra.mxu0 %v967
  %v2474 = vpop.f32.mrf.mxu0
  %v2475 = vadd.f32 %v1441, %v2474
  %v2476 = vpop.f32.mrf.mxu0
  %v2477 = vadd.f32 %v1443, %v2476
  %2478 = vmatmul.bf16.gmra.mxu0 %v970
  %v2479 = vpop.f32.mrf.mxu0
  %v2480 = vadd.f32 %v1446, %v2479
  %v2481 = vpop.f32.mrf.mxu0
  %v2482 = vadd.f32 %v1448, %v2481
  %2483 = vmatmul.bf16.gmra.mxu0 %v973
  %v2484 = vpop.f32.mrf.mxu0
  %v2485 = vadd.f32 %v1451, %v2484
  %v2486 = vpop.f32.mrf.mxu0
  %v2487 = vadd.f32 %v1453, %v2486
  %2488 = vmatmul.bf16.gmra.mxu0 %v976
  %v2489 = vpop.f32.mrf.mxu0
  %v2490 = vadd.f32 %v1456, %v2489
  %v2491 = vpop.f32.mrf.mxu0
  %v2492 = vadd.f32 %v1458, %v2491
  %2493 = vmatmul.bf16.gmra.mxu0 %v979
  %v2494 = vpop.f32.mrf.mxu0
  %v2495 = vadd.f32 %v1461, %v2494
  %v2496 = vpop.f32.mrf.mxu0
  %v2497 = vadd.f32 %v1463, %v2496
  %2498 = vmatmul.bf16.gmra.mxu0 %v982
  %v2499 = vpop.f32.mrf.mxu0
  %v2500 = vadd.f32 %v1466, %v2499
  %v2501 = vpop.f32.mrf.mxu0
  %v2502 = vadd.f32 %v1468, %v2501
  %2503 = vmatmul.bf16.gmra.mxu0 %v985
  %v2504 = vpop.f32.mrf.mxu0
  %v2505 = vadd.f32 %v1471, %v2504
  %v2506 = vpop.f32.mrf.mxu0
  %v2507 = vadd.f32 %v1473, %v2506
  %2508 = vmatmul.bf16.gmra.mxu0 %v988
  %v2509 = vpop.f32.mrf.mxu0
  %v2510 = vadd.f32 %v1476, %v2509
  %v2511 = vpop.f32.mrf.mxu0
  %v2512 = vadd.f32 %v1478, %v2511
  %2513 = vmatmul.bf16.gmra.mxu0 %v991
  %v2514 = vpop.f32.mrf.mxu0
  %v2515 = vadd.f32 %v1481, %v2514
  %v2516 = vpop.f32.mrf.mxu0
  %v2517 = vadd.f32 %v1483, %v2516
  %2518 = vmatmul.bf16.gmra.mxu0 %v994
  %v2519 = vpop.f32.mrf.mxu0
  %v2520 = vadd.f32 %v1486, %v2519
  %v2521 = vpop.f32.mrf.mxu0
  %v2522 = vadd.f32 %v1488, %v2521
  %2523 = vmatmul.bf16.gmra.mxu0 %v997
  %v2524 = vpop.f32.mrf.mxu0
  %v2525 = vadd.f32 %v1491, %v2524
  %v2526 = vpop.f32.mrf.mxu0
  %v2527 = vadd.f32 %v1493, %v2526
  %2528 = vmatmul.bf16.gmra.mxu0 %v1000
  %v2529 = vpop.f32.mrf.mxu0
  %v2530 = vadd.f32 %v1496, %v2529
  %v2531 = vpop.f32.mrf.mxu0
  %v2532 = vadd.f32 %v1498, %v2531
  %2533 = vmatmul.bf16.gmra.mxu0 %v1003
  %v2534 = vpop.f32.mrf.mxu0
  %v2535 = vadd.f32 %v1501, %v2534
  %v2536 = vpop.f32.mrf.mxu0
  %v2537 = vadd.f32 %v1503, %v2536
  %2538 = vmatmul.bf16.gmra.mxu0 %v1006
  %v2539 = vpop.f32.mrf.mxu0
  %v2540 = vadd.f32 %v1506, %v2539
  %v2541 = vpop.f32.mrf.mxu0
  %v2542 = vadd.f32 %v1508, %v2541
  %2543 = vmatmul.bf16.gmra.mxu0 %v1009
  %v2544 = vpop.f32.mrf.mxu0
  %v2545 = vadd.f32 %v1511, %v2544
  %v2546 = vpop.f32.mrf.mxu0
  %v2547 = vadd.f32 %v1513, %v2546
  %2548 = vmatmul.bf16.gmra.mxu0 %v1012
  %v2549 = vpop.f32.mrf.mxu0
  %v2550 = vadd.f32 %v1516, %v2549
  %v2551 = vpop.f32.mrf.mxu0
  %v2552 = vadd.f32 %v1518, %v2551
  %2553 = vmatmul.bf16.gmra.mxu0 %v1015
  %v2554 = vpop.f32.mrf.mxu0
  %v2555 = vadd.f32 %v1521, %v2554
  %v2556 = vpop.f32.mrf.mxu0
  %v2557 = vadd.f32 %v1523, %v2556
  %2558 = vdwg.mxu0
  %2559 = vmatpush.bf16.msra.mxu0 0
  %2560 = vmatpush.bf16.msra.mxu0 0
  %2561 = vmatpush.bf16.msra.mxu0 0
  %2562 = vmatpush.bf16.msra.mxu0 0
  %2563 = vmatpush.bf16.msra.mxu0 0
  %2564 = vmatpush.bf16.msra.mxu0 0
  %2565 = vmatpush.bf16.msra.mxu0 %v2068
  %2566 = vmatpush.bf16.msra.mxu0 %v2047
  %2567 = vmatmul.bf16.gmra.mxu0 %v2053
  %v2568 = vpop.f32.mrf.mxu0
  %v2569 = vadd.f32 %v1535, %v2568
  %v2570 = vpop.f32.mrf.mxu0
  %v2571 = vadd.f32 %v1537, %v2570
  %2572 = vmatmul.bf16.gmra.mxu0 %v2056
  %v2573 = vpop.f32.mrf.mxu0
  %v2574 = vadd.f32 %v1540, %v2573
  %v2575 = vpop.f32.mrf.mxu0
  %v2576 = vadd.f32 %v1542, %v2575
  %2577 = vmatmul.bf16.gmra.mxu0 %v2059
  %v2578 = vpop.f32.mrf.mxu0
  %v2579 = vadd.f32 %v1545, %v2578
  %v2580 = vpop.f32.mrf.mxu0
  %v2581 = vadd.f32 %v1547, %v2580
  %2582 = vmatmul.bf16.gmra.mxu0 %v2062
  %v2583 = vpop.f32.mrf.mxu0
  %v2584 = vadd.f32 %v1550, %v2583
  %v2585 = vpop.f32.mrf.mxu0
  %v2586 = vadd.f32 %v1552, %v2585
  %2587 = vmatmul.bf16.gmra.mxu0 %v742
  %v2588 = vpop.f32.mrf.mxu0
  %v2589 = vadd.f32 %v1555, %v2588
  %v2590 = vpop.f32.mrf.mxu0
  %v2591 = vadd.f32 %v1557, %v2590
  %2592 = vmatmul.bf16.gmra.mxu0 %v745
  %v2593 = vpop.f32.mrf.mxu0
  %v2594 = vadd.f32 %v1560, %v2593
  %v2595 = vpop.f32.mrf.mxu0
  %v2596 = vadd.f32 %v1562, %v2595
  %2597 = vmatmul.bf16.gmra.mxu0 %v748
  %v2598 = vpop.f32.mrf.mxu0
  %v2599 = vadd.f32 %v1565, %v2598
  %v2600 = vpop.f32.mrf.mxu0
  %v2601 = vadd.f32 %v1567, %v2600
  %2602 = vmatmul.bf16.gmra.mxu0 %v751
  %v2603 = vpop.f32.mrf.mxu0
  %v2604 = vadd.f32 %v1570, %v2603
  %v2605 = vpop.f32.mrf.mxu0
  %v2606 = vadd.f32 %v1572, %v2605
  %2607 = vmatmul.bf16.gmra.mxu0 %v754
  %v2608 = vpop.f32.mrf.mxu0
  %v2609 = vadd.f32 %v1575, %v2608
  %v2610 = vpop.f32.mrf.mxu0
  %v2611 = vadd.f32 %v1577, %v2610
  %2612 = vmatmul.bf16.gmra.mxu0 %v757
  %v2613 = vpop.f32.mrf.mxu0
  %v2614 = vadd.f32 %v1580, %v2613
  %v2615 = vpop.f32.mrf.mxu0
  %v2616 = vadd.f32 %v1582, %v2615
  %2617 = vmatmul.bf16.gmra.mxu0 %v760
  %v2618 = vpop.f32.mrf.mxu0
  %v2619 = vadd.f32 %v1585, %v2618
  %v2620 = vpop.f32.mrf.mxu0
  %v2621 = vadd.f32 %v1587, %v2620
  %2622 = vmatmul.bf16.gmra.mxu0 %v763
  %v2623 = vpop.f32.mrf.mxu0
  %v2624 = vadd.f32 %v1590, %v2623
  %v2625 = vpop.f32.mrf.mxu0
  %v2626 = vadd.f32 %v1592, %v2625
  %2627 = vmatmul.bf16.gmra.mxu0 %v766
  %v2628 = vpop.f32.mrf.mxu0
  %v2629 = vadd.f32 %v1595, %v2628
  %v2630 = vpop.f32.mrf.mxu0
  %v2631 = vadd.f32 %v1597, %v2630
  %2632 = vmatmul.bf16.gmra.mxu0 %v769
  %v2633 = vpop.f32.mrf.mxu0
  %v2634 = vadd.f32 %v1600, %v2633
  %v2635 = vpop.f32.mrf.mxu0
  %v2636 = vadd.f32 %v1602, %v2635
  %2637 = vmatmul.bf16.gmra.mxu0 %v772
  %v2638 = vpop.f32.mrf.mxu0
  %v2639 = vadd.f32 %v1605, %v2638
  %v2640 = vpop.f32.mrf.mxu0
  %v2641 = vadd.f32 %v1607, %v2640
  %2642 = vmatmul.bf16.gmra.mxu0 %v775
  %v2643 = vpop.f32.mrf.mxu0
  %v2644 = vadd.f32 %v1610, %v2643
  %v2645 = vpop.f32.mrf.mxu0
  %v2646 = vadd.f32 %v1612, %v2645
  %2647 = vmatmul.bf16.gmra.mxu0 %v778
  %v2648 = vpop.f32.mrf.mxu0
  %v2649 = vadd.f32 %v1615, %v2648
  %v2650 = vpop.f32.mrf.mxu0
  %v2651 = vadd.f32 %v1617, %v2650
  %2652 = vmatmul.bf16.gmra.mxu0 %v781
  %v2653 = vpop.f32.mrf.mxu0
  %v2654 = vadd.f32 %v1620, %v2653
  %v2655 = vpop.f32.mrf.mxu0
  %v2656 = vadd.f32 %v1622, %v2655
  %2657 = vmatmul.bf16.gmra.mxu0 %v784
  %v2658 = vpop.f32.mrf.mxu0
  %v2659 = vadd.f32 %v1625, %v2658
  %v2660 = vpop.f32.mrf.mxu0
  %v2661 = vadd.f32 %v1627, %v2660
  %2662 = vmatmul.bf16.gmra.mxu0 %v787
  %v2663 = vpop.f32.mrf.mxu0
  %v2664 = vadd.f32 %v1630, %v2663
  %v2665 = vpop.f32.mrf.mxu0
  %v2666 = vadd.f32 %v1632, %v2665
  %2667 = vmatmul.bf16.gmra.mxu0 %v790
  %v2668 = vpop.f32.mrf.mxu0
  %v2669 = vadd.f32 %v1635, %v2668
  %v2670 = vpop.f32.mrf.mxu0
  %v2671 = vadd.f32 %v1637, %v2670
  %2672 = vmatmul.bf16.gmra.mxu0 %v793
  %v2673 = vpop.f32.mrf.mxu0
  %v2674 = vadd.f32 %v1640, %v2673
  %v2675 = vpop.f32.mrf.mxu0
  %v2676 = vadd.f32 %v1642, %v2675
  %2677 = vmatmul.bf16.gmra.mxu0 %v796
  %v2678 = vpop.f32.mrf.mxu0
  %v2679 = vadd.f32 %v1645, %v2678
  %v2680 = vpop.f32.mrf.mxu0
  %v2681 = vadd.f32 %v1647, %v2680
  %2682 = vmatmul.bf16.gmra.mxu0 %v799
  %v2683 = vpop.f32.mrf.mxu0
  %v2684 = vadd.f32 %v1650, %v2683
  %v2685 = vpop.f32.mrf.mxu0
  %v2686 = vadd.f32 %v1652, %v2685
  %2687 = vmatmul.bf16.gmra.mxu0 %v802
  %v2688 = vpop.f32.mrf.mxu0
  %v2689 = vadd.f32 %v1655, %v2688
  %v2690 = vpop.f32.mrf.mxu0
  %v2691 = vadd.f32 %v1657, %v2690
  %2692 = vmatmul.bf16.gmra.mxu0 %v805
  %v2693 = vpop.f32.mrf.mxu0
  %v2694 = vadd.f32 %v1660, %v2693
  %v2695 = vpop.f32.mrf.mxu0
  %v2696 = vadd.f32 %v1662, %v2695
  %2697 = vmatmul.bf16.gmra.mxu0 %v808
  %v2698 = vpop.f32.mrf.mxu0
  %v2699 = vadd.f32 %v1665, %v2698
  %v2700 = vpop.f32.mrf.mxu0
  %v2701 = vadd.f32 %v1667, %v2700
  %2702 = vmatmul.bf16.gmra.mxu0 %v811
  %v2703 = vpop.f32.mrf.mxu0
  %v2704 = vadd.f32 %v1670, %v2703
  %v2705 = vpop.f32.mrf.mxu0
  %v2706 = vadd.f32 %v1672, %v2705
  %2707 = vmatmul.bf16.gmra.mxu0 %v814
  %v2708 = vpop.f32.mrf.mxu0
  %v2709 = vadd.f32 %v1675, %v2708
  %v2710 = vpop.f32.mrf.mxu0
  %v2711 = vadd.f32 %v1677, %v2710
  %2712 = vmatmul.bf16.gmra.mxu0 %v817
  %v2713 = vpop.f32.mrf.mxu0
  %v2714 = vadd.f32 %v1680, %v2713
  %v2715 = vpop.f32.mrf.mxu0
  %v2716 = vadd.f32 %v1682, %v2715
  %2717 = vmatmul.bf16.gmra.mxu0 %v820
  %v2718 = vpop.f32.mrf.mxu0
  %v2719 = vadd.f32 %v1685, %v2718
  %v2720 = vpop.f32.mrf.mxu0
  %v2721 = vadd.f32 %v1687, %v2720
  %2722 = vmatmul.bf16.gmra.mxu0 %v823
  %v2723 = vpop.f32.mrf.mxu0
  %v2724 = vadd.f32 %v1690, %v2723
  %v2725 = vpop.f32.mrf.mxu0
  %v2726 = vadd.f32 %v1692, %v2725
  %2727 = vmatmul.bf16.gmra.mxu0 %v826
  %v2728 = vpop.f32.mrf.mxu0
  %v2729 = vadd.f32 %v1695, %v2728
  %v2730 = vpop.f32.mrf.mxu0
  %v2731 = vadd.f32 %v1697, %v2730
  %2732 = vmatmul.bf16.gmra.mxu0 %v829
  %v2733 = vpop.f32.mrf.mxu0
  %v2734 = vadd.f32 %v1700, %v2733
  %v2735 = vpop.f32.mrf.mxu0
  %v2736 = vadd.f32 %v1702, %v2735
  %2737 = vmatmul.bf16.gmra.mxu0 %v832
  %v2738 = vpop.f32.mrf.mxu0
  %v2739 = vadd.f32 %v1705, %v2738
  %v2740 = vpop.f32.mrf.mxu0
  %v2741 = vadd.f32 %v1707, %v2740
  %2742 = vmatmul.bf16.gmra.mxu0 %v835
  %v2743 = vpop.f32.mrf.mxu0
  %v2744 = vadd.f32 %v1710, %v2743
  %v2745 = vpop.f32.mrf.mxu0
  %v2746 = vadd.f32 %v1712, %v2745
  %2747 = vmatmul.bf16.gmra.mxu0 %v838
  %v2748 = vpop.f32.mrf.mxu0
  %v2749 = vadd.f32 %v1715, %v2748
  %v2750 = vpop.f32.mrf.mxu0
  %v2751 = vadd.f32 %v1717, %v2750
  %2752 = vmatmul.bf16.gmra.mxu0 %v841
  %v2753 = vpop.f32.mrf.mxu0
  %v2754 = vadd.f32 %v1720, %v2753
  %v2755 = vpop.f32.mrf.mxu0
  %v2756 = vadd.f32 %v1722, %v2755
  %2757 = vmatmul.bf16.gmra.mxu0 %v844
  %v2758 = vpop.f32.mrf.mxu0
  %v2759 = vadd.f32 %v1725, %v2758
  %v2760 = vpop.f32.mrf.mxu0
  %v2761 = vadd.f32 %v1727, %v2760
  %2762 = vmatmul.bf16.gmra.mxu0 %v847
  %v2763 = vpop.f32.mrf.mxu0
  %v2764 = vadd.f32 %v1730, %v2763
  %v2765 = vpop.f32.mrf.mxu0
  %v2766 = vadd.f32 %v1732, %v2765
  %2767 = vmatmul.bf16.gmra.mxu0 %v850
  %v2768 = vpop.f32.mrf.mxu0
  %v2769 = vadd.f32 %v1735, %v2768
  %v2770 = vpop.f32.mrf.mxu0
  %v2771 = vadd.f32 %v1737, %v2770
  %2772 = vmatmul.bf16.gmra.mxu0 %v853
  %v2773 = vpop.f32.mrf.mxu0
  %v2774 = vadd.f32 %v1740, %v2773
  %v2775 = vpop.f32.mrf.mxu0
  %v2776 = vadd.f32 %v1742, %v2775
  %2777 = vmatmul.bf16.gmra.mxu0 %v856
  %v2778 = vpop.f32.mrf.mxu0
  %v2779 = vadd.f32 %v1745, %v2778
  %v2780 = vpop.f32.mrf.mxu0
  %v2781 = vadd.f32 %v1747, %v2780
  %2782 = vmatmul.bf16.gmra.mxu0 %v859
  %v2783 = vpop.f32.mrf.mxu0
  %v2784 = vadd.f32 %v1750, %v2783
  %v2785 = vpop.f32.mrf.mxu0
  %v2786 = vadd.f32 %v1752, %v2785
  %2787 = vmatmul.bf16.gmra.mxu0 %v862
  %v2788 = vpop.f32.mrf.mxu0
  %v2789 = vadd.f32 %v1755, %v2788
  %v2790 = vpop.f32.mrf.mxu0
  %v2791 = vadd.f32 %v1757, %v2790
  %2792 = vmatmul.bf16.gmra.mxu0 %v865
  %v2793 = vpop.f32.mrf.mxu0
  %v2794 = vadd.f32 %v1760, %v2793
  %v2795 = vpop.f32.mrf.mxu0
  %v2796 = vadd.f32 %v1762, %v2795
  %2797 = vmatmul.bf16.gmra.mxu0 %v868
  %v2798 = vpop.f32.mrf.mxu0
  %v2799 = vadd.f32 %v1765, %v2798
  %v2800 = vpop.f32.mrf.mxu0
  %v2801 = vadd.f32 %v1767, %v2800
  %2802 = vmatmul.bf16.gmra.mxu0 %v871
  %v2803 = vpop.f32.mrf.mxu0
  %v2804 = vadd.f32 %v1770, %v2803
  %v2805 = vpop.f32.mrf.mxu0
  %v2806 = vadd.f32 %v1772, %v2805
  %2807 = vmatmul.bf16.gmra.mxu0 %v874
  %v2808 = vpop.f32.mrf.mxu0
  %v2809 = vadd.f32 %v1775, %v2808
  %v2810 = vpop.f32.mrf.mxu0
  %v2811 = vadd.f32 %v1777, %v2810
  %2812 = vmatmul.bf16.gmra.mxu0 %v877
  %v2813 = vpop.f32.mrf.mxu0
  %v2814 = vadd.f32 %v1780, %v2813
  %v2815 = vpop.f32.mrf.mxu0
  %v2816 = vadd.f32 %v1782, %v2815
  %2817 = vmatmul.bf16.gmra.mxu0 %v880
  %v2818 = vpop.f32.mrf.mxu0
  %v2819 = vadd.f32 %v1785, %v2818
  %v2820 = vpop.f32.mrf.mxu0
  %v2821 = vadd.f32 %v1787, %v2820
  %2822 = vmatmul.bf16.gmra.mxu0 %v883
  %v2823 = vpop.f32.mrf.mxu0
  %v2824 = vadd.f32 %v1790, %v2823
  %v2825 = vpop.f32.mrf.mxu0
  %v2826 = vadd.f32 %v1792, %v2825
  %2827 = vmatmul.bf16.gmra.mxu0 %v886
  %v2828 = vpop.f32.mrf.mxu0
  %v2829 = vadd.f32 %v1795, %v2828
  %v2830 = vpop.f32.mrf.mxu0
  %v2831 = vadd.f32 %v1797, %v2830
  %2832 = vmatmul.bf16.gmra.mxu0 %v889
  %v2833 = vpop.f32.mrf.mxu0
  %v2834 = vadd.f32 %v1800, %v2833
  %v2835 = vpop.f32.mrf.mxu0
  %v2836 = vadd.f32 %v1802, %v2835
  %2837 = vmatmul.bf16.gmra.mxu0 %v892
  %v2838 = vpop.f32.mrf.mxu0
  %v2839 = vadd.f32 %v1805, %v2838
  %v2840 = vpop.f32.mrf.mxu0
  %v2841 = vadd.f32 %v1807, %v2840
  %2842 = vmatmul.bf16.gmra.mxu0 %v895
  %v2843 = vpop.f32.mrf.mxu0
  %v2844 = vadd.f32 %v1810, %v2843
  %v2845 = vpop.f32.mrf.mxu0
  %v2846 = vadd.f32 %v1812, %v2845
  %2847 = vmatmul.bf16.gmra.mxu0 %v898
  %v2848 = vpop.f32.mrf.mxu0
  %v2849 = vadd.f32 %v1815, %v2848
  %v2850 = vpop.f32.mrf.mxu0
  %v2851 = vadd.f32 %v1817, %v2850
  %2852 = vmatmul.bf16.gmra.mxu0 %v901
  %v2853 = vpop.f32.mrf.mxu0
  %v2854 = vadd.f32 %v1820, %v2853
  %v2855 = vpop.f32.mrf.mxu0
  %v2856 = vadd.f32 %v1822, %v2855
  %2857 = vmatmul.bf16.gmra.mxu0 %v904
  %v2858 = vpop.f32.mrf.mxu0
  %v2859 = vadd.f32 %v1825, %v2858
  %v2860 = vpop.f32.mrf.mxu0
  %v2861 = vadd.f32 %v1827, %v2860
  %2862 = vmatmul.bf16.gmra.mxu0 %v907
  %v2863 = vpop.f32.mrf.mxu0
  %v2864 = vadd.f32 %v1830, %v2863
  %v2865 = vpop.f32.mrf.mxu0
  %v2866 = vadd.f32 %v1832, %v2865
  %2867 = vmatmul.bf16.gmra.mxu0 %v910
  %v2868 = vpop.f32.mrf.mxu0
  %v2869 = vadd.f32 %v1835, %v2868
  %v2870 = vpop.f32.mrf.mxu0
  %v2871 = vadd.f32 %v1837, %v2870
  %2872 = vmatmul.bf16.gmra.mxu0 %v913
  %v2873 = vpop.f32.mrf.mxu0
  %v2874 = vadd.f32 %v1840, %v2873
  %v2875 = vpop.f32.mrf.mxu0
  %v2876 = vadd.f32 %v1842, %v2875
  %2877 = vmatmul.bf16.gmra.mxu0 %v916
  %v2878 = vpop.f32.mrf.mxu0
  %v2879 = vadd.f32 %v1845, %v2878
  %v2880 = vpop.f32.mrf.mxu0
  %v2881 = vadd.f32 %v1847, %v2880
  %2882 = vmatmul.bf16.gmra.mxu0 %v919
  %v2883 = vpop.f32.mrf.mxu0
  %v2884 = vadd.f32 %v1850, %v2883
  %v2885 = vpop.f32.mrf.mxu0
  %v2886 = vadd.f32 %v1852, %v2885
  %2887 = vmatmul.bf16.gmra.mxu0 %v922
  %v2888 = vpop.f32.mrf.mxu0
  %v2889 = vadd.f32 %v1855, %v2888
  %v2890 = vpop.f32.mrf.mxu0
  %v2891 = vadd.f32 %v1857, %v2890
  %2892 = vmatmul.bf16.gmra.mxu0 %v925
  %v2893 = vpop.f32.mrf.mxu0
  %v2894 = vadd.f32 %v1860, %v2893
  %v2895 = vpop.f32.mrf.mxu0
  %v2896 = vadd.f32 %v1862, %v2895
  %2897 = vmatmul.bf16.gmra.mxu0 %v928
  %v2898 = vpop.f32.mrf.mxu0
  %v2899 = vadd.f32 %v1865, %v2898
  %v2900 = vpop.f32.mrf.mxu0
  %v2901 = vadd.f32 %v1867, %v2900
  %2902 = vmatmul.bf16.gmra.mxu0 %v931
  %v2903 = vpop.f32.mrf.mxu0
  %v2904 = vadd.f32 %v1870, %v2903
  %v2905 = vpop.f32.mrf.mxu0
  %v2906 = vadd.f32 %v1872, %v2905
  %2907 = vmatmul.bf16.gmra.mxu0 %v934
  %v2908 = vpop.f32.mrf.mxu0
  %v2909 = vadd.f32 %v1875, %v2908
  %v2910 = vpop.f32.mrf.mxu0
  %v2911 = vadd.f32 %v1877, %v2910
  %2912 = vmatmul.bf16.gmra.mxu0 %v937
  %v2913 = vpop.f32.mrf.mxu0
  %v2914 = vadd.f32 %v1880, %v2913
  %v2915 = vpop.f32.mrf.mxu0
  %v2916 = vadd.f32 %v1882, %v2915
  %2917 = vmatmul.bf16.gmra.mxu0 %v940
  %v2918 = vpop.f32.mrf.mxu0
  %v2919 = vadd.f32 %v1885, %v2918
  %v2920 = vpop.f32.mrf.mxu0
  %v2921 = vadd.f32 %v1887, %v2920
  %2922 = vmatmul.bf16.gmra.mxu0 %v943
  %v2923 = vpop.f32.mrf.mxu0
  %v2924 = vadd.f32 %v1890, %v2923
  %v2925 = vpop.f32.mrf.mxu0
  %v2926 = vadd.f32 %v1892, %v2925
  %2927 = vmatmul.bf16.gmra.mxu0 %v946
  %v2928 = vpop.f32.mrf.mxu0
  %v2929 = vadd.f32 %v1895, %v2928
  %v2930 = vpop.f32.mrf.mxu0
  %v2931 = vadd.f32 %v1897, %v2930
  %2932 = vmatmul.bf16.gmra.mxu0 %v949
  %v2933 = vpop.f32.mrf.mxu0
  %v2934 = vadd.f32 %v1900, %v2933
  %v2935 = vpop.f32.mrf.mxu0
  %v2936 = vadd.f32 %v1902, %v2935
  %2937 = vmatmul.bf16.gmra.mxu0 %v952
  %v2938 = vpop.f32.mrf.mxu0
  %v2939 = vadd.f32 %v1905, %v2938
  %v2940 = vpop.f32.mrf.mxu0
  %v2941 = vadd.f32 %v1907, %v2940
  %2942 = vmatmul.bf16.gmra.mxu0 %v955
  %v2943 = vpop.f32.mrf.mxu0
  %v2944 = vadd.f32 %v1910, %v2943
  %v2945 = vpop.f32.mrf.mxu0
  %v2946 = vadd.f32 %v1912, %v2945
  %2947 = vmatmul.bf16.gmra.mxu0 %v958
  %v2948 = vpop.f32.mrf.mxu0
  %v2949 = vadd.f32 %v1915, %v2948
  %v2950 = vpop.f32.mrf.mxu0
  %v2951 = vadd.f32 %v1917, %v2950
  %2952 = vmatmul.bf16.gmra.mxu0 %v961
  %v2953 = vpop.f32.mrf.mxu0
  %v2954 = vadd.f32 %v1920, %v2953
  %v2955 = vpop.f32.mrf.mxu0
  %v2956 = vadd.f32 %v1922, %v2955
  %2957 = vmatmul.bf16.gmra.mxu0 %v964
  %v2958 = vpop.f32.mrf.mxu0
  %v2959 = vadd.f32 %v1925, %v2958
  %v2960 = vpop.f32.mrf.mxu0
  %v2961 = vadd.f32 %v1927, %v2960
  %2962 = vmatmul.bf16.gmra.mxu0 %v967
  %v2963 = vpop.f32.mrf.mxu0
  %v2964 = vadd.f32 %v1930, %v2963
  %v2965 = vpop.f32.mrf.mxu0
  %v2966 = vadd.f32 %v1932, %v2965
  %2967 = vmatmul.bf16.gmra.mxu0 %v970
  %v2968 = vpop.f32.mrf.mxu0
  %v2969 = vadd.f32 %v1935, %v2968
  %v2970 = vpop.f32.mrf.mxu0
  %v2971 = vadd.f32 %v1937, %v2970
  %2972 = vmatmul.bf16.gmra.mxu0 %v973
  %v2973 = vpop.f32.mrf.mxu0
  %v2974 = vadd.f32 %v1940, %v2973
  %v2975 = vpop.f32.mrf.mxu0
  %v2976 = vadd.f32 %v1942, %v2975
  %2977 = vmatmul.bf16.gmra.mxu0 %v976
  %v2978 = vpop.f32.mrf.mxu0
  %v2979 = vadd.f32 %v1945, %v2978
  %v2980 = vpop.f32.mrf.mxu0
  %v2981 = vadd.f32 %v1947, %v2980
  %2982 = vmatmul.bf16.gmra.mxu0 %v979
  %v2983 = vpop.f32.mrf.mxu0
  %v2984 = vadd.f32 %v1950, %v2983
  %v2985 = vpop.f32.mrf.mxu0
  %v2986 = vadd.f32 %v1952, %v2985
  %2987 = vmatmul.bf16.gmra.mxu0 %v982
  %v2988 = vpop.f32.mrf.mxu0
  %v2989 = vadd.f32 %v1955, %v2988
  %v2990 = vpop.f32.mrf.mxu0
  %v2991 = vadd.f32 %v1957, %v2990
  %2992 = vmatmul.bf16.gmra.mxu0 %v985
  %v2993 = vpop.f32.mrf.mxu0
  %v2994 = vadd.f32 %v1960, %v2993
  %v2995 = vpop.f32.mrf.mxu0
  %v2996 = vadd.f32 %v1962, %v2995
  %2997 = vmatmul.bf16.gmra.mxu0 %v988
  %v2998 = vpop.f32.mrf.mxu0
  %v2999 = vadd.f32 %v1965, %v2998
  %v3000 = vpop.f32.mrf.mxu0
  %v3001 = vadd.f32 %v1967, %v3000
  %3002 = vmatmul.bf16.gmra.mxu0 %v991
  %v3003 = vpop.f32.mrf.mxu0
  %v3004 = vadd.f32 %v1970, %v3003
  %v3005 = vpop.f32.mrf.mxu0
  %v3006 = vadd.f32 %v1972, %v3005
  %3007 = vmatmul.bf16.gmra.mxu0 %v994
  %v3008 = vpop.f32.mrf.mxu0
  %v3009 = vadd.f32 %v1975, %v3008
  %v3010 = vpop.f32.mrf.mxu0
  %v3011 = vadd.f32 %v1977, %v3010
  %3012 = vmatmul.bf16.gmra.mxu0 %v997
  %v3013 = vpop.f32.mrf.mxu0
  %v3014 = vadd.f32 %v1980, %v3013
  %v3015 = vpop.f32.mrf.mxu0
  %v3016 = vadd.f32 %v1982, %v3015
  %3017 = vmatmul.bf16.gmra.mxu0 %v1000
  %v3018 = vpop.f32.mrf.mxu0
  %v3019 = vadd.f32 %v1985, %v3018
  %v3020 = vpop.f32.mrf.mxu0
  %v3021 = vadd.f32 %v1987, %v3020
  %3022 = vmatmul.bf16.gmra.mxu0 %v1003
  %v3023 = vpop.f32.mrf.mxu0
  %v3024 = vadd.f32 %v1990, %v3023
  %v3025 = vpop.f32.mrf.mxu0
  %v3026 = vadd.f32 %v1992, %v3025
  %3027 = vmatmul.bf16.gmra.mxu0 %v1006
  %v3028 = vpop.f32.mrf.mxu0
  %v3029 = vadd.f32 %v1995, %v3028
  %v3030 = vpop.f32.mrf.mxu0
  %v3031 = vadd.f32 %v1997, %v3030
  %3032 = vmatmul.bf16.gmra.mxu0 %v1009
  %v3033 = vpop.f32.mrf.mxu0
  %v3034 = vadd.f32 %v2000, %v3033
  %v3035 = vpop.f32.mrf.mxu0
  %v3036 = vadd.f32 %v2002, %v3035
  %3037 = vmatmul.bf16.gmra.mxu0 %v1012
  %v3038 = vpop.f32.mrf.mxu0
  %v3039 = vadd.f32 %v2005, %v3038
  %v3040 = vpop.f32.mrf.mxu0
  %v3041 = vadd.f32 %v2007, %v3040
  %3042 = vmatmul.bf16.gmra.mxu0 %v1015
  %v3043 = vpop.f32.mrf.mxu0
  %v3044 = vadd.f32 %v2010, %v3043
  %v3045 = vpop.f32.mrf.mxu0
  %v3046 = vadd.f32 %v2012, %v3045
  %3047 = vdwg.mxu0
  %v3048 = vld [vmem:[%s0 + $0x40] sm:$0xf]
  %v3049 = vld [vmem:[%s0 + $0x44] sm:$0xf]
  %v3050 = vld [vmem:[%s0 + $0x48] sm:$0xf]
  %v3051 = vld [vmem:[%s0 + $0x4c] sm:$0xf]
  %v3052 = vld [vmem:[%s0 + $0x50] sm:$0xf]
  %v3053 = vld [vmem:[%s0 + $0x54] sm:$0xf]
  %v3054 = vld [vmem:[%s0 + $0x58] sm:$0xf]
  %v3055 = vld [vmem:[%s0 + $0x5c] sm:$0xf]
  %v3056 = vld [vmem:[%s0 + $0x60] sm:$0xf]
  %v3057 = vld [vmem:[%s0 + $0x64] sm:$0xf]
  %v3058 = vld [vmem:[%s0 + $0x68] sm:$0xf]
  %v3059 = vld [vmem:[%s0 + $0x6c] sm:$0xf]
  %v3060 = vld [vmem:[%s0 + $0x70] sm:$0xf]
  %v3061 = vld [vmem:[%s0 + $0x74] sm:$0xf]
  %v3062 = vld [vmem:[%s0 + $0x78] sm:$0xf]
  %v3063 = vld [vmem:[%s0 + $0x7c] sm:$0xf]
  %v3064 = vld [vmem:[%s0 + $0x80] sm:$0xf]
  %v3065 = vld [vmem:[%s0 + $0x84] sm:$0xf]
  %v3066 = vld [vmem:[%s0 + $0x88] sm:$0xf]
  %v3067 = vld [vmem:[%s0 + $0x8c] sm:$0xf]
  %v3068 = vld [vmem:[%s0 + $0x90] sm:$0xf]
  %v3069 = vld [vmem:[%s0 + $0x94] sm:$0xf]
  %v3070 = vld [vmem:[%s0 + $0x98] sm:$0xf]
  %v3071 = vld [vmem:[%s0 + $0x9c] sm:$0xf]
  %v3072 = vld [vmem:[%s0 + $0xa0] sm:$0xf]
  %v3073 = vld [vmem:[%s0 + $0xa4] sm:$0xf]
  %v3074 = vld [vmem:[%s0 + $0xa8] sm:$0xf]
  %v3075 = vld [vmem:[%s0 + $0xac] sm:$0xf]
  %v3076 = vld [vmem:[%s0 + $0xb0] sm:$0xf]
  %v3077 = vld [vmem:[%s0 + $0xb4] sm:$0xf]
  %v3078 = vld [vmem:[%s0 + $0xb8] sm:$0xf]
  %v3079 = vld [vmem:[%s0 + $0xbc] sm:$0xf]
  %v3080 = vld [vmem:[%s0 + $0xc0] sm:$0xf]
  %v3081 = vld [vmem:[%s0 + $0xc4] sm:$0xf]
  %v3082 = vld [vmem:[%s0 + $0xc8] sm:$0xf]
  %v3083 = vld [vmem:[%s0 + $0xcc] sm:$0xf]
  %v3084 = vld [vmem:[%s0 + $0xd0] sm:$0xf]
  %v3085 = vld [vmem:[%s0 + $0xd4] sm:$0xf]
  %v3086 = vld [vmem:[%s0 + $0xd8] sm:$0xf]
  %v3087 = vld [vmem:[%s0 + $0xdc] sm:$0xf]
  %v3088 = vld [vmem:[%s0 + $0xe0] sm:$0xf]
  %v3089 = vld [vmem:[%s0 + $0xe4] sm:$0xf]
  %v3090 = vld [vmem:[%s0 + $0xe8] sm:$0xf]
  %v3091 = vld [vmem:[%s0 + $0xec] sm:$0xf]
  %v3092 = vld [vmem:[%s0 + $0xf0] sm:$0xf]
  %v3093 = vld [vmem:[%s0 + $0xf4] sm:$0xf]
  %v3094 = vld [vmem:[%s0 + $0xf8] sm:$0xf]
  %v3095 = vld [vmem:[%s0 + $0xfc] sm:$0xf]
  %v3096 = vld [vmem:[%s0 + $0x100] sm:$0xf]
  %v3097 = vld [vmem:[%s0 + $0x104] sm:$0xf]
  %v3098 = vld [vmem:[%s0 + $0x108] sm:$0xf]
  %v3099 = vld [vmem:[%s0 + $0x10c] sm:$0xf]
  %v3100 = vld [vmem:[%s0 + $0x110] sm:$0xf]
  %v3101 = vld [vmem:[%s0 + $0x114] sm:$0xf]
  %v3102 = vld [vmem:[%s0 + $0x118] sm:$0xf]
  %v3103 = vld [vmem:[%s0 + $0x11c] sm:$0xf]
  %v3104 = vld [vmem:[%s0 + $0x120] sm:$0xf]
  %v3105 = vld [vmem:[%s0 + $0x124] sm:$0xf]
  %v3106 = vld [vmem:[%s0 + $0x128] sm:$0xf]
  %v3107 = vld [vmem:[%s0 + $0x12c] sm:$0xf]
  %v3108 = vld [vmem:[%s0 + $0x130] sm:$0xf]
  %v3109 = vld [vmem:[%s0 + $0x134] sm:$0xf]
  %v3110 = vld [vmem:[%s0 + $0x138] sm:$0xf]
  %v3111 = vld [vmem:[%s0 + $0x13c] sm:$0xf]
  %v3112 = vld [vmem:[%s0 + $0x140] sm:$0xf]
  %v3113 = vld [vmem:[%s0 + $0x144] sm:$0xf]
  %v3114 = vld [vmem:[%s0 + $0x148] sm:$0xf]
  %v3115 = vld [vmem:[%s0 + $0x14c] sm:$0xf]
  %v3116 = vld [vmem:[%s0 + $0x150] sm:$0xf]
  %v3117 = vld [vmem:[%s0 + $0x154] sm:$0xf]
  %v3118 = vld [vmem:[%s0 + $0x158] sm:$0xf]
  %v3119 = vld [vmem:[%s0 + $0x15c] sm:$0xf]
  %v3120 = vld [vmem:[%s0 + $0x160] sm:$0xf]
  %v3121 = vld [vmem:[%s0 + $0x164] sm:$0xf]
  %v3122 = vld [vmem:[%s0 + $0x168] sm:$0xf]
  %v3123 = vld [vmem:[%s0 + $0x16c] sm:$0xf]
  %v3124 = vld [vmem:[%s0 + $0x170] sm:$0xf]
  %v3125 = vld [vmem:[%s0 + $0x174] sm:$0xf]
  %v3126 = vld [vmem:[%s0 + $0x178] sm:$0xf]
  %v3127 = vld [vmem:[%s0 + $0x17c] sm:$0xf]
  %v3128 = vld [vmem:[%s0 + $0x180] sm:$0xf]
  %v3129 = vld [vmem:[%s0 + $0x184] sm:$0xf]
  %v3130 = vld [vmem:[%s0 + $0x188] sm:$0xf]
  %v3131 = vld [vmem:[%s0 + $0x18c] sm:$0xf]
  %v3132 = vld [vmem:[%s0 + $0x190] sm:$0xf]
  %v3133 = vld [vmem:[%s0 + $0x194] sm:$0xf]
  %v3134 = vld [vmem:[%s0 + $0x198] sm:$0xf]
  %v3135 = vld [vmem:[%s0 + $0x19c] sm:$0xf]
  %v3136 = vld [vmem:[%s0 + $0x1a0] sm:$0xf]
  %v3137 = vld [vmem:[%s0 + $0x1a4] sm:$0xf]
  %v3138 = vld [vmem:[%s0 + $0x1a8] sm:$0xf]
  %v3139 = vld [vmem:[%s0 + $0x1ac] sm:$0xf]
  %v3140 = vld [vmem:[%s0 + $0x1b0] sm:$0xf]
  %v3141 = vld [vmem:[%s0 + $0x1b4] sm:$0xf]
  %v3142 = vld [vmem:[%s0 + $0x1b8] sm:$0xf]
  %v3143 = vld [vmem:[%s0 + $0x1bc] sm:$0xf]
  %v3144 = vld [vmem:[%s0 + $0x1c0] sm:$0xf]
  %v3145 = vld [vmem:[%s0 + $0x1c4] sm:$0xf]
  %v3146 = vld [vmem:[%s0 + $0x1c8] sm:$0xf]
  %v3147 = vld [vmem:[%s0 + $0x1cc] sm:$0xf]
  %v3148 = vld [vmem:[%s0 + $0x1d0] sm:$0xf]
  %v3149 = vld [vmem:[%s0 + $0x1d4] sm:$0xf]
  %v3150 = vld [vmem:[%s0 + $0x1d8] sm:$0xf]
  %v3151 = vld [vmem:[%s0 + $0x1dc] sm:$0xf]
  %v3152 = vld [vmem:[%s0 + $0x1e0] sm:$0xf]
  %v3153 = vld [vmem:[%s0 + $0x1e4] sm:$0xf]
  %v3154 = vld [vmem:[%s0 + $0x1e8] sm:$0xf]
  %v3155 = vld [vmem:[%s0 + $0x1ec] sm:$0xf]
  %v3156 = vld [vmem:[%s0 + $0x1f0] sm:$0xf]
  %v3157 = vld [vmem:[%s0 + $0x1f4] sm:$0xf]
  %v3158 = vld [vmem:[%s0 + $0x1f8] sm:$0xf]
  %v3159 = vld [vmem:[%s0 + $0x1fc] sm:$0xf]
  %v3160 = vld [vmem:[%s0 + $0x200] sm:$0xf]
  %v3161 = vld [vmem:[%s0 + $0x204] sm:$0xf]
  %v3162 = vld [vmem:[%s0 + $0x208] sm:$0xf]
  %v3163 = vld [vmem:[%s0 + $0x20c] sm:$0xf]
  %v3164 = vld [vmem:[%s0 + $0x210] sm:$0xf]
  %v3165 = vld [vmem:[%s0 + $0x214] sm:$0xf]
  %v3166 = vld [vmem:[%s0 + $0x218] sm:$0xf]
  %v3167 = vld [vmem:[%s0 + $0x21c] sm:$0xf]
  %v3168 = vld [vmem:[%s0 + $0x220] sm:$0xf]
  %v3169 = vld [vmem:[%s0 + $0x224] sm:$0xf]
  %v3170 = vld [vmem:[%s0 + $0x228] sm:$0xf]
  %v3171 = vld [vmem:[%s0 + $0x22c] sm:$0xf]
  %v3172 = vld [vmem:[%s0 + $0x230] sm:$0xf]
  %v3173 = vld [vmem:[%s0 + $0x234] sm:$0xf]
  %v3174 = vld [vmem:[%s0 + $0x238] sm:$0xf]
  %v3175 = vld [vmem:[%s0 + $0x23c] sm:$0xf]
  %v3176 = vld [vmem:[%s0 + $0x240] sm:$0xf]
  %v3177 = vld [vmem:[%s0 + $0x244] sm:$0xf]
  %v3178 = vld [vmem:[%s0 + $0x248] sm:$0xf]
  %v3179 = vld [vmem:[%s0 + $0x24c] sm:$0xf]
  %v3180 = vld [vmem:[%s0 + $0x250] sm:$0xf]
  %v3181 = vld [vmem:[%s0 + $0x254] sm:$0xf]
  %v3182 = vld [vmem:[%s0 + $0x258] sm:$0xf]
  %v3183 = vld [vmem:[%s0 + $0x25c] sm:$0xf]
  %v3184 = vld [vmem:[%s0 + $0x260] sm:$0xf]
  %v3185 = vld [vmem:[%s0 + $0x264] sm:$0xf]
  %v3186 = vld [vmem:[%s0 + $0x268] sm:$0xf]
  %v3187 = vld [vmem:[%s0 + $0x26c] sm:$0xf]
  %v3188 = vld [vmem:[%s0 + $0x270] sm:$0xf]
  %v3189 = vld [vmem:[%s0 + $0x274] sm:$0xf]
  %v3190 = vld [vmem:[%s0 + $0x278] sm:$0xf]
  %v3191 = vld [vmem:[%s0 + $0x27c] sm:$0xf]
  %v3192 = vld [vmem:[%s0 + $0x280] sm:$0xf]
  %v3193 = vld [vmem:[%s0 + $0x284] sm:$0xf]
  %v3194 = vld [vmem:[%s0 + $0x288] sm:$0xf]
  %v3195 = vld [vmem:[%s0 + $0x28c] sm:$0xf]
  %v3196 = vld [vmem:[%s0 + $0x290] sm:$0xf]
  %v3197 = vld [vmem:[%s0 + $0x294] sm:$0xf]
  %v3198 = vld [vmem:[%s0 + $0x298] sm:$0xf]
  %v3199 = vld [vmem:[%s0 + $0x29c] sm:$0xf]
  %v3200 = vld [vmem:[%s0 + $0x2a0] sm:$0xf]
  %v3201 = vld [vmem:[%s0 + $0x2a4] sm:$0xf]
  %v3202 = vld [vmem:[%s0 + $0x2a8] sm:$0xf]
  %v3203 = vld [vmem:[%s0 + $0x2ac] sm:$0xf]
  %v3204 = vld [vmem:[%s0 + $0x2b0] sm:$0xf]
  %v3205 = vld [vmem:[%s0 + $0x2b4] sm:$0xf]
  %v3206 = vld [vmem:[%s0 + $0x2b8] sm:$0xf]
  %v3207 = vld [vmem:[%s0 + $0x2bc] sm:$0xf]
  %v3208 = vld [vmem:[%s0 + $0x2c0] sm:$0xf]
  %v3209 = vld [vmem:[%s0 + $0x2c4] sm:$0xf]
  %v3210 = vld [vmem:[%s0 + $0x2c8] sm:$0xf]
  %v3211 = vld [vmem:[%s0 + $0x2cc] sm:$0xf]
  %v3212 = vld [vmem:[%s0 + $0x2d0] sm:$0xf]
  %v3213 = vld [vmem:[%s0 + $0x2d4] sm:$0xf]
  %v3214 = vld [vmem:[%s0 + $0x2d8] sm:$0xf]
  %v3215 = vld [vmem:[%s0 + $0x2dc] sm:$0xf]
  %v3216 = vld [vmem:[%s0 + $0x2e0] sm:$0xf]
  %v3217 = vld [vmem:[%s0 + $0x2e4] sm:$0xf]
  %v3218 = vld [vmem:[%s0 + $0x2e8] sm:$0xf]
  %v3219 = vld [vmem:[%s0 + $0x2ec] sm:$0xf]
  %v3220 = vld [vmem:[%s0 + $0x2f0] sm:$0xf]
  %v3221 = vld [vmem:[%s0 + $0x2f4] sm:$0xf]
  %v3222 = vld [vmem:[%s0 + $0x2f8] sm:$0xf]
  %v3223 = vld [vmem:[%s0 + $0x2fc] sm:$0xf]
  %v3224 = vld [vmem:[%s0 + $0x300] sm:$0xf]
  %v3225 = vld [vmem:[%s0 + $0x304] sm:$0xf]
  %v3226 = vld [vmem:[%s0 + $0x308] sm:$0xf]
  %v3227 = vld [vmem:[%s0 + $0x30c] sm:$0xf]
  %v3228 = vld [vmem:[%s0 + $0x310] sm:$0xf]
  %v3229 = vld [vmem:[%s0 + $0x314] sm:$0xf]
  %v3230 = vld [vmem:[%s0 + $0x318] sm:$0xf]
  %v3231 = vld [vmem:[%s0 + $0x31c] sm:$0xf]
  %v3232 = vld [vmem:[%s0 + $0x320] sm:$0xf]
  %v3233 = vld [vmem:[%s0 + $0x324] sm:$0xf]
  %v3234 = vld [vmem:[%s0 + $0x328] sm:$0xf]
  %v3235 = vld [vmem:[%s0 + $0x32c] sm:$0xf]
  %v3236 = vld [vmem:[%s0 + $0x330] sm:$0xf]
  %v3237 = vld [vmem:[%s0 + $0x334] sm:$0xf]
  %v3238 = vld [vmem:[%s0 + $0x338] sm:$0xf]
  %v3239 = vld [vmem:[%s0 + $0x33c] sm:$0xf]
  %s3240 = scalar_lea.vmem %s1, 64
  %v3241 = vld [vmem:[%s3240] sm:$0xff]
  %v3242 = vld [vmem:[%s3240 + $0x8] sm:$0xff]
  %v3243 = vld [vmem:[%s3240 + $0x10] sm:$0xff]
  %v3244 = vld [vmem:[%s3240 + $0x18] sm:$0x33]
  %v3437 = vunpack.c.l.b16 %v3048
  %v3438 = vunpack.c.l.b16 %v3049
  %v3439 = vunpack.c.l.b16 %v3050
  %v3440 = vunpack.c.l.b16 %v3051
  %v3441 = vunpack.c.l.b16 %v3052
  %v3442 = vunpack.c.l.b16 %v3053
  %v3443 = vunpack.c.l.b16 %v3054
  %v3444 = vunpack.c.l.b16 %v3055
  %v3445 = vunpack.c.l.b16 %v3056
  %v3446 = vunpack.c.l.b16 %v3057
  %v3447 = vunpack.c.l.b16 %v3058
  %v3448 = vunpack.c.l.b16 %v3059
  %v3449 = vunpack.c.l.b16 %v3060
  %v3450 = vunpack.c.l.b16 %v3061
  %v3451 = vunpack.c.l.b16 %v3062
  %v3452 = vunpack.c.l.b16 %v3063
  %v3453 = vunpack.c.l.b16 %v3064
  %v3454 = vunpack.c.l.b16 %v3065
  %v3455 = vunpack.c.l.b16 %v3066
  %v3456 = vunpack.c.l.b16 %v3067
  %v3457 = vunpack.c.l.b16 %v3068
  %v3458 = vunpack.c.l.b16 %v3069
  %v3459 = vunpack.c.l.b16 %v3070
  %v3460 = vunpack.c.l.b16 %v3071
  %v3461 = vunpack.c.l.b16 %v3072
  %v3462 = vunpack.c.l.b16 %v3073
  %v3463 = vunpack.c.l.b16 %v3074
  %v3464 = vunpack.c.l.b16 %v3075
  %v3465 = vunpack.c.l.b16 %v3076
  %v3466 = vunpack.c.l.b16 %v3077
  %v3467 = vunpack.c.l.b16 %v3078
  %v3468 = vunpack.c.l.b16 %v3079
  %v3469 = vunpack.c.l.b16 %v3080
  %v3470 = vunpack.c.l.b16 %v3081
  %v3471 = vunpack.c.l.b16 %v3082
  %v3472 = vunpack.c.l.b16 %v3083
  %v3473 = vunpack.c.l.b16 %v3084
  %v3474 = vunpack.c.l.b16 %v3085
  %v3475 = vunpack.c.l.b16 %v3086
  %v3476 = vunpack.c.l.b16 %v3087
  %v3477 = vunpack.c.l.b16 %v3088
  %v3478 = vunpack.c.l.b16 %v3089
  %v3479 = vunpack.c.l.b16 %v3090
  %v3480 = vunpack.c.l.b16 %v3091
  %v3481 = vunpack.c.l.b16 %v3092
  %v3482 = vunpack.c.l.b16 %v3093
  %v3483 = vunpack.c.l.b16 %v3094
  %v3484 = vunpack.c.l.b16 %v3095
  %v3485 = vunpack.c.l.b16 %v3096
  %v3486 = vunpack.c.l.b16 %v3097
  %v3487 = vunpack.c.l.b16 %v3098
  %v3488 = vunpack.c.l.b16 %v3099
  %v3489 = vunpack.c.l.b16 %v3100
  %v3490 = vunpack.c.l.b16 %v3101
  %v3491 = vunpack.c.l.b16 %v3102
  %v3492 = vunpack.c.l.b16 %v3103
  %v3493 = vunpack.c.l.b16 %v3104
  %v3494 = vunpack.c.l.b16 %v3105
  %v3495 = vunpack.c.l.b16 %v3106
  %v3496 = vunpack.c.l.b16 %v3107
  %v3497 = vunpack.c.l.b16 %v3108
  %v3498 = vunpack.c.l.b16 %v3109
  %v3499 = vunpack.c.l.b16 %v3110
  %v3500 = vunpack.c.l.b16 %v3111
  %v3501 = vunpack.c.l.b16 %v3112
  %v3502 = vunpack.c.l.b16 %v3113
  %v3503 = vunpack.c.l.b16 %v3114
  %v3504 = vunpack.c.l.b16 %v3115
  %v3505 = vunpack.c.l.b16 %v3116
  %v3506 = vunpack.c.l.b16 %v3117
  %v3507 = vunpack.c.l.b16 %v3118
  %v3508 = vunpack.c.l.b16 %v3119
  %v3509 = vunpack.c.l.b16 %v3120
  %v3510 = vunpack.c.l.b16 %v3121
  %v3511 = vunpack.c.l.b16 %v3122
  %v3512 = vunpack.c.l.b16 %v3123
  %v3513 = vunpack.c.l.b16 %v3124
  %v3514 = vunpack.c.l.b16 %v3125
  %v3515 = vunpack.c.l.b16 %v3126
  %v3516 = vunpack.c.l.b16 %v3127
  %v3517 = vunpack.c.l.b16 %v3128
  %v3518 = vunpack.c.l.b16 %v3129
  %v3519 = vunpack.c.l.b16 %v3130
  %v3520 = vunpack.c.l.b16 %v3131
  %v3521 = vunpack.c.l.b16 %v3132
  %v3522 = vunpack.c.l.b16 %v3133
  %v3523 = vunpack.c.l.b16 %v3134
  %v3524 = vunpack.c.l.b16 %v3135
  %v3525 = vunpack.c.l.b16 %v3136
  %v3526 = vunpack.c.l.b16 %v3137
  %v3527 = vunpack.c.l.b16 %v3138
  %v3528 = vunpack.c.l.b16 %v3139
  %v3529 = vunpack.c.l.b16 %v3140
  %v3530 = vunpack.c.l.b16 %v3141
  %v3531 = vunpack.c.l.b16 %v3142
  %v3532 = vunpack.c.l.b16 %v3143
  %v3533 = vunpack.c.l.b16 %v3144
  %v3534 = vunpack.c.l.b16 %v3145
  %v3535 = vunpack.c.l.b16 %v3146
  %v3536 = vunpack.c.l.b16 %v3147
  %v3537 = vunpack.c.l.b16 %v3148
  %v3538 = vunpack.c.l.b16 %v3149
  %v3539 = vunpack.c.l.b16 %v3150
  %v3540 = vunpack.c.l.b16 %v3151
  %v3541 = vunpack.c.l.b16 %v3152
  %v3542 = vunpack.c.l.b16 %v3153
  %v3543 = vunpack.c.l.b16 %v3154
  %v3544 = vunpack.c.l.b16 %v3155
  %v3545 = vunpack.c.l.b16 %v3156
  %v3546 = vunpack.c.l.b16 %v3157
  %v3547 = vunpack.c.l.b16 %v3158
  %v3548 = vunpack.c.l.b16 %v3159
  %v3549 = vunpack.c.l.b16 %v3160
  %v3550 = vunpack.c.l.b16 %v3161
  %v3551 = vunpack.c.l.b16 %v3162
  %v3552 = vunpack.c.l.b16 %v3163
  %v3553 = vunpack.c.l.b16 %v3164
  %v3554 = vunpack.c.l.b16 %v3165
  %v3555 = vunpack.c.l.b16 %v3166
  %v3556 = vunpack.c.l.b16 %v3167
  %v3557 = vunpack.c.l.b16 %v3168
  %v3558 = vunpack.c.l.b16 %v3169
  %v3559 = vunpack.c.l.b16 %v3170
  %v3560 = vunpack.c.l.b16 %v3171
  %v3561 = vunpack.c.l.b16 %v3172
  %v3562 = vunpack.c.l.b16 %v3173
  %v3563 = vunpack.c.l.b16 %v3174
  %v3564 = vunpack.c.l.b16 %v3175
  %v3565 = vunpack.c.l.b16 %v3176
  %v3566 = vunpack.c.l.b16 %v3177
  %v3567 = vunpack.c.l.b16 %v3178
  %v3568 = vunpack.c.l.b16 %v3179
  %v3569 = vunpack.c.l.b16 %v3180
  %v3570 = vunpack.c.l.b16 %v3181
  %v3571 = vunpack.c.l.b16 %v3182
  %v3572 = vunpack.c.l.b16 %v3183
  %v3573 = vunpack.c.l.b16 %v3184
  %v3574 = vunpack.c.l.b16 %v3185
  %v3575 = vunpack.c.l.b16 %v3186
  %v3576 = vunpack.c.l.b16 %v3187
  %v3577 = vunpack.c.l.b16 %v3188
  %v3578 = vunpack.c.l.b16 %v3189
  %v3579 = vunpack.c.l.b16 %v3190
  %v3580 = vunpack.c.l.b16 %v3191
  %v3581 = vunpack.c.l.b16 %v3192
  %v3582 = vunpack.c.l.b16 %v3193
  %v3583 = vunpack.c.l.b16 %v3194
  %v3584 = vunpack.c.l.b16 %v3195
  %v3585 = vunpack.c.l.b16 %v3196
  %v3586 = vunpack.c.l.b16 %v3197
  %v3587 = vunpack.c.l.b16 %v3198
  %v3588 = vunpack.c.l.b16 %v3199
  %v3589 = vunpack.c.l.b16 %v3200
  %v3590 = vunpack.c.l.b16 %v3201
  %v3591 = vunpack.c.l.b16 %v3202
  %v3592 = vunpack.c.l.b16 %v3203
  %v3593 = vunpack.c.l.b16 %v3204
  %v3594 = vunpack.c.l.b16 %v3205
  %v3595 = vunpack.c.l.b16 %v3206
  %v3596 = vunpack.c.l.b16 %v3207
  %v3597 = vunpack.c.l.b16 %v3208
  %v3598 = vunpack.c.l.b16 %v3209
  %v3599 = vunpack.c.l.b16 %v3210
  %v3600 = vunpack.c.l.b16 %v3211
  %v3601 = vunpack.c.l.b16 %v3212
  %v3602 = vunpack.c.l.b16 %v3213
  %v3603 = vunpack.c.l.b16 %v3214
  %v3604 = vunpack.c.l.b16 %v3215
  %v3605 = vunpack.c.l.b16 %v3216
  %v3606 = vunpack.c.l.b16 %v3217
  %v3607 = vunpack.c.l.b16 %v3218
  %v3608 = vunpack.c.l.b16 %v3219
  %v3609 = vunpack.c.l.b16 %v3220
  %v3610 = vunpack.c.l.b16 %v3221
  %v3611 = vunpack.c.l.b16 %v3222
  %v3612 = vunpack.c.l.b16 %v3223
  %v3613 = vunpack.c.l.b16 %v3224
  %v3614 = vunpack.c.l.b16 %v3225
  %v3615 = vunpack.c.l.b16 %v3226
  %v3616 = vunpack.c.l.b16 %v3227
  %v3617 = vunpack.c.l.b16 %v3228
  %v3618 = vunpack.c.l.b16 %v3229
  %v3619 = vunpack.c.l.b16 %v3230
  %v3620 = vunpack.c.l.b16 %v3231
  %v3621 = vunpack.c.l.b16 %v3232
  %v3622 = vunpack.c.l.b16 %v3233
  %v3623 = vunpack.c.l.b16 %v3234
  %v3624 = vunpack.c.l.b16 %v3235
  %v3625 = vunpack.c.l.b16 %v3236
  %v3626 = vunpack.c.l.b16 %v3237
  %v3627 = vunpack.c.l.b16 %v3238
  %v3628 = vunpack.c.l.b16 %v3239
  %v3629 = vpack.c.b16 %v3438, %v3437
  %v3630 = vpack.c.b16 %v3440, %v3439
  %v3631 = vpack.c.b16 %v3442, %v3441
  %v3632 = vpack.c.b16 %v3444, %v3443
  %v3633 = vpack.c.b16 %v3446, %v3445
  %v3634 = vpack.c.b16 %v3448, %v3447
  %v3635 = vpack.c.b16 %v3450, %v3449
  %v3636 = vpack.c.b16 %v3452, %v3451
  %v3637 = vpack.c.b16 %v3454, %v3453
  %v3638 = vpack.c.b16 %v3456, %v3455
  %v3639 = vpack.c.b16 %v3458, %v3457
  %v3640 = vpack.c.b16 %v3460, %v3459
  %v3641 = vpack.c.b16 %v3462, %v3461
  %v3642 = vpack.c.b16 %v3464, %v3463
  %v3643 = vpack.c.b16 %v3466, %v3465
  %v3644 = vpack.c.b16 %v3468, %v3467
  %v3645 = vpack.c.b16 %v3470, %v3469
  %v3646 = vpack.c.b16 %v3472, %v3471
  %v3647 = vpack.c.b16 %v3474, %v3473
  %v3648 = vpack.c.b16 %v3476, %v3475
  %v3649 = vpack.c.b16 %v3478, %v3477
  %v3650 = vpack.c.b16 %v3480, %v3479
  %v3651 = vpack.c.b16 %v3482, %v3481
  %v3652 = vpack.c.b16 %v3484, %v3483
  %v3653 = vpack.c.b16 %v3486, %v3485
  %v3654 = vpack.c.b16 %v3488, %v3487
  %v3655 = vpack.c.b16 %v3490, %v3489
  %v3656 = vpack.c.b16 %v3492, %v3491
  %v3657 = vpack.c.b16 %v3494, %v3493
  %v3658 = vpack.c.b16 %v3496, %v3495
  %v3659 = vpack.c.b16 %v3498, %v3497
  %v3660 = vpack.c.b16 %v3500, %v3499
  %v3661 = vpack.c.b16 %v3502, %v3501
  %v3662 = vpack.c.b16 %v3504, %v3503
  %v3663 = vpack.c.b16 %v3506, %v3505
  %v3664 = vpack.c.b16 %v3508, %v3507
  %v3665 = vpack.c.b16 %v3510, %v3509
  %v3666 = vpack.c.b16 %v3512, %v3511
  %v3667 = vpack.c.b16 %v3514, %v3513
  %v3668 = vpack.c.b16 %v3516, %v3515
  %v3669 = vpack.c.b16 %v3518, %v3517
  %v3670 = vpack.c.b16 %v3520, %v3519
  %v3671 = vpack.c.b16 %v3522, %v3521
  %v3672 = vpack.c.b16 %v3524, %v3523
  %v3673 = vpack.c.b16 %v3526, %v3525
  %v3674 = vpack.c.b16 %v3528, %v3527
  %v3675 = vpack.c.b16 %v3530, %v3529
  %v3676 = vpack.c.b16 %v3532, %v3531
  %v3677 = vpack.c.b16 %v3534, %v3533
  %v3678 = vpack.c.b16 %v3536, %v3535
  %v3679 = vpack.c.b16 %v3538, %v3537
  %v3680 = vpack.c.b16 %v3540, %v3539
  %v3681 = vpack.c.b16 %v3542, %v3541
  %v3682 = vpack.c.b16 %v3544, %v3543
  %v3683 = vpack.c.b16 %v3546, %v3545
  %v3684 = vpack.c.b16 %v3548, %v3547
  %v3685 = vpack.c.b16 %v3550, %v3549
  %v3686 = vpack.c.b16 %v3552, %v3551
  %v3687 = vpack.c.b16 %v3554, %v3553
  %v3688 = vpack.c.b16 %v3556, %v3555
  %v3689 = vpack.c.b16 %v3558, %v3557
  %v3690 = vpack.c.b16 %v3560, %v3559
  %v3691 = vpack.c.b16 %v3562, %v3561
  %v3692 = vpack.c.b16 %v3564, %v3563
  %v3693 = vpack.c.b16 %v3566, %v3565
  %v3694 = vpack.c.b16 %v3568, %v3567
  %v3695 = vpack.c.b16 %v3570, %v3569
  %v3696 = vpack.c.b16 %v3572, %v3571
  %v3697 = vpack.c.b16 %v3574, %v3573
  %v3698 = vpack.c.b16 %v3576, %v3575
  %v3699 = vpack.c.b16 %v3578, %v3577
  %v3700 = vpack.c.b16 %v3580, %v3579
  %v3701 = vpack.c.b16 %v3582, %v3581
  %v3702 = vpack.c.b16 %v3584, %v3583
  %v3703 = vpack.c.b16 %v3586, %v3585
  %v3704 = vpack.c.b16 %v3588, %v3587
  %v3705 = vpack.c.b16 %v3590, %v3589
  %v3706 = vpack.c.b16 %v3592, %v3591
  %v3707 = vpack.c.b16 %v3594, %v3593
  %v3708 = vpack.c.b16 %v3596, %v3595
  %v3709 = vpack.c.b16 %v3598, %v3597
  %v3710 = vpack.c.b16 %v3600, %v3599
  %v3711 = vpack.c.b16 %v3602, %v3601
  %v3712 = vpack.c.b16 %v3604, %v3603
  %v3713 = vpack.c.b16 %v3606, %v3605
  %v3714 = vpack.c.b16 %v3608, %v3607
  %v3715 = vpack.c.b16 %v3610, %v3609
  %v3716 = vpack.c.b16 %v3612, %v3611
  %v3717 = vpack.c.b16 %v3614, %v3613
  %v3718 = vpack.c.b16 %v3616, %v3615
  %v3719 = vpack.c.b16 %v3618, %v3617
  %v3720 = vpack.c.b16 %v3620, %v3619
  %v3721 = vpack.c.b16 %v3622, %v3621
  %v3722 = vpack.c.b16 %v3624, %v3623
  %v3723 = vpack.c.b16 %v3626, %v3625
  %v3724 = vpack.c.b16 %v3628, %v3627
  %v3729 = vunpack.c.l.b16 %v3241
  %v3730 = vunpack.c.h.b16 %v3241
  %v3731 = vunpack.c.l.b16 %v3242
  %v3732 = vunpack.c.h.b16 %v3242
  %v3733 = vunpack.c.l.b16 %v3243
  %v3734 = vunpack.c.h.b16 %v3243
  %v3735 = vunpack.c.l.b16 %v3244
  %v3736 = vunpack.c.h.b16 %v3244
  %v3737 = vpack.c.b16 %v3731, %v3729
  %v3738 = vpack.c.b16 %v3732, %v3730
  %v3739 = vpack.c.b16 %v3735, %v3733
  %v3740 = vpack.c.b16 %v3736, %v3734
  %v3744 = vsel %vm740, %v3629, 0
  %v3747 = vsel %vm740, %v3630, 0
  %v3750 = vsel %vm740, %v3631, 0
  %v3753 = vsel %vm740, %v3632, 0
  %v3756 = vsel %vm740, %v3633, 0
  %v3759 = vsel %vm740, %v3634, 0
  %v3762 = vsel %vm740, %v3635, 0
  %v3765 = vsel %vm740, %v3636, 0
  %v3768 = vsel %vm740, %v3637, 0
  %v3771 = vsel %vm740, %v3638, 0
  %v3774 = vsel %vm740, %v3639, 0
  %v3777 = vsel %vm740, %v3640, 0
  %v3780 = vsel %vm740, %v3641, 0
  %v3783 = vsel %vm740, %v3642, 0
  %v3786 = vsel %vm740, %v3643, 0
  %v3789 = vsel %vm740, %v3644, 0
  %v3792 = vsel %vm740, %v3645, 0
  %v3795 = vsel %vm740, %v3646, 0
  %v3798 = vsel %vm740, %v3647, 0
  %v3801 = vsel %vm740, %v3648, 0
  %v3804 = vsel %vm740, %v3649, 0
  %v3807 = vsel %vm740, %v3650, 0
  %v3810 = vsel %vm740, %v3651, 0
  %v3813 = vsel %vm740, %v3652, 0
  %v3816 = vsel %vm740, %v3653, 0
  %v3819 = vsel %vm740, %v3654, 0
  %v3822 = vsel %vm740, %v3655, 0
  %v3825 = vsel %vm740, %v3656, 0
  %v3828 = vsel %vm740, %v3657, 0
  %v3831 = vsel %vm740, %v3658, 0
  %v3834 = vsel %vm740, %v3659, 0
  %v3837 = vsel %vm740, %v3660, 0
  %v3840 = vsel %vm740, %v3661, 0
  %v3843 = vsel %vm740, %v3662, 0
  %v3846 = vsel %vm740, %v3663, 0
  %v3849 = vsel %vm740, %v3664, 0
  %v3852 = vsel %vm740, %v3665, 0
  %v3855 = vsel %vm740, %v3666, 0
  %v3858 = vsel %vm740, %v3667, 0
  %v3861 = vsel %vm740, %v3668, 0
  %v3864 = vsel %vm740, %v3669, 0
  %v3867 = vsel %vm740, %v3670, 0
  %v3870 = vsel %vm740, %v3671, 0
  %v3873 = vsel %vm740, %v3672, 0
  %v3876 = vsel %vm740, %v3673, 0
  %v3879 = vsel %vm740, %v3674, 0
  %v3882 = vsel %vm740, %v3675, 0
  %v3885 = vsel %vm740, %v3676, 0
  %v3888 = vsel %vm740, %v3677, 0
  %v3891 = vsel %vm740, %v3678, 0
  %v3894 = vsel %vm740, %v3679, 0
  %v3897 = vsel %vm740, %v3680, 0
  %v3900 = vsel %vm740, %v3681, 0
  %v3903 = vsel %vm740, %v3682, 0
  %v3906 = vsel %vm740, %v3683, 0
  %v3909 = vsel %vm740, %v3684, 0
  %v3912 = vsel %vm740, %v3685, 0
  %v3915 = vsel %vm740, %v3686, 0
  %v3918 = vsel %vm740, %v3687, 0
  %v3921 = vsel %vm740, %v3688, 0
  %v3924 = vsel %vm740, %v3689, 0
  %v3927 = vsel %vm740, %v3690, 0
  %v3930 = vsel %vm740, %v3691, 0
  %v3933 = vsel %vm740, %v3692, 0
  %v3936 = vsel %vm740, %v3693, 0
  %v3939 = vsel %vm740, %v3694, 0
  %v3942 = vsel %vm740, %v3695, 0
  %v3945 = vsel %vm740, %v3696, 0
  %v3948 = vsel %vm740, %v3697, 0
  %v3951 = vsel %vm740, %v3698, 0
  %v3954 = vsel %vm740, %v3699, 0
  %v3957 = vsel %vm740, %v3700, 0
  %v3960 = vsel %vm740, %v3701, 0
  %v3963 = vsel %vm740, %v3702, 0
  %v3966 = vsel %vm740, %v3703, 0
  %v3969 = vsel %vm740, %v3704, 0
  %v3972 = vsel %vm740, %v3705, 0
  %v3975 = vsel %vm740, %v3706, 0
  %v3978 = vsel %vm740, %v3707, 0
  %v3981 = vsel %vm740, %v3708, 0
  %v3984 = vsel %vm740, %v3709, 0
  %v3987 = vsel %vm740, %v3710, 0
  %v3990 = vsel %vm740, %v3711, 0
  %v3993 = vsel %vm740, %v3712, 0
  %v3996 = vsel %vm740, %v3713, 0
  %v3999 = vsel %vm740, %v3714, 0
  %v4002 = vsel %vm740, %v3715, 0
  %v4005 = vsel %vm740, %v3716, 0
  %v4008 = vsel %vm740, %v3717, 0
  %v4011 = vsel %vm740, %v3718, 0
  %v4014 = vsel %vm740, %v3719, 0
  %v4017 = vsel %vm740, %v3720, 0
  %v4020 = vsel %vm740, %v3721, 0
  %v4023 = vsel %vm740, %v3722, 0
  %v4026 = vsel %vm740, %v3723, 0
  %v4029 = vsel %vm740, %v3724, 0
  %v4032 = vsel %vm1029, %v3739, 0
  %v4035 = vsel %vm1029, %v3740, 0
  %4037 = vmatpush.bf16.msra.mxu0 0
  %4038 = vmatpush.bf16.msra.mxu0 0
  %4039 = vmatpush.bf16.msra.mxu0 0
  %4040 = vmatpush.bf16.msra.mxu0 0
  %4041 = vmatpush.bf16.msra.mxu0 0
  %4042 = vmatpush.bf16.msra.mxu0 0
  %4043 = vmatpush.bf16.msra.mxu0 %v4032
  %4044 = vmatpush.bf16.msra.mxu0 %v3737
  %4045 = vmatmul.bf16.gmra.mxu0 %v3744
  %v4046 = vpop.f32.mrf.mxu0
  %v4047 = vadd.f32 0.0, %v4046
  %v4048 = vpop.f32.mrf.mxu0
  %v4049 = vadd.f32 0.0, %v4048
  %4050 = vmatmul.bf16.gmra.mxu0 %v3747
  %v4051 = vpop.f32.mrf.mxu0
  %v4052 = vadd.f32 0.0, %v4051
  %v4053 = vpop.f32.mrf.mxu0
  %v4054 = vadd.f32 0.0, %v4053
  %4055 = vmatmul.bf16.gmra.mxu0 %v3750
  %v4056 = vpop.f32.mrf.mxu0
  %v4057 = vadd.f32 0.0, %v4056
  %v4058 = vpop.f32.mrf.mxu0
  %v4059 = vadd.f32 0.0, %v4058
  %4060 = vmatmul.bf16.gmra.mxu0 %v3753
  %v4061 = vpop.f32.mrf.mxu0
  %v4062 = vadd.f32 0.0, %v4061
  %v4063 = vpop.f32.mrf.mxu0
  %v4064 = vadd.f32 0.0, %v4063
  %4065 = vmatmul.bf16.gmra.mxu0 %v3756
  %v4066 = vpop.f32.mrf.mxu0
  %v4067 = vadd.f32 0.0, %v4066
  %v4068 = vpop.f32.mrf.mxu0
  %v4069 = vadd.f32 0.0, %v4068
  %4070 = vmatmul.bf16.gmra.mxu0 %v3759
  %v4071 = vpop.f32.mrf.mxu0
  %v4072 = vadd.f32 0.0, %v4071
  %v4073 = vpop.f32.mrf.mxu0
  %v4074 = vadd.f32 0.0, %v4073
  %4075 = vmatmul.bf16.gmra.mxu0 %v3762
  %v4076 = vpop.f32.mrf.mxu0
  %v4077 = vadd.f32 0.0, %v4076
  %v4078 = vpop.f32.mrf.mxu0
  %v4079 = vadd.f32 0.0, %v4078
  %4080 = vmatmul.bf16.gmra.mxu0 %v3765
  %v4081 = vpop.f32.mrf.mxu0
  %v4082 = vadd.f32 0.0, %v4081
  %v4083 = vpop.f32.mrf.mxu0
  %v4084 = vadd.f32 0.0, %v4083
  %4085 = vmatmul.bf16.gmra.mxu0 %v3768
  %v4086 = vpop.f32.mrf.mxu0
  %v4087 = vadd.f32 0.0, %v4086
  %v4088 = vpop.f32.mrf.mxu0
  %v4089 = vadd.f32 0.0, %v4088
  %4090 = vmatmul.bf16.gmra.mxu0 %v3771
  %v4091 = vpop.f32.mrf.mxu0
  %v4092 = vadd.f32 0.0, %v4091
  %v4093 = vpop.f32.mrf.mxu0
  %v4094 = vadd.f32 0.0, %v4093
  %4095 = vmatmul.bf16.gmra.mxu0 %v3774
  %v4096 = vpop.f32.mrf.mxu0
  %v4097 = vadd.f32 0.0, %v4096
  %v4098 = vpop.f32.mrf.mxu0
  %v4099 = vadd.f32 0.0, %v4098
  %4100 = vmatmul.bf16.gmra.mxu0 %v3777
  %v4101 = vpop.f32.mrf.mxu0
  %v4102 = vadd.f32 0.0, %v4101
  %v4103 = vpop.f32.mrf.mxu0
  %v4104 = vadd.f32 0.0, %v4103
  %4105 = vmatmul.bf16.gmra.mxu0 %v3780
  %v4106 = vpop.f32.mrf.mxu0
  %v4107 = vadd.f32 0.0, %v4106
  %v4108 = vpop.f32.mrf.mxu0
  %v4109 = vadd.f32 0.0, %v4108
  %4110 = vmatmul.bf16.gmra.mxu0 %v3783
  %v4111 = vpop.f32.mrf.mxu0
  %v4112 = vadd.f32 0.0, %v4111
  %v4113 = vpop.f32.mrf.mxu0
  %v4114 = vadd.f32 0.0, %v4113
  %4115 = vmatmul.bf16.gmra.mxu0 %v3786
  %v4116 = vpop.f32.mrf.mxu0
  %v4117 = vadd.f32 0.0, %v4116
  %v4118 = vpop.f32.mrf.mxu0
  %v4119 = vadd.f32 0.0, %v4118
  %4120 = vmatmul.bf16.gmra.mxu0 %v3789
  %v4121 = vpop.f32.mrf.mxu0
  %v4122 = vadd.f32 0.0, %v4121
  %v4123 = vpop.f32.mrf.mxu0
  %v4124 = vadd.f32 0.0, %v4123
  %4125 = vmatmul.bf16.gmra.mxu0 %v3792
  %v4126 = vpop.f32.mrf.mxu0
  %v4127 = vadd.f32 0.0, %v4126
  %v4128 = vpop.f32.mrf.mxu0
  %v4129 = vadd.f32 0.0, %v4128
  %4130 = vmatmul.bf16.gmra.mxu0 %v3795
  %v4131 = vpop.f32.mrf.mxu0
  %v4132 = vadd.f32 0.0, %v4131
  %v4133 = vpop.f32.mrf.mxu0
  %v4134 = vadd.f32 0.0, %v4133
  %4135 = vmatmul.bf16.gmra.mxu0 %v3798
  %v4136 = vpop.f32.mrf.mxu0
  %v4137 = vadd.f32 0.0, %v4136
  %v4138 = vpop.f32.mrf.mxu0
  %v4139 = vadd.f32 0.0, %v4138
  %4140 = vmatmul.bf16.gmra.mxu0 %v3801
  %v4141 = vpop.f32.mrf.mxu0
  %v4142 = vadd.f32 0.0, %v4141
  %v4143 = vpop.f32.mrf.mxu0
  %v4144 = vadd.f32 0.0, %v4143
  %4145 = vmatmul.bf16.gmra.mxu0 %v3804
  %v4146 = vpop.f32.mrf.mxu0
  %v4147 = vadd.f32 0.0, %v4146
  %v4148 = vpop.f32.mrf.mxu0
  %v4149 = vadd.f32 0.0, %v4148
  %4150 = vmatmul.bf16.gmra.mxu0 %v3807
  %v4151 = vpop.f32.mrf.mxu0
  %v4152 = vadd.f32 0.0, %v4151
  %v4153 = vpop.f32.mrf.mxu0
  %v4154 = vadd.f32 0.0, %v4153
  %4155 = vmatmul.bf16.gmra.mxu0 %v3810
  %v4156 = vpop.f32.mrf.mxu0
  %v4157 = vadd.f32 0.0, %v4156
  %v4158 = vpop.f32.mrf.mxu0
  %v4159 = vadd.f32 0.0, %v4158
  %4160 = vmatmul.bf16.gmra.mxu0 %v3813
  %v4161 = vpop.f32.mrf.mxu0
  %v4162 = vadd.f32 0.0, %v4161
  %v4163 = vpop.f32.mrf.mxu0
  %v4164 = vadd.f32 0.0, %v4163
  %4165 = vmatmul.bf16.gmra.mxu0 %v3816
  %v4166 = vpop.f32.mrf.mxu0
  %v4167 = vadd.f32 0.0, %v4166
  %v4168 = vpop.f32.mrf.mxu0
  %v4169 = vadd.f32 0.0, %v4168
  %4170 = vmatmul.bf16.gmra.mxu0 %v3819
  %v4171 = vpop.f32.mrf.mxu0
  %v4172 = vadd.f32 0.0, %v4171
  %v4173 = vpop.f32.mrf.mxu0
  %v4174 = vadd.f32 0.0, %v4173
  %4175 = vmatmul.bf16.gmra.mxu0 %v3822
  %v4176 = vpop.f32.mrf.mxu0
  %v4177 = vadd.f32 0.0, %v4176
  %v4178 = vpop.f32.mrf.mxu0
  %v4179 = vadd.f32 0.0, %v4178
  %4180 = vmatmul.bf16.gmra.mxu0 %v3825
  %v4181 = vpop.f32.mrf.mxu0
  %v4182 = vadd.f32 0.0, %v4181
  %v4183 = vpop.f32.mrf.mxu0
  %v4184 = vadd.f32 0.0, %v4183
  %4185 = vmatmul.bf16.gmra.mxu0 %v3828
  %v4186 = vpop.f32.mrf.mxu0
  %v4187 = vadd.f32 0.0, %v4186
  %v4188 = vpop.f32.mrf.mxu0
  %v4189 = vadd.f32 0.0, %v4188
  %4190 = vmatmul.bf16.gmra.mxu0 %v3831
  %v4191 = vpop.f32.mrf.mxu0
  %v4192 = vadd.f32 0.0, %v4191
  %v4193 = vpop.f32.mrf.mxu0
  %v4194 = vadd.f32 0.0, %v4193
  %4195 = vmatmul.bf16.gmra.mxu0 %v3834
  %v4196 = vpop.f32.mrf.mxu0
  %v4197 = vadd.f32 0.0, %v4196
  %v4198 = vpop.f32.mrf.mxu0
  %v4199 = vadd.f32 0.0, %v4198
  %4200 = vmatmul.bf16.gmra.mxu0 %v3837
  %v4201 = vpop.f32.mrf.mxu0
  %v4202 = vadd.f32 0.0, %v4201
  %v4203 = vpop.f32.mrf.mxu0
  %v4204 = vadd.f32 0.0, %v4203
  %4205 = vmatmul.bf16.gmra.mxu0 %v3840
  %v4206 = vpop.f32.mrf.mxu0
  %v4207 = vadd.f32 0.0, %v4206
  %v4208 = vpop.f32.mrf.mxu0
  %v4209 = vadd.f32 0.0, %v4208
  %4210 = vmatmul.bf16.gmra.mxu0 %v3843
  %v4211 = vpop.f32.mrf.mxu0
  %v4212 = vadd.f32 0.0, %v4211
  %v4213 = vpop.f32.mrf.mxu0
  %v4214 = vadd.f32 0.0, %v4213
  %4215 = vmatmul.bf16.gmra.mxu0 %v3846
  %v4216 = vpop.f32.mrf.mxu0
  %v4217 = vadd.f32 0.0, %v4216
  %v4218 = vpop.f32.mrf.mxu0
  %v4219 = vadd.f32 0.0, %v4218
  %4220 = vmatmul.bf16.gmra.mxu0 %v3849
  %v4221 = vpop.f32.mrf.mxu0
  %v4222 = vadd.f32 0.0, %v4221
  %v4223 = vpop.f32.mrf.mxu0
  %v4224 = vadd.f32 0.0, %v4223
  %4225 = vmatmul.bf16.gmra.mxu0 %v3852
  %v4226 = vpop.f32.mrf.mxu0
  %v4227 = vadd.f32 0.0, %v4226
  %v4228 = vpop.f32.mrf.mxu0
  %v4229 = vadd.f32 0.0, %v4228
  %4230 = vmatmul.bf16.gmra.mxu0 %v3855
  %v4231 = vpop.f32.mrf.mxu0
  %v4232 = vadd.f32 0.0, %v4231
  %v4233 = vpop.f32.mrf.mxu0
  %v4234 = vadd.f32 0.0, %v4233
  %4235 = vmatmul.bf16.gmra.mxu0 %v3858
  %v4236 = vpop.f32.mrf.mxu0
  %v4237 = vadd.f32 0.0, %v4236
  %v4238 = vpop.f32.mrf.mxu0
  %v4239 = vadd.f32 0.0, %v4238
  %4240 = vmatmul.bf16.gmra.mxu0 %v3861
  %v4241 = vpop.f32.mrf.mxu0
  %v4242 = vadd.f32 0.0, %v4241
  %v4243 = vpop.f32.mrf.mxu0
  %v4244 = vadd.f32 0.0, %v4243
  %4245 = vmatmul.bf16.gmra.mxu0 %v3864
  %v4246 = vpop.f32.mrf.mxu0
  %v4247 = vadd.f32 0.0, %v4246
  %v4248 = vpop.f32.mrf.mxu0
  %v4249 = vadd.f32 0.0, %v4248
  %4250 = vmatmul.bf16.gmra.mxu0 %v3867
  %v4251 = vpop.f32.mrf.mxu0
  %v4252 = vadd.f32 0.0, %v4251
  %v4253 = vpop.f32.mrf.mxu0
  %v4254 = vadd.f32 0.0, %v4253
  %4255 = vmatmul.bf16.gmra.mxu0 %v3870
  %v4256 = vpop.f32.mrf.mxu0
  %v4257 = vadd.f32 0.0, %v4256
  %v4258 = vpop.f32.mrf.mxu0
  %v4259 = vadd.f32 0.0, %v4258
  %4260 = vmatmul.bf16.gmra.mxu0 %v3873
  %v4261 = vpop.f32.mrf.mxu0
  %v4262 = vadd.f32 0.0, %v4261
  %v4263 = vpop.f32.mrf.mxu0
  %v4264 = vadd.f32 0.0, %v4263
  %4265 = vmatmul.bf16.gmra.mxu0 %v3876
  %v4266 = vpop.f32.mrf.mxu0
  %v4267 = vadd.f32 0.0, %v4266
  %v4268 = vpop.f32.mrf.mxu0
  %v4269 = vadd.f32 0.0, %v4268
  %4270 = vmatmul.bf16.gmra.mxu0 %v3879
  %v4271 = vpop.f32.mrf.mxu0
  %v4272 = vadd.f32 0.0, %v4271
  %v4273 = vpop.f32.mrf.mxu0
  %v4274 = vadd.f32 0.0, %v4273
  %4275 = vmatmul.bf16.gmra.mxu0 %v3882
  %v4276 = vpop.f32.mrf.mxu0
  %v4277 = vadd.f32 0.0, %v4276
  %v4278 = vpop.f32.mrf.mxu0
  %v4279 = vadd.f32 0.0, %v4278
  %4280 = vmatmul.bf16.gmra.mxu0 %v3885
  %v4281 = vpop.f32.mrf.mxu0
  %v4282 = vadd.f32 0.0, %v4281
  %v4283 = vpop.f32.mrf.mxu0
  %v4284 = vadd.f32 0.0, %v4283
  %4285 = vmatmul.bf16.gmra.mxu0 %v3888
  %v4286 = vpop.f32.mrf.mxu0
  %v4287 = vadd.f32 0.0, %v4286
  %v4288 = vpop.f32.mrf.mxu0
  %v4289 = vadd.f32 0.0, %v4288
  %4290 = vmatmul.bf16.gmra.mxu0 %v3891
  %v4291 = vpop.f32.mrf.mxu0
  %v4292 = vadd.f32 0.0, %v4291
  %v4293 = vpop.f32.mrf.mxu0
  %v4294 = vadd.f32 0.0, %v4293
  %4295 = vmatmul.bf16.gmra.mxu0 %v3894
  %v4296 = vpop.f32.mrf.mxu0
  %v4297 = vadd.f32 0.0, %v4296
  %v4298 = vpop.f32.mrf.mxu0
  %v4299 = vadd.f32 0.0, %v4298
  %4300 = vmatmul.bf16.gmra.mxu0 %v3897
  %v4301 = vpop.f32.mrf.mxu0
  %v4302 = vadd.f32 0.0, %v4301
  %v4303 = vpop.f32.mrf.mxu0
  %v4304 = vadd.f32 0.0, %v4303
  %4305 = vmatmul.bf16.gmra.mxu0 %v3900
  %v4306 = vpop.f32.mrf.mxu0
  %v4307 = vadd.f32 0.0, %v4306
  %v4308 = vpop.f32.mrf.mxu0
  %v4309 = vadd.f32 0.0, %v4308
  %4310 = vmatmul.bf16.gmra.mxu0 %v3903
  %v4311 = vpop.f32.mrf.mxu0
  %v4312 = vadd.f32 0.0, %v4311
  %v4313 = vpop.f32.mrf.mxu0
  %v4314 = vadd.f32 0.0, %v4313
  %4315 = vmatmul.bf16.gmra.mxu0 %v3906
  %v4316 = vpop.f32.mrf.mxu0
  %v4317 = vadd.f32 0.0, %v4316
  %v4318 = vpop.f32.mrf.mxu0
  %v4319 = vadd.f32 0.0, %v4318
  %4320 = vmatmul.bf16.gmra.mxu0 %v3909
  %v4321 = vpop.f32.mrf.mxu0
  %v4322 = vadd.f32 0.0, %v4321
  %v4323 = vpop.f32.mrf.mxu0
  %v4324 = vadd.f32 0.0, %v4323
  %4325 = vmatmul.bf16.gmra.mxu0 %v3912
  %v4326 = vpop.f32.mrf.mxu0
  %v4327 = vadd.f32 0.0, %v4326
  %v4328 = vpop.f32.mrf.mxu0
  %v4329 = vadd.f32 0.0, %v4328
  %4330 = vmatmul.bf16.gmra.mxu0 %v3915
  %v4331 = vpop.f32.mrf.mxu0
  %v4332 = vadd.f32 0.0, %v4331
  %v4333 = vpop.f32.mrf.mxu0
  %v4334 = vadd.f32 0.0, %v4333
  %4335 = vmatmul.bf16.gmra.mxu0 %v3918
  %v4336 = vpop.f32.mrf.mxu0
  %v4337 = vadd.f32 0.0, %v4336
  %v4338 = vpop.f32.mrf.mxu0
  %v4339 = vadd.f32 0.0, %v4338
  %4340 = vmatmul.bf16.gmra.mxu0 %v3921
  %v4341 = vpop.f32.mrf.mxu0
  %v4342 = vadd.f32 0.0, %v4341
  %v4343 = vpop.f32.mrf.mxu0
  %v4344 = vadd.f32 0.0, %v4343
  %4345 = vmatmul.bf16.gmra.mxu0 %v3924
  %v4346 = vpop.f32.mrf.mxu0
  %v4347 = vadd.f32 0.0, %v4346
  %v4348 = vpop.f32.mrf.mxu0
  %v4349 = vadd.f32 0.0, %v4348
  %4350 = vmatmul.bf16.gmra.mxu0 %v3927
  %v4351 = vpop.f32.mrf.mxu0
  %v4352 = vadd.f32 0.0, %v4351
  %v4353 = vpop.f32.mrf.mxu0
  %v4354 = vadd.f32 0.0, %v4353
  %4355 = vmatmul.bf16.gmra.mxu0 %v3930
  %v4356 = vpop.f32.mrf.mxu0
  %v4357 = vadd.f32 0.0, %v4356
  %v4358 = vpop.f32.mrf.mxu0
  %v4359 = vadd.f32 0.0, %v4358
  %4360 = vmatmul.bf16.gmra.mxu0 %v3933
  %v4361 = vpop.f32.mrf.mxu0
  %v4362 = vadd.f32 0.0, %v4361
  %v4363 = vpop.f32.mrf.mxu0
  %v4364 = vadd.f32 0.0, %v4363
  %4365 = vmatmul.bf16.gmra.mxu0 %v3936
  %v4366 = vpop.f32.mrf.mxu0
  %v4367 = vadd.f32 0.0, %v4366
  %v4368 = vpop.f32.mrf.mxu0
  %v4369 = vadd.f32 0.0, %v4368
  %4370 = vmatmul.bf16.gmra.mxu0 %v3939
  %v4371 = vpop.f32.mrf.mxu0
  %v4372 = vadd.f32 0.0, %v4371
  %v4373 = vpop.f32.mrf.mxu0
  %v4374 = vadd.f32 0.0, %v4373
  %4375 = vmatmul.bf16.gmra.mxu0 %v3942
  %v4376 = vpop.f32.mrf.mxu0
  %v4377 = vadd.f32 0.0, %v4376
  %v4378 = vpop.f32.mrf.mxu0
  %v4379 = vadd.f32 0.0, %v4378
  %4380 = vmatmul.bf16.gmra.mxu0 %v3945
  %v4381 = vpop.f32.mrf.mxu0
  %v4382 = vadd.f32 0.0, %v4381
  %v4383 = vpop.f32.mrf.mxu0
  %v4384 = vadd.f32 0.0, %v4383
  %4385 = vmatmul.bf16.gmra.mxu0 %v3948
  %v4386 = vpop.f32.mrf.mxu0
  %v4387 = vadd.f32 0.0, %v4386
  %v4388 = vpop.f32.mrf.mxu0
  %v4389 = vadd.f32 0.0, %v4388
  %4390 = vmatmul.bf16.gmra.mxu0 %v3951
  %v4391 = vpop.f32.mrf.mxu0
  %v4392 = vadd.f32 0.0, %v4391
  %v4393 = vpop.f32.mrf.mxu0
  %v4394 = vadd.f32 0.0, %v4393
  %4395 = vmatmul.bf16.gmra.mxu0 %v3954
  %v4396 = vpop.f32.mrf.mxu0
  %v4397 = vadd.f32 0.0, %v4396
  %v4398 = vpop.f32.mrf.mxu0
  %v4399 = vadd.f32 0.0, %v4398
  %4400 = vmatmul.bf16.gmra.mxu0 %v3957
  %v4401 = vpop.f32.mrf.mxu0
  %v4402 = vadd.f32 0.0, %v4401
  %v4403 = vpop.f32.mrf.mxu0
  %v4404 = vadd.f32 0.0, %v4403
  %4405 = vmatmul.bf16.gmra.mxu0 %v3960
  %v4406 = vpop.f32.mrf.mxu0
  %v4407 = vadd.f32 0.0, %v4406
  %v4408 = vpop.f32.mrf.mxu0
  %v4409 = vadd.f32 0.0, %v4408
  %4410 = vmatmul.bf16.gmra.mxu0 %v3963
  %v4411 = vpop.f32.mrf.mxu0
  %v4412 = vadd.f32 0.0, %v4411
  %v4413 = vpop.f32.mrf.mxu0
  %v4414 = vadd.f32 0.0, %v4413
  %4415 = vmatmul.bf16.gmra.mxu0 %v3966
  %v4416 = vpop.f32.mrf.mxu0
  %v4417 = vadd.f32 0.0, %v4416
  %v4418 = vpop.f32.mrf.mxu0
  %v4419 = vadd.f32 0.0, %v4418
  %4420 = vmatmul.bf16.gmra.mxu0 %v3969
  %v4421 = vpop.f32.mrf.mxu0
  %v4422 = vadd.f32 0.0, %v4421
  %v4423 = vpop.f32.mrf.mxu0
  %v4424 = vadd.f32 0.0, %v4423
  %4425 = vmatmul.bf16.gmra.mxu0 %v3972
  %v4426 = vpop.f32.mrf.mxu0
  %v4427 = vadd.f32 0.0, %v4426
  %v4428 = vpop.f32.mrf.mxu0
  %v4429 = vadd.f32 0.0, %v4428
  %4430 = vmatmul.bf16.gmra.mxu0 %v3975
  %v4431 = vpop.f32.mrf.mxu0
  %v4432 = vadd.f32 0.0, %v4431
  %v4433 = vpop.f32.mrf.mxu0
  %v4434 = vadd.f32 0.0, %v4433
  %4435 = vmatmul.bf16.gmra.mxu0 %v3978
  %v4436 = vpop.f32.mrf.mxu0
  %v4437 = vadd.f32 0.0, %v4436
  %v4438 = vpop.f32.mrf.mxu0
  %v4439 = vadd.f32 0.0, %v4438
  %4440 = vmatmul.bf16.gmra.mxu0 %v3981
  %v4441 = vpop.f32.mrf.mxu0
  %v4442 = vadd.f32 0.0, %v4441
  %v4443 = vpop.f32.mrf.mxu0
  %v4444 = vadd.f32 0.0, %v4443
  %4445 = vmatmul.bf16.gmra.mxu0 %v3984
  %v4446 = vpop.f32.mrf.mxu0
  %v4447 = vadd.f32 0.0, %v4446
  %v4448 = vpop.f32.mrf.mxu0
  %v4449 = vadd.f32 0.0, %v4448
  %4450 = vmatmul.bf16.gmra.mxu0 %v3987
  %v4451 = vpop.f32.mrf.mxu0
  %v4452 = vadd.f32 0.0, %v4451
  %v4453 = vpop.f32.mrf.mxu0
  %v4454 = vadd.f32 0.0, %v4453
  %4455 = vmatmul.bf16.gmra.mxu0 %v3990
  %v4456 = vpop.f32.mrf.mxu0
  %v4457 = vadd.f32 0.0, %v4456
  %v4458 = vpop.f32.mrf.mxu0
  %v4459 = vadd.f32 0.0, %v4458
  %4460 = vmatmul.bf16.gmra.mxu0 %v3993
  %v4461 = vpop.f32.mrf.mxu0
  %v4462 = vadd.f32 0.0, %v4461
  %v4463 = vpop.f32.mrf.mxu0
  %v4464 = vadd.f32 0.0, %v4463
  %4465 = vmatmul.bf16.gmra.mxu0 %v3996
  %v4466 = vpop.f32.mrf.mxu0
  %v4467 = vadd.f32 0.0, %v4466
  %v4468 = vpop.f32.mrf.mxu0
  %v4469 = vadd.f32 0.0, %v4468
  %4470 = vmatmul.bf16.gmra.mxu0 %v3999
  %v4471 = vpop.f32.mrf.mxu0
  %v4472 = vadd.f32 0.0, %v4471
  %v4473 = vpop.f32.mrf.mxu0
  %v4474 = vadd.f32 0.0, %v4473
  %4475 = vmatmul.bf16.gmra.mxu0 %v4002
  %v4476 = vpop.f32.mrf.mxu0
  %v4477 = vadd.f32 0.0, %v4476
  %v4478 = vpop.f32.mrf.mxu0
  %v4479 = vadd.f32 0.0, %v4478
  %4480 = vmatmul.bf16.gmra.mxu0 %v4005
  %v4481 = vpop.f32.mrf.mxu0
  %v4482 = vadd.f32 0.0, %v4481
  %v4483 = vpop.f32.mrf.mxu0
  %v4484 = vadd.f32 0.0, %v4483
  %4485 = vmatmul.bf16.gmra.mxu0 %v4008
  %v4486 = vpop.f32.mrf.mxu0
  %v4487 = vadd.f32 0.0, %v4486
  %v4488 = vpop.f32.mrf.mxu0
  %v4489 = vadd.f32 0.0, %v4488
  %4490 = vmatmul.bf16.gmra.mxu0 %v4011
  %v4491 = vpop.f32.mrf.mxu0
  %v4492 = vadd.f32 0.0, %v4491
  %v4493 = vpop.f32.mrf.mxu0
  %v4494 = vadd.f32 0.0, %v4493
  %4495 = vmatmul.bf16.gmra.mxu0 %v4014
  %v4496 = vpop.f32.mrf.mxu0
  %v4497 = vadd.f32 0.0, %v4496
  %v4498 = vpop.f32.mrf.mxu0
  %v4499 = vadd.f32 0.0, %v4498
  %4500 = vmatmul.bf16.gmra.mxu0 %v4017
  %v4501 = vpop.f32.mrf.mxu0
  %v4502 = vadd.f32 0.0, %v4501
  %v4503 = vpop.f32.mrf.mxu0
  %v4504 = vadd.f32 0.0, %v4503
  %4505 = vmatmul.bf16.gmra.mxu0 %v4020
  %v4506 = vpop.f32.mrf.mxu0
  %v4507 = vadd.f32 0.0, %v4506
  %v4508 = vpop.f32.mrf.mxu0
  %v4509 = vadd.f32 0.0, %v4508
  %4510 = vmatmul.bf16.gmra.mxu0 %v4023
  %v4511 = vpop.f32.mrf.mxu0
  %v4512 = vadd.f32 0.0, %v4511
  %v4513 = vpop.f32.mrf.mxu0
  %v4514 = vadd.f32 0.0, %v4513
  %4515 = vmatmul.bf16.gmra.mxu0 %v4026
  %v4516 = vpop.f32.mrf.mxu0
  %v4517 = vadd.f32 0.0, %v4516
  %v4518 = vpop.f32.mrf.mxu0
  %v4519 = vadd.f32 0.0, %v4518
  %4520 = vmatmul.bf16.gmra.mxu0 %v4029
  %v4521 = vpop.f32.mrf.mxu0
  %v4522 = vadd.f32 0.0, %v4521
  %v4523 = vpop.f32.mrf.mxu0
  %v4524 = vadd.f32 0.0, %v4523
  %4525 = vdwg.mxu0
  %4526 = vmatpush.bf16.msra.mxu0 0
  %4527 = vmatpush.bf16.msra.mxu0 0
  %4528 = vmatpush.bf16.msra.mxu0 0
  %4529 = vmatpush.bf16.msra.mxu0 0
  %4530 = vmatpush.bf16.msra.mxu0 0
  %4531 = vmatpush.bf16.msra.mxu0 0
  %4532 = vmatpush.bf16.msra.mxu0 %v4035
  %4533 = vmatpush.bf16.msra.mxu0 %v3738
  %4534 = vmatmul.bf16.gmra.mxu0 %v3744
  %v4535 = vpop.f32.mrf.mxu0
  %v4536 = vadd.f32 0.0, %v4535
  %v4537 = vpop.f32.mrf.mxu0
  %v4538 = vadd.f32 0.0, %v4537
  %4539 = vmatmul.bf16.gmra.mxu0 %v3747
  %v4540 = vpop.f32.mrf.mxu0
  %v4541 = vadd.f32 0.0, %v4540
  %v4542 = vpop.f32.mrf.mxu0
  %v4543 = vadd.f32 0.0, %v4542
  %4544 = vmatmul.bf16.gmra.mxu0 %v3750
  %v4545 = vpop.f32.mrf.mxu0
  %v4546 = vadd.f32 0.0, %v4545
  %v4547 = vpop.f32.mrf.mxu0
  %v4548 = vadd.f32 0.0, %v4547
  %4549 = vmatmul.bf16.gmra.mxu0 %v3753
  %v4550 = vpop.f32.mrf.mxu0
  %v4551 = vadd.f32 0.0, %v4550
  %v4552 = vpop.f32.mrf.mxu0
  %v4553 = vadd.f32 0.0, %v4552
  %4554 = vmatmul.bf16.gmra.mxu0 %v3756
  %v4555 = vpop.f32.mrf.mxu0
  %v4556 = vadd.f32 0.0, %v4555
  %v4557 = vpop.f32.mrf.mxu0
  %v4558 = vadd.f32 0.0, %v4557
  %4559 = vmatmul.bf16.gmra.mxu0 %v3759
  %v4560 = vpop.f32.mrf.mxu0
  %v4561 = vadd.f32 0.0, %v4560
  %v4562 = vpop.f32.mrf.mxu0
  %v4563 = vadd.f32 0.0, %v4562
  %4564 = vmatmul.bf16.gmra.mxu0 %v3762
  %v4565 = vpop.f32.mrf.mxu0
  %v4566 = vadd.f32 0.0, %v4565
  %v4567 = vpop.f32.mrf.mxu0
  %v4568 = vadd.f32 0.0, %v4567
  %4569 = vmatmul.bf16.gmra.mxu0 %v3765
  %v4570 = vpop.f32.mrf.mxu0
  %v4571 = vadd.f32 0.0, %v4570
  %v4572 = vpop.f32.mrf.mxu0
  %v4573 = vadd.f32 0.0, %v4572
  %4574 = vmatmul.bf16.gmra.mxu0 %v3768
  %v4575 = vpop.f32.mrf.mxu0
  %v4576 = vadd.f32 0.0, %v4575
  %v4577 = vpop.f32.mrf.mxu0
  %v4578 = vadd.f32 0.0, %v4577
  %4579 = vmatmul.bf16.gmra.mxu0 %v3771
  %v4580 = vpop.f32.mrf.mxu0
  %v4581 = vadd.f32 0.0, %v4580
  %v4582 = vpop.f32.mrf.mxu0
  %v4583 = vadd.f32 0.0, %v4582
  %4584 = vmatmul.bf16.gmra.mxu0 %v3774
  %v4585 = vpop.f32.mrf.mxu0
  %v4586 = vadd.f32 0.0, %v4585
  %v4587 = vpop.f32.mrf.mxu0
  %v4588 = vadd.f32 0.0, %v4587
  %4589 = vmatmul.bf16.gmra.mxu0 %v3777
  %v4590 = vpop.f32.mrf.mxu0
  %v4591 = vadd.f32 0.0, %v4590
  %v4592 = vpop.f32.mrf.mxu0
  %v4593 = vadd.f32 0.0, %v4592
  %4594 = vmatmul.bf16.gmra.mxu0 %v3780
  %v4595 = vpop.f32.mrf.mxu0
  %v4596 = vadd.f32 0.0, %v4595
  %v4597 = vpop.f32.mrf.mxu0
  %v4598 = vadd.f32 0.0, %v4597
  %4599 = vmatmul.bf16.gmra.mxu0 %v3783
  %v4600 = vpop.f32.mrf.mxu0
  %v4601 = vadd.f32 0.0, %v4600
  %v4602 = vpop.f32.mrf.mxu0
  %v4603 = vadd.f32 0.0, %v4602
  %4604 = vmatmul.bf16.gmra.mxu0 %v3786
  %v4605 = vpop.f32.mrf.mxu0
  %v4606 = vadd.f32 0.0, %v4605
  %v4607 = vpop.f32.mrf.mxu0
  %v4608 = vadd.f32 0.0, %v4607
  %4609 = vmatmul.bf16.gmra.mxu0 %v3789
  %v4610 = vpop.f32.mrf.mxu0
  %v4611 = vadd.f32 0.0, %v4610
  %v4612 = vpop.f32.mrf.mxu0
  %v4613 = vadd.f32 0.0, %v4612
  %4614 = vmatmul.bf16.gmra.mxu0 %v3792
  %v4615 = vpop.f32.mrf.mxu0
  %v4616 = vadd.f32 0.0, %v4615
  %v4617 = vpop.f32.mrf.mxu0
  %v4618 = vadd.f32 0.0, %v4617
  %4619 = vmatmul.bf16.gmra.mxu0 %v3795
  %v4620 = vpop.f32.mrf.mxu0
  %v4621 = vadd.f32 0.0, %v4620
  %v4622 = vpop.f32.mrf.mxu0
  %v4623 = vadd.f32 0.0, %v4622
  %4624 = vmatmul.bf16.gmra.mxu0 %v3798
  %v4625 = vpop.f32.mrf.mxu0
  %v4626 = vadd.f32 0.0, %v4625
  %v4627 = vpop.f32.mrf.mxu0
  %v4628 = vadd.f32 0.0, %v4627
  %4629 = vmatmul.bf16.gmra.mxu0 %v3801
  %v4630 = vpop.f32.mrf.mxu0
  %v4631 = vadd.f32 0.0, %v4630
  %v4632 = vpop.f32.mrf.mxu0
  %v4633 = vadd.f32 0.0, %v4632
  %4634 = vmatmul.bf16.gmra.mxu0 %v3804
  %v4635 = vpop.f32.mrf.mxu0
  %v4636 = vadd.f32 0.0, %v4635
  %v4637 = vpop.f32.mrf.mxu0
  %v4638 = vadd.f32 0.0, %v4637
  %4639 = vmatmul.bf16.gmra.mxu0 %v3807
  %v4640 = vpop.f32.mrf.mxu0
  %v4641 = vadd.f32 0.0, %v4640
  %v4642 = vpop.f32.mrf.mxu0
  %v4643 = vadd.f32 0.0, %v4642
  %4644 = vmatmul.bf16.gmra.mxu0 %v3810
  %v4645 = vpop.f32.mrf.mxu0
  %v4646 = vadd.f32 0.0, %v4645
  %v4647 = vpop.f32.mrf.mxu0
  %v4648 = vadd.f32 0.0, %v4647
  %4649 = vmatmul.bf16.gmra.mxu0 %v3813
  %v4650 = vpop.f32.mrf.mxu0
  %v4651 = vadd.f32 0.0, %v4650
  %v4652 = vpop.f32.mrf.mxu0
  %v4653 = vadd.f32 0.0, %v4652
  %4654 = vmatmul.bf16.gmra.mxu0 %v3816
  %v4655 = vpop.f32.mrf.mxu0
  %v4656 = vadd.f32 0.0, %v4655
  %v4657 = vpop.f32.mrf.mxu0
  %v4658 = vadd.f32 0.0, %v4657
  %4659 = vmatmul.bf16.gmra.mxu0 %v3819
  %v4660 = vpop.f32.mrf.mxu0
  %v4661 = vadd.f32 0.0, %v4660
  %v4662 = vpop.f32.mrf.mxu0
  %v4663 = vadd.f32 0.0, %v4662
  %4664 = vmatmul.bf16.gmra.mxu0 %v3822
  %v4665 = vpop.f32.mrf.mxu0
  %v4666 = vadd.f32 0.0, %v4665
  %v4667 = vpop.f32.mrf.mxu0
  %v4668 = vadd.f32 0.0, %v4667
  %4669 = vmatmul.bf16.gmra.mxu0 %v3825
  %v4670 = vpop.f32.mrf.mxu0
  %v4671 = vadd.f32 0.0, %v4670
  %v4672 = vpop.f32.mrf.mxu0
  %v4673 = vadd.f32 0.0, %v4672
  %4674 = vmatmul.bf16.gmra.mxu0 %v3828
  %v4675 = vpop.f32.mrf.mxu0
  %v4676 = vadd.f32 0.0, %v4675
  %v4677 = vpop.f32.mrf.mxu0
  %v4678 = vadd.f32 0.0, %v4677
  %4679 = vmatmul.bf16.gmra.mxu0 %v3831
  %v4680 = vpop.f32.mrf.mxu0
  %v4681 = vadd.f32 0.0, %v4680
  %v4682 = vpop.f32.mrf.mxu0
  %v4683 = vadd.f32 0.0, %v4682
  %4684 = vmatmul.bf16.gmra.mxu0 %v3834
  %v4685 = vpop.f32.mrf.mxu0
  %v4686 = vadd.f32 0.0, %v4685
  %v4687 = vpop.f32.mrf.mxu0
  %v4688 = vadd.f32 0.0, %v4687
  %4689 = vmatmul.bf16.gmra.mxu0 %v3837
  %v4690 = vpop.f32.mrf.mxu0
  %v4691 = vadd.f32 0.0, %v4690
  %v4692 = vpop.f32.mrf.mxu0
  %v4693 = vadd.f32 0.0, %v4692
  %4694 = vmatmul.bf16.gmra.mxu0 %v3840
  %v4695 = vpop.f32.mrf.mxu0
  %v4696 = vadd.f32 0.0, %v4695
  %v4697 = vpop.f32.mrf.mxu0
  %v4698 = vadd.f32 0.0, %v4697
  %4699 = vmatmul.bf16.gmra.mxu0 %v3843
  %v4700 = vpop.f32.mrf.mxu0
  %v4701 = vadd.f32 0.0, %v4700
  %v4702 = vpop.f32.mrf.mxu0
  %v4703 = vadd.f32 0.0, %v4702
  %4704 = vmatmul.bf16.gmra.mxu0 %v3846
  %v4705 = vpop.f32.mrf.mxu0
  %v4706 = vadd.f32 0.0, %v4705
  %v4707 = vpop.f32.mrf.mxu0
  %v4708 = vadd.f32 0.0, %v4707
  %4709 = vmatmul.bf16.gmra.mxu0 %v3849
  %v4710 = vpop.f32.mrf.mxu0
  %v4711 = vadd.f32 0.0, %v4710
  %v4712 = vpop.f32.mrf.mxu0
  %v4713 = vadd.f32 0.0, %v4712
  %4714 = vmatmul.bf16.gmra.mxu0 %v3852
  %v4715 = vpop.f32.mrf.mxu0
  %v4716 = vadd.f32 0.0, %v4715
  %v4717 = vpop.f32.mrf.mxu0
  %v4718 = vadd.f32 0.0, %v4717
  %4719 = vmatmul.bf16.gmra.mxu0 %v3855
  %v4720 = vpop.f32.mrf.mxu0
  %v4721 = vadd.f32 0.0, %v4720
  %v4722 = vpop.f32.mrf.mxu0
  %v4723 = vadd.f32 0.0, %v4722
  %4724 = vmatmul.bf16.gmra.mxu0 %v3858
  %v4725 = vpop.f32.mrf.mxu0
  %v4726 = vadd.f32 0.0, %v4725
  %v4727 = vpop.f32.mrf.mxu0
  %v4728 = vadd.f32 0.0, %v4727
  %4729 = vmatmul.bf16.gmra.mxu0 %v3861
  %v4730 = vpop.f32.mrf.mxu0
  %v4731 = vadd.f32 0.0, %v4730
  %v4732 = vpop.f32.mrf.mxu0
  %v4733 = vadd.f32 0.0, %v4732
  %4734 = vmatmul.bf16.gmra.mxu0 %v3864
  %v4735 = vpop.f32.mrf.mxu0
  %v4736 = vadd.f32 0.0, %v4735
  %v4737 = vpop.f32.mrf.mxu0
  %v4738 = vadd.f32 0.0, %v4737
  %4739 = vmatmul.bf16.gmra.mxu0 %v3867
  %v4740 = vpop.f32.mrf.mxu0
  %v4741 = vadd.f32 0.0, %v4740
  %v4742 = vpop.f32.mrf.mxu0
  %v4743 = vadd.f32 0.0, %v4742
  %4744 = vmatmul.bf16.gmra.mxu0 %v3870
  %v4745 = vpop.f32.mrf.mxu0
  %v4746 = vadd.f32 0.0, %v4745
  %v4747 = vpop.f32.mrf.mxu0
  %v4748 = vadd.f32 0.0, %v4747
  %4749 = vmatmul.bf16.gmra.mxu0 %v3873
  %v4750 = vpop.f32.mrf.mxu0
  %v4751 = vadd.f32 0.0, %v4750
  %v4752 = vpop.f32.mrf.mxu0
  %v4753 = vadd.f32 0.0, %v4752
  %4754 = vmatmul.bf16.gmra.mxu0 %v3876
  %v4755 = vpop.f32.mrf.mxu0
  %v4756 = vadd.f32 0.0, %v4755
  %v4757 = vpop.f32.mrf.mxu0
  %v4758 = vadd.f32 0.0, %v4757
  %4759 = vmatmul.bf16.gmra.mxu0 %v3879
  %v4760 = vpop.f32.mrf.mxu0
  %v4761 = vadd.f32 0.0, %v4760
  %v4762 = vpop.f32.mrf.mxu0
  %v4763 = vadd.f32 0.0, %v4762
  %4764 = vmatmul.bf16.gmra.mxu0 %v3882
  %v4765 = vpop.f32.mrf.mxu0
  %v4766 = vadd.f32 0.0, %v4765
  %v4767 = vpop.f32.mrf.mxu0
  %v4768 = vadd.f32 0.0, %v4767
  %4769 = vmatmul.bf16.gmra.mxu0 %v3885
  %v4770 = vpop.f32.mrf.mxu0
  %v4771 = vadd.f32 0.0, %v4770
  %v4772 = vpop.f32.mrf.mxu0
  %v4773 = vadd.f32 0.0, %v4772
  %4774 = vmatmul.bf16.gmra.mxu0 %v3888
  %v4775 = vpop.f32.mrf.mxu0
  %v4776 = vadd.f32 0.0, %v4775
  %v4777 = vpop.f32.mrf.mxu0
  %v4778 = vadd.f32 0.0, %v4777
  %4779 = vmatmul.bf16.gmra.mxu0 %v3891
  %v4780 = vpop.f32.mrf.mxu0
  %v4781 = vadd.f32 0.0, %v4780
  %v4782 = vpop.f32.mrf.mxu0
  %v4783 = vadd.f32 0.0, %v4782
  %4784 = vmatmul.bf16.gmra.mxu0 %v3894
  %v4785 = vpop.f32.mrf.mxu0
  %v4786 = vadd.f32 0.0, %v4785
  %v4787 = vpop.f32.mrf.mxu0
  %v4788 = vadd.f32 0.0, %v4787
  %4789 = vmatmul.bf16.gmra.mxu0 %v3897
  %v4790 = vpop.f32.mrf.mxu0
  %v4791 = vadd.f32 0.0, %v4790
  %v4792 = vpop.f32.mrf.mxu0
  %v4793 = vadd.f32 0.0, %v4792
  %4794 = vmatmul.bf16.gmra.mxu0 %v3900
  %v4795 = vpop.f32.mrf.mxu0
  %v4796 = vadd.f32 0.0, %v4795
  %v4797 = vpop.f32.mrf.mxu0
  %v4798 = vadd.f32 0.0, %v4797
  %4799 = vmatmul.bf16.gmra.mxu0 %v3903
  %v4800 = vpop.f32.mrf.mxu0
  %v4801 = vadd.f32 0.0, %v4800
  %v4802 = vpop.f32.mrf.mxu0
  %v4803 = vadd.f32 0.0, %v4802
  %4804 = vmatmul.bf16.gmra.mxu0 %v3906
  %v4805 = vpop.f32.mrf.mxu0
  %v4806 = vadd.f32 0.0, %v4805
  %v4807 = vpop.f32.mrf.mxu0
  %v4808 = vadd.f32 0.0, %v4807
  %4809 = vmatmul.bf16.gmra.mxu0 %v3909
  %v4810 = vpop.f32.mrf.mxu0
  %v4811 = vadd.f32 0.0, %v4810
  %v4812 = vpop.f32.mrf.mxu0
  %v4813 = vadd.f32 0.0, %v4812
  %4814 = vmatmul.bf16.gmra.mxu0 %v3912
  %v4815 = vpop.f32.mrf.mxu0
  %v4816 = vadd.f32 0.0, %v4815
  %v4817 = vpop.f32.mrf.mxu0
  %v4818 = vadd.f32 0.0, %v4817
  %4819 = vmatmul.bf16.gmra.mxu0 %v3915
  %v4820 = vpop.f32.mrf.mxu0
  %v4821 = vadd.f32 0.0, %v4820
  %v4822 = vpop.f32.mrf.mxu0
  %v4823 = vadd.f32 0.0, %v4822
  %4824 = vmatmul.bf16.gmra.mxu0 %v3918
  %v4825 = vpop.f32.mrf.mxu0
  %v4826 = vadd.f32 0.0, %v4825
  %v4827 = vpop.f32.mrf.mxu0
  %v4828 = vadd.f32 0.0, %v4827
  %4829 = vmatmul.bf16.gmra.mxu0 %v3921
  %v4830 = vpop.f32.mrf.mxu0
  %v4831 = vadd.f32 0.0, %v4830
  %v4832 = vpop.f32.mrf.mxu0
  %v4833 = vadd.f32 0.0, %v4832
  %4834 = vmatmul.bf16.gmra.mxu0 %v3924
  %v4835 = vpop.f32.mrf.mxu0
  %v4836 = vadd.f32 0.0, %v4835
  %v4837 = vpop.f32.mrf.mxu0
  %v4838 = vadd.f32 0.0, %v4837
  %4839 = vmatmul.bf16.gmra.mxu0 %v3927
  %v4840 = vpop.f32.mrf.mxu0
  %v4841 = vadd.f32 0.0, %v4840
  %v4842 = vpop.f32.mrf.mxu0
  %v4843 = vadd.f32 0.0, %v4842
  %4844 = vmatmul.bf16.gmra.mxu0 %v3930
  %v4845 = vpop.f32.mrf.mxu0
  %v4846 = vadd.f32 0.0, %v4845
  %v4847 = vpop.f32.mrf.mxu0
  %v4848 = vadd.f32 0.0, %v4847
  %4849 = vmatmul.bf16.gmra.mxu0 %v3933
  %v4850 = vpop.f32.mrf.mxu0
  %v4851 = vadd.f32 0.0, %v4850
  %v4852 = vpop.f32.mrf.mxu0
  %v4853 = vadd.f32 0.0, %v4852
  %4854 = vmatmul.bf16.gmra.mxu0 %v3936
  %v4855 = vpop.f32.mrf.mxu0
  %v4856 = vadd.f32 0.0, %v4855
  %v4857 = vpop.f32.mrf.mxu0
  %v4858 = vadd.f32 0.0, %v4857
  %4859 = vmatmul.bf16.gmra.mxu0 %v3939
  %v4860 = vpop.f32.mrf.mxu0
  %v4861 = vadd.f32 0.0, %v4860
  %v4862 = vpop.f32.mrf.mxu0
  %v4863 = vadd.f32 0.0, %v4862
  %4864 = vmatmul.bf16.gmra.mxu0 %v3942
  %v4865 = vpop.f32.mrf.mxu0
  %v4866 = vadd.f32 0.0, %v4865
  %v4867 = vpop.f32.mrf.mxu0
  %v4868 = vadd.f32 0.0, %v4867
  %4869 = vmatmul.bf16.gmra.mxu0 %v3945
  %v4870 = vpop.f32.mrf.mxu0
  %v4871 = vadd.f32 0.0, %v4870
  %v4872 = vpop.f32.mrf.mxu0
  %v4873 = vadd.f32 0.0, %v4872
  %4874 = vmatmul.bf16.gmra.mxu0 %v3948
  %v4875 = vpop.f32.mrf.mxu0
  %v4876 = vadd.f32 0.0, %v4875
  %v4877 = vpop.f32.mrf.mxu0
  %v4878 = vadd.f32 0.0, %v4877
  %4879 = vmatmul.bf16.gmra.mxu0 %v3951
  %v4880 = vpop.f32.mrf.mxu0
  %v4881 = vadd.f32 0.0, %v4880
  %v4882 = vpop.f32.mrf.mxu0
  %v4883 = vadd.f32 0.0, %v4882
  %4884 = vmatmul.bf16.gmra.mxu0 %v3954
  %v4885 = vpop.f32.mrf.mxu0
  %v4886 = vadd.f32 0.0, %v4885
  %v4887 = vpop.f32.mrf.mxu0
  %v4888 = vadd.f32 0.0, %v4887
  %4889 = vmatmul.bf16.gmra.mxu0 %v3957
  %v4890 = vpop.f32.mrf.mxu0
  %v4891 = vadd.f32 0.0, %v4890
  %v4892 = vpop.f32.mrf.mxu0
  %v4893 = vadd.f32 0.0, %v4892
  %4894 = vmatmul.bf16.gmra.mxu0 %v3960
  %v4895 = vpop.f32.mrf.mxu0
  %v4896 = vadd.f32 0.0, %v4895
  %v4897 = vpop.f32.mrf.mxu0
  %v4898 = vadd.f32 0.0, %v4897
  %4899 = vmatmul.bf16.gmra.mxu0 %v3963
  %v4900 = vpop.f32.mrf.mxu0
  %v4901 = vadd.f32 0.0, %v4900
  %v4902 = vpop.f32.mrf.mxu0
  %v4903 = vadd.f32 0.0, %v4902
  %4904 = vmatmul.bf16.gmra.mxu0 %v3966
  %v4905 = vpop.f32.mrf.mxu0
  %v4906 = vadd.f32 0.0, %v4905
  %v4907 = vpop.f32.mrf.mxu0
  %v4908 = vadd.f32 0.0, %v4907
  %4909 = vmatmul.bf16.gmra.mxu0 %v3969
  %v4910 = vpop.f32.mrf.mxu0
  %v4911 = vadd.f32 0.0, %v4910
  %v4912 = vpop.f32.mrf.mxu0
  %v4913 = vadd.f32 0.0, %v4912
  %4914 = vmatmul.bf16.gmra.mxu0 %v3972
  %v4915 = vpop.f32.mrf.mxu0
  %v4916 = vadd.f32 0.0, %v4915
  %v4917 = vpop.f32.mrf.mxu0
  %v4918 = vadd.f32 0.0, %v4917
  %4919 = vmatmul.bf16.gmra.mxu0 %v3975
  %v4920 = vpop.f32.mrf.mxu0
  %v4921 = vadd.f32 0.0, %v4920
  %v4922 = vpop.f32.mrf.mxu0
  %v4923 = vadd.f32 0.0, %v4922
  %4924 = vmatmul.bf16.gmra.mxu0 %v3978
  %v4925 = vpop.f32.mrf.mxu0
  %v4926 = vadd.f32 0.0, %v4925
  %v4927 = vpop.f32.mrf.mxu0
  %v4928 = vadd.f32 0.0, %v4927
  %4929 = vmatmul.bf16.gmra.mxu0 %v3981
  %v4930 = vpop.f32.mrf.mxu0
  %v4931 = vadd.f32 0.0, %v4930
  %v4932 = vpop.f32.mrf.mxu0
  %v4933 = vadd.f32 0.0, %v4932
  %4934 = vmatmul.bf16.gmra.mxu0 %v3984
  %v4935 = vpop.f32.mrf.mxu0
  %v4936 = vadd.f32 0.0, %v4935
  %v4937 = vpop.f32.mrf.mxu0
  %v4938 = vadd.f32 0.0, %v4937
  %4939 = vmatmul.bf16.gmra.mxu0 %v3987
  %v4940 = vpop.f32.mrf.mxu0
  %v4941 = vadd.f32 0.0, %v4940
  %v4942 = vpop.f32.mrf.mxu0
  %v4943 = vadd.f32 0.0, %v4942
  %4944 = vmatmul.bf16.gmra.mxu0 %v3990
  %v4945 = vpop.f32.mrf.mxu0
  %v4946 = vadd.f32 0.0, %v4945
  %v4947 = vpop.f32.mrf.mxu0
  %v4948 = vadd.f32 0.0, %v4947
  %4949 = vmatmul.bf16.gmra.mxu0 %v3993
  %v4950 = vpop.f32.mrf.mxu0
  %v4951 = vadd.f32 0.0, %v4950
  %v4952 = vpop.f32.mrf.mxu0
  %v4953 = vadd.f32 0.0, %v4952
  %4954 = vmatmul.bf16.gmra.mxu0 %v3996
  %v4955 = vpop.f32.mrf.mxu0
  %v4956 = vadd.f32 0.0, %v4955
  %v4957 = vpop.f32.mrf.mxu0
  %v4958 = vadd.f32 0.0, %v4957
  %4959 = vmatmul.bf16.gmra.mxu0 %v3999
  %v4960 = vpop.f32.mrf.mxu0
  %v4961 = vadd.f32 0.0, %v4960
  %v4962 = vpop.f32.mrf.mxu0
  %v4963 = vadd.f32 0.0, %v4962
  %4964 = vmatmul.bf16.gmra.mxu0 %v4002
  %v4965 = vpop.f32.mrf.mxu0
  %v4966 = vadd.f32 0.0, %v4965
  %v4967 = vpop.f32.mrf.mxu0
  %v4968 = vadd.f32 0.0, %v4967
  %4969 = vmatmul.bf16.gmra.mxu0 %v4005
  %v4970 = vpop.f32.mrf.mxu0
  %v4971 = vadd.f32 0.0, %v4970
  %v4972 = vpop.f32.mrf.mxu0
  %v4973 = vadd.f32 0.0, %v4972
  %4974 = vmatmul.bf16.gmra.mxu0 %v4008
  %v4975 = vpop.f32.mrf.mxu0
  %v4976 = vadd.f32 0.0, %v4975
  %v4977 = vpop.f32.mrf.mxu0
  %v4978 = vadd.f32 0.0, %v4977
  %4979 = vmatmul.bf16.gmra.mxu0 %v4011
  %v4980 = vpop.f32.mrf.mxu0
  %v4981 = vadd.f32 0.0, %v4980
  %v4982 = vpop.f32.mrf.mxu0
  %v4983 = vadd.f32 0.0, %v4982
  %4984 = vmatmul.bf16.gmra.mxu0 %v4014
  %v4985 = vpop.f32.mrf.mxu0
  %v4986 = vadd.f32 0.0, %v4985
  %v4987 = vpop.f32.mrf.mxu0
  %v4988 = vadd.f32 0.0, %v4987
  %4989 = vmatmul.bf16.gmra.mxu0 %v4017
  %v4990 = vpop.f32.mrf.mxu0
  %v4991 = vadd.f32 0.0, %v4990
  %v4992 = vpop.f32.mrf.mxu0
  %v4993 = vadd.f32 0.0, %v4992
  %4994 = vmatmul.bf16.gmra.mxu0 %v4020
  %v4995 = vpop.f32.mrf.mxu0
  %v4996 = vadd.f32 0.0, %v4995
  %v4997 = vpop.f32.mrf.mxu0
  %v4998 = vadd.f32 0.0, %v4997
  %4999 = vmatmul.bf16.gmra.mxu0 %v4023
  %v5000 = vpop.f32.mrf.mxu0
  %v5001 = vadd.f32 0.0, %v5000
  %v5002 = vpop.f32.mrf.mxu0
  %v5003 = vadd.f32 0.0, %v5002
  %5004 = vmatmul.bf16.gmra.mxu0 %v4026
  %v5005 = vpop.f32.mrf.mxu0
  %v5006 = vadd.f32 0.0, %v5005
  %v5007 = vpop.f32.mrf.mxu0
  %v5008 = vadd.f32 0.0, %v5007
  %5009 = vmatmul.bf16.gmra.mxu0 %v4029
  %v5010 = vpop.f32.mrf.mxu0
  %v5011 = vadd.f32 0.0, %v5010
  %v5012 = vpop.f32.mrf.mxu0
  %v5013 = vadd.f32 0.0, %v5012
  %5014 = vdwg.mxu0
  %v5015 = vadd.f32 %v2080, %v4047
  %v5016 = vadd.f32 %v2569, %v4536
  %v5017 = vadd.f32 %v2082, %v4049
  %v5018 = vadd.f32 %v2571, %v4538
  %v5019 = vadd.f32 %v2085, %v4052
  %v5020 = vadd.f32 %v2574, %v4541
  %v5021 = vadd.f32 %v2087, %v4054
  %v5022 = vadd.f32 %v2576, %v4543
  %v5023 = vadd.f32 %v2090, %v4057
  %v5024 = vadd.f32 %v2579, %v4546
  %v5025 = vadd.f32 %v2092, %v4059
  %v5026 = vadd.f32 %v2581, %v4548
  %v5027 = vadd.f32 %v2095, %v4062
  %v5028 = vadd.f32 %v2584, %v4551
  %v5029 = vadd.f32 %v2097, %v4064
  %v5030 = vadd.f32 %v2586, %v4553
  %v5031 = vadd.f32 %v2100, %v4067
  %v5032 = vadd.f32 %v2589, %v4556
  %v5033 = vadd.f32 %v2102, %v4069
  %v5034 = vadd.f32 %v2591, %v4558
  %v5035 = vadd.f32 %v2105, %v4072
  %v5036 = vadd.f32 %v2594, %v4561
  %v5037 = vadd.f32 %v2107, %v4074
  %v5038 = vadd.f32 %v2596, %v4563
  %v5039 = vadd.f32 %v2110, %v4077
  %v5040 = vadd.f32 %v2599, %v4566
  %v5041 = vadd.f32 %v2112, %v4079
  %v5042 = vadd.f32 %v2601, %v4568
  %v5043 = vadd.f32 %v2115, %v4082
  %v5044 = vadd.f32 %v2604, %v4571
  %v5045 = vadd.f32 %v2117, %v4084
  %v5046 = vadd.f32 %v2606, %v4573
  %v5047 = vadd.f32 %v2120, %v4087
  %v5048 = vadd.f32 %v2609, %v4576
  %v5049 = vadd.f32 %v2122, %v4089
  %v5050 = vadd.f32 %v2611, %v4578
  %v5051 = vadd.f32 %v2125, %v4092
  %v5052 = vadd.f32 %v2614, %v4581
  %v5053 = vadd.f32 %v2127, %v4094
  %v5054 = vadd.f32 %v2616, %v4583
  %v5055 = vadd.f32 %v2130, %v4097
  %v5056 = vadd.f32 %v2619, %v4586
  %v5057 = vadd.f32 %v2132, %v4099
  %v5058 = vadd.f32 %v2621, %v4588
  %v5059 = vadd.f32 %v2135, %v4102
  %v5060 = vadd.f32 %v2624, %v4591
  %v5061 = vadd.f32 %v2137, %v4104
  %v5062 = vadd.f32 %v2626, %v4593
  %v5063 = vadd.f32 %v2140, %v4107
  %v5064 = vadd.f32 %v2629, %v4596
  %v5065 = vadd.f32 %v2142, %v4109
  %v5066 = vadd.f32 %v2631, %v4598
  %v5067 = vadd.f32 %v2145, %v4112
  %v5068 = vadd.f32 %v2634, %v4601
  %v5069 = vadd.f32 %v2147, %v4114
  %v5070 = vadd.f32 %v2636, %v4603
  %v5071 = vadd.f32 %v2150, %v4117
  %v5072 = vadd.f32 %v2639, %v4606
  %v5073 = vadd.f32 %v2152, %v4119
  %v5074 = vadd.f32 %v2641, %v4608
  %v5075 = vadd.f32 %v2155, %v4122
  %v5076 = vadd.f32 %v2644, %v4611
  %v5077 = vadd.f32 %v2157, %v4124
  %v5078 = vadd.f32 %v2646, %v4613
  %v5079 = vadd.f32 %v2160, %v4127
  %v5080 = vadd.f32 %v2649, %v4616
  %v5081 = vadd.f32 %v2162, %v4129
  %v5082 = vadd.f32 %v2651, %v4618
  %v5083 = vadd.f32 %v2165, %v4132
  %v5084 = vadd.f32 %v2654, %v4621
  %v5085 = vadd.f32 %v2167, %v4134
  %v5086 = vadd.f32 %v2656, %v4623
  %v5087 = vadd.f32 %v2170, %v4137
  %v5088 = vadd.f32 %v2659, %v4626
  %v5089 = vadd.f32 %v2172, %v4139
  %v5090 = vadd.f32 %v2661, %v4628
  %v5091 = vadd.f32 %v2175, %v4142
  %v5092 = vadd.f32 %v2664, %v4631
  %v5093 = vadd.f32 %v2177, %v4144
  %v5094 = vadd.f32 %v2666, %v4633
  %v5095 = vadd.f32 %v2180, %v4147
  %v5096 = vadd.f32 %v2669, %v4636
  %v5097 = vadd.f32 %v2182, %v4149
  %v5098 = vadd.f32 %v2671, %v4638
  %v5099 = vadd.f32 %v2185, %v4152
  %v5100 = vadd.f32 %v2674, %v4641
  %v5101 = vadd.f32 %v2187, %v4154
  %v5102 = vadd.f32 %v2676, %v4643
  %v5103 = vadd.f32 %v2190, %v4157
  %v5104 = vadd.f32 %v2679, %v4646
  %v5105 = vadd.f32 %v2192, %v4159
  %v5106 = vadd.f32 %v2681, %v4648
  %v5107 = vadd.f32 %v2195, %v4162
  %v5108 = vadd.f32 %v2684, %v4651
  %v5109 = vadd.f32 %v2197, %v4164
  %v5110 = vadd.f32 %v2686, %v4653
  %v5111 = vadd.f32 %v2200, %v4167
  %v5112 = vadd.f32 %v2689, %v4656
  %v5113 = vadd.f32 %v2202, %v4169
  %v5114 = vadd.f32 %v2691, %v4658
  %v5115 = vadd.f32 %v2205, %v4172
  %v5116 = vadd.f32 %v2694, %v4661
  %v5117 = vadd.f32 %v2207, %v4174
  %v5118 = vadd.f32 %v2696, %v4663
  %v5119 = vadd.f32 %v2210, %v4177
  %v5120 = vadd.f32 %v2699, %v4666
  %v5121 = vadd.f32 %v2212, %v4179
  %v5122 = vadd.f32 %v2701, %v4668
  %v5123 = vadd.f32 %v2215, %v4182
  %v5124 = vadd.f32 %v2704, %v4671
  %v5125 = vadd.f32 %v2217, %v4184
  %v5126 = vadd.f32 %v2706, %v4673
  %v5127 = vadd.f32 %v2220, %v4187
  %v5128 = vadd.f32 %v2709, %v4676
  %v5129 = vadd.f32 %v2222, %v4189
  %v5130 = vadd.f32 %v2711, %v4678
  %v5131 = vadd.f32 %v2225, %v4192
  %v5132 = vadd.f32 %v2714, %v4681
  %v5133 = vadd.f32 %v2227, %v4194
  %v5134 = vadd.f32 %v2716, %v4683
  %v5135 = vadd.f32 %v2230, %v4197
  %v5136 = vadd.f32 %v2719, %v4686
  %v5137 = vadd.f32 %v2232, %v4199
  %v5138 = vadd.f32 %v2721, %v4688
  %v5139 = vadd.f32 %v2235, %v4202
  %v5140 = vadd.f32 %v2724, %v4691
  %v5141 = vadd.f32 %v2237, %v4204
  %v5142 = vadd.f32 %v2726, %v4693
  %v5143 = vadd.f32 %v2240, %v4207
  %v5144 = vadd.f32 %v2729, %v4696
  %v5145 = vadd.f32 %v2242, %v4209
  %v5146 = vadd.f32 %v2731, %v4698
  %v5147 = vadd.f32 %v2245, %v4212
  %v5148 = vadd.f32 %v2734, %v4701
  %v5149 = vadd.f32 %v2247, %v4214
  %v5150 = vadd.f32 %v2736, %v4703
  %v5151 = vadd.f32 %v2250, %v4217
  %v5152 = vadd.f32 %v2739, %v4706
  %v5153 = vadd.f32 %v2252, %v4219
  %v5154 = vadd.f32 %v2741, %v4708
  %v5155 = vadd.f32 %v2255, %v4222
  %v5156 = vadd.f32 %v2744, %v4711
  %v5157 = vadd.f32 %v2257, %v4224
  %v5158 = vadd.f32 %v2746, %v4713
  %v5159 = vadd.f32 %v2260, %v4227
  %v5160 = vadd.f32 %v2749, %v4716
  %v5161 = vadd.f32 %v2262, %v4229
  %v5162 = vadd.f32 %v2751, %v4718
  %v5163 = vadd.f32 %v2265, %v4232
  %v5164 = vadd.f32 %v2754, %v4721
  %v5165 = vadd.f32 %v2267, %v4234
  %v5166 = vadd.f32 %v2756, %v4723
  %v5167 = vadd.f32 %v2270, %v4237
  %v5168 = vadd.f32 %v2759, %v4726
  %v5169 = vadd.f32 %v2272, %v4239
  %v5170 = vadd.f32 %v2761, %v4728
  %v5171 = vadd.f32 %v2275, %v4242
  %v5172 = vadd.f32 %v2764, %v4731
  %v5173 = vadd.f32 %v2277, %v4244
  %v5174 = vadd.f32 %v2766, %v4733
  %v5175 = vadd.f32 %v2280, %v4247
  %v5176 = vadd.f32 %v2769, %v4736
  %v5177 = vadd.f32 %v2282, %v4249
  %v5178 = vadd.f32 %v2771, %v4738
  %v5179 = vadd.f32 %v2285, %v4252
  %v5180 = vadd.f32 %v2774, %v4741
  %v5181 = vadd.f32 %v2287, %v4254
  %v5182 = vadd.f32 %v2776, %v4743
  %v5183 = vadd.f32 %v2290, %v4257
  %v5184 = vadd.f32 %v2779, %v4746
  %v5185 = vadd.f32 %v2292, %v4259
  %v5186 = vadd.f32 %v2781, %v4748
  %v5187 = vadd.f32 %v2295, %v4262
  %v5188 = vadd.f32 %v2784, %v4751
  %v5189 = vadd.f32 %v2297, %v4264
  %v5190 = vadd.f32 %v2786, %v4753
  %v5191 = vadd.f32 %v2300, %v4267
  %v5192 = vadd.f32 %v2789, %v4756
  %v5193 = vadd.f32 %v2302, %v4269
  %v5194 = vadd.f32 %v2791, %v4758
  %v5195 = vadd.f32 %v2305, %v4272
  %v5196 = vadd.f32 %v2794, %v4761
  %v5197 = vadd.f32 %v2307, %v4274
  %v5198 = vadd.f32 %v2796, %v4763
  %v5199 = vadd.f32 %v2310, %v4277
  %v5200 = vadd.f32 %v2799, %v4766
  %v5201 = vadd.f32 %v2312, %v4279
  %v5202 = vadd.f32 %v2801, %v4768
  %v5203 = vadd.f32 %v2315, %v4282
  %v5204 = vadd.f32 %v2804, %v4771
  %v5205 = vadd.f32 %v2317, %v4284
  %v5206 = vadd.f32 %v2806, %v4773
  %v5207 = vadd.f32 %v2320, %v4287
  %v5208 = vadd.f32 %v2809, %v4776
  %v5209 = vadd.f32 %v2322, %v4289
  %v5210 = vadd.f32 %v2811, %v4778
  %v5211 = vadd.f32 %v2325, %v4292
  %v5212 = vadd.f32 %v2814, %v4781
  %v5213 = vadd.f32 %v2327, %v4294
  %v5214 = vadd.f32 %v2816, %v4783
  %v5215 = vadd.f32 %v2330, %v4297
  %v5216 = vadd.f32 %v2819, %v4786
  %v5217 = vadd.f32 %v2332, %v4299
  %v5218 = vadd.f32 %v2821, %v4788
  %v5219 = vadd.f32 %v2335, %v4302
  %v5220 = vadd.f32 %v2824, %v4791
  %v5221 = vadd.f32 %v2337, %v4304
  %v5222 = vadd.f32 %v2826, %v4793
  %v5223 = vadd.f32 %v2340, %v4307
  %v5224 = vadd.f32 %v2829, %v4796
  %v5225 = vadd.f32 %v2342, %v4309
  %v5226 = vadd.f32 %v2831, %v4798
  %v5227 = vadd.f32 %v2345, %v4312
  %v5228 = vadd.f32 %v2834, %v4801
  %v5229 = vadd.f32 %v2347, %v4314
  %v5230 = vadd.f32 %v2836, %v4803
  %v5231 = vadd.f32 %v2350, %v4317
  %v5232 = vadd.f32 %v2839, %v4806
  %v5233 = vadd.f32 %v2352, %v4319
  %v5234 = vadd.f32 %v2841, %v4808
  %v5235 = vadd.f32 %v2355, %v4322
  %v5236 = vadd.f32 %v2844, %v4811
  %v5237 = vadd.f32 %v2357, %v4324
  %v5238 = vadd.f32 %v2846, %v4813
  %v5239 = vadd.f32 %v2360, %v4327
  %v5240 = vadd.f32 %v2849, %v4816
  %v5241 = vadd.f32 %v2362, %v4329
  %v5242 = vadd.f32 %v2851, %v4818
  %v5243 = vadd.f32 %v2365, %v4332
  %v5244 = vadd.f32 %v2854, %v4821
  %v5245 = vadd.f32 %v2367, %v4334
  %v5246 = vadd.f32 %v2856, %v4823
  %v5247 = vadd.f32 %v2370, %v4337
  %v5248 = vadd.f32 %v2859, %v4826
  %v5249 = vadd.f32 %v2372, %v4339
  %v5250 = vadd.f32 %v2861, %v4828
  %v5251 = vadd.f32 %v2375, %v4342
  %v5252 = vadd.f32 %v2864, %v4831
  %v5253 = vadd.f32 %v2377, %v4344
  %v5254 = vadd.f32 %v2866, %v4833
  %v5255 = vadd.f32 %v2380, %v4347
  %v5256 = vadd.f32 %v2869, %v4836
  %v5257 = vadd.f32 %v2382, %v4349
  %v5258 = vadd.f32 %v2871, %v4838
  %v5259 = vadd.f32 %v2385, %v4352
  %v5260 = vadd.f32 %v2874, %v4841
  %v5261 = vadd.f32 %v2387, %v4354
  %v5262 = vadd.f32 %v2876, %v4843
  %v5263 = vadd.f32 %v2390, %v4357
  %v5264 = vadd.f32 %v2879, %v4846
  %v5265 = vadd.f32 %v2392, %v4359
  %v5266 = vadd.f32 %v2881, %v4848
  %v5267 = vadd.f32 %v2395, %v4362
  %v5268 = vadd.f32 %v2884, %v4851
  %v5269 = vadd.f32 %v2397, %v4364
  %v5270 = vadd.f32 %v2886, %v4853
  %v5271 = vadd.f32 %v2400, %v4367
  %v5272 = vadd.f32 %v2889, %v4856
  %v5273 = vadd.f32 %v2402, %v4369
  %v5274 = vadd.f32 %v2891, %v4858
  %v5275 = vadd.f32 %v2405, %v4372
  %v5276 = vadd.f32 %v2894, %v4861
  %v5277 = vadd.f32 %v2407, %v4374
  %v5278 = vadd.f32 %v2896, %v4863
  %v5279 = vadd.f32 %v2410, %v4377
  %v5280 = vadd.f32 %v2899, %v4866
  %v5281 = vadd.f32 %v2412, %v4379
  %v5282 = vadd.f32 %v2901, %v4868
  %v5283 = vadd.f32 %v2415, %v4382
  %v5284 = vadd.f32 %v2904, %v4871
  %v5285 = vadd.f32 %v2417, %v4384
  %v5286 = vadd.f32 %v2906, %v4873
  %v5287 = vadd.f32 %v2420, %v4387
  %v5288 = vadd.f32 %v2909, %v4876
  %v5289 = vadd.f32 %v2422, %v4389
  %v5290 = vadd.f32 %v2911, %v4878
  %v5291 = vadd.f32 %v2425, %v4392
  %v5292 = vadd.f32 %v2914, %v4881
  %v5293 = vadd.f32 %v2427, %v4394
  %v5294 = vadd.f32 %v2916, %v4883
  %v5295 = vadd.f32 %v2430, %v4397
  %v5296 = vadd.f32 %v2919, %v4886
  %v5297 = vadd.f32 %v2432, %v4399
  %v5298 = vadd.f32 %v2921, %v4888
  %v5299 = vadd.f32 %v2435, %v4402
  %v5300 = vadd.f32 %v2924, %v4891
  %v5301 = vadd.f32 %v2437, %v4404
  %v5302 = vadd.f32 %v2926, %v4893
  %v5303 = vadd.f32 %v2440, %v4407
  %v5304 = vadd.f32 %v2929, %v4896
  %v5305 = vadd.f32 %v2442, %v4409
  %v5306 = vadd.f32 %v2931, %v4898
  %v5307 = vadd.f32 %v2445, %v4412
  %v5308 = vadd.f32 %v2934, %v4901
  %v5309 = vadd.f32 %v2447, %v4414
  %v5310 = vadd.f32 %v2936, %v4903
  %v5311 = vadd.f32 %v2450, %v4417
  %v5312 = vadd.f32 %v2939, %v4906
  %v5313 = vadd.f32 %v2452, %v4419
  %v5314 = vadd.f32 %v2941, %v4908
  %v5315 = vadd.f32 %v2455, %v4422
  %v5316 = vadd.f32 %v2944, %v4911
  %v5317 = vadd.f32 %v2457, %v4424
  %v5318 = vadd.f32 %v2946, %v4913
  %v5319 = vadd.f32 %v2460, %v4427
  %v5320 = vadd.f32 %v2949, %v4916
  %v5321 = vadd.f32 %v2462, %v4429
  %v5322 = vadd.f32 %v2951, %v4918
  %v5323 = vadd.f32 %v2465, %v4432
  %v5324 = vadd.f32 %v2954, %v4921
  %v5325 = vadd.f32 %v2467, %v4434
  %v5326 = vadd.f32 %v2956, %v4923
  %v5327 = vadd.f32 %v2470, %v4437
  %v5328 = vadd.f32 %v2959, %v4926
  %v5329 = vadd.f32 %v2472, %v4439
  %v5330 = vadd.f32 %v2961, %v4928
  %v5331 = vadd.f32 %v2475, %v4442
  %v5332 = vadd.f32 %v2964, %v4931
  %v5333 = vadd.f32 %v2477, %v4444
  %v5334 = vadd.f32 %v2966, %v4933
  %v5335 = vadd.f32 %v2480, %v4447
  %v5336 = vadd.f32 %v2969, %v4936
  %v5337 = vadd.f32 %v2482, %v4449
  %v5338 = vadd.f32 %v2971, %v4938
  %v5339 = vadd.f32 %v2485, %v4452
  %v5340 = vadd.f32 %v2974, %v4941
  %v5341 = vadd.f32 %v2487, %v4454
  %v5342 = vadd.f32 %v2976, %v4943
  %v5343 = vadd.f32 %v2490, %v4457
  %v5344 = vadd.f32 %v2979, %v4946
  %v5345 = vadd.f32 %v2492, %v4459
  %v5346 = vadd.f32 %v2981, %v4948
  %v5347 = vadd.f32 %v2495, %v4462
  %v5348 = vadd.f32 %v2984, %v4951
  %v5349 = vadd.f32 %v2497, %v4464
  %v5350 = vadd.f32 %v2986, %v4953
  %v5351 = vadd.f32 %v2500, %v4467
  %v5352 = vadd.f32 %v2989, %v4956
  %v5353 = vadd.f32 %v2502, %v4469
  %v5354 = vadd.f32 %v2991, %v4958
  %v5355 = vadd.f32 %v2505, %v4472
  %v5356 = vadd.f32 %v2994, %v4961
  %v5357 = vadd.f32 %v2507, %v4474
  %v5358 = vadd.f32 %v2996, %v4963
  %v5359 = vadd.f32 %v2510, %v4477
  %v5360 = vadd.f32 %v2999, %v4966
  %v5361 = vadd.f32 %v2512, %v4479
  %v5362 = vadd.f32 %v3001, %v4968
  %v5363 = vadd.f32 %v2515, %v4482
  %v5364 = vadd.f32 %v3004, %v4971
  %v5365 = vadd.f32 %v2517, %v4484
  %v5366 = vadd.f32 %v3006, %v4973
  %v5367 = vadd.f32 %v2520, %v4487
  %v5368 = vadd.f32 %v3009, %v4976
  %v5369 = vadd.f32 %v2522, %v4489
  %v5370 = vadd.f32 %v3011, %v4978
  %v5371 = vadd.f32 %v2525, %v4492
  %v5372 = vadd.f32 %v3014, %v4981
  %v5373 = vadd.f32 %v2527, %v4494
  %v5374 = vadd.f32 %v3016, %v4983
  %v5375 = vadd.f32 %v2530, %v4497
  %v5376 = vadd.f32 %v3019, %v4986
  %v5377 = vadd.f32 %v2532, %v4499
  %v5378 = vadd.f32 %v3021, %v4988
  %v5379 = vadd.f32 %v2535, %v4502
  %v5380 = vadd.f32 %v3024, %v4991
  %v5381 = vadd.f32 %v2537, %v4504
  %v5382 = vadd.f32 %v3026, %v4993
  %v5383 = vadd.f32 %v2540, %v4507
  %v5384 = vadd.f32 %v3029, %v4996
  %v5385 = vadd.f32 %v2542, %v4509
  %v5386 = vadd.f32 %v3031, %v4998
  %v5387 = vadd.f32 %v2545, %v4512
  %v5388 = vadd.f32 %v3034, %v5001
  %v5389 = vadd.f32 %v2547, %v4514
  %v5390 = vadd.f32 %v3036, %v5003
  %v5391 = vadd.f32 %v2550, %v4517
  %v5392 = vadd.f32 %v3039, %v5006
  %v5393 = vadd.f32 %v2552, %v4519
  %v5394 = vadd.f32 %v3041, %v5008
  %v5395 = vadd.f32 %v2555, %v4522
  %v5396 = vadd.f32 %v3044, %v5011
  %v5397 = vadd.f32 %v2557, %v4524
  %v5398 = vadd.f32 %v3046, %v5013
  %v5399 = vld [vmem:[%s0 + $0x60] sm:$0xf]
  %v5400 = vld [vmem:[%s0 + $0x64] sm:$0xf]
  %v5401 = vld [vmem:[%s0 + $0x68] sm:$0xf]
  %v5402 = vld [vmem:[%s0 + $0x6c] sm:$0xf]
  %v5403 = vld [vmem:[%s0 + $0x70] sm:$0xf]
  %v5404 = vld [vmem:[%s0 + $0x74] sm:$0xf]
  %v5405 = vld [vmem:[%s0 + $0x78] sm:$0xf]
  %v5406 = vld [vmem:[%s0 + $0x7c] sm:$0xf]
  %v5407 = vld [vmem:[%s0 + $0x80] sm:$0xf]
  %v5408 = vld [vmem:[%s0 + $0x84] sm:$0xf]
  %v5409 = vld [vmem:[%s0 + $0x88] sm:$0xf]
  %v5410 = vld [vmem:[%s0 + $0x8c] sm:$0xf]
  %v5411 = vld [vmem:[%s0 + $0x90] sm:$0xf]
  %v5412 = vld [vmem:[%s0 + $0x94] sm:$0xf]
  %v5413 = vld [vmem:[%s0 + $0x98] sm:$0xf]
  %v5414 = vld [vmem:[%s0 + $0x9c] sm:$0xf]
  %v5415 = vld [vmem:[%s0 + $0xa0] sm:$0xf]
  %v5416 = vld [vmem:[%s0 + $0xa4] sm:$0xf]
  %v5417 = vld [vmem:[%s0 + $0xa8] sm:$0xf]
  %v5418 = vld [vmem:[%s0 + $0xac] sm:$0xf]
  %v5419 = vld [vmem:[%s0 + $0xb0] sm:$0xf]
  %v5420 = vld [vmem:[%s0 + $0xb4] sm:$0xf]
  %v5421 = vld [vmem:[%s0 + $0xb8] sm:$0xf]
  %v5422 = vld [vmem:[%s0 + $0xbc] sm:$0xf]
  %v5423 = vld [vmem:[%s0 + $0xc0] sm:$0xf]
  %v5424 = vld [vmem:[%s0 + $0xc4] sm:$0xf]
  %v5425 = vld [vmem:[%s0 + $0xc8] sm:$0xf]
  %v5426 = vld [vmem:[%s0 + $0xcc] sm:$0xf]
  %v5427 = vld [vmem:[%s0 + $0xd0] sm:$0xf]
  %v5428 = vld [vmem:[%s0 + $0xd4] sm:$0xf]
  %v5429 = vld [vmem:[%s0 + $0xd8] sm:$0xf]
  %v5430 = vld [vmem:[%s0 + $0xdc] sm:$0xf]
  %v5431 = vld [vmem:[%s0 + $0xe0] sm:$0xf]
  %v5432 = vld [vmem:[%s0 + $0xe4] sm:$0xf]
  %v5433 = vld [vmem:[%s0 + $0xe8] sm:$0xf]
  %v5434 = vld [vmem:[%s0 + $0xec] sm:$0xf]
  %v5435 = vld [vmem:[%s0 + $0xf0] sm:$0xf]
  %v5436 = vld [vmem:[%s0 + $0xf4] sm:$0xf]
  %v5437 = vld [vmem:[%s0 + $0xf8] sm:$0xf]
  %v5438 = vld [vmem:[%s0 + $0xfc] sm:$0xf]
  %v5439 = vld [vmem:[%s0 + $0x100] sm:$0xf]
  %v5440 = vld [vmem:[%s0 + $0x104] sm:$0xf]
  %v5441 = vld [vmem:[%s0 + $0x108] sm:$0xf]
  %v5442 = vld [vmem:[%s0 + $0x10c] sm:$0xf]
  %v5443 = vld [vmem:[%s0 + $0x110] sm:$0xf]
  %v5444 = vld [vmem:[%s0 + $0x114] sm:$0xf]
  %v5445 = vld [vmem:[%s0 + $0x118] sm:$0xf]
  %v5446 = vld [vmem:[%s0 + $0x11c] sm:$0xf]
  %v5447 = vld [vmem:[%s0 + $0x120] sm:$0xf]
  %v5448 = vld [vmem:[%s0 + $0x124] sm:$0xf]
  %v5449 = vld [vmem:[%s0 + $0x128] sm:$0xf]
  %v5450 = vld [vmem:[%s0 + $0x12c] sm:$0xf]
  %v5451 = vld [vmem:[%s0 + $0x130] sm:$0xf]
  %v5452 = vld [vmem:[%s0 + $0x134] sm:$0xf]
  %v5453 = vld [vmem:[%s0 + $0x138] sm:$0xf]
  %v5454 = vld [vmem:[%s0 + $0x13c] sm:$0xf]
  %v5455 = vld [vmem:[%s0 + $0x140] sm:$0xf]
  %v5456 = vld [vmem:[%s0 + $0x144] sm:$0xf]
  %v5457 = vld [vmem:[%s0 + $0x148] sm:$0xf]
  %v5458 = vld [vmem:[%s0 + $0x14c] sm:$0xf]
  %v5459 = vld [vmem:[%s0 + $0x150] sm:$0xf]
  %v5460 = vld [vmem:[%s0 + $0x154] sm:$0xf]
  %v5461 = vld [vmem:[%s0 + $0x158] sm:$0xf]
  %v5462 = vld [vmem:[%s0 + $0x15c] sm:$0xf]
  %v5463 = vld [vmem:[%s0 + $0x160] sm:$0xf]
  %v5464 = vld [vmem:[%s0 + $0x164] sm:$0xf]
  %v5465 = vld [vmem:[%s0 + $0x168] sm:$0xf]
  %v5466 = vld [vmem:[%s0 + $0x16c] sm:$0xf]
  %v5467 = vld [vmem:[%s0 + $0x170] sm:$0xf]
  %v5468 = vld [vmem:[%s0 + $0x174] sm:$0xf]
  %v5469 = vld [vmem:[%s0 + $0x178] sm:$0xf]
  %v5470 = vld [vmem:[%s0 + $0x17c] sm:$0xf]
  %v5471 = vld [vmem:[%s0 + $0x180] sm:$0xf]
  %v5472 = vld [vmem:[%s0 + $0x184] sm:$0xf]
  %v5473 = vld [vmem:[%s0 + $0x188] sm:$0xf]
  %v5474 = vld [vmem:[%s0 + $0x18c] sm:$0xf]
  %v5475 = vld [vmem:[%s0 + $0x190] sm:$0xf]
  %v5476 = vld [vmem:[%s0 + $0x194] sm:$0xf]
  %v5477 = vld [vmem:[%s0 + $0x198] sm:$0xf]
  %v5478 = vld [vmem:[%s0 + $0x19c] sm:$0xf]
  %v5479 = vld [vmem:[%s0 + $0x1a0] sm:$0xf]
  %v5480 = vld [vmem:[%s0 + $0x1a4] sm:$0xf]
  %v5481 = vld [vmem:[%s0 + $0x1a8] sm:$0xf]
  %v5482 = vld [vmem:[%s0 + $0x1ac] sm:$0xf]
  %v5483 = vld [vmem:[%s0 + $0x1b0] sm:$0xf]
  %v5484 = vld [vmem:[%s0 + $0x1b4] sm:$0xf]
  %v5485 = vld [vmem:[%s0 + $0x1b8] sm:$0xf]
  %v5486 = vld [vmem:[%s0 + $0x1bc] sm:$0xf]
  %v5487 = vld [vmem:[%s0 + $0x1c0] sm:$0xf]
  %v5488 = vld [vmem:[%s0 + $0x1c4] sm:$0xf]
  %v5489 = vld [vmem:[%s0 + $0x1c8] sm:$0xf]
  %v5490 = vld [vmem:[%s0 + $0x1cc] sm:$0xf]
  %v5491 = vld [vmem:[%s0 + $0x1d0] sm:$0xf]
  %v5492 = vld [vmem:[%s0 + $0x1d4] sm:$0xf]
  %v5493 = vld [vmem:[%s0 + $0x1d8] sm:$0xf]
  %v5494 = vld [vmem:[%s0 + $0x1dc] sm:$0xf]
  %v5495 = vld [vmem:[%s0 + $0x1e0] sm:$0xf]
  %v5496 = vld [vmem:[%s0 + $0x1e4] sm:$0xf]
  %v5497 = vld [vmem:[%s0 + $0x1e8] sm:$0xf]
  %v5498 = vld [vmem:[%s0 + $0x1ec] sm:$0xf]
  %v5499 = vld [vmem:[%s0 + $0x1f0] sm:$0xf]
  %v5500 = vld [vmem:[%s0 + $0x1f4] sm:$0xf]
  %v5501 = vld [vmem:[%s0 + $0x1f8] sm:$0xf]
  %v5502 = vld [vmem:[%s0 + $0x1fc] sm:$0xf]
  %v5503 = vld [vmem:[%s0 + $0x200] sm:$0xf]
  %v5504 = vld [vmem:[%s0 + $0x204] sm:$0xf]
  %v5505 = vld [vmem:[%s0 + $0x208] sm:$0xf]
  %v5506 = vld [vmem:[%s0 + $0x20c] sm:$0xf]
  %v5507 = vld [vmem:[%s0 + $0x210] sm:$0xf]
  %v5508 = vld [vmem:[%s0 + $0x214] sm:$0xf]
  %v5509 = vld [vmem:[%s0 + $0x218] sm:$0xf]
  %v5510 = vld [vmem:[%s0 + $0x21c] sm:$0xf]
  %v5511 = vld [vmem:[%s0 + $0x220] sm:$0xf]
  %v5512 = vld [vmem:[%s0 + $0x224] sm:$0xf]
  %v5513 = vld [vmem:[%s0 + $0x228] sm:$0xf]
  %v5514 = vld [vmem:[%s0 + $0x22c] sm:$0xf]
  %v5515 = vld [vmem:[%s0 + $0x230] sm:$0xf]
  %v5516 = vld [vmem:[%s0 + $0x234] sm:$0xf]
  %v5517 = vld [vmem:[%s0 + $0x238] sm:$0xf]
  %v5518 = vld [vmem:[%s0 + $0x23c] sm:$0xf]
  %v5519 = vld [vmem:[%s0 + $0x240] sm:$0xf]
  %v5520 = vld [vmem:[%s0 + $0x244] sm:$0xf]
  %v5521 = vld [vmem:[%s0 + $0x248] sm:$0xf]
  %v5522 = vld [vmem:[%s0 + $0x24c] sm:$0xf]
  %v5523 = vld [vmem:[%s0 + $0x250] sm:$0xf]
  %v5524 = vld [vmem:[%s0 + $0x254] sm:$0xf]
  %v5525 = vld [vmem:[%s0 + $0x258] sm:$0xf]
  %v5526 = vld [vmem:[%s0 + $0x25c] sm:$0xf]
  %v5527 = vld [vmem:[%s0 + $0x260] sm:$0xf]
  %v5528 = vld [vmem:[%s0 + $0x264] sm:$0xf]
  %v5529 = vld [vmem:[%s0 + $0x268] sm:$0xf]
  %v5530 = vld [vmem:[%s0 + $0x26c] sm:$0xf]
  %v5531 = vld [vmem:[%s0 + $0x270] sm:$0xf]
  %v5532 = vld [vmem:[%s0 + $0x274] sm:$0xf]
  %v5533 = vld [vmem:[%s0 + $0x278] sm:$0xf]
  %v5534 = vld [vmem:[%s0 + $0x27c] sm:$0xf]
  %v5535 = vld [vmem:[%s0 + $0x280] sm:$0xf]
  %v5536 = vld [vmem:[%s0 + $0x284] sm:$0xf]
  %v5537 = vld [vmem:[%s0 + $0x288] sm:$0xf]
  %v5538 = vld [vmem:[%s0 + $0x28c] sm:$0xf]
  %v5539 = vld [vmem:[%s0 + $0x290] sm:$0xf]
  %v5540 = vld [vmem:[%s0 + $0x294] sm:$0xf]
  %v5541 = vld [vmem:[%s0 + $0x298] sm:$0xf]
  %v5542 = vld [vmem:[%s0 + $0x29c] sm:$0xf]
  %v5543 = vld [vmem:[%s0 + $0x2a0] sm:$0xf]
  %v5544 = vld [vmem:[%s0 + $0x2a4] sm:$0xf]
  %v5545 = vld [vmem:[%s0 + $0x2a8] sm:$0xf]
  %v5546 = vld [vmem:[%s0 + $0x2ac] sm:$0xf]
  %v5547 = vld [vmem:[%s0 + $0x2b0] sm:$0xf]
  %v5548 = vld [vmem:[%s0 + $0x2b4] sm:$0xf]
  %v5549 = vld [vmem:[%s0 + $0x2b8] sm:$0xf]
  %v5550 = vld [vmem:[%s0 + $0x2bc] sm:$0xf]
  %v5551 = vld [vmem:[%s0 + $0x2c0] sm:$0xf]
  %v5552 = vld [vmem:[%s0 + $0x2c4] sm:$0xf]
  %v5553 = vld [vmem:[%s0 + $0x2c8] sm:$0xf]
  %v5554 = vld [vmem:[%s0 + $0x2cc] sm:$0xf]
  %v5555 = vld [vmem:[%s0 + $0x2d0] sm:$0xf]
  %v5556 = vld [vmem:[%s0 + $0x2d4] sm:$0xf]
  %v5557 = vld [vmem:[%s0 + $0x2d8] sm:$0xf]
  %v5558 = vld [vmem:[%s0 + $0x2dc] sm:$0xf]
  %v5559 = vld [vmem:[%s0 + $0x2e0] sm:$0xf]
  %v5560 = vld [vmem:[%s0 + $0x2e4] sm:$0xf]
  %v5561 = vld [vmem:[%s0 + $0x2e8] sm:$0xf]
  %v5562 = vld [vmem:[%s0 + $0x2ec] sm:$0xf]
  %v5563 = vld [vmem:[%s0 + $0x2f0] sm:$0xf]
  %v5564 = vld [vmem:[%s0 + $0x2f4] sm:$0xf]
  %v5565 = vld [vmem:[%s0 + $0x2f8] sm:$0xf]
  %v5566 = vld [vmem:[%s0 + $0x2fc] sm:$0xf]
  %v5567 = vld [vmem:[%s0 + $0x300] sm:$0xf]
  %v5568 = vld [vmem:[%s0 + $0x304] sm:$0xf]
  %v5569 = vld [vmem:[%s0 + $0x308] sm:$0xf]
  %v5570 = vld [vmem:[%s0 + $0x30c] sm:$0xf]
  %v5571 = vld [vmem:[%s0 + $0x310] sm:$0xf]
  %v5572 = vld [vmem:[%s0 + $0x314] sm:$0xf]
  %v5573 = vld [vmem:[%s0 + $0x318] sm:$0xf]
  %v5574 = vld [vmem:[%s0 + $0x31c] sm:$0xf]
  %v5575 = vld [vmem:[%s0 + $0x320] sm:$0xf]
  %v5576 = vld [vmem:[%s0 + $0x324] sm:$0xf]
  %v5577 = vld [vmem:[%s0 + $0x328] sm:$0xf]
  %v5578 = vld [vmem:[%s0 + $0x32c] sm:$0xf]
  %v5579 = vld [vmem:[%s0 + $0x330] sm:$0xf]
  %v5580 = vld [vmem:[%s0 + $0x334] sm:$0xf]
  %v5581 = vld [vmem:[%s0 + $0x338] sm:$0xf]
  %v5582 = vld [vmem:[%s0 + $0x33c] sm:$0xf]
  %v5583 = vld [vmem:[%s0 + $0x340] sm:$0xf]
  %v5584 = vld [vmem:[%s0 + $0x344] sm:$0xf]
  %v5585 = vld [vmem:[%s0 + $0x348] sm:$0xf]
  %v5586 = vld [vmem:[%s0 + $0x34c] sm:$0xf]
  %v5587 = vld [vmem:[%s0 + $0x350] sm:$0xf]
  %v5588 = vld [vmem:[%s0 + $0x354] sm:$0xf]
  %v5589 = vld [vmem:[%s0 + $0x358] sm:$0xf]
  %v5590 = vld [vmem:[%s0 + $0x35c] sm:$0xf]
  %s5591 = scalar_lea.vmem %s1, 96
  %v5592 = vld [vmem:[%s5591] sm:$0xff]
  %v5593 = vld [vmem:[%s5591 + $0x8] sm:$0xff]
  %v5594 = vld [vmem:[%s5591 + $0x10] sm:$0xff]
  %v5595 = vld [vmem:[%s5591 + $0x18] sm:$0x33]
  %v5788 = vunpack.c.l.b16 %v5399
  %v5789 = vunpack.c.l.b16 %v5400
  %v5790 = vunpack.c.l.b16 %v5401
  %v5791 = vunpack.c.l.b16 %v5402
  %v5792 = vunpack.c.l.b16 %v5403
  %v5793 = vunpack.c.l.b16 %v5404
  %v5794 = vunpack.c.l.b16 %v5405
  %v5795 = vunpack.c.l.b16 %v5406
  %v5796 = vunpack.c.l.b16 %v5407
  %v5797 = vunpack.c.l.b16 %v5408
  %v5798 = vunpack.c.l.b16 %v5409
  %v5799 = vunpack.c.l.b16 %v5410
  %v5800 = vunpack.c.l.b16 %v5411
  %v5801 = vunpack.c.l.b16 %v5412
  %v5802 = vunpack.c.l.b16 %v5413
  %v5803 = vunpack.c.l.b16 %v5414
  %v5804 = vunpack.c.l.b16 %v5415
  %v5805 = vunpack.c.l.b16 %v5416
  %v5806 = vunpack.c.l.b16 %v5417
  %v5807 = vunpack.c.l.b16 %v5418
  %v5808 = vunpack.c.l.b16 %v5419
  %v5809 = vunpack.c.l.b16 %v5420
  %v5810 = vunpack.c.l.b16 %v5421
  %v5811 = vunpack.c.l.b16 %v5422
  %v5812 = vunpack.c.l.b16 %v5423
  %v5813 = vunpack.c.l.b16 %v5424
  %v5814 = vunpack.c.l.b16 %v5425
  %v5815 = vunpack.c.l.b16 %v5426
  %v5816 = vunpack.c.l.b16 %v5427
  %v5817 = vunpack.c.l.b16 %v5428
  %v5818 = vunpack.c.l.b16 %v5429
  %v5819 = vunpack.c.l.b16 %v5430
  %v5820 = vunpack.c.l.b16 %v5431
  %v5821 = vunpack.c.l.b16 %v5432
  %v5822 = vunpack.c.l.b16 %v5433
  %v5823 = vunpack.c.l.b16 %v5434
  %v5824 = vunpack.c.l.b16 %v5435
  %v5825 = vunpack.c.l.b16 %v5436
  %v5826 = vunpack.c.l.b16 %v5437
  %v5827 = vunpack.c.l.b16 %v5438
  %v5828 = vunpack.c.l.b16 %v5439
  %v5829 = vunpack.c.l.b16 %v5440
  %v5830 = vunpack.c.l.b16 %v5441
  %v5831 = vunpack.c.l.b16 %v5442
  %v5832 = vunpack.c.l.b16 %v5443
  %v5833 = vunpack.c.l.b16 %v5444
  %v5834 = vunpack.c.l.b16 %v5445
  %v5835 = vunpack.c.l.b16 %v5446
  %v5836 = vunpack.c.l.b16 %v5447
  %v5837 = vunpack.c.l.b16 %v5448
  %v5838 = vunpack.c.l.b16 %v5449
  %v5839 = vunpack.c.l.b16 %v5450
  %v5840 = vunpack.c.l.b16 %v5451
  %v5841 = vunpack.c.l.b16 %v5452
  %v5842 = vunpack.c.l.b16 %v5453
  %v5843 = vunpack.c.l.b16 %v5454
  %v5844 = vunpack.c.l.b16 %v5455
  %v5845 = vunpack.c.l.b16 %v5456
  %v5846 = vunpack.c.l.b16 %v5457
  %v5847 = vunpack.c.l.b16 %v5458
  %v5848 = vunpack.c.l.b16 %v5459
  %v5849 = vunpack.c.l.b16 %v5460
  %v5850 = vunpack.c.l.b16 %v5461
  %v5851 = vunpack.c.l.b16 %v5462
  %v5852 = vunpack.c.l.b16 %v5463
  %v5853 = vunpack.c.l.b16 %v5464
  %v5854 = vunpack.c.l.b16 %v5465
  %v5855 = vunpack.c.l.b16 %v5466
  %v5856 = vunpack.c.l.b16 %v5467
  %v5857 = vunpack.c.l.b16 %v5468
  %v5858 = vunpack.c.l.b16 %v5469
  %v5859 = vunpack.c.l.b16 %v5470
  %v5860 = vunpack.c.l.b16 %v5471
  %v5861 = vunpack.c.l.b16 %v5472
  %v5862 = vunpack.c.l.b16 %v5473
  %v5863 = vunpack.c.l.b16 %v5474
  %v5864 = vunpack.c.l.b16 %v5475
  %v5865 = vunpack.c.l.b16 %v5476
  %v5866 = vunpack.c.l.b16 %v5477
  %v5867 = vunpack.c.l.b16 %v5478
  %v5868 = vunpack.c.l.b16 %v5479
  %v5869 = vunpack.c.l.b16 %v5480
  %v5870 = vunpack.c.l.b16 %v5481
  %v5871 = vunpack.c.l.b16 %v5482
  %v5872 = vunpack.c.l.b16 %v5483
  %v5873 = vunpack.c.l.b16 %v5484
  %v5874 = vunpack.c.l.b16 %v5485
  %v5875 = vunpack.c.l.b16 %v5486
  %v5876 = vunpack.c.l.b16 %v5487
  %v5877 = vunpack.c.l.b16 %v5488
  %v5878 = vunpack.c.l.b16 %v5489
  %v5879 = vunpack.c.l.b16 %v5490
  %v5880 = vunpack.c.l.b16 %v5491
  %v5881 = vunpack.c.l.b16 %v5492
  %v5882 = vunpack.c.l.b16 %v5493
  %v5883 = vunpack.c.l.b16 %v5494
  %v5884 = vunpack.c.l.b16 %v5495
  %v5885 = vunpack.c.l.b16 %v5496
  %v5886 = vunpack.c.l.b16 %v5497
  %v5887 = vunpack.c.l.b16 %v5498
  %v5888 = vunpack.c.l.b16 %v5499
  %v5889 = vunpack.c.l.b16 %v5500
  %v5890 = vunpack.c.l.b16 %v5501
  %v5891 = vunpack.c.l.b16 %v5502
  %v5892 = vunpack.c.l.b16 %v5503
  %v5893 = vunpack.c.l.b16 %v5504
  %v5894 = vunpack.c.l.b16 %v5505
  %v5895 = vunpack.c.l.b16 %v5506
  %v5896 = vunpack.c.l.b16 %v5507
  %v5897 = vunpack.c.l.b16 %v5508
  %v5898 = vunpack.c.l.b16 %v5509
  %v5899 = vunpack.c.l.b16 %v5510
  %v5900 = vunpack.c.l.b16 %v5511
  %v5901 = vunpack.c.l.b16 %v5512
  %v5902 = vunpack.c.l.b16 %v5513
  %v5903 = vunpack.c.l.b16 %v5514
  %v5904 = vunpack.c.l.b16 %v5515
  %v5905 = vunpack.c.l.b16 %v5516
  %v5906 = vunpack.c.l.b16 %v5517
  %v5907 = vunpack.c.l.b16 %v5518
  %v5908 = vunpack.c.l.b16 %v5519
  %v5909 = vunpack.c.l.b16 %v5520
  %v5910 = vunpack.c.l.b16 %v5521
  %v5911 = vunpack.c.l.b16 %v5522
  %v5912 = vunpack.c.l.b16 %v5523
  %v5913 = vunpack.c.l.b16 %v5524
  %v5914 = vunpack.c.l.b16 %v5525
  %v5915 = vunpack.c.l.b16 %v5526
  %v5916 = vunpack.c.l.b16 %v5527
  %v5917 = vunpack.c.l.b16 %v5528
  %v5918 = vunpack.c.l.b16 %v5529
  %v5919 = vunpack.c.l.b16 %v5530
  %v5920 = vunpack.c.l.b16 %v5531
  %v5921 = vunpack.c.l.b16 %v5532
  %v5922 = vunpack.c.l.b16 %v5533
  %v5923 = vunpack.c.l.b16 %v5534
  %v5924 = vunpack.c.l.b16 %v5535
  %v5925 = vunpack.c.l.b16 %v5536
  %v5926 = vunpack.c.l.b16 %v5537
  %v5927 = vunpack.c.l.b16 %v5538
  %v5928 = vunpack.c.l.b16 %v5539
  %v5929 = vunpack.c.l.b16 %v5540
  %v5930 = vunpack.c.l.b16 %v5541
  %v5931 = vunpack.c.l.b16 %v5542
  %v5932 = vunpack.c.l.b16 %v5543
  %v5933 = vunpack.c.l.b16 %v5544
  %v5934 = vunpack.c.l.b16 %v5545
  %v5935 = vunpack.c.l.b16 %v5546
  %v5936 = vunpack.c.l.b16 %v5547
  %v5937 = vunpack.c.l.b16 %v5548
  %v5938 = vunpack.c.l.b16 %v5549
  %v5939 = vunpack.c.l.b16 %v5550
  %v5940 = vunpack.c.l.b16 %v5551
  %v5941 = vunpack.c.l.b16 %v5552
  %v5942 = vunpack.c.l.b16 %v5553
  %v5943 = vunpack.c.l.b16 %v5554
  %v5944 = vunpack.c.l.b16 %v5555
  %v5945 = vunpack.c.l.b16 %v5556
  %v5946 = vunpack.c.l.b16 %v5557
  %v5947 = vunpack.c.l.b16 %v5558
  %v5948 = vunpack.c.l.b16 %v5559
  %v5949 = vunpack.c.l.b16 %v5560
  %v5950 = vunpack.c.l.b16 %v5561
  %v5951 = vunpack.c.l.b16 %v5562
  %v5952 = vunpack.c.l.b16 %v5563
  %v5953 = vunpack.c.l.b16 %v5564
  %v5954 = vunpack.c.l.b16 %v5565
  %v5955 = vunpack.c.l.b16 %v5566
  %v5956 = vunpack.c.l.b16 %v5567
  %v5957 = vunpack.c.l.b16 %v5568
  %v5958 = vunpack.c.l.b16 %v5569
  %v5959 = vunpack.c.l.b16 %v5570
  %v5960 = vunpack.c.l.b16 %v5571
  %v5961 = vunpack.c.l.b16 %v5572
  %v5962 = vunpack.c.l.b16 %v5573
  %v5963 = vunpack.c.l.b16 %v5574
  %v5964 = vunpack.c.l.b16 %v5575
  %v5965 = vunpack.c.l.b16 %v5576
  %v5966 = vunpack.c.l.b16 %v5577
  %v5967 = vunpack.c.l.b16 %v5578
  %v5968 = vunpack.c.l.b16 %v5579
  %v5969 = vunpack.c.l.b16 %v5580
  %v5970 = vunpack.c.l.b16 %v5581
  %v5971 = vunpack.c.l.b16 %v5582
  %v5972 = vunpack.c.l.b16 %v5583
  %v5973 = vunpack.c.l.b16 %v5584
  %v5974 = vunpack.c.l.b16 %v5585
  %v5975 = vunpack.c.l.b16 %v5586
  %v5976 = vunpack.c.l.b16 %v5587
  %v5977 = vunpack.c.l.b16 %v5588
  %v5978 = vunpack.c.l.b16 %v5589
  %v5979 = vunpack.c.l.b16 %v5590
  %v5980 = vpack.c.b16 %v5789, %v5788
  %v5981 = vpack.c.b16 %v5791, %v5790
  %v5982 = vpack.c.b16 %v5793, %v5792
  %v5983 = vpack.c.b16 %v5795, %v5794
  %v5984 = vpack.c.b16 %v5797, %v5796
  %v5985 = vpack.c.b16 %v5799, %v5798
  %v5986 = vpack.c.b16 %v5801, %v5800
  %v5987 = vpack.c.b16 %v5803, %v5802
  %v5988 = vpack.c.b16 %v5805, %v5804
  %v5989 = vpack.c.b16 %v5807, %v5806
  %v5990 = vpack.c.b16 %v5809, %v5808
  %v5991 = vpack.c.b16 %v5811, %v5810
  %v5992 = vpack.c.b16 %v5813, %v5812
  %v5993 = vpack.c.b16 %v5815, %v5814
  %v5994 = vpack.c.b16 %v5817, %v5816
  %v5995 = vpack.c.b16 %v5819, %v5818
  %v5996 = vpack.c.b16 %v5821, %v5820
  %v5997 = vpack.c.b16 %v5823, %v5822
  %v5998 = vpack.c.b16 %v5825, %v5824
  %v5999 = vpack.c.b16 %v5827, %v5826
  %v6000 = vpack.c.b16 %v5829, %v5828
  %v6001 = vpack.c.b16 %v5831, %v5830
  %v6002 = vpack.c.b16 %v5833, %v5832
  %v6003 = vpack.c.b16 %v5835, %v5834
  %v6004 = vpack.c.b16 %v5837, %v5836
  %v6005 = vpack.c.b16 %v5839, %v5838
  %v6006 = vpack.c.b16 %v5841, %v5840
  %v6007 = vpack.c.b16 %v5843, %v5842
  %v6008 = vpack.c.b16 %v5845, %v5844
  %v6009 = vpack.c.b16 %v5847, %v5846
  %v6010 = vpack.c.b16 %v5849, %v5848
  %v6011 = vpack.c.b16 %v5851, %v5850
  %v6012 = vpack.c.b16 %v5853, %v5852
  %v6013 = vpack.c.b16 %v5855, %v5854
  %v6014 = vpack.c.b16 %v5857, %v5856
  %v6015 = vpack.c.b16 %v5859, %v5858
  %v6016 = vpack.c.b16 %v5861, %v5860
  %v6017 = vpack.c.b16 %v5863, %v5862
  %v6018 = vpack.c.b16 %v5865, %v5864
  %v6019 = vpack.c.b16 %v5867, %v5866
  %v6020 = vpack.c.b16 %v5869, %v5868
  %v6021 = vpack.c.b16 %v5871, %v5870
  %v6022 = vpack.c.b16 %v5873, %v5872
  %v6023 = vpack.c.b16 %v5875, %v5874
  %v6024 = vpack.c.b16 %v5877, %v5876
  %v6025 = vpack.c.b16 %v5879, %v5878
  %v6026 = vpack.c.b16 %v5881, %v5880
  %v6027 = vpack.c.b16 %v5883, %v5882
  %v6028 = vpack.c.b16 %v5885, %v5884
  %v6029 = vpack.c.b16 %v5887, %v5886
  %v6030 = vpack.c.b16 %v5889, %v5888
  %v6031 = vpack.c.b16 %v5891, %v5890
  %v6032 = vpack.c.b16 %v5893, %v5892
  %v6033 = vpack.c.b16 %v5895, %v5894
  %v6034 = vpack.c.b16 %v5897, %v5896
  %v6035 = vpack.c.b16 %v5899, %v5898
  %v6036 = vpack.c.b16 %v5901, %v5900
  %v6037 = vpack.c.b16 %v5903, %v5902
  %v6038 = vpack.c.b16 %v5905, %v5904
  %v6039 = vpack.c.b16 %v5907, %v5906
  %v6040 = vpack.c.b16 %v5909, %v5908
  %v6041 = vpack.c.b16 %v5911, %v5910
  %v6042 = vpack.c.b16 %v5913, %v5912
  %v6043 = vpack.c.b16 %v5915, %v5914
  %v6044 = vpack.c.b16 %v5917, %v5916
  %v6045 = vpack.c.b16 %v5919, %v5918
  %v6046 = vpack.c.b16 %v5921, %v5920
  %v6047 = vpack.c.b16 %v5923, %v5922
  %v6048 = vpack.c.b16 %v5925, %v5924
  %v6049 = vpack.c.b16 %v5927, %v5926
  %v6050 = vpack.c.b16 %v5929, %v5928
  %v6051 = vpack.c.b16 %v5931, %v5930
  %v6052 = vpack.c.b16 %v5933, %v5932
  %v6053 = vpack.c.b16 %v5935, %v5934
  %v6054 = vpack.c.b16 %v5937, %v5936
  %v6055 = vpack.c.b16 %v5939, %v5938
  %v6056 = vpack.c.b16 %v5941, %v5940
  %v6057 = vpack.c.b16 %v5943, %v5942
  %v6058 = vpack.c.b16 %v5945, %v5944
  %v6059 = vpack.c.b16 %v5947, %v5946
  %v6060 = vpack.c.b16 %v5949, %v5948
  %v6061 = vpack.c.b16 %v5951, %v5950
  %v6062 = vpack.c.b16 %v5953, %v5952
  %v6063 = vpack.c.b16 %v5955, %v5954
  %v6064 = vpack.c.b16 %v5957, %v5956
  %v6065 = vpack.c.b16 %v5959, %v5958
  %v6066 = vpack.c.b16 %v5961, %v5960
  %v6067 = vpack.c.b16 %v5963, %v5962
  %v6068 = vpack.c.b16 %v5965, %v5964
  %v6069 = vpack.c.b16 %v5967, %v5966
  %v6070 = vpack.c.b16 %v5969, %v5968
  %v6071 = vpack.c.b16 %v5971, %v5970
  %v6072 = vpack.c.b16 %v5973, %v5972
  %v6073 = vpack.c.b16 %v5975, %v5974
  %v6074 = vpack.c.b16 %v5977, %v5976
  %v6075 = vpack.c.b16 %v5979, %v5978
  %v6080 = vunpack.c.l.b16 %v5592
  %v6081 = vunpack.c.h.b16 %v5592
  %v6082 = vunpack.c.l.b16 %v5593
  %v6083 = vunpack.c.h.b16 %v5593
  %v6084 = vunpack.c.l.b16 %v5594
  %v6085 = vunpack.c.h.b16 %v5594
  %v6086 = vunpack.c.l.b16 %v5595
  %v6087 = vunpack.c.h.b16 %v5595
  %v6088 = vpack.c.b16 %v6082, %v6080
  %v6089 = vpack.c.b16 %v6083, %v6081
  %v6090 = vpack.c.b16 %v6086, %v6084
  %v6091 = vpack.c.b16 %v6087, %v6085
  %v6095 = vsel %vm740, %v5980, 0
  %v6098 = vsel %vm740, %v5981, 0
  %v6101 = vsel %vm740, %v5982, 0
  %v6104 = vsel %vm740, %v5983, 0
  %v6107 = vsel %vm740, %v5984, 0
  %v6110 = vsel %vm740, %v5985, 0
  %v6113 = vsel %vm740, %v5986, 0
  %v6116 = vsel %vm740, %v5987, 0
  %v6119 = vsel %vm740, %v5988, 0
  %v6122 = vsel %vm740, %v5989, 0
  %v6125 = vsel %vm740, %v5990, 0
  %v6128 = vsel %vm740, %v5991, 0
  %v6131 = vsel %vm740, %v5992, 0
  %v6134 = vsel %vm740, %v5993, 0
  %v6137 = vsel %vm740, %v5994, 0
  %v6140 = vsel %vm740, %v5995, 0
  %v6143 = vsel %vm740, %v5996, 0
  %v6146 = vsel %vm740, %v5997, 0
  %v6149 = vsel %vm740, %v5998, 0
  %v6152 = vsel %vm740, %v5999, 0
  %v6155 = vsel %vm740, %v6000, 0
  %v6158 = vsel %vm740, %v6001, 0
  %v6161 = vsel %vm740, %v6002, 0
  %v6164 = vsel %vm740, %v6003, 0
  %v6167 = vsel %vm740, %v6004, 0
  %v6170 = vsel %vm740, %v6005, 0
  %v6173 = vsel %vm740, %v6006, 0
  %v6176 = vsel %vm740, %v6007, 0
  %v6179 = vsel %vm740, %v6008, 0
  %v6182 = vsel %vm740, %v6009, 0
  %v6185 = vsel %vm740, %v6010, 0
  %v6188 = vsel %vm740, %v6011, 0
  %v6191 = vsel %vm740, %v6012, 0
  %v6194 = vsel %vm740, %v6013, 0
  %v6197 = vsel %vm740, %v6014, 0
  %v6200 = vsel %vm740, %v6015, 0
  %v6203 = vsel %vm740, %v6016, 0
  %v6206 = vsel %vm740, %v6017, 0
  %v6209 = vsel %vm740, %v6018, 0
  %v6212 = vsel %vm740, %v6019, 0
  %v6215 = vsel %vm740, %v6020, 0
  %v6218 = vsel %vm740, %v6021, 0
  %v6221 = vsel %vm740, %v6022, 0
  %v6224 = vsel %vm740, %v6023, 0
  %v6227 = vsel %vm740, %v6024, 0
  %v6230 = vsel %vm740, %v6025, 0
  %v6233 = vsel %vm740, %v6026, 0
  %v6236 = vsel %vm740, %v6027, 0
  %v6239 = vsel %vm740, %v6028, 0
  %v6242 = vsel %vm740, %v6029, 0
  %v6245 = vsel %vm740, %v6030, 0
  %v6248 = vsel %vm740, %v6031, 0
  %v6251 = vsel %vm740, %v6032, 0
  %v6254 = vsel %vm740, %v6033, 0
  %v6257 = vsel %vm740, %v6034, 0
  %v6260 = vsel %vm740, %v6035, 0
  %v6263 = vsel %vm740, %v6036, 0
  %v6266 = vsel %vm740, %v6037, 0
  %v6269 = vsel %vm740, %v6038, 0
  %v6272 = vsel %vm740, %v6039, 0
  %v6275 = vsel %vm740, %v6040, 0
  %v6278 = vsel %vm740, %v6041, 0
  %v6281 = vsel %vm740, %v6042, 0
  %v6284 = vsel %vm740, %v6043, 0
  %v6287 = vsel %vm740, %v6044, 0
  %v6290 = vsel %vm740, %v6045, 0
  %v6293 = vsel %vm740, %v6046, 0
  %v6296 = vsel %vm740, %v6047, 0
  %v6299 = vsel %vm740, %v6048, 0
  %v6302 = vsel %vm740, %v6049, 0
  %v6305 = vsel %vm740, %v6050, 0
  %v6308 = vsel %vm740, %v6051, 0
  %v6311 = vsel %vm740, %v6052, 0
  %v6314 = vsel %vm740, %v6053, 0
  %v6317 = vsel %vm740, %v6054, 0
  %v6320 = vsel %vm740, %v6055, 0
  %v6323 = vsel %vm740, %v6056, 0
  %v6326 = vsel %vm740, %v6057, 0
  %v6329 = vsel %vm740, %v6058, 0
  %v6332 = vsel %vm740, %v6059, 0
  %v6335 = vsel %vm740, %v6060, 0
  %v6338 = vsel %vm740, %v6061, 0
  %v6341 = vsel %vm740, %v6062, 0
  %v6344 = vsel %vm740, %v6063, 0
  %v6347 = vsel %vm740, %v6064, 0
  %v6350 = vsel %vm740, %v6065, 0
  %v6353 = vsel %vm740, %v6066, 0
  %v6356 = vsel %vm740, %v6067, 0
  %v6359 = vsel %vm740, %v6068, 0
  %v6362 = vsel %vm740, %v6069, 0
  %v6365 = vsel %vm740, %v6070, 0
  %v6368 = vsel %vm740, %v6071, 0
  %v6371 = vsel %vm740, %v6072, 0
  %v6374 = vsel %vm740, %v6073, 0
  %v6377 = vsel %vm740, %v6074, 0
  %v6380 = vsel %vm740, %v6075, 0
  %v6383 = vsel %vm1029, %v6090, 0
  %v6386 = vsel %vm1029, %v6091, 0
  %6388 = vmatpush.bf16.msra.mxu0 0
  %6389 = vmatpush.bf16.msra.mxu0 0
  %6390 = vmatpush.bf16.msra.mxu0 0
  %6391 = vmatpush.bf16.msra.mxu0 0
  %6392 = vmatpush.bf16.msra.mxu0 0
  %6393 = vmatpush.bf16.msra.mxu0 0
  %6394 = vmatpush.bf16.msra.mxu0 %v6383
  %6395 = vmatpush.bf16.msra.mxu0 %v6088
  %6396 = vmatmul.bf16.gmra.mxu0 %v6095
  %v6397 = vpop.f32.mrf.mxu0
  %v6398 = vadd.f32 0.0, %v6397
  %v6399 = vpop.f32.mrf.mxu0
  %v6400 = vadd.f32 0.0, %v6399
  %6401 = vmatmul.bf16.gmra.mxu0 %v6098
  %v6402 = vpop.f32.mrf.mxu0
  %v6403 = vadd.f32 0.0, %v6402
  %v6404 = vpop.f32.mrf.mxu0
  %v6405 = vadd.f32 0.0, %v6404
  %6406 = vmatmul.bf16.gmra.mxu0 %v6101
  %v6407 = vpop.f32.mrf.mxu0
  %v6408 = vadd.f32 0.0, %v6407
  %v6409 = vpop.f32.mrf.mxu0
  %v6410 = vadd.f32 0.0, %v6409
  %6411 = vmatmul.bf16.gmra.mxu0 %v6104
  %v6412 = vpop.f32.mrf.mxu0
  %v6413 = vadd.f32 0.0, %v6412
  %v6414 = vpop.f32.mrf.mxu0
  %v6415 = vadd.f32 0.0, %v6414
  %6416 = vmatmul.bf16.gmra.mxu0 %v6107
  %v6417 = vpop.f32.mrf.mxu0
  %v6418 = vadd.f32 0.0, %v6417
  %v6419 = vpop.f32.mrf.mxu0
  %v6420 = vadd.f32 0.0, %v6419
  %6421 = vmatmul.bf16.gmra.mxu0 %v6110
  %v6422 = vpop.f32.mrf.mxu0
  %v6423 = vadd.f32 0.0, %v6422
  %v6424 = vpop.f32.mrf.mxu0
  %v6425 = vadd.f32 0.0, %v6424
  %6426 = vmatmul.bf16.gmra.mxu0 %v6113
  %v6427 = vpop.f32.mrf.mxu0
  %v6428 = vadd.f32 0.0, %v6427
  %v6429 = vpop.f32.mrf.mxu0
  %v6430 = vadd.f32 0.0, %v6429
  %6431 = vmatmul.bf16.gmra.mxu0 %v6116
  %v6432 = vpop.f32.mrf.mxu0
  %v6433 = vadd.f32 0.0, %v6432
  %v6434 = vpop.f32.mrf.mxu0
  %v6435 = vadd.f32 0.0, %v6434
  %6436 = vmatmul.bf16.gmra.mxu0 %v6119
  %v6437 = vpop.f32.mrf.mxu0
  %v6438 = vadd.f32 0.0, %v6437
  %v6439 = vpop.f32.mrf.mxu0
  %v6440 = vadd.f32 0.0, %v6439
  %6441 = vmatmul.bf16.gmra.mxu0 %v6122
  %v6442 = vpop.f32.mrf.mxu0
  %v6443 = vadd.f32 0.0, %v6442
  %v6444 = vpop.f32.mrf.mxu0
  %v6445 = vadd.f32 0.0, %v6444
  %6446 = vmatmul.bf16.gmra.mxu0 %v6125
  %v6447 = vpop.f32.mrf.mxu0
  %v6448 = vadd.f32 0.0, %v6447
  %v6449 = vpop.f32.mrf.mxu0
  %v6450 = vadd.f32 0.0, %v6449
  %6451 = vmatmul.bf16.gmra.mxu0 %v6128
  %v6452 = vpop.f32.mrf.mxu0
  %v6453 = vadd.f32 0.0, %v6452
  %v6454 = vpop.f32.mrf.mxu0
  %v6455 = vadd.f32 0.0, %v6454
  %6456 = vmatmul.bf16.gmra.mxu0 %v6131
  %v6457 = vpop.f32.mrf.mxu0
  %v6458 = vadd.f32 0.0, %v6457
  %v6459 = vpop.f32.mrf.mxu0
  %v6460 = vadd.f32 0.0, %v6459
  %6461 = vmatmul.bf16.gmra.mxu0 %v6134
  %v6462 = vpop.f32.mrf.mxu0
  %v6463 = vadd.f32 0.0, %v6462
  %v6464 = vpop.f32.mrf.mxu0
  %v6465 = vadd.f32 0.0, %v6464
  %6466 = vmatmul.bf16.gmra.mxu0 %v6137
  %v6467 = vpop.f32.mrf.mxu0
  %v6468 = vadd.f32 0.0, %v6467
  %v6469 = vpop.f32.mrf.mxu0
  %v6470 = vadd.f32 0.0, %v6469
  %6471 = vmatmul.bf16.gmra.mxu0 %v6140
  %v6472 = vpop.f32.mrf.mxu0
  %v6473 = vadd.f32 0.0, %v6472
  %v6474 = vpop.f32.mrf.mxu0
  %v6475 = vadd.f32 0.0, %v6474
  %6476 = vmatmul.bf16.gmra.mxu0 %v6143
  %v6477 = vpop.f32.mrf.mxu0
  %v6478 = vadd.f32 0.0, %v6477
  %v6479 = vpop.f32.mrf.mxu0
  %v6480 = vadd.f32 0.0, %v6479
  %6481 = vmatmul.bf16.gmra.mxu0 %v6146
  %v6482 = vpop.f32.mrf.mxu0
  %v6483 = vadd.f32 0.0, %v6482
  %v6484 = vpop.f32.mrf.mxu0
  %v6485 = vadd.f32 0.0, %v6484
  %6486 = vmatmul.bf16.gmra.mxu0 %v6149
  %v6487 = vpop.f32.mrf.mxu0
  %v6488 = vadd.f32 0.0, %v6487
  %v6489 = vpop.f32.mrf.mxu0
  %v6490 = vadd.f32 0.0, %v6489
  %6491 = vmatmul.bf16.gmra.mxu0 %v6152
  %v6492 = vpop.f32.mrf.mxu0
  %v6493 = vadd.f32 0.0, %v6492
  %v6494 = vpop.f32.mrf.mxu0
  %v6495 = vadd.f32 0.0, %v6494
  %6496 = vmatmul.bf16.gmra.mxu0 %v6155
  %v6497 = vpop.f32.mrf.mxu0
  %v6498 = vadd.f32 0.0, %v6497
  %v6499 = vpop.f32.mrf.mxu0
  %v6500 = vadd.f32 0.0, %v6499
  %6501 = vmatmul.bf16.gmra.mxu0 %v6158
  %v6502 = vpop.f32.mrf.mxu0
  %v6503 = vadd.f32 0.0, %v6502
  %v6504 = vpop.f32.mrf.mxu0
  %v6505 = vadd.f32 0.0, %v6504
  %6506 = vmatmul.bf16.gmra.mxu0 %v6161
  %v6507 = vpop.f32.mrf.mxu0
  %v6508 = vadd.f32 0.0, %v6507
  %v6509 = vpop.f32.mrf.mxu0
  %v6510 = vadd.f32 0.0, %v6509
  %6511 = vmatmul.bf16.gmra.mxu0 %v6164
  %v6512 = vpop.f32.mrf.mxu0
  %v6513 = vadd.f32 0.0, %v6512
  %v6514 = vpop.f32.mrf.mxu0
  %v6515 = vadd.f32 0.0, %v6514
  %6516 = vmatmul.bf16.gmra.mxu0 %v6167
  %v6517 = vpop.f32.mrf.mxu0
  %v6518 = vadd.f32 0.0, %v6517
  %v6519 = vpop.f32.mrf.mxu0
  %v6520 = vadd.f32 0.0, %v6519
  %6521 = vmatmul.bf16.gmra.mxu0 %v6170
  %v6522 = vpop.f32.mrf.mxu0
  %v6523 = vadd.f32 0.0, %v6522
  %v6524 = vpop.f32.mrf.mxu0
  %v6525 = vadd.f32 0.0, %v6524
  %6526 = vmatmul.bf16.gmra.mxu0 %v6173
  %v6527 = vpop.f32.mrf.mxu0
  %v6528 = vadd.f32 0.0, %v6527
  %v6529 = vpop.f32.mrf.mxu0
  %v6530 = vadd.f32 0.0, %v6529
  %6531 = vmatmul.bf16.gmra.mxu0 %v6176
  %v6532 = vpop.f32.mrf.mxu0
  %v6533 = vadd.f32 0.0, %v6532
  %v6534 = vpop.f32.mrf.mxu0
  %v6535 = vadd.f32 0.0, %v6534
  %6536 = vmatmul.bf16.gmra.mxu0 %v6179
  %v6537 = vpop.f32.mrf.mxu0
  %v6538 = vadd.f32 0.0, %v6537
  %v6539 = vpop.f32.mrf.mxu0
  %v6540 = vadd.f32 0.0, %v6539
  %6541 = vmatmul.bf16.gmra.mxu0 %v6182
  %v6542 = vpop.f32.mrf.mxu0
  %v6543 = vadd.f32 0.0, %v6542
  %v6544 = vpop.f32.mrf.mxu0
  %v6545 = vadd.f32 0.0, %v6544
  %6546 = vmatmul.bf16.gmra.mxu0 %v6185
  %v6547 = vpop.f32.mrf.mxu0
  %v6548 = vadd.f32 0.0, %v6547
  %v6549 = vpop.f32.mrf.mxu0
  %v6550 = vadd.f32 0.0, %v6549
  %6551 = vmatmul.bf16.gmra.mxu0 %v6188
  %v6552 = vpop.f32.mrf.mxu0
  %v6553 = vadd.f32 0.0, %v6552
  %v6554 = vpop.f32.mrf.mxu0
  %v6555 = vadd.f32 0.0, %v6554
  %6556 = vmatmul.bf16.gmra.mxu0 %v6191
  %v6557 = vpop.f32.mrf.mxu0
  %v6558 = vadd.f32 0.0, %v6557
  %v6559 = vpop.f32.mrf.mxu0
  %v6560 = vadd.f32 0.0, %v6559
  %6561 = vmatmul.bf16.gmra.mxu0 %v6194
  %v6562 = vpop.f32.mrf.mxu0
  %v6563 = vadd.f32 0.0, %v6562
  %v6564 = vpop.f32.mrf.mxu0
  %v6565 = vadd.f32 0.0, %v6564
  %6566 = vmatmul.bf16.gmra.mxu0 %v6197
  %v6567 = vpop.f32.mrf.mxu0
  %v6568 = vadd.f32 0.0, %v6567
  %v6569 = vpop.f32.mrf.mxu0
  %v6570 = vadd.f32 0.0, %v6569
  %6571 = vmatmul.bf16.gmra.mxu0 %v6200
  %v6572 = vpop.f32.mrf.mxu0
  %v6573 = vadd.f32 0.0, %v6572
  %v6574 = vpop.f32.mrf.mxu0
  %v6575 = vadd.f32 0.0, %v6574
  %6576 = vmatmul.bf16.gmra.mxu0 %v6203
  %v6577 = vpop.f32.mrf.mxu0
  %v6578 = vadd.f32 0.0, %v6577
  %v6579 = vpop.f32.mrf.mxu0
  %v6580 = vadd.f32 0.0, %v6579
  %6581 = vmatmul.bf16.gmra.mxu0 %v6206
  %v6582 = vpop.f32.mrf.mxu0
  %v6583 = vadd.f32 0.0, %v6582
  %v6584 = vpop.f32.mrf.mxu0
  %v6585 = vadd.f32 0.0, %v6584
  %6586 = vmatmul.bf16.gmra.mxu0 %v6209
  %v6587 = vpop.f32.mrf.mxu0
  %v6588 = vadd.f32 0.0, %v6587
  %v6589 = vpop.f32.mrf.mxu0
  %v6590 = vadd.f32 0.0, %v6589
  %6591 = vmatmul.bf16.gmra.mxu0 %v6212
  %v6592 = vpop.f32.mrf.mxu0
  %v6593 = vadd.f32 0.0, %v6592
  %v6594 = vpop.f32.mrf.mxu0
  %v6595 = vadd.f32 0.0, %v6594
  %6596 = vmatmul.bf16.gmra.mxu0 %v6215
  %v6597 = vpop.f32.mrf.mxu0
  %v6598 = vadd.f32 0.0, %v6597
  %v6599 = vpop.f32.mrf.mxu0
  %v6600 = vadd.f32 0.0, %v6599
  %6601 = vmatmul.bf16.gmra.mxu0 %v6218
  %v6602 = vpop.f32.mrf.mxu0
  %v6603 = vadd.f32 0.0, %v6602
  %v6604 = vpop.f32.mrf.mxu0
  %v6605 = vadd.f32 0.0, %v6604
  %6606 = vmatmul.bf16.gmra.mxu0 %v6221
  %v6607 = vpop.f32.mrf.mxu0
  %v6608 = vadd.f32 0.0, %v6607
  %v6609 = vpop.f32.mrf.mxu0
  %v6610 = vadd.f32 0.0, %v6609
  %6611 = vmatmul.bf16.gmra.mxu0 %v6224
  %v6612 = vpop.f32.mrf.mxu0
  %v6613 = vadd.f32 0.0, %v6612
  %v6614 = vpop.f32.mrf.mxu0
  %v6615 = vadd.f32 0.0, %v6614
  %6616 = vmatmul.bf16.gmra.mxu0 %v6227
  %v6617 = vpop.f32.mrf.mxu0
  %v6618 = vadd.f32 0.0, %v6617
  %v6619 = vpop.f32.mrf.mxu0
  %v6620 = vadd.f32 0.0, %v6619
  %6621 = vmatmul.bf16.gmra.mxu0 %v6230
  %v6622 = vpop.f32.mrf.mxu0
  %v6623 = vadd.f32 0.0, %v6622
  %v6624 = vpop.f32.mrf.mxu0
  %v6625 = vadd.f32 0.0, %v6624
  %6626 = vmatmul.bf16.gmra.mxu0 %v6233
  %v6627 = vpop.f32.mrf.mxu0
  %v6628 = vadd.f32 0.0, %v6627
  %v6629 = vpop.f32.mrf.mxu0
  %v6630 = vadd.f32 0.0, %v6629
  %6631 = vmatmul.bf16.gmra.mxu0 %v6236
  %v6632 = vpop.f32.mrf.mxu0
  %v6633 = vadd.f32 0.0, %v6632
  %v6634 = vpop.f32.mrf.mxu0
  %v6635 = vadd.f32 0.0, %v6634
  %6636 = vmatmul.bf16.gmra.mxu0 %v6239
  %v6637 = vpop.f32.mrf.mxu0
  %v6638 = vadd.f32 0.0, %v6637
  %v6639 = vpop.f32.mrf.mxu0
  %v6640 = vadd.f32 0.0, %v6639
  %6641 = vmatmul.bf16.gmra.mxu0 %v6242
  %v6642 = vpop.f32.mrf.mxu0
  %v6643 = vadd.f32 0.0, %v6642
  %v6644 = vpop.f32.mrf.mxu0
  %v6645 = vadd.f32 0.0, %v6644
  %6646 = vmatmul.bf16.gmra.mxu0 %v6245
  %v6647 = vpop.f32.mrf.mxu0
  %v6648 = vadd.f32 0.0, %v6647
  %v6649 = vpop.f32.mrf.mxu0
  %v6650 = vadd.f32 0.0, %v6649
  %6651 = vmatmul.bf16.gmra.mxu0 %v6248
  %v6652 = vpop.f32.mrf.mxu0
  %v6653 = vadd.f32 0.0, %v6652
  %v6654 = vpop.f32.mrf.mxu0
  %v6655 = vadd.f32 0.0, %v6654
  %6656 = vmatmul.bf16.gmra.mxu0 %v6251
  %v6657 = vpop.f32.mrf.mxu0
  %v6658 = vadd.f32 0.0, %v6657
  %v6659 = vpop.f32.mrf.mxu0
  %v6660 = vadd.f32 0.0, %v6659
  %6661 = vmatmul.bf16.gmra.mxu0 %v6254
  %v6662 = vpop.f32.mrf.mxu0
  %v6663 = vadd.f32 0.0, %v6662
  %v6664 = vpop.f32.mrf.mxu0
  %v6665 = vadd.f32 0.0, %v6664
  %6666 = vmatmul.bf16.gmra.mxu0 %v6257
  %v6667 = vpop.f32.mrf.mxu0
  %v6668 = vadd.f32 0.0, %v6667
  %v6669 = vpop.f32.mrf.mxu0
  %v6670 = vadd.f32 0.0, %v6669
  %6671 = vmatmul.bf16.gmra.mxu0 %v6260
  %v6672 = vpop.f32.mrf.mxu0
  %v6673 = vadd.f32 0.0, %v6672
  %v6674 = vpop.f32.mrf.mxu0
  %v6675 = vadd.f32 0.0, %v6674
  %6676 = vmatmul.bf16.gmra.mxu0 %v6263
  %v6677 = vpop.f32.mrf.mxu0
  %v6678 = vadd.f32 0.0, %v6677
  %v6679 = vpop.f32.mrf.mxu0
  %v6680 = vadd.f32 0.0, %v6679
  %6681 = vmatmul.bf16.gmra.mxu0 %v6266
  %v6682 = vpop.f32.mrf.mxu0
  %v6683 = vadd.f32 0.0, %v6682
  %v6684 = vpop.f32.mrf.mxu0
  %v6685 = vadd.f32 0.0, %v6684
  %6686 = vmatmul.bf16.gmra.mxu0 %v6269
  %v6687 = vpop.f32.mrf.mxu0
  %v6688 = vadd.f32 0.0, %v6687
  %v6689 = vpop.f32.mrf.mxu0
  %v6690 = vadd.f32 0.0, %v6689
  %6691 = vmatmul.bf16.gmra.mxu0 %v6272
  %v6692 = vpop.f32.mrf.mxu0
  %v6693 = vadd.f32 0.0, %v6692
  %v6694 = vpop.f32.mrf.mxu0
  %v6695 = vadd.f32 0.0, %v6694
  %6696 = vmatmul.bf16.gmra.mxu0 %v6275
  %v6697 = vpop.f32.mrf.mxu0
  %v6698 = vadd.f32 0.0, %v6697
  %v6699 = vpop.f32.mrf.mxu0
  %v6700 = vadd.f32 0.0, %v6699
  %6701 = vmatmul.bf16.gmra.mxu0 %v6278
  %v6702 = vpop.f32.mrf.mxu0
  %v6703 = vadd.f32 0.0, %v6702
  %v6704 = vpop.f32.mrf.mxu0
  %v6705 = vadd.f32 0.0, %v6704
  %6706 = vmatmul.bf16.gmra.mxu0 %v6281
  %v6707 = vpop.f32.mrf.mxu0
  %v6708 = vadd.f32 0.0, %v6707
  %v6709 = vpop.f32.mrf.mxu0
  %v6710 = vadd.f32 0.0, %v6709
  %6711 = vmatmul.bf16.gmra.mxu0 %v6284
  %v6712 = vpop.f32.mrf.mxu0
  %v6713 = vadd.f32 0.0, %v6712
  %v6714 = vpop.f32.mrf.mxu0
  %v6715 = vadd.f32 0.0, %v6714
  %6716 = vmatmul.bf16.gmra.mxu0 %v6287
  %v6717 = vpop.f32.mrf.mxu0
  %v6718 = vadd.f32 0.0, %v6717
  %v6719 = vpop.f32.mrf.mxu0
  %v6720 = vadd.f32 0.0, %v6719
  %6721 = vmatmul.bf16.gmra.mxu0 %v6290
  %v6722 = vpop.f32.mrf.mxu0
  %v6723 = vadd.f32 0.0, %v6722
  %v6724 = vpop.f32.mrf.mxu0
  %v6725 = vadd.f32 0.0, %v6724
  %6726 = vmatmul.bf16.gmra.mxu0 %v6293
  %v6727 = vpop.f32.mrf.mxu0
  %v6728 = vadd.f32 0.0, %v6727
  %v6729 = vpop.f32.mrf.mxu0
  %v6730 = vadd.f32 0.0, %v6729
  %6731 = vmatmul.bf16.gmra.mxu0 %v6296
  %v6732 = vpop.f32.mrf.mxu0
  %v6733 = vadd.f32 0.0, %v6732
  %v6734 = vpop.f32.mrf.mxu0
  %v6735 = vadd.f32 0.0, %v6734
  %6736 = vmatmul.bf16.gmra.mxu0 %v6299
  %v6737 = vpop.f32.mrf.mxu0
  %v6738 = vadd.f32 0.0, %v6737
  %v6739 = vpop.f32.mrf.mxu0
  %v6740 = vadd.f32 0.0, %v6739
  %6741 = vmatmul.bf16.gmra.mxu0 %v6302
  %v6742 = vpop.f32.mrf.mxu0
  %v6743 = vadd.f32 0.0, %v6742
  %v6744 = vpop.f32.mrf.mxu0
  %v6745 = vadd.f32 0.0, %v6744
  %6746 = vmatmul.bf16.gmra.mxu0 %v6305
  %v6747 = vpop.f32.mrf.mxu0
  %v6748 = vadd.f32 0.0, %v6747
  %v6749 = vpop.f32.mrf.mxu0
  %v6750 = vadd.f32 0.0, %v6749
  %6751 = vmatmul.bf16.gmra.mxu0 %v6308
  %v6752 = vpop.f32.mrf.mxu0
  %v6753 = vadd.f32 0.0, %v6752
  %v6754 = vpop.f32.mrf.mxu0
  %v6755 = vadd.f32 0.0, %v6754
  %6756 = vmatmul.bf16.gmra.mxu0 %v6311
  %v6757 = vpop.f32.mrf.mxu0
  %v6758 = vadd.f32 0.0, %v6757
  %v6759 = vpop.f32.mrf.mxu0
  %v6760 = vadd.f32 0.0, %v6759
  %6761 = vmatmul.bf16.gmra.mxu0 %v6314
  %v6762 = vpop.f32.mrf.mxu0
  %v6763 = vadd.f32 0.0, %v6762
  %v6764 = vpop.f32.mrf.mxu0
  %v6765 = vadd.f32 0.0, %v6764
  %6766 = vmatmul.bf16.gmra.mxu0 %v6317
  %v6767 = vpop.f32.mrf.mxu0
  %v6768 = vadd.f32 0.0, %v6767
  %v6769 = vpop.f32.mrf.mxu0
  %v6770 = vadd.f32 0.0, %v6769
  %6771 = vmatmul.bf16.gmra.mxu0 %v6320
  %v6772 = vpop.f32.mrf.mxu0
  %v6773 = vadd.f32 0.0, %v6772
  %v6774 = vpop.f32.mrf.mxu0
  %v6775 = vadd.f32 0.0, %v6774
  %6776 = vmatmul.bf16.gmra.mxu0 %v6323
  %v6777 = vpop.f32.mrf.mxu0
  %v6778 = vadd.f32 0.0, %v6777
  %v6779 = vpop.f32.mrf.mxu0
  %v6780 = vadd.f32 0.0, %v6779
  %6781 = vmatmul.bf16.gmra.mxu0 %v6326
  %v6782 = vpop.f32.mrf.mxu0
  %v6783 = vadd.f32 0.0, %v6782
  %v6784 = vpop.f32.mrf.mxu0
  %v6785 = vadd.f32 0.0, %v6784
  %6786 = vmatmul.bf16.gmra.mxu0 %v6329
  %v6787 = vpop.f32.mrf.mxu0
  %v6788 = vadd.f32 0.0, %v6787
  %v6789 = vpop.f32.mrf.mxu0
  %v6790 = vadd.f32 0.0, %v6789
  %6791 = vmatmul.bf16.gmra.mxu0 %v6332
  %v6792 = vpop.f32.mrf.mxu0
  %v6793 = vadd.f32 0.0, %v6792
  %v6794 = vpop.f32.mrf.mxu0
  %v6795 = vadd.f32 0.0, %v6794
  %6796 = vmatmul.bf16.gmra.mxu0 %v6335
  %v6797 = vpop.f32.mrf.mxu0
  %v6798 = vadd.f32 0.0, %v6797
  %v6799 = vpop.f32.mrf.mxu0
  %v6800 = vadd.f32 0.0, %v6799
  %6801 = vmatmul.bf16.gmra.mxu0 %v6338
  %v6802 = vpop.f32.mrf.mxu0
  %v6803 = vadd.f32 0.0, %v6802
  %v6804 = vpop.f32.mrf.mxu0
  %v6805 = vadd.f32 0.0, %v6804
  %6806 = vmatmul.bf16.gmra.mxu0 %v6341
  %v6807 = vpop.f32.mrf.mxu0
  %v6808 = vadd.f32 0.0, %v6807
  %v6809 = vpop.f32.mrf.mxu0
  %v6810 = vadd.f32 0.0, %v6809
  %6811 = vmatmul.bf16.gmra.mxu0 %v6344
  %v6812 = vpop.f32.mrf.mxu0
  %v6813 = vadd.f32 0.0, %v6812
  %v6814 = vpop.f32.mrf.mxu0
  %v6815 = vadd.f32 0.0, %v6814
  %6816 = vmatmul.bf16.gmra.mxu0 %v6347
  %v6817 = vpop.f32.mrf.mxu0
  %v6818 = vadd.f32 0.0, %v6817
  %v6819 = vpop.f32.mrf.mxu0
  %v6820 = vadd.f32 0.0, %v6819
  %6821 = vmatmul.bf16.gmra.mxu0 %v6350
  %v6822 = vpop.f32.mrf.mxu0
  %v6823 = vadd.f32 0.0, %v6822
  %v6824 = vpop.f32.mrf.mxu0
  %v6825 = vadd.f32 0.0, %v6824
  %6826 = vmatmul.bf16.gmra.mxu0 %v6353
  %v6827 = vpop.f32.mrf.mxu0
  %v6828 = vadd.f32 0.0, %v6827
  %v6829 = vpop.f32.mrf.mxu0
  %v6830 = vadd.f32 0.0, %v6829
  %6831 = vmatmul.bf16.gmra.mxu0 %v6356
  %v6832 = vpop.f32.mrf.mxu0
  %v6833 = vadd.f32 0.0, %v6832
  %v6834 = vpop.f32.mrf.mxu0
  %v6835 = vadd.f32 0.0, %v6834
  %6836 = vmatmul.bf16.gmra.mxu0 %v6359
  %v6837 = vpop.f32.mrf.mxu0
  %v6838 = vadd.f32 0.0, %v6837
  %v6839 = vpop.f32.mrf.mxu0
  %v6840 = vadd.f32 0.0, %v6839
  %6841 = vmatmul.bf16.gmra.mxu0 %v6362
  %v6842 = vpop.f32.mrf.mxu0
  %v6843 = vadd.f32 0.0, %v6842
  %v6844 = vpop.f32.mrf.mxu0
  %v6845 = vadd.f32 0.0, %v6844
  %6846 = vmatmul.bf16.gmra.mxu0 %v6365
  %v6847 = vpop.f32.mrf.mxu0
  %v6848 = vadd.f32 0.0, %v6847
  %v6849 = vpop.f32.mrf.mxu0
  %v6850 = vadd.f32 0.0, %v6849
  %6851 = vmatmul.bf16.gmra.mxu0 %v6368
  %v6852 = vpop.f32.mrf.mxu0
  %v6853 = vadd.f32 0.0, %v6852
  %v6854 = vpop.f32.mrf.mxu0
  %v6855 = vadd.f32 0.0, %v6854
  %6856 = vmatmul.bf16.gmra.mxu0 %v6371
  %v6857 = vpop.f32.mrf.mxu0
  %v6858 = vadd.f32 0.0, %v6857
  %v6859 = vpop.f32.mrf.mxu0
  %v6860 = vadd.f32 0.0, %v6859
  %6861 = vmatmul.bf16.gmra.mxu0 %v6374
  %v6862 = vpop.f32.mrf.mxu0
  %v6863 = vadd.f32 0.0, %v6862
  %v6864 = vpop.f32.mrf.mxu0
  %v6865 = vadd.f32 0.0, %v6864
  %6866 = vmatmul.bf16.gmra.mxu0 %v6377
  %v6867 = vpop.f32.mrf.mxu0
  %v6868 = vadd.f32 0.0, %v6867
  %v6869 = vpop.f32.mrf.mxu0
  %v6870 = vadd.f32 0.0, %v6869
  %6871 = vmatmul.bf16.gmra.mxu0 %v6380
  %v6872 = vpop.f32.mrf.mxu0
  %v6873 = vadd.f32 0.0, %v6872
  %v6874 = vpop.f32.mrf.mxu0
  %v6875 = vadd.f32 0.0, %v6874
  %6876 = vdwg.mxu0
  %6877 = vmatpush.bf16.msra.mxu0 0
  %6878 = vmatpush.bf16.msra.mxu0 0
  %6879 = vmatpush.bf16.msra.mxu0 0
  %6880 = vmatpush.bf16.msra.mxu0 0
  %6881 = vmatpush.bf16.msra.mxu0 0
  %6882 = vmatpush.bf16.msra.mxu0 0
  %6883 = vmatpush.bf16.msra.mxu0 %v6386
  %6884 = vmatpush.bf16.msra.mxu0 %v6089
  %6885 = vmatmul.bf16.gmra.mxu0 %v6095
  %v6886 = vpop.f32.mrf.mxu0
  %v6887 = vadd.f32 0.0, %v6886
  %v6888 = vpop.f32.mrf.mxu0
  %v6889 = vadd.f32 0.0, %v6888
  %6890 = vmatmul.bf16.gmra.mxu0 %v6098
  %v6891 = vpop.f32.mrf.mxu0
  %v6892 = vadd.f32 0.0, %v6891
  %v6893 = vpop.f32.mrf.mxu0
  %v6894 = vadd.f32 0.0, %v6893
  %6895 = vmatmul.bf16.gmra.mxu0 %v6101
  %v6896 = vpop.f32.mrf.mxu0
  %v6897 = vadd.f32 0.0, %v6896
  %v6898 = vpop.f32.mrf.mxu0
  %v6899 = vadd.f32 0.0, %v6898
  %6900 = vmatmul.bf16.gmra.mxu0 %v6104
  %v6901 = vpop.f32.mrf.mxu0
  %v6902 = vadd.f32 0.0, %v6901
  %v6903 = vpop.f32.mrf.mxu0
  %v6904 = vadd.f32 0.0, %v6903
  %6905 = vmatmul.bf16.gmra.mxu0 %v6107
  %v6906 = vpop.f32.mrf.mxu0
  %v6907 = vadd.f32 0.0, %v6906
  %v6908 = vpop.f32.mrf.mxu0
  %v6909 = vadd.f32 0.0, %v6908
  %6910 = vmatmul.bf16.gmra.mxu0 %v6110
  %v6911 = vpop.f32.mrf.mxu0
  %v6912 = vadd.f32 0.0, %v6911
  %v6913 = vpop.f32.mrf.mxu0
  %v6914 = vadd.f32 0.0, %v6913
  %6915 = vmatmul.bf16.gmra.mxu0 %v6113
  %v6916 = vpop.f32.mrf.mxu0
  %v6917 = vadd.f32 0.0, %v6916
  %v6918 = vpop.f32.mrf.mxu0
  %v6919 = vadd.f32 0.0, %v6918
  %6920 = vmatmul.bf16.gmra.mxu0 %v6116
  %v6921 = vpop.f32.mrf.mxu0
  %v6922 = vadd.f32 0.0, %v6921
  %v6923 = vpop.f32.mrf.mxu0
  %v6924 = vadd.f32 0.0, %v6923
  %6925 = vmatmul.bf16.gmra.mxu0 %v6119
  %v6926 = vpop.f32.mrf.mxu0
  %v6927 = vadd.f32 0.0, %v6926
  %v6928 = vpop.f32.mrf.mxu0
  %v6929 = vadd.f32 0.0, %v6928
  %6930 = vmatmul.bf16.gmra.mxu0 %v6122
  %v6931 = vpop.f32.mrf.mxu0
  %v6932 = vadd.f32 0.0, %v6931
  %v6933 = vpop.f32.mrf.mxu0
  %v6934 = vadd.f32 0.0, %v6933
  %6935 = vmatmul.bf16.gmra.mxu0 %v6125
  %v6936 = vpop.f32.mrf.mxu0
  %v6937 = vadd.f32 0.0, %v6936
  %v6938 = vpop.f32.mrf.mxu0
  %v6939 = vadd.f32 0.0, %v6938
  %6940 = vmatmul.bf16.gmra.mxu0 %v6128
  %v6941 = vpop.f32.mrf.mxu0
  %v6942 = vadd.f32 0.0, %v6941
  %v6943 = vpop.f32.mrf.mxu0
  %v6944 = vadd.f32 0.0, %v6943
  %6945 = vmatmul.bf16.gmra.mxu0 %v6131
  %v6946 = vpop.f32.mrf.mxu0
  %v6947 = vadd.f32 0.0, %v6946
  %v6948 = vpop.f32.mrf.mxu0
  %v6949 = vadd.f32 0.0, %v6948
  %6950 = vmatmul.bf16.gmra.mxu0 %v6134
  %v6951 = vpop.f32.mrf.mxu0
  %v6952 = vadd.f32 0.0, %v6951
  %v6953 = vpop.f32.mrf.mxu0
  %v6954 = vadd.f32 0.0, %v6953
  %6955 = vmatmul.bf16.gmra.mxu0 %v6137
  %v6956 = vpop.f32.mrf.mxu0
  %v6957 = vadd.f32 0.0, %v6956
  %v6958 = vpop.f32.mrf.mxu0
  %v6959 = vadd.f32 0.0, %v6958
  %6960 = vmatmul.bf16.gmra.mxu0 %v6140
  %v6961 = vpop.f32.mrf.mxu0
  %v6962 = vadd.f32 0.0, %v6961
  %v6963 = vpop.f32.mrf.mxu0
  %v6964 = vadd.f32 0.0, %v6963
  %6965 = vmatmul.bf16.gmra.mxu0 %v6143
  %v6966 = vpop.f32.mrf.mxu0
  %v6967 = vadd.f32 0.0, %v6966
  %v6968 = vpop.f32.mrf.mxu0
  %v6969 = vadd.f32 0.0, %v6968
  %6970 = vmatmul.bf16.gmra.mxu0 %v6146
  %v6971 = vpop.f32.mrf.mxu0
  %v6972 = vadd.f32 0.0, %v6971
  %v6973 = vpop.f32.mrf.mxu0
  %v6974 = vadd.f32 0.0, %v6973
  %6975 = vmatmul.bf16.gmra.mxu0 %v6149
  %v6976 = vpop.f32.mrf.mxu0
  %v6977 = vadd.f32 0.0, %v6976
  %v6978 = vpop.f32.mrf.mxu0
  %v6979 = vadd.f32 0.0, %v6978
  %6980 = vmatmul.bf16.gmra.mxu0 %v6152
  %v6981 = vpop.f32.mrf.mxu0
  %v6982 = vadd.f32 0.0, %v6981
  %v6983 = vpop.f32.mrf.mxu0
  %v6984 = vadd.f32 0.0, %v6983
  %6985 = vmatmul.bf16.gmra.mxu0 %v6155
  %v6986 = vpop.f32.mrf.mxu0
  %v6987 = vadd.f32 0.0, %v6986
  %v6988 = vpop.f32.mrf.mxu0
  %v6989 = vadd.f32 0.0, %v6988
  %6990 = vmatmul.bf16.gmra.mxu0 %v6158
  %v6991 = vpop.f32.mrf.mxu0
  %v6992 = vadd.f32 0.0, %v6991
  %v6993 = vpop.f32.mrf.mxu0
  %v6994 = vadd.f32 0.0, %v6993
  %6995 = vmatmul.bf16.gmra.mxu0 %v6161
  %v6996 = vpop.f32.mrf.mxu0
  %v6997 = vadd.f32 0.0, %v6996
  %v6998 = vpop.f32.mrf.mxu0
  %v6999 = vadd.f32 0.0, %v6998
  %7000 = vmatmul.bf16.gmra.mxu0 %v6164
  %v7001 = vpop.f32.mrf.mxu0
  %v7002 = vadd.f32 0.0, %v7001
  %v7003 = vpop.f32.mrf.mxu0
  %v7004 = vadd.f32 0.0, %v7003
  %7005 = vmatmul.bf16.gmra.mxu0 %v6167
  %v7006 = vpop.f32.mrf.mxu0
  %v7007 = vadd.f32 0.0, %v7006
  %v7008 = vpop.f32.mrf.mxu0
  %v7009 = vadd.f32 0.0, %v7008
  %7010 = vmatmul.bf16.gmra.mxu0 %v6170
  %v7011 = vpop.f32.mrf.mxu0
  %v7012 = vadd.f32 0.0, %v7011
  %v7013 = vpop.f32.mrf.mxu0
  %v7014 = vadd.f32 0.0, %v7013
  %7015 = vmatmul.bf16.gmra.mxu0 %v6173
  %v7016 = vpop.f32.mrf.mxu0
  %v7017 = vadd.f32 0.0, %v7016
  %v7018 = vpop.f32.mrf.mxu0
  %v7019 = vadd.f32 0.0, %v7018
  %7020 = vmatmul.bf16.gmra.mxu0 %v6176
  %v7021 = vpop.f32.mrf.mxu0
  %v7022 = vadd.f32 0.0, %v7021
  %v7023 = vpop.f32.mrf.mxu0
  %v7024 = vadd.f32 0.0, %v7023
  %7025 = vmatmul.bf16.gmra.mxu0 %v6179
  %v7026 = vpop.f32.mrf.mxu0
  %v7027 = vadd.f32 0.0, %v7026
  %v7028 = vpop.f32.mrf.mxu0
  %v7029 = vadd.f32 0.0, %v7028
  %7030 = vmatmul.bf16.gmra.mxu0 %v6182
  %v7031 = vpop.f32.mrf.mxu0
  %v7032 = vadd.f32 0.0, %v7031
  %v7033 = vpop.f32.mrf.mxu0
  %v7034 = vadd.f32 0.0, %v7033
  %7035 = vmatmul.bf16.gmra.mxu0 %v6185
  %v7036 = vpop.f32.mrf.mxu0
  %v7037 = vadd.f32 0.0, %v7036
  %v7038 = vpop.f32.mrf.mxu0
  %v7039 = vadd.f32 0.0, %v7038
  %7040 = vmatmul.bf16.gmra.mxu0 %v6188
  %v7041 = vpop.f32.mrf.mxu0
  %v7042 = vadd.f32 0.0, %v7041
  %v7043 = vpop.f32.mrf.mxu0
  %v7044 = vadd.f32 0.0, %v7043
  %7045 = vmatmul.bf16.gmra.mxu0 %v6191
  %v7046 = vpop.f32.mrf.mxu0
  %v7047 = vadd.f32 0.0, %v7046
  %v7048 = vpop.f32.mrf.mxu0
  %v7049 = vadd.f32 0.0, %v7048
  %7050 = vmatmul.bf16.gmra.mxu0 %v6194
  %v7051 = vpop.f32.mrf.mxu0
  %v7052 = vadd.f32 0.0, %v7051
  %v7053 = vpop.f32.mrf.mxu0
  %v7054 = vadd.f32 0.0, %v7053
  %7055 = vmatmul.bf16.gmra.mxu0 %v6197
  %v7056 = vpop.f32.mrf.mxu0
  %v7057 = vadd.f32 0.0, %v7056
  %v7058 = vpop.f32.mrf.mxu0
  %v7059 = vadd.f32 0.0, %v7058
  %7060 = vmatmul.bf16.gmra.mxu0 %v6200
  %v7061 = vpop.f32.mrf.mxu0
  %v7062 = vadd.f32 0.0, %v7061
  %v7063 = vpop.f32.mrf.mxu0
  %v7064 = vadd.f32 0.0, %v7063
  %7065 = vmatmul.bf16.gmra.mxu0 %v6203
  %v7066 = vpop.f32.mrf.mxu0
  %v7067 = vadd.f32 0.0, %v7066
  %v7068 = vpop.f32.mrf.mxu0
  %v7069 = vadd.f32 0.0, %v7068
  %7070 = vmatmul.bf16.gmra.mxu0 %v6206
  %v7071 = vpop.f32.mrf.mxu0
  %v7072 = vadd.f32 0.0, %v7071
  %v7073 = vpop.f32.mrf.mxu0
  %v7074 = vadd.f32 0.0, %v7073
  %7075 = vmatmul.bf16.gmra.mxu0 %v6209
  %v7076 = vpop.f32.mrf.mxu0
  %v7077 = vadd.f32 0.0, %v7076
  %v7078 = vpop.f32.mrf.mxu0
  %v7079 = vadd.f32 0.0, %v7078
  %7080 = vmatmul.bf16.gmra.mxu0 %v6212
  %v7081 = vpop.f32.mrf.mxu0
  %v7082 = vadd.f32 0.0, %v7081
  %v7083 = vpop.f32.mrf.mxu0
  %v7084 = vadd.f32 0.0, %v7083
  %7085 = vmatmul.bf16.gmra.mxu0 %v6215
  %v7086 = vpop.f32.mrf.mxu0
  %v7087 = vadd.f32 0.0, %v7086
  %v7088 = vpop.f32.mrf.mxu0
  %v7089 = vadd.f32 0.0, %v7088
  %7090 = vmatmul.bf16.gmra.mxu0 %v6218
  %v7091 = vpop.f32.mrf.mxu0
  %v7092 = vadd.f32 0.0, %v7091
  %v7093 = vpop.f32.mrf.mxu0
  %v7094 = vadd.f32 0.0, %v7093
  %7095 = vmatmul.bf16.gmra.mxu0 %v6221
  %v7096 = vpop.f32.mrf.mxu0
  %v7097 = vadd.f32 0.0, %v7096
  %v7098 = vpop.f32.mrf.mxu0
  %v7099 = vadd.f32 0.0, %v7098
  %7100 = vmatmul.bf16.gmra.mxu0 %v6224
  %v7101 = vpop.f32.mrf.mxu0
  %v7102 = vadd.f32 0.0, %v7101
  %v7103 = vpop.f32.mrf.mxu0
  %v7104 = vadd.f32 0.0, %v7103
  %7105 = vmatmul.bf16.gmra.mxu0 %v6227
  %v7106 = vpop.f32.mrf.mxu0
  %v7107 = vadd.f32 0.0, %v7106
  %v7108 = vpop.f32.mrf.mxu0
  %v7109 = vadd.f32 0.0, %v7108
  %7110 = vmatmul.bf16.gmra.mxu0 %v6230
  %v7111 = vpop.f32.mrf.mxu0
  %v7112 = vadd.f32 0.0, %v7111
  %v7113 = vpop.f32.mrf.mxu0
  %v7114 = vadd.f32 0.0, %v7113
  %7115 = vmatmul.bf16.gmra.mxu0 %v6233
  %v7116 = vpop.f32.mrf.mxu0
  %v7117 = vadd.f32 0.0, %v7116
  %v7118 = vpop.f32.mrf.mxu0
  %v7119 = vadd.f32 0.0, %v7118
  %7120 = vmatmul.bf16.gmra.mxu0 %v6236
  %v7121 = vpop.f32.mrf.mxu0
  %v7122 = vadd.f32 0.0, %v7121
  %v7123 = vpop.f32.mrf.mxu0
  %v7124 = vadd.f32 0.0, %v7123
  %7125 = vmatmul.bf16.gmra.mxu0 %v6239
  %v7126 = vpop.f32.mrf.mxu0
  %v7127 = vadd.f32 0.0, %v7126
  %v7128 = vpop.f32.mrf.mxu0
  %v7129 = vadd.f32 0.0, %v7128
  %7130 = vmatmul.bf16.gmra.mxu0 %v6242
  %v7131 = vpop.f32.mrf.mxu0
  %v7132 = vadd.f32 0.0, %v7131
  %v7133 = vpop.f32.mrf.mxu0
  %v7134 = vadd.f32 0.0, %v7133
  %7135 = vmatmul.bf16.gmra.mxu0 %v6245
  %v7136 = vpop.f32.mrf.mxu0
  %v7137 = vadd.f32 0.0, %v7136
  %v7138 = vpop.f32.mrf.mxu0
  %v7139 = vadd.f32 0.0, %v7138
  %7140 = vmatmul.bf16.gmra.mxu0 %v6248
  %v7141 = vpop.f32.mrf.mxu0
  %v7142 = vadd.f32 0.0, %v7141
  %v7143 = vpop.f32.mrf.mxu0
  %v7144 = vadd.f32 0.0, %v7143
  %7145 = vmatmul.bf16.gmra.mxu0 %v6251
  %v7146 = vpop.f32.mrf.mxu0
  %v7147 = vadd.f32 0.0, %v7146
  %v7148 = vpop.f32.mrf.mxu0
  %v7149 = vadd.f32 0.0, %v7148
  %7150 = vmatmul.bf16.gmra.mxu0 %v6254
  %v7151 = vpop.f32.mrf.mxu0
  %v7152 = vadd.f32 0.0, %v7151
  %v7153 = vpop.f32.mrf.mxu0
  %v7154 = vadd.f32 0.0, %v7153
  %7155 = vmatmul.bf16.gmra.mxu0 %v6257
  %v7156 = vpop.f32.mrf.mxu0
  %v7157 = vadd.f32 0.0, %v7156
  %v7158 = vpop.f32.mrf.mxu0
  %v7159 = vadd.f32 0.0, %v7158
  %7160 = vmatmul.bf16.gmra.mxu0 %v6260
  %v7161 = vpop.f32.mrf.mxu0
  %v7162 = vadd.f32 0.0, %v7161
  %v7163 = vpop.f32.mrf.mxu0
  %v7164 = vadd.f32 0.0, %v7163
  %7165 = vmatmul.bf16.gmra.mxu0 %v6263
  %v7166 = vpop.f32.mrf.mxu0
  %v7167 = vadd.f32 0.0, %v7166
  %v7168 = vpop.f32.mrf.mxu0
  %v7169 = vadd.f32 0.0, %v7168
  %7170 = vmatmul.bf16.gmra.mxu0 %v6266
  %v7171 = vpop.f32.mrf.mxu0
  %v7172 = vadd.f32 0.0, %v7171
  %v7173 = vpop.f32.mrf.mxu0
  %v7174 = vadd.f32 0.0, %v7173
  %7175 = vmatmul.bf16.gmra.mxu0 %v6269
  %v7176 = vpop.f32.mrf.mxu0
  %v7177 = vadd.f32 0.0, %v7176
  %v7178 = vpop.f32.mrf.mxu0
  %v7179 = vadd.f32 0.0, %v7178
  %7180 = vmatmul.bf16.gmra.mxu0 %v6272
  %v7181 = vpop.f32.mrf.mxu0
  %v7182 = vadd.f32 0.0, %v7181
  %v7183 = vpop.f32.mrf.mxu0
  %v7184 = vadd.f32 0.0, %v7183
  %7185 = vmatmul.bf16.gmra.mxu0 %v6275
  %v7186 = vpop.f32.mrf.mxu0
  %v7187 = vadd.f32 0.0, %v7186
  %v7188 = vpop.f32.mrf.mxu0
  %v7189 = vadd.f32 0.0, %v7188
  %7190 = vmatmul.bf16.gmra.mxu0 %v6278
  %v7191 = vpop.f32.mrf.mxu0
  %v7192 = vadd.f32 0.0, %v7191
  %v7193 = vpop.f32.mrf.mxu0
  %v7194 = vadd.f32 0.0, %v7193
  %7195 = vmatmul.bf16.gmra.mxu0 %v6281
  %v7196 = vpop.f32.mrf.mxu0
  %v7197 = vadd.f32 0.0, %v7196
  %v7198 = vpop.f32.mrf.mxu0
  %v7199 = vadd.f32 0.0, %v7198
  %7200 = vmatmul.bf16.gmra.mxu0 %v6284
  %v7201 = vpop.f32.mrf.mxu0
  %v7202 = vadd.f32 0.0, %v7201
  %v7203 = vpop.f32.mrf.mxu0
  %v7204 = vadd.f32 0.0, %v7203
  %7205 = vmatmul.bf16.gmra.mxu0 %v6287
  %v7206 = vpop.f32.mrf.mxu0
  %v7207 = vadd.f32 0.0, %v7206
  %v7208 = vpop.f32.mrf.mxu0
  %v7209 = vadd.f32 0.0, %v7208
  %7210 = vmatmul.bf16.gmra.mxu0 %v6290
  %v7211 = vpop.f32.mrf.mxu0
  %v7212 = vadd.f32 0.0, %v7211
  %v7213 = vpop.f32.mrf.mxu0
  %v7214 = vadd.f32 0.0, %v7213
  %7215 = vmatmul.bf16.gmra.mxu0 %v6293
  %v7216 = vpop.f32.mrf.mxu0
  %v7217 = vadd.f32 0.0, %v7216
  %v7218 = vpop.f32.mrf.mxu0
  %v7219 = vadd.f32 0.0, %v7218
  %7220 = vmatmul.bf16.gmra.mxu0 %v6296
  %v7221 = vpop.f32.mrf.mxu0
  %v7222 = vadd.f32 0.0, %v7221
  %v7223 = vpop.f32.mrf.mxu0
  %v7224 = vadd.f32 0.0, %v7223
  %7225 = vmatmul.bf16.gmra.mxu0 %v6299
  %v7226 = vpop.f32.mrf.mxu0
  %v7227 = vadd.f32 0.0, %v7226
  %v7228 = vpop.f32.mrf.mxu0
  %v7229 = vadd.f32 0.0, %v7228
  %7230 = vmatmul.bf16.gmra.mxu0 %v6302
  %v7231 = vpop.f32.mrf.mxu0
  %v7232 = vadd.f32 0.0, %v7231
  %v7233 = vpop.f32.mrf.mxu0
  %v7234 = vadd.f32 0.0, %v7233
  %7235 = vmatmul.bf16.gmra.mxu0 %v6305
  %v7236 = vpop.f32.mrf.mxu0
  %v7237 = vadd.f32 0.0, %v7236
  %v7238 = vpop.f32.mrf.mxu0
  %v7239 = vadd.f32 0.0, %v7238
  %7240 = vmatmul.bf16.gmra.mxu0 %v6308
  %v7241 = vpop.f32.mrf.mxu0
  %v7242 = vadd.f32 0.0, %v7241
  %v7243 = vpop.f32.mrf.mxu0
  %v7244 = vadd.f32 0.0, %v7243
  %7245 = vmatmul.bf16.gmra.mxu0 %v6311
  %v7246 = vpop.f32.mrf.mxu0
  %v7247 = vadd.f32 0.0, %v7246
  %v7248 = vpop.f32.mrf.mxu0
  %v7249 = vadd.f32 0.0, %v7248
  %7250 = vmatmul.bf16.gmra.mxu0 %v6314
  %v7251 = vpop.f32.mrf.mxu0
  %v7252 = vadd.f32 0.0, %v7251
  %v7253 = vpop.f32.mrf.mxu0
  %v7254 = vadd.f32 0.0, %v7253
  %7255 = vmatmul.bf16.gmra.mxu0 %v6317
  %v7256 = vpop.f32.mrf.mxu0
  %v7257 = vadd.f32 0.0, %v7256
  %v7258 = vpop.f32.mrf.mxu0
  %v7259 = vadd.f32 0.0, %v7258
  %7260 = vmatmul.bf16.gmra.mxu0 %v6320
  %v7261 = vpop.f32.mrf.mxu0
  %v7262 = vadd.f32 0.0, %v7261
  %v7263 = vpop.f32.mrf.mxu0
  %v7264 = vadd.f32 0.0, %v7263
  %7265 = vmatmul.bf16.gmra.mxu0 %v6323
  %v7266 = vpop.f32.mrf.mxu0
  %v7267 = vadd.f32 0.0, %v7266
  %v7268 = vpop.f32.mrf.mxu0
  %v7269 = vadd.f32 0.0, %v7268
  %7270 = vmatmul.bf16.gmra.mxu0 %v6326
  %v7271 = vpop.f32.mrf.mxu0
  %v7272 = vadd.f32 0.0, %v7271
  %v7273 = vpop.f32.mrf.mxu0
  %v7274 = vadd.f32 0.0, %v7273
  %7275 = vmatmul.bf16.gmra.mxu0 %v6329
  %v7276 = vpop.f32.mrf.mxu0
  %v7277 = vadd.f32 0.0, %v7276
  %v7278 = vpop.f32.mrf.mxu0
  %v7279 = vadd.f32 0.0, %v7278
  %7280 = vmatmul.bf16.gmra.mxu0 %v6332
  %v7281 = vpop.f32.mrf.mxu0
  %v7282 = vadd.f32 0.0, %v7281
  %v7283 = vpop.f32.mrf.mxu0
  %v7284 = vadd.f32 0.0, %v7283
  %7285 = vmatmul.bf16.gmra.mxu0 %v6335
  %v7286 = vpop.f32.mrf.mxu0
  %v7287 = vadd.f32 0.0, %v7286
  %v7288 = vpop.f32.mrf.mxu0
  %v7289 = vadd.f32 0.0, %v7288
  %7290 = vmatmul.bf16.gmra.mxu0 %v6338
  %v7291 = vpop.f32.mrf.mxu0
  %v7292 = vadd.f32 0.0, %v7291
  %v7293 = vpop.f32.mrf.mxu0
  %v7294 = vadd.f32 0.0, %v7293
  %7295 = vmatmul.bf16.gmra.mxu0 %v6341
  %v7296 = vpop.f32.mrf.mxu0
  %v7297 = vadd.f32 0.0, %v7296
  %v7298 = vpop.f32.mrf.mxu0
  %v7299 = vadd.f32 0.0, %v7298
  %7300 = vmatmul.bf16.gmra.mxu0 %v6344
  %v7301 = vpop.f32.mrf.mxu0
  %v7302 = vadd.f32 0.0, %v7301
  %v7303 = vpop.f32.mrf.mxu0
  %v7304 = vadd.f32 0.0, %v7303
  %7305 = vmatmul.bf16.gmra.mxu0 %v6347
  %v7306 = vpop.f32.mrf.mxu0
  %v7307 = vadd.f32 0.0, %v7306
  %v7308 = vpop.f32.mrf.mxu0
  %v7309 = vadd.f32 0.0, %v7308
  %7310 = vmatmul.bf16.gmra.mxu0 %v6350
  %v7311 = vpop.f32.mrf.mxu0
  %v7312 = vadd.f32 0.0, %v7311
  %v7313 = vpop.f32.mrf.mxu0
  %v7314 = vadd.f32 0.0, %v7313
  %7315 = vmatmul.bf16.gmra.mxu0 %v6353
  %v7316 = vpop.f32.mrf.mxu0
  %v7317 = vadd.f32 0.0, %v7316
  %v7318 = vpop.f32.mrf.mxu0
  %v7319 = vadd.f32 0.0, %v7318
  %7320 = vmatmul.bf16.gmra.mxu0 %v6356
  %v7321 = vpop.f32.mrf.mxu0
  %v7322 = vadd.f32 0.0, %v7321
  %v7323 = vpop.f32.mrf.mxu0
  %v7324 = vadd.f32 0.0, %v7323
  %7325 = vmatmul.bf16.gmra.mxu0 %v6359
  %v7326 = vpop.f32.mrf.mxu0
  %v7327 = vadd.f32 0.0, %v7326
  %v7328 = vpop.f32.mrf.mxu0
  %v7329 = vadd.f32 0.0, %v7328
  %7330 = vmatmul.bf16.gmra.mxu0 %v6362
  %v7331 = vpop.f32.mrf.mxu0
  %v7332 = vadd.f32 0.0, %v7331
  %v7333 = vpop.f32.mrf.mxu0
  %v7334 = vadd.f32 0.0, %v7333
  %7335 = vmatmul.bf16.gmra.mxu0 %v6365
  %v7336 = vpop.f32.mrf.mxu0
  %v7337 = vadd.f32 0.0, %v7336
  %v7338 = vpop.f32.mrf.mxu0
  %v7339 = vadd.f32 0.0, %v7338
  %7340 = vmatmul.bf16.gmra.mxu0 %v6368
  %v7341 = vpop.f32.mrf.mxu0
  %v7342 = vadd.f32 0.0, %v7341
  %v7343 = vpop.f32.mrf.mxu0
  %v7344 = vadd.f32 0.0, %v7343
  %7345 = vmatmul.bf16.gmra.mxu0 %v6371
  %v7346 = vpop.f32.mrf.mxu0
  %v7347 = vadd.f32 0.0, %v7346
  %v7348 = vpop.f32.mrf.mxu0
  %v7349 = vadd.f32 0.0, %v7348
  %7350 = vmatmul.bf16.gmra.mxu0 %v6374
  %v7351 = vpop.f32.mrf.mxu0
  %v7352 = vadd.f32 0.0, %v7351
  %v7353 = vpop.f32.mrf.mxu0
  %v7354 = vadd.f32 0.0, %v7353
  %7355 = vmatmul.bf16.gmra.mxu0 %v6377
  %v7356 = vpop.f32.mrf.mxu0
  %v7357 = vadd.f32 0.0, %v7356
  %v7358 = vpop.f32.mrf.mxu0
  %v7359 = vadd.f32 0.0, %v7358
  %7360 = vmatmul.bf16.gmra.mxu0 %v6380
  %v7361 = vpop.f32.mrf.mxu0
  %v7362 = vadd.f32 0.0, %v7361
  %v7363 = vpop.f32.mrf.mxu0
  %v7364 = vadd.f32 0.0, %v7363
  %7365 = vdwg.mxu0
  %v7366 = vadd.f32 %v5015, %v6398
  %v7367 = vadd.f32 %v5016, %v6887
  %v7368 = vadd.f32 %v5017, %v6400
  %v7369 = vadd.f32 %v5018, %v6889
  %v7370 = vadd.f32 %v5019, %v6403
  %v7371 = vadd.f32 %v5020, %v6892
  %v7372 = vadd.f32 %v5021, %v6405
  %v7373 = vadd.f32 %v5022, %v6894
  %v7374 = vadd.f32 %v5023, %v6408
  %v7375 = vadd.f32 %v5024, %v6897
  %v7376 = vadd.f32 %v5025, %v6410
  %v7377 = vadd.f32 %v5026, %v6899
  %v7378 = vadd.f32 %v5027, %v6413
  %v7379 = vadd.f32 %v5028, %v6902
  %v7380 = vadd.f32 %v5029, %v6415
  %v7381 = vadd.f32 %v5030, %v6904
  %v7382 = vadd.f32 %v5031, %v6418
  %v7383 = vadd.f32 %v5032, %v6907
  %v7384 = vadd.f32 %v5033, %v6420
  %v7385 = vadd.f32 %v5034, %v6909
  %v7386 = vadd.f32 %v5035, %v6423
  %v7387 = vadd.f32 %v5036, %v6912
  %v7388 = vadd.f32 %v5037, %v6425
  %v7389 = vadd.f32 %v5038, %v6914
  %v7390 = vadd.f32 %v5039, %v6428
  %v7391 = vadd.f32 %v5040, %v6917
  %v7392 = vadd.f32 %v5041, %v6430
  %v7393 = vadd.f32 %v5042, %v6919
  %v7394 = vadd.f32 %v5043, %v6433
  %v7395 = vadd.f32 %v5044, %v6922
  %v7396 = vadd.f32 %v5045, %v6435
  %v7397 = vadd.f32 %v5046, %v6924
  %v7398 = vadd.f32 %v5047, %v6438
  %v7399 = vadd.f32 %v5048, %v6927
  %v7400 = vadd.f32 %v5049, %v6440
  %v7401 = vadd.f32 %v5050, %v6929
  %v7402 = vadd.f32 %v5051, %v6443
  %v7403 = vadd.f32 %v5052, %v6932
  %v7404 = vadd.f32 %v5053, %v6445
  %v7405 = vadd.f32 %v5054, %v6934
  %v7406 = vadd.f32 %v5055, %v6448
  %v7407 = vadd.f32 %v5056, %v6937
  %v7408 = vadd.f32 %v5057, %v6450
  %v7409 = vadd.f32 %v5058, %v6939
  %v7410 = vadd.f32 %v5059, %v6453
  %v7411 = vadd.f32 %v5060, %v6942
  %v7412 = vadd.f32 %v5061, %v6455
  %v7413 = vadd.f32 %v5062, %v6944
  %v7414 = vadd.f32 %v5063, %v6458
  %v7415 = vadd.f32 %v5064, %v6947
  %v7416 = vadd.f32 %v5065, %v6460
  %v7417 = vadd.f32 %v5066, %v6949
  %v7418 = vadd.f32 %v5067, %v6463
  %v7419 = vadd.f32 %v5068, %v6952
  %v7420 = vadd.f32 %v5069, %v6465
  %v7421 = vadd.f32 %v5070, %v6954
  %v7422 = vadd.f32 %v5071, %v6468
  %v7423 = vadd.f32 %v5072, %v6957
  %v7424 = vadd.f32 %v5073, %v6470
  %v7425 = vadd.f32 %v5074, %v6959
  %v7426 = vadd.f32 %v5075, %v6473
  %v7427 = vadd.f32 %v5076, %v6962
  %v7428 = vadd.f32 %v5077, %v6475
  %v7429 = vadd.f32 %v5078, %v6964
  %v7430 = vadd.f32 %v5079, %v6478
  %v7431 = vadd.f32 %v5080, %v6967
  %v7432 = vadd.f32 %v5081, %v6480
  %v7433 = vadd.f32 %v5082, %v6969
  %v7434 = vadd.f32 %v5083, %v6483
  %v7435 = vadd.f32 %v5084, %v6972
  %v7436 = vadd.f32 %v5085, %v6485
  %v7437 = vadd.f32 %v5086, %v6974
  %v7438 = vadd.f32 %v5087, %v6488
  %v7439 = vadd.f32 %v5088, %v6977
  %v7440 = vadd.f32 %v5089, %v6490
  %v7441 = vadd.f32 %v5090, %v6979
  %v7442 = vadd.f32 %v5091, %v6493
  %v7443 = vadd.f32 %v5092, %v6982
  %v7444 = vadd.f32 %v5093, %v6495
  %v7445 = vadd.f32 %v5094, %v6984
  %v7446 = vadd.f32 %v5095, %v6498
  %v7447 = vadd.f32 %v5096, %v6987
  %v7448 = vadd.f32 %v5097, %v6500
  %v7449 = vadd.f32 %v5098, %v6989
  %v7450 = vadd.f32 %v5099, %v6503
  %v7451 = vadd.f32 %v5100, %v6992
  %v7452 = vadd.f32 %v5101, %v6505
  %v7453 = vadd.f32 %v5102, %v6994
  %v7454 = vadd.f32 %v5103, %v6508
  %v7455 = vadd.f32 %v5104, %v6997
  %v7456 = vadd.f32 %v5105, %v6510
  %v7457 = vadd.f32 %v5106, %v6999
  %v7458 = vadd.f32 %v5107, %v6513
  %v7459 = vadd.f32 %v5108, %v7002
  %v7460 = vadd.f32 %v5109, %v6515
  %v7461 = vadd.f32 %v5110, %v7004
  %v7462 = vadd.f32 %v5111, %v6518
  %v7463 = vadd.f32 %v5112, %v7007
  %v7464 = vadd.f32 %v5113, %v6520
  %v7465 = vadd.f32 %v5114, %v7009
  %v7466 = vadd.f32 %v5115, %v6523
  %v7467 = vadd.f32 %v5116, %v7012
  %v7468 = vadd.f32 %v5117, %v6525
  %v7469 = vadd.f32 %v5118, %v7014
  %v7470 = vadd.f32 %v5119, %v6528
  %v7471 = vadd.f32 %v5120, %v7017
  %v7472 = vadd.f32 %v5121, %v6530
  %v7473 = vadd.f32 %v5122, %v7019
  %v7474 = vadd.f32 %v5123, %v6533
  %v7475 = vadd.f32 %v5124, %v7022
  %v7476 = vadd.f32 %v5125, %v6535
  %v7477 = vadd.f32 %v5126, %v7024
  %v7478 = vadd.f32 %v5127, %v6538
  %v7479 = vadd.f32 %v5128, %v7027
  %v7480 = vadd.f32 %v5129, %v6540
  %v7481 = vadd.f32 %v5130, %v7029
  %v7482 = vadd.f32 %v5131, %v6543
  %v7483 = vadd.f32 %v5132, %v7032
  %v7484 = vadd.f32 %v5133, %v6545
  %v7485 = vadd.f32 %v5134, %v7034
  %v7486 = vadd.f32 %v5135, %v6548
  %v7487 = vadd.f32 %v5136, %v7037
  %v7488 = vadd.f32 %v5137, %v6550
  %v7489 = vadd.f32 %v5138, %v7039
  %v7490 = vadd.f32 %v5139, %v6553
  %v7491 = vadd.f32 %v5140, %v7042
  %v7492 = vadd.f32 %v5141, %v6555
  %v7493 = vadd.f32 %v5142, %v7044
  %v7494 = vadd.f32 %v5143, %v6558
  %v7495 = vadd.f32 %v5144, %v7047
  %v7496 = vadd.f32 %v5145, %v6560
  %v7497 = vadd.f32 %v5146, %v7049
  %v7498 = vadd.f32 %v5147, %v6563
  %v7499 = vadd.f32 %v5148, %v7052
  %v7500 = vadd.f32 %v5149, %v6565
  %v7501 = vadd.f32 %v5150, %v7054
  %v7502 = vadd.f32 %v5151, %v6568
  %v7503 = vadd.f32 %v5152, %v7057
  %v7504 = vadd.f32 %v5153, %v6570
  %v7505 = vadd.f32 %v5154, %v7059
  %v7506 = vadd.f32 %v5155, %v6573
  %v7507 = vadd.f32 %v5156, %v7062
  %v7508 = vadd.f32 %v5157, %v6575
  %v7509 = vadd.f32 %v5158, %v7064
  %v7510 = vadd.f32 %v5159, %v6578
  %v7511 = vadd.f32 %v5160, %v7067
  %v7512 = vadd.f32 %v5161, %v6580
  %v7513 = vadd.f32 %v5162, %v7069
  %v7514 = vadd.f32 %v5163, %v6583
  %v7515 = vadd.f32 %v5164, %v7072
  %v7516 = vadd.f32 %v5165, %v6585
  %v7517 = vadd.f32 %v5166, %v7074
  %v7518 = vadd.f32 %v5167, %v6588
  %v7519 = vadd.f32 %v5168, %v7077
  %v7520 = vadd.f32 %v5169, %v6590
  %v7521 = vadd.f32 %v5170, %v7079
  %v7522 = vadd.f32 %v5171, %v6593
  %v7523 = vadd.f32 %v5172, %v7082
  %v7524 = vadd.f32 %v5173, %v6595
  %v7525 = vadd.f32 %v5174, %v7084
  %v7526 = vadd.f32 %v5175, %v6598
  %v7527 = vadd.f32 %v5176, %v7087
  %v7528 = vadd.f32 %v5177, %v6600
  %v7529 = vadd.f32 %v5178, %v7089
  %v7530 = vadd.f32 %v5179, %v6603
  %v7531 = vadd.f32 %v5180, %v7092
  %v7532 = vadd.f32 %v5181, %v6605
  %v7533 = vadd.f32 %v5182, %v7094
  %v7534 = vadd.f32 %v5183, %v6608
  %v7535 = vadd.f32 %v5184, %v7097
  %v7536 = vadd.f32 %v5185, %v6610
  %v7537 = vadd.f32 %v5186, %v7099
  %v7538 = vadd.f32 %v5187, %v6613
  %v7539 = vadd.f32 %v5188, %v7102
  %v7540 = vadd.f32 %v5189, %v6615
  %v7541 = vadd.f32 %v5190, %v7104
  %v7542 = vadd.f32 %v5191, %v6618
  %v7543 = vadd.f32 %v5192, %v7107
  %v7544 = vadd.f32 %v5193, %v6620
  %v7545 = vadd.f32 %v5194, %v7109
  %v7546 = vadd.f32 %v5195, %v6623
  %v7547 = vadd.f32 %v5196, %v7112
  %v7548 = vadd.f32 %v5197, %v6625
  %v7549 = vadd.f32 %v5198, %v7114
  %v7550 = vadd.f32 %v5199, %v6628
  %v7551 = vadd.f32 %v5200, %v7117
  %v7552 = vadd.f32 %v5201, %v6630
  %v7553 = vadd.f32 %v5202, %v7119
  %v7554 = vadd.f32 %v5203, %v6633
  %v7555 = vadd.f32 %v5204, %v7122
  %v7556 = vadd.f32 %v5205, %v6635
  %v7557 = vadd.f32 %v5206, %v7124
  %v7558 = vadd.f32 %v5207, %v6638
  %v7559 = vadd.f32 %v5208, %v7127
  %v7560 = vadd.f32 %v5209, %v6640
  %v7561 = vadd.f32 %v5210, %v7129
  %v7562 = vadd.f32 %v5211, %v6643
  %v7563 = vadd.f32 %v5212, %v7132
  %v7564 = vadd.f32 %v5213, %v6645
  %v7565 = vadd.f32 %v5214, %v7134
  %v7566 = vadd.f32 %v5215, %v6648
  %v7567 = vadd.f32 %v5216, %v7137
  %v7568 = vadd.f32 %v5217, %v6650
  %v7569 = vadd.f32 %v5218, %v7139
  %v7570 = vadd.f32 %v5219, %v6653
  %v7571 = vadd.f32 %v5220, %v7142
  %v7572 = vadd.f32 %v5221, %v6655
  %v7573 = vadd.f32 %v5222, %v7144
  %v7574 = vadd.f32 %v5223, %v6658
  %v7575 = vadd.f32 %v5224, %v7147
  %v7576 = vadd.f32 %v5225, %v6660
  %v7577 = vadd.f32 %v5226, %v7149
  %v7578 = vadd.f32 %v5227, %v6663
  %v7579 = vadd.f32 %v5228, %v7152
  %v7580 = vadd.f32 %v5229, %v6665
  %v7581 = vadd.f32 %v5230, %v7154
  %v7582 = vadd.f32 %v5231, %v6668
  %v7583 = vadd.f32 %v5232, %v7157
  %v7584 = vadd.f32 %v5233, %v6670
  %v7585 = vadd.f32 %v5234, %v7159
  %v7586 = vadd.f32 %v5235, %v6673
  %v7587 = vadd.f32 %v5236, %v7162
  %v7588 = vadd.f32 %v5237, %v6675
  %v7589 = vadd.f32 %v5238, %v7164
  %v7590 = vadd.f32 %v5239, %v6678
  %v7591 = vadd.f32 %v5240, %v7167
  %v7592 = vadd.f32 %v5241, %v6680
  %v7593 = vadd.f32 %v5242, %v7169
  %v7594 = vadd.f32 %v5243, %v6683
  %v7595 = vadd.f32 %v5244, %v7172
  %v7596 = vadd.f32 %v5245, %v6685
  %v7597 = vadd.f32 %v5246, %v7174
  %v7598 = vadd.f32 %v5247, %v6688
  %v7599 = vadd.f32 %v5248, %v7177
  %v7600 = vadd.f32 %v5249, %v6690
  %v7601 = vadd.f32 %v5250, %v7179
  %v7602 = vadd.f32 %v5251, %v6693
  %v7603 = vadd.f32 %v5252, %v7182
  %v7604 = vadd.f32 %v5253, %v6695
  %v7605 = vadd.f32 %v5254, %v7184
  %v7606 = vadd.f32 %v5255, %v6698
  %v7607 = vadd.f32 %v5256, %v7187
  %v7608 = vadd.f32 %v5257, %v6700
  %v7609 = vadd.f32 %v5258, %v7189
  %v7610 = vadd.f32 %v5259, %v6703
  %v7611 = vadd.f32 %v5260, %v7192
  %v7612 = vadd.f32 %v5261, %v6705
  %v7613 = vadd.f32 %v5262, %v7194
  %v7614 = vadd.f32 %v5263, %v6708
  %v7615 = vadd.f32 %v5264, %v7197
  %v7616 = vadd.f32 %v5265, %v6710
  %v7617 = vadd.f32 %v5266, %v7199
  %v7618 = vadd.f32 %v5267, %v6713
  %v7619 = vadd.f32 %v5268, %v7202
  %v7620 = vadd.f32 %v5269, %v6715
  %v7621 = vadd.f32 %v5270, %v7204
  %v7622 = vadd.f32 %v5271, %v6718
  %v7623 = vadd.f32 %v5272, %v7207
  %v7624 = vadd.f32 %v5273, %v6720
  %v7625 = vadd.f32 %v5274, %v7209
  %v7626 = vadd.f32 %v5275, %v6723
  %v7627 = vadd.f32 %v5276, %v7212
  %v7628 = vadd.f32 %v5277, %v6725
  %v7629 = vadd.f32 %v5278, %v7214
  %v7630 = vadd.f32 %v5279, %v6728
  %v7631 = vadd.f32 %v5280, %v7217
  %v7632 = vadd.f32 %v5281, %v6730
  %v7633 = vadd.f32 %v5282, %v7219
  %v7634 = vadd.f32 %v5283, %v6733
  %v7635 = vadd.f32 %v5284, %v7222
  %v7636 = vadd.f32 %v5285, %v6735
  %v7637 = vadd.f32 %v5286, %v7224
  %v7638 = vadd.f32 %v5287, %v6738
  %v7639 = vadd.f32 %v5288, %v7227
  %v7640 = vadd.f32 %v5289, %v6740
  %v7641 = vadd.f32 %v5290, %v7229
  %v7642 = vadd.f32 %v5291, %v6743
  %v7643 = vadd.f32 %v5292, %v7232
  %v7644 = vadd.f32 %v5293, %v6745
  %v7645 = vadd.f32 %v5294, %v7234
  %v7646 = vadd.f32 %v5295, %v6748
  %v7647 = vadd.f32 %v5296, %v7237
  %v7648 = vadd.f32 %v5297, %v6750
  %v7649 = vadd.f32 %v5298, %v7239
  %v7650 = vadd.f32 %v5299, %v6753
  %v7651 = vadd.f32 %v5300, %v7242
  %v7652 = vadd.f32 %v5301, %v6755
  %v7653 = vadd.f32 %v5302, %v7244
  %v7654 = vadd.f32 %v5303, %v6758
  %v7655 = vadd.f32 %v5304, %v7247
  %v7656 = vadd.f32 %v5305, %v6760
  %v7657 = vadd.f32 %v5306, %v7249
  %v7658 = vadd.f32 %v5307, %v6763
  %v7659 = vadd.f32 %v5308, %v7252
  %v7660 = vadd.f32 %v5309, %v6765
  %v7661 = vadd.f32 %v5310, %v7254
  %v7662 = vadd.f32 %v5311, %v6768
  %v7663 = vadd.f32 %v5312, %v7257
  %v7664 = vadd.f32 %v5313, %v6770
  %v7665 = vadd.f32 %v5314, %v7259
  %v7666 = vadd.f32 %v5315, %v6773
  %v7667 = vadd.f32 %v5316, %v7262
  %v7668 = vadd.f32 %v5317, %v6775
  %v7669 = vadd.f32 %v5318, %v7264
  %v7670 = vadd.f32 %v5319, %v6778
  %v7671 = vadd.f32 %v5320, %v7267
  %v7672 = vadd.f32 %v5321, %v6780
  %v7673 = vadd.f32 %v5322, %v7269
  %v7674 = vadd.f32 %v5323, %v6783
  %v7675 = vadd.f32 %v5324, %v7272
  %v7676 = vadd.f32 %v5325, %v6785
  %v7677 = vadd.f32 %v5326, %v7274
  %v7678 = vadd.f32 %v5327, %v6788
  %v7679 = vadd.f32 %v5328, %v7277
  %v7680 = vadd.f32 %v5329, %v6790
  %v7681 = vadd.f32 %v5330, %v7279
  %v7682 = vadd.f32 %v5331, %v6793
  %v7683 = vadd.f32 %v5332, %v7282
  %v7684 = vadd.f32 %v5333, %v6795
  %v7685 = vadd.f32 %v5334, %v7284
  %v7686 = vadd.f32 %v5335, %v6798
  %v7687 = vadd.f32 %v5336, %v7287
  %v7688 = vadd.f32 %v5337, %v6800
  %v7689 = vadd.f32 %v5338, %v7289
  %v7690 = vadd.f32 %v5339, %v6803
  %v7691 = vadd.f32 %v5340, %v7292
  %v7692 = vadd.f32 %v5341, %v6805
  %v7693 = vadd.f32 %v5342, %v7294
  %v7694 = vadd.f32 %v5343, %v6808
  %v7695 = vadd.f32 %v5344, %v7297
  %v7696 = vadd.f32 %v5345, %v6810
  %v7697 = vadd.f32 %v5346, %v7299
  %v7698 = vadd.f32 %v5347, %v6813
  %v7699 = vadd.f32 %v5348, %v7302
  %v7700 = vadd.f32 %v5349, %v6815
  %v7701 = vadd.f32 %v5350, %v7304
  %v7702 = vadd.f32 %v5351, %v6818
  %v7703 = vadd.f32 %v5352, %v7307
  %v7704 = vadd.f32 %v5353, %v6820
  %v7705 = vadd.f32 %v5354, %v7309
  %v7706 = vadd.f32 %v5355, %v6823
  %v7707 = vadd.f32 %v5356, %v7312
  %v7708 = vadd.f32 %v5357, %v6825
  %v7709 = vadd.f32 %v5358, %v7314
  %v7710 = vadd.f32 %v5359, %v6828
  %v7711 = vadd.f32 %v5360, %v7317
  %v7712 = vadd.f32 %v5361, %v6830
  %v7713 = vadd.f32 %v5362, %v7319
  %v7714 = vadd.f32 %v5363, %v6833
  %v7715 = vadd.f32 %v5364, %v7322
  %v7716 = vadd.f32 %v5365, %v6835
  %v7717 = vadd.f32 %v5366, %v7324
  %v7718 = vadd.f32 %v5367, %v6838
  %v7719 = vadd.f32 %v5368, %v7327
  %v7720 = vadd.f32 %v5369, %v6840
  %v7721 = vadd.f32 %v5370, %v7329
  %v7722 = vadd.f32 %v5371, %v6843
  %v7723 = vadd.f32 %v5372, %v7332
  %v7724 = vadd.f32 %v5373, %v6845
  %v7725 = vadd.f32 %v5374, %v7334
  %v7726 = vadd.f32 %v5375, %v6848
  %v7727 = vadd.f32 %v5376, %v7337
  %v7728 = vadd.f32 %v5377, %v6850
  %v7729 = vadd.f32 %v5378, %v7339
  %v7730 = vadd.f32 %v5379, %v6853
  %v7731 = vadd.f32 %v5380, %v7342
  %v7732 = vadd.f32 %v5381, %v6855
  %v7733 = vadd.f32 %v5382, %v7344
  %v7734 = vadd.f32 %v5383, %v6858
  %v7735 = vadd.f32 %v5384, %v7347
  %v7736 = vadd.f32 %v5385, %v6860
  %v7737 = vadd.f32 %v5386, %v7349
  %v7738 = vadd.f32 %v5387, %v6863
  %v7739 = vadd.f32 %v5388, %v7352
  %v7740 = vadd.f32 %v5389, %v6865
  %v7741 = vadd.f32 %v5390, %v7354
  %v7742 = vadd.f32 %v5391, %v6868
  %v7743 = vadd.f32 %v5392, %v7357
  %v7744 = vadd.f32 %v5393, %v6870
  %v7745 = vadd.f32 %v5394, %v7359
  %v7746 = vadd.f32 %v5395, %v6873
  %v7747 = vadd.f32 %v5396, %v7362
  %v7748 = vadd.f32 %v5397, %v6875
  %v7749 = vadd.f32 %v5398, %v7364
  %v7750 = vld [vmem:[%s0 + $0x80] sm:$0xf]
  %v7751 = vld [vmem:[%s0 + $0x84] sm:$0xf]
  %v7752 = vld [vmem:[%s0 + $0x88] sm:$0xf]
  %v7753 = vld [vmem:[%s0 + $0x8c] sm:$0xf]
  %v7754 = vld [vmem:[%s0 + $0x90] sm:$0xf]
  %v7755 = vld [vmem:[%s0 + $0x94] sm:$0xf]
  %v7756 = vld [vmem:[%s0 + $0x98] sm:$0xf]
  %v7757 = vld [vmem:[%s0 + $0x9c] sm:$0xf]
  %v7758 = vld [vmem:[%s0 + $0xa0] sm:$0xf]
  %v7759 = vld [vmem:[%s0 + $0xa4] sm:$0xf]
  %v7760 = vld [vmem:[%s0 + $0xa8] sm:$0xf]
  %v7761 = vld [vmem:[%s0 + $0xac] sm:$0xf]
  %v7762 = vld [vmem:[%s0 + $0xb0] sm:$0xf]
  %v7763 = vld [vmem:[%s0 + $0xb4] sm:$0xf]
  %v7764 = vld [vmem:[%s0 + $0xb8] sm:$0xf]
  %v7765 = vld [vmem:[%s0 + $0xbc] sm:$0xf]
  %v7766 = vld [vmem:[%s0 + $0xc0] sm:$0xf]
  %v7767 = vld [vmem:[%s0 + $0xc4] sm:$0xf]
  %v7768 = vld [vmem:[%s0 + $0xc8] sm:$0xf]
  %v7769 = vld [vmem:[%s0 + $0xcc] sm:$0xf]
  %v7770 = vld [vmem:[%s0 + $0xd0] sm:$0xf]
  %v7771 = vld [vmem:[%s0 + $0xd4] sm:$0xf]
  %v7772 = vld [vmem:[%s0 + $0xd8] sm:$0xf]
  %v7773 = vld [vmem:[%s0 + $0xdc] sm:$0xf]
  %v7774 = vld [vmem:[%s0 + $0xe0] sm:$0xf]
  %v7775 = vld [vmem:[%s0 + $0xe4] sm:$0xf]
  %v7776 = vld [vmem:[%s0 + $0xe8] sm:$0xf]
  %v7777 = vld [vmem:[%s0 + $0xec] sm:$0xf]
  %v7778 = vld [vmem:[%s0 + $0xf0] sm:$0xf]
  %v7779 = vld [vmem:[%s0 + $0xf4] sm:$0xf]
  %v7780 = vld [vmem:[%s0 + $0xf8] sm:$0xf]
  %v7781 = vld [vmem:[%s0 + $0xfc] sm:$0xf]
  %v7782 = vld [vmem:[%s0 + $0x100] sm:$0xf]
  %v7783 = vld [vmem:[%s0 + $0x104] sm:$0xf]
  %v7784 = vld [vmem:[%s0 + $0x108] sm:$0xf]
  %v7785 = vld [vmem:[%s0 + $0x10c] sm:$0xf]
  %v7786 = vld [vmem:[%s0 + $0x110] sm:$0xf]
  %v7787 = vld [vmem:[%s0 + $0x114] sm:$0xf]
  %v7788 = vld [vmem:[%s0 + $0x118] sm:$0xf]
  %v7789 = vld [vmem:[%s0 + $0x11c] sm:$0xf]
  %v7790 = vld [vmem:[%s0 + $0x120] sm:$0xf]
  %v7791 = vld [vmem:[%s0 + $0x124] sm:$0xf]
  %v7792 = vld [vmem:[%s0 + $0x128] sm:$0xf]
  %v7793 = vld [vmem:[%s0 + $0x12c] sm:$0xf]
  %v7794 = vld [vmem:[%s0 + $0x130] sm:$0xf]
  %v7795 = vld [vmem:[%s0 + $0x134] sm:$0xf]
  %v7796 = vld [vmem:[%s0 + $0x138] sm:$0xf]
  %v7797 = vld [vmem:[%s0 + $0x13c] sm:$0xf]
  %v7798 = vld [vmem:[%s0 + $0x140] sm:$0xf]
  %v7799 = vld [vmem:[%s0 + $0x144] sm:$0xf]
  %v7800 = vld [vmem:[%s0 + $0x148] sm:$0xf]
  %v7801 = vld [vmem:[%s0 + $0x14c] sm:$0xf]
  %v7802 = vld [vmem:[%s0 + $0x150] sm:$0xf]
  %v7803 = vld [vmem:[%s0 + $0x154] sm:$0xf]
  %v7804 = vld [vmem:[%s0 + $0x158] sm:$0xf]
  %v7805 = vld [vmem:[%s0 + $0x15c] sm:$0xf]
  %v7806 = vld [vmem:[%s0 + $0x160] sm:$0xf]
  %v7807 = vld [vmem:[%s0 + $0x164] sm:$0xf]
  %v7808 = vld [vmem:[%s0 + $0x168] sm:$0xf]
  %v7809 = vld [vmem:[%s0 + $0x16c] sm:$0xf]
  %v7810 = vld [vmem:[%s0 + $0x170] sm:$0xf]
  %v7811 = vld [vmem:[%s0 + $0x174] sm:$0xf]
  %v7812 = vld [vmem:[%s0 + $0x178] sm:$0xf]
  %v7813 = vld [vmem:[%s0 + $0x17c] sm:$0xf]
  %v7814 = vld [vmem:[%s0 + $0x180] sm:$0xf]
  %v7815 = vld [vmem:[%s0 + $0x184] sm:$0xf]
  %v7816 = vld [vmem:[%s0 + $0x188] sm:$0xf]
  %v7817 = vld [vmem:[%s0 + $0x18c] sm:$0xf]
  %v7818 = vld [vmem:[%s0 + $0x190] sm:$0xf]
  %v7819 = vld [vmem:[%s0 + $0x194] sm:$0xf]
  %v7820 = vld [vmem:[%s0 + $0x198] sm:$0xf]
  %v7821 = vld [vmem:[%s0 + $0x19c] sm:$0xf]
  %v7822 = vld [vmem:[%s0 + $0x1a0] sm:$0xf]
  %v7823 = vld [vmem:[%s0 + $0x1a4] sm:$0xf]
  %v7824 = vld [vmem:[%s0 + $0x1a8] sm:$0xf]
  %v7825 = vld [vmem:[%s0 + $0x1ac] sm:$0xf]
  %v7826 = vld [vmem:[%s0 + $0x1b0] sm:$0xf]
  %v7827 = vld [vmem:[%s0 + $0x1b4] sm:$0xf]
  %v7828 = vld [vmem:[%s0 + $0x1b8] sm:$0xf]
  %v7829 = vld [vmem:[%s0 + $0x1bc] sm:$0xf]
  %v7830 = vld [vmem:[%s0 + $0x1c0] sm:$0xf]
  %v7831 = vld [vmem:[%s0 + $0x1c4] sm:$0xf]
  %v7832 = vld [vmem:[%s0 + $0x1c8] sm:$0xf]
  %v7833 = vld [vmem:[%s0 + $0x1cc] sm:$0xf]
  %v7834 = vld [vmem:[%s0 + $0x1d0] sm:$0xf]
  %v7835 = vld [vmem:[%s0 + $0x1d4] sm:$0xf]
  %v7836 = vld [vmem:[%s0 + $0x1d8] sm:$0xf]
  %v7837 = vld [vmem:[%s0 + $0x1dc] sm:$0xf]
  %v7838 = vld [vmem:[%s0 + $0x1e0] sm:$0xf]
  %v7839 = vld [vmem:[%s0 + $0x1e4] sm:$0xf]
  %v7840 = vld [vmem:[%s0 + $0x1e8] sm:$0xf]
  %v7841 = vld [vmem:[%s0 + $0x1ec] sm:$0xf]
  %v7842 = vld [vmem:[%s0 + $0x1f0] sm:$0xf]
  %v7843 = vld [vmem:[%s0 + $0x1f4] sm:$0xf]
  %v7844 = vld [vmem:[%s0 + $0x1f8] sm:$0xf]
  %v7845 = vld [vmem:[%s0 + $0x1fc] sm:$0xf]
  %v7846 = vld [vmem:[%s0 + $0x200] sm:$0xf]
  %v7847 = vld [vmem:[%s0 + $0x204] sm:$0xf]
  %v7848 = vld [vmem:[%s0 + $0x208] sm:$0xf]
  %v7849 = vld [vmem:[%s0 + $0x20c] sm:$0xf]
  %v7850 = vld [vmem:[%s0 + $0x210] sm:$0xf]
  %v7851 = vld [vmem:[%s0 + $0x214] sm:$0xf]
  %v7852 = vld [vmem:[%s0 + $0x218] sm:$0xf]
  %v7853 = vld [vmem:[%s0 + $0x21c] sm:$0xf]
  %v7854 = vld [vmem:[%s0 + $0x220] sm:$0xf]
  %v7855 = vld [vmem:[%s0 + $0x224] sm:$0xf]
  %v7856 = vld [vmem:[%s0 + $0x228] sm:$0xf]
  %v7857 = vld [vmem:[%s0 + $0x22c] sm:$0xf]
  %v7858 = vld [vmem:[%s0 + $0x230] sm:$0xf]
  %v7859 = vld [vmem:[%s0 + $0x234] sm:$0xf]
  %v7860 = vld [vmem:[%s0 + $0x238] sm:$0xf]
  %v7861 = vld [vmem:[%s0 + $0x23c] sm:$0xf]
  %v7862 = vld [vmem:[%s0 + $0x240] sm:$0xf]
  %v7863 = vld [vmem:[%s0 + $0x244] sm:$0xf]
  %v7864 = vld [vmem:[%s0 + $0x248] sm:$0xf]
  %v7865 = vld [vmem:[%s0 + $0x24c] sm:$0xf]
  %v7866 = vld [vmem:[%s0 + $0x250] sm:$0xf]
  %v7867 = vld [vmem:[%s0 + $0x254] sm:$0xf]
  %v7868 = vld [vmem:[%s0 + $0x258] sm:$0xf]
  %v7869 = vld [vmem:[%s0 + $0x25c] sm:$0xf]
  %v7870 = vld [vmem:[%s0 + $0x260] sm:$0xf]
  %v7871 = vld [vmem:[%s0 + $0x264] sm:$0xf]
  %v7872 = vld [vmem:[%s0 + $0x268] sm:$0xf]
  %v7873 = vld [vmem:[%s0 + $0x26c] sm:$0xf]
  %v7874 = vld [vmem:[%s0 + $0x270] sm:$0xf]
  %v7875 = vld [vmem:[%s0 + $0x274] sm:$0xf]
  %v7876 = vld [vmem:[%s0 + $0x278] sm:$0xf]
  %v7877 = vld [vmem:[%s0 + $0x27c] sm:$0xf]
  %v7878 = vld [vmem:[%s0 + $0x280] sm:$0xf]
  %v7879 = vld [vmem:[%s0 + $0x284] sm:$0xf]
  %v7880 = vld [vmem:[%s0 + $0x288] sm:$0xf]
  %v7881 = vld [vmem:[%s0 + $0x28c] sm:$0xf]
  %v7882 = vld [vmem:[%s0 + $0x290] sm:$0xf]
  %v7883 = vld [vmem:[%s0 + $0x294] sm:$0xf]
  %v7884 = vld [vmem:[%s0 + $0x298] sm:$0xf]
  %v7885 = vld [vmem:[%s0 + $0x29c] sm:$0xf]
  %v7886 = vld [vmem:[%s0 + $0x2a0] sm:$0xf]
  %v7887 = vld [vmem:[%s0 + $0x2a4] sm:$0xf]
  %v7888 = vld [vmem:[%s0 + $0x2a8] sm:$0xf]
  %v7889 = vld [vmem:[%s0 + $0x2ac] sm:$0xf]
  %v7890 = vld [vmem:[%s0 + $0x2b0] sm:$0xf]
  %v7891 = vld [vmem:[%s0 + $0x2b4] sm:$0xf]
  %v7892 = vld [vmem:[%s0 + $0x2b8] sm:$0xf]
  %v7893 = vld [vmem:[%s0 + $0x2bc] sm:$0xf]
  %v7894 = vld [vmem:[%s0 + $0x2c0] sm:$0xf]
  %v7895 = vld [vmem:[%s0 + $0x2c4] sm:$0xf]
  %v7896 = vld [vmem:[%s0 + $0x2c8] sm:$0xf]
  %v7897 = vld [vmem:[%s0 + $0x2cc] sm:$0xf]
  %v7898 = vld [vmem:[%s0 + $0x2d0] sm:$0xf]
  %v7899 = vld [vmem:[%s0 + $0x2d4] sm:$0xf]
  %v7900 = vld [vmem:[%s0 + $0x2d8] sm:$0xf]
  %v7901 = vld [vmem:[%s0 + $0x2dc] sm:$0xf]
  %v7902 = vld [vmem:[%s0 + $0x2e0] sm:$0xf]
  %v7903 = vld [vmem:[%s0 + $0x2e4] sm:$0xf]
  %v7904 = vld [vmem:[%s0 + $0x2e8] sm:$0xf]
  %v7905 = vld [vmem:[%s0 + $0x2ec] sm:$0xf]
  %v7906 = vld [vmem:[%s0 + $0x2f0] sm:$0xf]
  %v7907 = vld [vmem:[%s0 + $0x2f4] sm:$0xf]
  %v7908 = vld [vmem:[%s0 + $0x2f8] sm:$0xf]
  %v7909 = vld [vmem:[%s0 + $0x2fc] sm:$0xf]
  %v7910 = vld [vmem:[%s0 + $0x300] sm:$0xf]
  %v7911 = vld [vmem:[%s0 + $0x304] sm:$0xf]
  %v7912 = vld [vmem:[%s0 + $0x308] sm:$0xf]
  %v7913 = vld [vmem:[%s0 + $0x30c] sm:$0xf]
  %v7914 = vld [vmem:[%s0 + $0x310] sm:$0xf]
  %v7915 = vld [vmem:[%s0 + $0x314] sm:$0xf]
  %v7916 = vld [vmem:[%s0 + $0x318] sm:$0xf]
  %v7917 = vld [vmem:[%s0 + $0x31c] sm:$0xf]
  %v7918 = vld [vmem:[%s0 + $0x320] sm:$0xf]
  %v7919 = vld [vmem:[%s0 + $0x324] sm:$0xf]
  %v7920 = vld [vmem:[%s0 + $0x328] sm:$0xf]
  %v7921 = vld [vmem:[%s0 + $0x32c] sm:$0xf]
  %v7922 = vld [vmem:[%s0 + $0x330] sm:$0xf]
  %v7923 = vld [vmem:[%s0 + $0x334] sm:$0xf]
  %v7924 = vld [vmem:[%s0 + $0x338] sm:$0xf]
  %v7925 = vld [vmem:[%s0 + $0x33c] sm:$0xf]
  %v7926 = vld [vmem:[%s0 + $0x340] sm:$0xf]
  %v7927 = vld [vmem:[%s0 + $0x344] sm:$0xf]
  %v7928 = vld [vmem:[%s0 + $0x348] sm:$0xf]
  %v7929 = vld [vmem:[%s0 + $0x34c] sm:$0xf]
  %v7930 = vld [vmem:[%s0 + $0x350] sm:$0xf]
  %v7931 = vld [vmem:[%s0 + $0x354] sm:$0xf]
  %v7932 = vld [vmem:[%s0 + $0x358] sm:$0xf]
  %v7933 = vld [vmem:[%s0 + $0x35c] sm:$0xf]
  %v7934 = vld [vmem:[%s0 + $0x360] sm:$0xf]
  %v7935 = vld [vmem:[%s0 + $0x364] sm:$0xf]
  %v7936 = vld [vmem:[%s0 + $0x368] sm:$0xf]
  %v7937 = vld [vmem:[%s0 + $0x36c] sm:$0xf]
  %v7938 = vld [vmem:[%s0 + $0x370] sm:$0xf]
  %v7939 = vld [vmem:[%s0 + $0x374] sm:$0xf]
  %v7940 = vld [vmem:[%s0 + $0x378] sm:$0xf]
  %v7941 = vld [vmem:[%s0 + $0x37c] sm:$0xf]
  %s7942 = scalar_lea.vmem %s1, 128
  %v7943 = vld [vmem:[%s7942] sm:$0xff]
  %v7944 = vld [vmem:[%s7942 + $0x8] sm:$0xff]
  %v7945 = vld [vmem:[%s7942 + $0x10] sm:$0xff]
  %v7946 = vld [vmem:[%s7942 + $0x18] sm:$0x33]
  %v8139 = vunpack.c.l.b16 %v7750
  %v8140 = vunpack.c.l.b16 %v7751
  %v8141 = vunpack.c.l.b16 %v7752
  %v8142 = vunpack.c.l.b16 %v7753
  %v8143 = vunpack.c.l.b16 %v7754
  %v8144 = vunpack.c.l.b16 %v7755
  %v8145 = vunpack.c.l.b16 %v7756
  %v8146 = vunpack.c.l.b16 %v7757
  %v8147 = vunpack.c.l.b16 %v7758
  %v8148 = vunpack.c.l.b16 %v7759
  %v8149 = vunpack.c.l.b16 %v7760
  %v8150 = vunpack.c.l.b16 %v7761
  %v8151 = vunpack.c.l.b16 %v7762
  %v8152 = vunpack.c.l.b16 %v7763
  %v8153 = vunpack.c.l.b16 %v7764
  %v8154 = vunpack.c.l.b16 %v7765
  %v8155 = vunpack.c.l.b16 %v7766
  %v8156 = vunpack.c.l.b16 %v7767
  %v8157 = vunpack.c.l.b16 %v7768
  %v8158 = vunpack.c.l.b16 %v7769
  %v8159 = vunpack.c.l.b16 %v7770
  %v8160 = vunpack.c.l.b16 %v7771
  %v8161 = vunpack.c.l.b16 %v7772
  %v8162 = vunpack.c.l.b16 %v7773
  %v8163 = vunpack.c.l.b16 %v7774
  %v8164 = vunpack.c.l.b16 %v7775
  %v8165 = vunpack.c.l.b16 %v7776
  %v8166 = vunpack.c.l.b16 %v7777
  %v8167 = vunpack.c.l.b16 %v7778
  %v8168 = vunpack.c.l.b16 %v7779
  %v8169 = vunpack.c.l.b16 %v7780
  %v8170 = vunpack.c.l.b16 %v7781
  %v8171 = vunpack.c.l.b16 %v7782
  %v8172 = vunpack.c.l.b16 %v7783
  %v8173 = vunpack.c.l.b16 %v7784
  %v8174 = vunpack.c.l.b16 %v7785
  %v8175 = vunpack.c.l.b16 %v7786
  %v8176 = vunpack.c.l.b16 %v7787
  %v8177 = vunpack.c.l.b16 %v7788
  %v8178 = vunpack.c.l.b16 %v7789
  %v8179 = vunpack.c.l.b16 %v7790
  %v8180 = vunpack.c.l.b16 %v7791
  %v8181 = vunpack.c.l.b16 %v7792
  %v8182 = vunpack.c.l.b16 %v7793
  %v8183 = vunpack.c.l.b16 %v7794
  %v8184 = vunpack.c.l.b16 %v7795
  %v8185 = vunpack.c.l.b16 %v7796
  %v8186 = vunpack.c.l.b16 %v7797
  %v8187 = vunpack.c.l.b16 %v7798
  %v8188 = vunpack.c.l.b16 %v7799
  %v8189 = vunpack.c.l.b16 %v7800
  %v8190 = vunpack.c.l.b16 %v7801
  %v8191 = vunpack.c.l.b16 %v7802
  %v8192 = vunpack.c.l.b16 %v7803
  %v8193 = vunpack.c.l.b16 %v7804
  %v8194 = vunpack.c.l.b16 %v7805
  %v8195 = vunpack.c.l.b16 %v7806
  %v8196 = vunpack.c.l.b16 %v7807
  %v8197 = vunpack.c.l.b16 %v7808
  %v8198 = vunpack.c.l.b16 %v7809
  %v8199 = vunpack.c.l.b16 %v7810
  %v8200 = vunpack.c.l.b16 %v7811
  %v8201 = vunpack.c.l.b16 %v7812
  %v8202 = vunpack.c.l.b16 %v7813
  %v8203 = vunpack.c.l.b16 %v7814
  %v8204 = vunpack.c.l.b16 %v7815
  %v8205 = vunpack.c.l.b16 %v7816
  %v8206 = vunpack.c.l.b16 %v7817
  %v8207 = vunpack.c.l.b16 %v7818
  %v8208 = vunpack.c.l.b16 %v7819
  %v8209 = vunpack.c.l.b16 %v7820
  %v8210 = vunpack.c.l.b16 %v7821
  %v8211 = vunpack.c.l.b16 %v7822
  %v8212 = vunpack.c.l.b16 %v7823
  %v8213 = vunpack.c.l.b16 %v7824
  %v8214 = vunpack.c.l.b16 %v7825
  %v8215 = vunpack.c.l.b16 %v7826
  %v8216 = vunpack.c.l.b16 %v7827
  %v8217 = vunpack.c.l.b16 %v7828
  %v8218 = vunpack.c.l.b16 %v7829
  %v8219 = vunpack.c.l.b16 %v7830
  %v8220 = vunpack.c.l.b16 %v7831
  %v8221 = vunpack.c.l.b16 %v7832
  %v8222 = vunpack.c.l.b16 %v7833
  %v8223 = vunpack.c.l.b16 %v7834
  %v8224 = vunpack.c.l.b16 %v7835
  %v8225 = vunpack.c.l.b16 %v7836
  %v8226 = vunpack.c.l.b16 %v7837
  %v8227 = vunpack.c.l.b16 %v7838
  %v8228 = vunpack.c.l.b16 %v7839
  %v8229 = vunpack.c.l.b16 %v7840
  %v8230 = vunpack.c.l.b16 %v7841
  %v8231 = vunpack.c.l.b16 %v7842
  %v8232 = vunpack.c.l.b16 %v7843
  %v8233 = vunpack.c.l.b16 %v7844
  %v8234 = vunpack.c.l.b16 %v7845
  %v8235 = vunpack.c.l.b16 %v7846
  %v8236 = vunpack.c.l.b16 %v7847
  %v8237 = vunpack.c.l.b16 %v7848
  %v8238 = vunpack.c.l.b16 %v7849
  %v8239 = vunpack.c.l.b16 %v7850
  %v8240 = vunpack.c.l.b16 %v7851
  %v8241 = vunpack.c.l.b16 %v7852
  %v8242 = vunpack.c.l.b16 %v7853
  %v8243 = vunpack.c.l.b16 %v7854
  %v8244 = vunpack.c.l.b16 %v7855
  %v8245 = vunpack.c.l.b16 %v7856
  %v8246 = vunpack.c.l.b16 %v7857
  %v8247 = vunpack.c.l.b16 %v7858
  %v8248 = vunpack.c.l.b16 %v7859
  %v8249 = vunpack.c.l.b16 %v7860
  %v8250 = vunpack.c.l.b16 %v7861
  %v8251 = vunpack.c.l.b16 %v7862
  %v8252 = vunpack.c.l.b16 %v7863
  %v8253 = vunpack.c.l.b16 %v7864
  %v8254 = vunpack.c.l.b16 %v7865
  %v8255 = vunpack.c.l.b16 %v7866
  %v8256 = vunpack.c.l.b16 %v7867
  %v8257 = vunpack.c.l.b16 %v7868
  %v8258 = vunpack.c.l.b16 %v7869
  %v8259 = vunpack.c.l.b16 %v7870
  %v8260 = vunpack.c.l.b16 %v7871
  %v8261 = vunpack.c.l.b16 %v7872
  %v8262 = vunpack.c.l.b16 %v7873
  %v8263 = vunpack.c.l.b16 %v7874
  %v8264 = vunpack.c.l.b16 %v7875
  %v8265 = vunpack.c.l.b16 %v7876
  %v8266 = vunpack.c.l.b16 %v7877
  %v8267 = vunpack.c.l.b16 %v7878
  %v8268 = vunpack.c.l.b16 %v7879
  %v8269 = vunpack.c.l.b16 %v7880
  %v8270 = vunpack.c.l.b16 %v7881
  %v8271 = vunpack.c.l.b16 %v7882
  %v8272 = vunpack.c.l.b16 %v7883
  %v8273 = vunpack.c.l.b16 %v7884
  %v8274 = vunpack.c.l.b16 %v7885
  %v8275 = vunpack.c.l.b16 %v7886
  %v8276 = vunpack.c.l.b16 %v7887
  %v8277 = vunpack.c.l.b16 %v7888
  %v8278 = vunpack.c.l.b16 %v7889
  %v8279 = vunpack.c.l.b16 %v7890
  %v8280 = vunpack.c.l.b16 %v7891
  %v8281 = vunpack.c.l.b16 %v7892
  %v8282 = vunpack.c.l.b16 %v7893
  %v8283 = vunpack.c.l.b16 %v7894
  %v8284 = vunpack.c.l.b16 %v7895
  %v8285 = vunpack.c.l.b16 %v7896
  %v8286 = vunpack.c.l.b16 %v7897
  %v8287 = vunpack.c.l.b16 %v7898
  %v8288 = vunpack.c.l.b16 %v7899
  %v8289 = vunpack.c.l.b16 %v7900
  %v8290 = vunpack.c.l.b16 %v7901
  %v8291 = vunpack.c.l.b16 %v7902
  %v8292 = vunpack.c.l.b16 %v7903
  %v8293 = vunpack.c.l.b16 %v7904
  %v8294 = vunpack.c.l.b16 %v7905
  %v8295 = vunpack.c.l.b16 %v7906
  %v8296 = vunpack.c.l.b16 %v7907
  %v8297 = vunpack.c.l.b16 %v7908
  %v8298 = vunpack.c.l.b16 %v7909
  %v8299 = vunpack.c.l.b16 %v7910
  %v8300 = vunpack.c.l.b16 %v7911
  %v8301 = vunpack.c.l.b16 %v7912
  %v8302 = vunpack.c.l.b16 %v7913
  %v8303 = vunpack.c.l.b16 %v7914
  %v8304 = vunpack.c.l.b16 %v7915
  %v8305 = vunpack.c.l.b16 %v7916
  %v8306 = vunpack.c.l.b16 %v7917
  %v8307 = vunpack.c.l.b16 %v7918
  %v8308 = vunpack.c.l.b16 %v7919
  %v8309 = vunpack.c.l.b16 %v7920
  %v8310 = vunpack.c.l.b16 %v7921
  %v8311 = vunpack.c.l.b16 %v7922
  %v8312 = vunpack.c.l.b16 %v7923
  %v8313 = vunpack.c.l.b16 %v7924
  %v8314 = vunpack.c.l.b16 %v7925
  %v8315 = vunpack.c.l.b16 %v7926
  %v8316 = vunpack.c.l.b16 %v7927
  %v8317 = vunpack.c.l.b16 %v7928
  %v8318 = vunpack.c.l.b16 %v7929
  %v8319 = vunpack.c.l.b16 %v7930
  %v8320 = vunpack.c.l.b16 %v7931
  %v8321 = vunpack.c.l.b16 %v7932
  %v8322 = vunpack.c.l.b16 %v7933
  %v8323 = vunpack.c.l.b16 %v7934
  %v8324 = vunpack.c.l.b16 %v7935
  %v8325 = vunpack.c.l.b16 %v7936
  %v8326 = vunpack.c.l.b16 %v7937
  %v8327 = vunpack.c.l.b16 %v7938
  %v8328 = vunpack.c.l.b16 %v7939
  %v8329 = vunpack.c.l.b16 %v7940
  %v8330 = vunpack.c.l.b16 %v7941
  %v8331 = vpack.c.b16 %v8140, %v8139
  %v8332 = vpack.c.b16 %v8142, %v8141
  %v8333 = vpack.c.b16 %v8144, %v8143
  %v8334 = vpack.c.b16 %v8146, %v8145
  %v8335 = vpack.c.b16 %v8148, %v8147
  %v8336 = vpack.c.b16 %v8150, %v8149
  %v8337 = vpack.c.b16 %v8152, %v8151
  %v8338 = vpack.c.b16 %v8154, %v8153
  %v8339 = vpack.c.b16 %v8156, %v8155
  %v8340 = vpack.c.b16 %v8158, %v8157
  %v8341 = vpack.c.b16 %v8160, %v8159
  %v8342 = vpack.c.b16 %v8162, %v8161
  %v8343 = vpack.c.b16 %v8164, %v8163
  %v8344 = vpack.c.b16 %v8166, %v8165
  %v8345 = vpack.c.b16 %v8168, %v8167
  %v8346 = vpack.c.b16 %v8170, %v8169
  %v8347 = vpack.c.b16 %v8172, %v8171
  %v8348 = vpack.c.b16 %v8174, %v8173
  %v8349 = vpack.c.b16 %v8176, %v8175
  %v8350 = vpack.c.b16 %v8178, %v8177
  %v8351 = vpack.c.b16 %v8180, %v8179
  %v8352 = vpack.c.b16 %v8182, %v8181
  %v8353 = vpack.c.b16 %v8184, %v8183
  %v8354 = vpack.c.b16 %v8186, %v8185
  %v8355 = vpack.c.b16 %v8188, %v8187
  %v8356 = vpack.c.b16 %v8190, %v8189
  %v8357 = vpack.c.b16 %v8192, %v8191
  %v8358 = vpack.c.b16 %v8194, %v8193
  %v8359 = vpack.c.b16 %v8196, %v8195
  %v8360 = vpack.c.b16 %v8198, %v8197
  %v8361 = vpack.c.b16 %v8200, %v8199
  %v8362 = vpack.c.b16 %v8202, %v8201
  %v8363 = vpack.c.b16 %v8204, %v8203
  %v8364 = vpack.c.b16 %v8206, %v8205
  %v8365 = vpack.c.b16 %v8208, %v8207
  %v8366 = vpack.c.b16 %v8210, %v8209
  %v8367 = vpack.c.b16 %v8212, %v8211
  %v8368 = vpack.c.b16 %v8214, %v8213
  %v8369 = vpack.c.b16 %v8216, %v8215
  %v8370 = vpack.c.b16 %v8218, %v8217
  %v8371 = vpack.c.b16 %v8220, %v8219
  %v8372 = vpack.c.b16 %v8222, %v8221
  %v8373 = vpack.c.b16 %v8224, %v8223
  %v8374 = vpack.c.b16 %v8226, %v8225
  %v8375 = vpack.c.b16 %v8228, %v8227
  %v8376 = vpack.c.b16 %v8230, %v8229
  %v8377 = vpack.c.b16 %v8232, %v8231
  %v8378 = vpack.c.b16 %v8234, %v8233
  %v8379 = vpack.c.b16 %v8236, %v8235
  %v8380 = vpack.c.b16 %v8238, %v8237
  %v8381 = vpack.c.b16 %v8240, %v8239
  %v8382 = vpack.c.b16 %v8242, %v8241
  %v8383 = vpack.c.b16 %v8244, %v8243
  %v8384 = vpack.c.b16 %v8246, %v8245
  %v8385 = vpack.c.b16 %v8248, %v8247
  %v8386 = vpack.c.b16 %v8250, %v8249
  %v8387 = vpack.c.b16 %v8252, %v8251
  %v8388 = vpack.c.b16 %v8254, %v8253
  %v8389 = vpack.c.b16 %v8256, %v8255
  %v8390 = vpack.c.b16 %v8258, %v8257
  %v8391 = vpack.c.b16 %v8260, %v8259
  %v8392 = vpack.c.b16 %v8262, %v8261
  %v8393 = vpack.c.b16 %v8264, %v8263
  %v8394 = vpack.c.b16 %v8266, %v8265
  %v8395 = vpack.c.b16 %v8268, %v8267
  %v8396 = vpack.c.b16 %v8270, %v8269
  %v8397 = vpack.c.b16 %v8272, %v8271
  %v8398 = vpack.c.b16 %v8274, %v8273
  %v8399 = vpack.c.b16 %v8276, %v8275
  %v8400 = vpack.c.b16 %v8278, %v8277
  %v8401 = vpack.c.b16 %v8280, %v8279
  %v8402 = vpack.c.b16 %v8282, %v8281
  %v8403 = vpack.c.b16 %v8284, %v8283
  %v8404 = vpack.c.b16 %v8286, %v8285
  %v8405 = vpack.c.b16 %v8288, %v8287
  %v8406 = vpack.c.b16 %v8290, %v8289
  %v8407 = vpack.c.b16 %v8292, %v8291
  %v8408 = vpack.c.b16 %v8294, %v8293
  %v8409 = vpack.c.b16 %v8296, %v8295
  %v8410 = vpack.c.b16 %v8298, %v8297
  %v8411 = vpack.c.b16 %v8300, %v8299
  %v8412 = vpack.c.b16 %v8302, %v8301
  %v8413 = vpack.c.b16 %v8304, %v8303
  %v8414 = vpack.c.b16 %v8306, %v8305
  %v8415 = vpack.c.b16 %v8308, %v8307
  %v8416 = vpack.c.b16 %v8310, %v8309
  %v8417 = vpack.c.b16 %v8312, %v8311
  %v8418 = vpack.c.b16 %v8314, %v8313
  %v8419 = vpack.c.b16 %v8316, %v8315
  %v8420 = vpack.c.b16 %v8318, %v8317
  %v8421 = vpack.c.b16 %v8320, %v8319
  %v8422 = vpack.c.b16 %v8322, %v8321
  %v8423 = vpack.c.b16 %v8324, %v8323
  %v8424 = vpack.c.b16 %v8326, %v8325
  %v8425 = vpack.c.b16 %v8328, %v8327
  %v8426 = vpack.c.b16 %v8330, %v8329
  %v8431 = vunpack.c.l.b16 %v7943
  %v8432 = vunpack.c.h.b16 %v7943
  %v8433 = vunpack.c.l.b16 %v7944
  %v8434 = vunpack.c.h.b16 %v7944
  %v8435 = vunpack.c.l.b16 %v7945
  %v8436 = vunpack.c.h.b16 %v7945
  %v8437 = vunpack.c.l.b16 %v7946
  %v8438 = vunpack.c.h.b16 %v7946
  %v8439 = vpack.c.b16 %v8433, %v8431
  %v8440 = vpack.c.b16 %v8434, %v8432
  %v8441 = vpack.c.b16 %v8437, %v8435
  %v8442 = vpack.c.b16 %v8438, %v8436
  %v8446 = vsel %vm740, %v8331, 0
  %v8449 = vsel %vm740, %v8332, 0
  %v8452 = vsel %vm740, %v8333, 0
  %v8455 = vsel %vm740, %v8334, 0
  %v8458 = vsel %vm740, %v8335, 0
  %v8461 = vsel %vm740, %v8336, 0
  %v8464 = vsel %vm740, %v8337, 0
  %v8467 = vsel %vm740, %v8338, 0
  %v8470 = vsel %vm740, %v8339, 0
  %v8473 = vsel %vm740, %v8340, 0
  %v8476 = vsel %vm740, %v8341, 0
  %v8479 = vsel %vm740, %v8342, 0
  %v8482 = vsel %vm740, %v8343, 0
  %v8485 = vsel %vm740, %v8344, 0
  %v8488 = vsel %vm740, %v8345, 0
  %v8491 = vsel %vm740, %v8346, 0
  %v8494 = vsel %vm740, %v8347, 0
  %v8497 = vsel %vm740, %v8348, 0
  %v8500 = vsel %vm740, %v8349, 0
  %v8503 = vsel %vm740, %v8350, 0
  %v8506 = vsel %vm740, %v8351, 0
  %v8509 = vsel %vm740, %v8352, 0
  %v8512 = vsel %vm740, %v8353, 0
  %v8515 = vsel %vm740, %v8354, 0
  %v8518 = vsel %vm740, %v8355, 0
  %v8521 = vsel %vm740, %v8356, 0
  %v8524 = vsel %vm740, %v8357, 0
  %v8527 = vsel %vm740, %v8358, 0
  %v8530 = vsel %vm740, %v8359, 0
  %v8533 = vsel %vm740, %v8360, 0
  %v8536 = vsel %vm740, %v8361, 0
  %v8539 = vsel %vm740, %v8362, 0
  %v8542 = vsel %vm740, %v8363, 0
  %v8545 = vsel %vm740, %v8364, 0
  %v8548 = vsel %vm740, %v8365, 0
  %v8551 = vsel %vm740, %v8366, 0
  %v8554 = vsel %vm740, %v8367, 0
  %v8557 = vsel %vm740, %v8368, 0
  %v8560 = vsel %vm740, %v8369, 0
  %v8563 = vsel %vm740, %v8370, 0
  %v8566 = vsel %vm740, %v8371, 0
  %v8569 = vsel %vm740, %v8372, 0
  %v8572 = vsel %vm740, %v8373, 0
  %v8575 = vsel %vm740, %v8374, 0
  %v8578 = vsel %vm740, %v8375, 0
  %v8581 = vsel %vm740, %v8376, 0
  %v8584 = vsel %vm740, %v8377, 0
  %v8587 = vsel %vm740, %v8378, 0
  %v8590 = vsel %vm740, %v8379, 0
  %v8593 = vsel %vm740, %v8380, 0
  %v8596 = vsel %vm740, %v8381, 0
  %v8599 = vsel %vm740, %v8382, 0
  %v8602 = vsel %vm740, %v8383, 0
  %v8605 = vsel %vm740, %v8384, 0
  %v8608 = vsel %vm740, %v8385, 0
  %v8611 = vsel %vm740, %v8386, 0
  %v8614 = vsel %vm740, %v8387, 0
  %v8617 = vsel %vm740, %v8388, 0
  %v8620 = vsel %vm740, %v8389, 0
  %v8623 = vsel %vm740, %v8390, 0
  %v8626 = vsel %vm740, %v8391, 0
  %v8629 = vsel %vm740, %v8392, 0
  %v8632 = vsel %vm740, %v8393, 0
  %v8635 = vsel %vm740, %v8394, 0
  %v8638 = vsel %vm740, %v8395, 0
  %v8641 = vsel %vm740, %v8396, 0
  %v8644 = vsel %vm740, %v8397, 0
  %v8647 = vsel %vm740, %v8398, 0
  %v8650 = vsel %vm740, %v8399, 0
  %v8653 = vsel %vm740, %v8400, 0
  %v8656 = vsel %vm740, %v8401, 0
  %v8659 = vsel %vm740, %v8402, 0
  %v8662 = vsel %vm740, %v8403, 0
  %v8665 = vsel %vm740, %v8404, 0
  %v8668 = vsel %vm740, %v8405, 0
  %v8671 = vsel %vm740, %v8406, 0
  %v8674 = vsel %vm740, %v8407, 0
  %v8677 = vsel %vm740, %v8408, 0
  %v8680 = vsel %vm740, %v8409, 0
  %v8683 = vsel %vm740, %v8410, 0
  %v8686 = vsel %vm740, %v8411, 0
  %v8689 = vsel %vm740, %v8412, 0
  %v8692 = vsel %vm740, %v8413, 0
  %v8695 = vsel %vm740, %v8414, 0
  %v8698 = vsel %vm740, %v8415, 0
  %v8701 = vsel %vm740, %v8416, 0
  %v8704 = vsel %vm740, %v8417, 0
  %v8707 = vsel %vm740, %v8418, 0
  %v8710 = vsel %vm740, %v8419, 0
  %v8713 = vsel %vm740, %v8420, 0
  %v8716 = vsel %vm740, %v8421, 0
  %v8719 = vsel %vm740, %v8422, 0
  %v8722 = vsel %vm740, %v8423, 0
  %v8725 = vsel %vm740, %v8424, 0
  %v8728 = vsel %vm740, %v8425, 0
  %v8731 = vsel %vm740, %v8426, 0
  %v8734 = vsel %vm1029, %v8441, 0
  %v8737 = vsel %vm1029, %v8442, 0
  %8739 = vmatpush.bf16.msra.mxu0 0
  %8740 = vmatpush.bf16.msra.mxu0 0
  %8741 = vmatpush.bf16.msra.mxu0 0
  %8742 = vmatpush.bf16.msra.mxu0 0
  %8743 = vmatpush.bf16.msra.mxu0 0
  %8744 = vmatpush.bf16.msra.mxu0 0
  %8745 = vmatpush.bf16.msra.mxu0 %v8734
  %8746 = vmatpush.bf16.msra.mxu0 %v8439
  %8747 = vmatmul.bf16.gmra.mxu0 %v8446
  %v8748 = vpop.f32.mrf.mxu0
  %v8749 = vadd.f32 0.0, %v8748
  %v8750 = vpop.f32.mrf.mxu0
  %v8751 = vadd.f32 0.0, %v8750
  %8752 = vmatmul.bf16.gmra.mxu0 %v8449
  %v8753 = vpop.f32.mrf.mxu0
  %v8754 = vadd.f32 0.0, %v8753
  %v8755 = vpop.f32.mrf.mxu0
  %v8756 = vadd.f32 0.0, %v8755
  %8757 = vmatmul.bf16.gmra.mxu0 %v8452
  %v8758 = vpop.f32.mrf.mxu0
  %v8759 = vadd.f32 0.0, %v8758
  %v8760 = vpop.f32.mrf.mxu0
  %v8761 = vadd.f32 0.0, %v8760
  %8762 = vmatmul.bf16.gmra.mxu0 %v8455
  %v8763 = vpop.f32.mrf.mxu0
  %v8764 = vadd.f32 0.0, %v8763
  %v8765 = vpop.f32.mrf.mxu0
  %v8766 = vadd.f32 0.0, %v8765
  %8767 = vmatmul.bf16.gmra.mxu0 %v8458
  %v8768 = vpop.f32.mrf.mxu0
  %v8769 = vadd.f32 0.0, %v8768
  %v8770 = vpop.f32.mrf.mxu0
  %v8771 = vadd.f32 0.0, %v8770
  %8772 = vmatmul.bf16.gmra.mxu0 %v8461
  %v8773 = vpop.f32.mrf.mxu0
  %v8774 = vadd.f32 0.0, %v8773
  %v8775 = vpop.f32.mrf.mxu0
  %v8776 = vadd.f32 0.0, %v8775
  %8777 = vmatmul.bf16.gmra.mxu0 %v8464
  %v8778 = vpop.f32.mrf.mxu0
  %v8779 = vadd.f32 0.0, %v8778
  %v8780 = vpop.f32.mrf.mxu0
  %v8781 = vadd.f32 0.0, %v8780
  %8782 = vmatmul.bf16.gmra.mxu0 %v8467
  %v8783 = vpop.f32.mrf.mxu0
  %v8784 = vadd.f32 0.0, %v8783
  %v8785 = vpop.f32.mrf.mxu0
  %v8786 = vadd.f32 0.0, %v8785
  %8787 = vmatmul.bf16.gmra.mxu0 %v8470
  %v8788 = vpop.f32.mrf.mxu0
  %v8789 = vadd.f32 0.0, %v8788
  %v8790 = vpop.f32.mrf.mxu0
  %v8791 = vadd.f32 0.0, %v8790
  %8792 = vmatmul.bf16.gmra.mxu0 %v8473
  %v8793 = vpop.f32.mrf.mxu0
  %v8794 = vadd.f32 0.0, %v8793
  %v8795 = vpop.f32.mrf.mxu0
  %v8796 = vadd.f32 0.0, %v8795
  %8797 = vmatmul.bf16.gmra.mxu0 %v8476
  %v8798 = vpop.f32.mrf.mxu0
  %v8799 = vadd.f32 0.0, %v8798
  %v8800 = vpop.f32.mrf.mxu0
  %v8801 = vadd.f32 0.0, %v8800
  %8802 = vmatmul.bf16.gmra.mxu0 %v8479
  %v8803 = vpop.f32.mrf.mxu0
  %v8804 = vadd.f32 0.0, %v8803
  %v8805 = vpop.f32.mrf.mxu0
  %v8806 = vadd.f32 0.0, %v8805
  %8807 = vmatmul.bf16.gmra.mxu0 %v8482
  %v8808 = vpop.f32.mrf.mxu0
  %v8809 = vadd.f32 0.0, %v8808
  %v8810 = vpop.f32.mrf.mxu0
  %v8811 = vadd.f32 0.0, %v8810
  %8812 = vmatmul.bf16.gmra.mxu0 %v8485
  %v8813 = vpop.f32.mrf.mxu0
  %v8814 = vadd.f32 0.0, %v8813
  %v8815 = vpop.f32.mrf.mxu0
  %v8816 = vadd.f32 0.0, %v8815
  %8817 = vmatmul.bf16.gmra.mxu0 %v8488
  %v8818 = vpop.f32.mrf.mxu0
  %v8819 = vadd.f32 0.0, %v8818
  %v8820 = vpop.f32.mrf.mxu0
  %v8821 = vadd.f32 0.0, %v8820
  %8822 = vmatmul.bf16.gmra.mxu0 %v8491
  %v8823 = vpop.f32.mrf.mxu0
  %v8824 = vadd.f32 0.0, %v8823
  %v8825 = vpop.f32.mrf.mxu0
  %v8826 = vadd.f32 0.0, %v8825
  %8827 = vmatmul.bf16.gmra.mxu0 %v8494
  %v8828 = vpop.f32.mrf.mxu0
  %v8829 = vadd.f32 0.0, %v8828
  %v8830 = vpop.f32.mrf.mxu0
  %v8831 = vadd.f32 0.0, %v8830
  %8832 = vmatmul.bf16.gmra.mxu0 %v8497
  %v8833 = vpop.f32.mrf.mxu0
  %v8834 = vadd.f32 0.0, %v8833
  %v8835 = vpop.f32.mrf.mxu0
  %v8836 = vadd.f32 0.0, %v8835
  %8837 = vmatmul.bf16.gmra.mxu0 %v8500
  %v8838 = vpop.f32.mrf.mxu0
  %v8839 = vadd.f32 0.0, %v8838
  %v8840 = vpop.f32.mrf.mxu0
  %v8841 = vadd.f32 0.0, %v8840
  %8842 = vmatmul.bf16.gmra.mxu0 %v8503
  %v8843 = vpop.f32.mrf.mxu0
  %v8844 = vadd.f32 0.0, %v8843
  %v8845 = vpop.f32.mrf.mxu0
  %v8846 = vadd.f32 0.0, %v8845
  %8847 = vmatmul.bf16.gmra.mxu0 %v8506
  %v8848 = vpop.f32.mrf.mxu0
  %v8849 = vadd.f32 0.0, %v8848
  %v8850 = vpop.f32.mrf.mxu0
  %v8851 = vadd.f32 0.0, %v8850
  %8852 = vmatmul.bf16.gmra.mxu0 %v8509
  %v8853 = vpop.f32.mrf.mxu0
  %v8854 = vadd.f32 0.0, %v8853
  %v8855 = vpop.f32.mrf.mxu0
  %v8856 = vadd.f32 0.0, %v8855
  %8857 = vmatmul.bf16.gmra.mxu0 %v8512
  %v8858 = vpop.f32.mrf.mxu0
  %v8859 = vadd.f32 0.0, %v8858
  %v8860 = vpop.f32.mrf.mxu0
  %v8861 = vadd.f32 0.0, %v8860
  %8862 = vmatmul.bf16.gmra.mxu0 %v8515
  %v8863 = vpop.f32.mrf.mxu0
  %v8864 = vadd.f32 0.0, %v8863
  %v8865 = vpop.f32.mrf.mxu0
  %v8866 = vadd.f32 0.0, %v8865
  %8867 = vmatmul.bf16.gmra.mxu0 %v8518
  %v8868 = vpop.f32.mrf.mxu0
  %v8869 = vadd.f32 0.0, %v8868
  %v8870 = vpop.f32.mrf.mxu0
  %v8871 = vadd.f32 0.0, %v8870
  %8872 = vmatmul.bf16.gmra.mxu0 %v8521
  %v8873 = vpop.f32.mrf.mxu0
  %v8874 = vadd.f32 0.0, %v8873
  %v8875 = vpop.f32.mrf.mxu0
  %v8876 = vadd.f32 0.0, %v8875
  %8877 = vmatmul.bf16.gmra.mxu0 %v8524
  %v8878 = vpop.f32.mrf.mxu0
  %v8879 = vadd.f32 0.0, %v8878
  %v8880 = vpop.f32.mrf.mxu0
  %v8881 = vadd.f32 0.0, %v8880
  %8882 = vmatmul.bf16.gmra.mxu0 %v8527
  %v8883 = vpop.f32.mrf.mxu0
  %v8884 = vadd.f32 0.0, %v8883
  %v8885 = vpop.f32.mrf.mxu0
  %v8886 = vadd.f32 0.0, %v8885
  %8887 = vmatmul.bf16.gmra.mxu0 %v8530
  %v8888 = vpop.f32.mrf.mxu0
  %v8889 = vadd.f32 0.0, %v8888
  %v8890 = vpop.f32.mrf.mxu0
  %v8891 = vadd.f32 0.0, %v8890
  %8892 = vmatmul.bf16.gmra.mxu0 %v8533
  %v8893 = vpop.f32.mrf.mxu0
  %v8894 = vadd.f32 0.0, %v8893
  %v8895 = vpop.f32.mrf.mxu0
  %v8896 = vadd.f32 0.0, %v8895
  %8897 = vmatmul.bf16.gmra.mxu0 %v8536
  %v8898 = vpop.f32.mrf.mxu0
  %v8899 = vadd.f32 0.0, %v8898
  %v8900 = vpop.f32.mrf.mxu0
  %v8901 = vadd.f32 0.0, %v8900
  %8902 = vmatmul.bf16.gmra.mxu0 %v8539
  %v8903 = vpop.f32.mrf.mxu0
  %v8904 = vadd.f32 0.0, %v8903
  %v8905 = vpop.f32.mrf.mxu0
  %v8906 = vadd.f32 0.0, %v8905
  %8907 = vmatmul.bf16.gmra.mxu0 %v8542
  %v8908 = vpop.f32.mrf.mxu0
  %v8909 = vadd.f32 0.0, %v8908
  %v8910 = vpop.f32.mrf.mxu0
  %v8911 = vadd.f32 0.0, %v8910
  %8912 = vmatmul.bf16.gmra.mxu0 %v8545
  %v8913 = vpop.f32.mrf.mxu0
  %v8914 = vadd.f32 0.0, %v8913
  %v8915 = vpop.f32.mrf.mxu0
  %v8916 = vadd.f32 0.0, %v8915
  %8917 = vmatmul.bf16.gmra.mxu0 %v8548
  %v8918 = vpop.f32.mrf.mxu0
  %v8919 = vadd.f32 0.0, %v8918
  %v8920 = vpop.f32.mrf.mxu0
  %v8921 = vadd.f32 0.0, %v8920
  %8922 = vmatmul.bf16.gmra.mxu0 %v8551
  %v8923 = vpop.f32.mrf.mxu0
  %v8924 = vadd.f32 0.0, %v8923
  %v8925 = vpop.f32.mrf.mxu0
  %v8926 = vadd.f32 0.0, %v8925
  %8927 = vmatmul.bf16.gmra.mxu0 %v8554
  %v8928 = vpop.f32.mrf.mxu0
  %v8929 = vadd.f32 0.0, %v8928
  %v8930 = vpop.f32.mrf.mxu0
  %v8931 = vadd.f32 0.0, %v8930
  %8932 = vmatmul.bf16.gmra.mxu0 %v8557
  %v8933 = vpop.f32.mrf.mxu0
  %v8934 = vadd.f32 0.0, %v8933
  %v8935 = vpop.f32.mrf.mxu0
  %v8936 = vadd.f32 0.0, %v8935
  %8937 = vmatmul.bf16.gmra.mxu0 %v8560
  %v8938 = vpop.f32.mrf.mxu0
  %v8939 = vadd.f32 0.0, %v8938
  %v8940 = vpop.f32.mrf.mxu0
  %v8941 = vadd.f32 0.0, %v8940
  %8942 = vmatmul.bf16.gmra.mxu0 %v8563
  %v8943 = vpop.f32.mrf.mxu0
  %v8944 = vadd.f32 0.0, %v8943
  %v8945 = vpop.f32.mrf.mxu0
  %v8946 = vadd.f32 0.0, %v8945
  %8947 = vmatmul.bf16.gmra.mxu0 %v8566
  %v8948 = vpop.f32.mrf.mxu0
  %v8949 = vadd.f32 0.0, %v8948
  %v8950 = vpop.f32.mrf.mxu0
  %v8951 = vadd.f32 0.0, %v8950
  %8952 = vmatmul.bf16.gmra.mxu0 %v8569
  %v8953 = vpop.f32.mrf.mxu0
  %v8954 = vadd.f32 0.0, %v8953
  %v8955 = vpop.f32.mrf.mxu0
  %v8956 = vadd.f32 0.0, %v8955
  %8957 = vmatmul.bf16.gmra.mxu0 %v8572
  %v8958 = vpop.f32.mrf.mxu0
  %v8959 = vadd.f32 0.0, %v8958
  %v8960 = vpop.f32.mrf.mxu0
  %v8961 = vadd.f32 0.0, %v8960
  %8962 = vmatmul.bf16.gmra.mxu0 %v8575
  %v8963 = vpop.f32.mrf.mxu0
  %v8964 = vadd.f32 0.0, %v8963
  %v8965 = vpop.f32.mrf.mxu0
  %v8966 = vadd.f32 0.0, %v8965
  %8967 = vmatmul.bf16.gmra.mxu0 %v8578
  %v8968 = vpop.f32.mrf.mxu0
  %v8969 = vadd.f32 0.0, %v8968
  %v8970 = vpop.f32.mrf.mxu0
  %v8971 = vadd.f32 0.0, %v8970
  %8972 = vmatmul.bf16.gmra.mxu0 %v8581
  %v8973 = vpop.f32.mrf.mxu0
  %v8974 = vadd.f32 0.0, %v8973
  %v8975 = vpop.f32.mrf.mxu0
  %v8976 = vadd.f32 0.0, %v8975
  %8977 = vmatmul.bf16.gmra.mxu0 %v8584
  %v8978 = vpop.f32.mrf.mxu0
  %v8979 = vadd.f32 0.0, %v8978
  %v8980 = vpop.f32.mrf.mxu0
  %v8981 = vadd.f32 0.0, %v8980
  %8982 = vmatmul.bf16.gmra.mxu0 %v8587
  %v8983 = vpop.f32.mrf.mxu0
  %v8984 = vadd.f32 0.0, %v8983
  %v8985 = vpop.f32.mrf.mxu0
  %v8986 = vadd.f32 0.0, %v8985
  %8987 = vmatmul.bf16.gmra.mxu0 %v8590
  %v8988 = vpop.f32.mrf.mxu0
  %v8989 = vadd.f32 0.0, %v8988
  %v8990 = vpop.f32.mrf.mxu0
  %v8991 = vadd.f32 0.0, %v8990
  %8992 = vmatmul.bf16.gmra.mxu0 %v8593
  %v8993 = vpop.f32.mrf.mxu0
  %v8994 = vadd.f32 0.0, %v8993
  %v8995 = vpop.f32.mrf.mxu0
  %v8996 = vadd.f32 0.0, %v8995
  %8997 = vmatmul.bf16.gmra.mxu0 %v8596
  %v8998 = vpop.f32.mrf.mxu0
  %v8999 = vadd.f32 0.0, %v8998
  %v9000 = vpop.f32.mrf.mxu0
  %v9001 = vadd.f32 0.0, %v9000
  %9002 = vmatmul.bf16.gmra.mxu0 %v8599
  %v9003 = vpop.f32.mrf.mxu0
  %v9004 = vadd.f32 0.0, %v9003
  %v9005 = vpop.f32.mrf.mxu0
  %v9006 = vadd.f32 0.0, %v9005
  %9007 = vmatmul.bf16.gmra.mxu0 %v8602
  %v9008 = vpop.f32.mrf.mxu0
  %v9009 = vadd.f32 0.0, %v9008
  %v9010 = vpop.f32.mrf.mxu0
  %v9011 = vadd.f32 0.0, %v9010
  %9012 = vmatmul.bf16.gmra.mxu0 %v8605
  %v9013 = vpop.f32.mrf.mxu0
  %v9014 = vadd.f32 0.0, %v9013
  %v9015 = vpop.f32.mrf.mxu0
  %v9016 = vadd.f32 0.0, %v9015
  %9017 = vmatmul.bf16.gmra.mxu0 %v8608
  %v9018 = vpop.f32.mrf.mxu0
  %v9019 = vadd.f32 0.0, %v9018
  %v9020 = vpop.f32.mrf.mxu0
  %v9021 = vadd.f32 0.0, %v9020
  %9022 = vmatmul.bf16.gmra.mxu0 %v8611
  %v9023 = vpop.f32.mrf.mxu0
  %v9024 = vadd.f32 0.0, %v9023
  %v9025 = vpop.f32.mrf.mxu0
  %v9026 = vadd.f32 0.0, %v9025
  %9027 = vmatmul.bf16.gmra.mxu0 %v8614
  %v9028 = vpop.f32.mrf.mxu0
  %v9029 = vadd.f32 0.0, %v9028
  %v9030 = vpop.f32.mrf.mxu0
  %v9031 = vadd.f32 0.0, %v9030
  %9032 = vmatmul.bf16.gmra.mxu0 %v8617
  %v9033 = vpop.f32.mrf.mxu0
  %v9034 = vadd.f32 0.0, %v9033
  %v9035 = vpop.f32.mrf.mxu0
  %v9036 = vadd.f32 0.0, %v9035
  %9037 = vmatmul.bf16.gmra.mxu0 %v8620
  %v9038 = vpop.f32.mrf.mxu0
  %v9039 = vadd.f32 0.0, %v9038
  %v9040 = vpop.f32.mrf.mxu0
  %v9041 = vadd.f32 0.0, %v9040
  %9042 = vmatmul.bf16.gmra.mxu0 %v8623
  %v9043 = vpop.f32.mrf.mxu0
  %v9044 = vadd.f32 0.0, %v9043
  %v9045 = vpop.f32.mrf.mxu0
  %v9046 = vadd.f32 0.0, %v9045
  %9047 = vmatmul.bf16.gmra.mxu0 %v8626
  %v9048 = vpop.f32.mrf.mxu0
  %v9049 = vadd.f32 0.0, %v9048
  %v9050 = vpop.f32.mrf.mxu0
  %v9051 = vadd.f32 0.0, %v9050
  %9052 = vmatmul.bf16.gmra.mxu0 %v8629
  %v9053 = vpop.f32.mrf.mxu0
  %v9054 = vadd.f32 0.0, %v9053
  %v9055 = vpop.f32.mrf.mxu0
  %v9056 = vadd.f32 0.0, %v9055
  %9057 = vmatmul.bf16.gmra.mxu0 %v8632
  %v9058 = vpop.f32.mrf.mxu0
  %v9059 = vadd.f32 0.0, %v9058
  %v9060 = vpop.f32.mrf.mxu0
  %v9061 = vadd.f32 0.0, %v9060
  %9062 = vmatmul.bf16.gmra.mxu0 %v8635
  %v9063 = vpop.f32.mrf.mxu0
  %v9064 = vadd.f32 0.0, %v9063
  %v9065 = vpop.f32.mrf.mxu0
  %v9066 = vadd.f32 0.0, %v9065
  %9067 = vmatmul.bf16.gmra.mxu0 %v8638
  %v9068 = vpop.f32.mrf.mxu0
  %v9069 = vadd.f32 0.0, %v9068
  %v9070 = vpop.f32.mrf.mxu0
  %v9071 = vadd.f32 0.0, %v9070
  %9072 = vmatmul.bf16.gmra.mxu0 %v8641
  %v9073 = vpop.f32.mrf.mxu0
  %v9074 = vadd.f32 0.0, %v9073
  %v9075 = vpop.f32.mrf.mxu0
  %v9076 = vadd.f32 0.0, %v9075
  %9077 = vmatmul.bf16.gmra.mxu0 %v8644
  %v9078 = vpop.f32.mrf.mxu0
  %v9079 = vadd.f32 0.0, %v9078
  %v9080 = vpop.f32.mrf.mxu0
  %v9081 = vadd.f32 0.0, %v9080
  %9082 = vmatmul.bf16.gmra.mxu0 %v8647
  %v9083 = vpop.f32.mrf.mxu0
  %v9084 = vadd.f32 0.0, %v9083
  %v9085 = vpop.f32.mrf.mxu0
  %v9086 = vadd.f32 0.0, %v9085
  %9087 = vmatmul.bf16.gmra.mxu0 %v8650
  %v9088 = vpop.f32.mrf.mxu0
  %v9089 = vadd.f32 0.0, %v9088
  %v9090 = vpop.f32.mrf.mxu0
  %v9091 = vadd.f32 0.0, %v9090
  %9092 = vmatmul.bf16.gmra.mxu0 %v8653
  %v9093 = vpop.f32.mrf.mxu0
  %v9094 = vadd.f32 0.0, %v9093
  %v9095 = vpop.f32.mrf.mxu0
  %v9096 = vadd.f32 0.0, %v9095
  %9097 = vmatmul.bf16.gmra.mxu0 %v8656
  %v9098 = vpop.f32.mrf.mxu0
  %v9099 = vadd.f32 0.0, %v9098
  %v9100 = vpop.f32.mrf.mxu0
  %v9101 = vadd.f32 0.0, %v9100
  %9102 = vmatmul.bf16.gmra.mxu0 %v8659
  %v9103 = vpop.f32.mrf.mxu0
  %v9104 = vadd.f32 0.0, %v9103
  %v9105 = vpop.f32.mrf.mxu0
  %v9106 = vadd.f32 0.0, %v9105
  %9107 = vmatmul.bf16.gmra.mxu0 %v8662
  %v9108 = vpop.f32.mrf.mxu0
  %v9109 = vadd.f32 0.0, %v9108
  %v9110 = vpop.f32.mrf.mxu0
  %v9111 = vadd.f32 0.0, %v9110
  %9112 = vmatmul.bf16.gmra.mxu0 %v8665
  %v9113 = vpop.f32.mrf.mxu0
  %v9114 = vadd.f32 0.0, %v9113
  %v9115 = vpop.f32.mrf.mxu0
  %v9116 = vadd.f32 0.0, %v9115
  %9117 = vmatmul.bf16.gmra.mxu0 %v8668
  %v9118 = vpop.f32.mrf.mxu0
  %v9119 = vadd.f32 0.0, %v9118
  %v9120 = vpop.f32.mrf.mxu0
  %v9121 = vadd.f32 0.0, %v9120
  %9122 = vmatmul.bf16.gmra.mxu0 %v8671
  %v9123 = vpop.f32.mrf.mxu0
  %v9124 = vadd.f32 0.0, %v9123
  %v9125 = vpop.f32.mrf.mxu0
  %v9126 = vadd.f32 0.0, %v9125
  %9127 = vmatmul.bf16.gmra.mxu0 %v8674
  %v9128 = vpop.f32.mrf.mxu0
  %v9129 = vadd.f32 0.0, %v9128
  %v9130 = vpop.f32.mrf.mxu0
  %v9131 = vadd.f32 0.0, %v9130
  %9132 = vmatmul.bf16.gmra.mxu0 %v8677
  %v9133 = vpop.f32.mrf.mxu0
  %v9134 = vadd.f32 0.0, %v9133
  %v9135 = vpop.f32.mrf.mxu0
  %v9136 = vadd.f32 0.0, %v9135
  %9137 = vmatmul.bf16.gmra.mxu0 %v8680
  %v9138 = vpop.f32.mrf.mxu0
  %v9139 = vadd.f32 0.0, %v9138
  %v9140 = vpop.f32.mrf.mxu0
  %v9141 = vadd.f32 0.0, %v9140
  %9142 = vmatmul.bf16.gmra.mxu0 %v8683
  %v9143 = vpop.f32.mrf.mxu0
  %v9144 = vadd.f32 0.0, %v9143
  %v9145 = vpop.f32.mrf.mxu0
  %v9146 = vadd.f32 0.0, %v9145
  %9147 = vmatmul.bf16.gmra.mxu0 %v8686
  %v9148 = vpop.f32.mrf.mxu0
  %v9149 = vadd.f32 0.0, %v9148
  %v9150 = vpop.f32.mrf.mxu0
  %v9151 = vadd.f32 0.0, %v9150
  %9152 = vmatmul.bf16.gmra.mxu0 %v8689
  %v9153 = vpop.f32.mrf.mxu0
  %v9154 = vadd.f32 0.0, %v9153
  %v9155 = vpop.f32.mrf.mxu0
  %v9156 = vadd.f32 0.0, %v9155
  %9157 = vmatmul.bf16.gmra.mxu0 %v8692
  %v9158 = vpop.f32.mrf.mxu0
  %v9159 = vadd.f32 0.0, %v9158
  %v9160 = vpop.f32.mrf.mxu0
  %v9161 = vadd.f32 0.0, %v9160
  %9162 = vmatmul.bf16.gmra.mxu0 %v8695
  %v9163 = vpop.f32.mrf.mxu0
  %v9164 = vadd.f32 0.0, %v9163
  %v9165 = vpop.f32.mrf.mxu0
  %v9166 = vadd.f32 0.0, %v9165
  %9167 = vmatmul.bf16.gmra.mxu0 %v8698
  %v9168 = vpop.f32.mrf.mxu0
  %v9169 = vadd.f32 0.0, %v9168
  %v9170 = vpop.f32.mrf.mxu0
  %v9171 = vadd.f32 0.0, %v9170
  %9172 = vmatmul.bf16.gmra.mxu0 %v8701
  %v9173 = vpop.f32.mrf.mxu0
  %v9174 = vadd.f32 0.0, %v9173
  %v9175 = vpop.f32.mrf.mxu0
  %v9176 = vadd.f32 0.0, %v9175
  %9177 = vmatmul.bf16.gmra.mxu0 %v8704
  %v9178 = vpop.f32.mrf.mxu0
  %v9179 = vadd.f32 0.0, %v9178
  %v9180 = vpop.f32.mrf.mxu0
  %v9181 = vadd.f32 0.0, %v9180
  %9182 = vmatmul.bf16.gmra.mxu0 %v8707
  %v9183 = vpop.f32.mrf.mxu0
  %v9184 = vadd.f32 0.0, %v9183
  %v9185 = vpop.f32.mrf.mxu0
  %v9186 = vadd.f32 0.0, %v9185
  %9187 = vmatmul.bf16.gmra.mxu0 %v8710
  %v9188 = vpop.f32.mrf.mxu0
  %v9189 = vadd.f32 0.0, %v9188
  %v9190 = vpop.f32.mrf.mxu0
  %v9191 = vadd.f32 0.0, %v9190
  %9192 = vmatmul.bf16.gmra.mxu0 %v8713
  %v9193 = vpop.f32.mrf.mxu0
  %v9194 = vadd.f32 0.0, %v9193
  %v9195 = vpop.f32.mrf.mxu0
  %v9196 = vadd.f32 0.0, %v9195
  %9197 = vmatmul.bf16.gmra.mxu0 %v8716
  %v9198 = vpop.f32.mrf.mxu0
  %v9199 = vadd.f32 0.0, %v9198
  %v9200 = vpop.f32.mrf.mxu0
  %v9201 = vadd.f32 0.0, %v9200
  %9202 = vmatmul.bf16.gmra.mxu0 %v8719
  %v9203 = vpop.f32.mrf.mxu0
  %v9204 = vadd.f32 0.0, %v9203
  %v9205 = vpop.f32.mrf.mxu0
  %v9206 = vadd.f32 0.0, %v9205
  %9207 = vmatmul.bf16.gmra.mxu0 %v8722
  %v9208 = vpop.f32.mrf.mxu0
  %v9209 = vadd.f32 0.0, %v9208
  %v9210 = vpop.f32.mrf.mxu0
  %v9211 = vadd.f32 0.0, %v9210
  %9212 = vmatmul.bf16.gmra.mxu0 %v8725
  %v9213 = vpop.f32.mrf.mxu0
  %v9214 = vadd.f32 0.0, %v9213
  %v9215 = vpop.f32.mrf.mxu0
  %v9216 = vadd.f32 0.0, %v9215
  %9217 = vmatmul.bf16.gmra.mxu0 %v8728
  %v9218 = vpop.f32.mrf.mxu0
  %v9219 = vadd.f32 0.0, %v9218
  %v9220 = vpop.f32.mrf.mxu0
  %v9221 = vadd.f32 0.0, %v9220
  %9222 = vmatmul.bf16.gmra.mxu0 %v8731
  %v9223 = vpop.f32.mrf.mxu0
  %v9224 = vadd.f32 0.0, %v9223
  %v9225 = vpop.f32.mrf.mxu0
  %v9226 = vadd.f32 0.0, %v9225
  %9227 = vdwg.mxu0
  %9228 = vmatpush.bf16.msra.mxu0 0
  %9229 = vmatpush.bf16.msra.mxu0 0
  %9230 = vmatpush.bf16.msra.mxu0 0
  %9231 = vmatpush.bf16.msra.mxu0 0
  %9232 = vmatpush.bf16.msra.mxu0 0
  %9233 = vmatpush.bf16.msra.mxu0 0
  %9234 = vmatpush.bf16.msra.mxu0 %v8737
  %9235 = vmatpush.bf16.msra.mxu0 %v8440
  %9236 = vmatmul.bf16.gmra.mxu0 %v8446
  %v9237 = vpop.f32.mrf.mxu0
  %v9238 = vadd.f32 0.0, %v9237
  %v9239 = vpop.f32.mrf.mxu0
  %v9240 = vadd.f32 0.0, %v9239
  %9241 = vmatmul.bf16.gmra.mxu0 %v8449
  %v9242 = vpop.f32.mrf.mxu0
  %v9243 = vadd.f32 0.0, %v9242
  %v9244 = vpop.f32.mrf.mxu0
  %v9245 = vadd.f32 0.0, %v9244
  %9246 = vmatmul.bf16.gmra.mxu0 %v8452
  %v9247 = vpop.f32.mrf.mxu0
  %v9248 = vadd.f32 0.0, %v9247
  %v9249 = vpop.f32.mrf.mxu0
  %v9250 = vadd.f32 0.0, %v9249
  %9251 = vmatmul.bf16.gmra.mxu0 %v8455
  %v9252 = vpop.f32.mrf.mxu0
  %v9253 = vadd.f32 0.0, %v9252
  %v9254 = vpop.f32.mrf.mxu0
  %v9255 = vadd.f32 0.0, %v9254
  %9256 = vmatmul.bf16.gmra.mxu0 %v8458
  %v9257 = vpop.f32.mrf.mxu0
  %v9258 = vadd.f32 0.0, %v9257
  %v9259 = vpop.f32.mrf.mxu0
  %v9260 = vadd.f32 0.0, %v9259
  %9261 = vmatmul.bf16.gmra.mxu0 %v8461
  %v9262 = vpop.f32.mrf.mxu0
  %v9263 = vadd.f32 0.0, %v9262
  %v9264 = vpop.f32.mrf.mxu0
  %v9265 = vadd.f32 0.0, %v9264
  %9266 = vmatmul.bf16.gmra.mxu0 %v8464
  %v9267 = vpop.f32.mrf.mxu0
  %v9268 = vadd.f32 0.0, %v9267
  %v9269 = vpop.f32.mrf.mxu0
  %v9270 = vadd.f32 0.0, %v9269
  %9271 = vmatmul.bf16.gmra.mxu0 %v8467
  %v9272 = vpop.f32.mrf.mxu0
  %v9273 = vadd.f32 0.0, %v9272
  %v9274 = vpop.f32.mrf.mxu0
  %v9275 = vadd.f32 0.0, %v9274
  %9276 = vmatmul.bf16.gmra.mxu0 %v8470
  %v9277 = vpop.f32.mrf.mxu0
  %v9278 = vadd.f32 0.0, %v9277
  %v9279 = vpop.f32.mrf.mxu0
  %v9280 = vadd.f32 0.0, %v9279
  %9281 = vmatmul.bf16.gmra.mxu0 %v8473
  %v9282 = vpop.f32.mrf.mxu0
  %v9283 = vadd.f32 0.0, %v9282
  %v9284 = vpop.f32.mrf.mxu0
  %v9285 = vadd.f32 0.0, %v9284
  %9286 = vmatmul.bf16.gmra.mxu0 %v8476
  %v9287 = vpop.f32.mrf.mxu0
  %v9288 = vadd.f32 0.0, %v9287
  %v9289 = vpop.f32.mrf.mxu0
  %v9290 = vadd.f32 0.0, %v9289
  %9291 = vmatmul.bf16.gmra.mxu0 %v8479
  %v9292 = vpop.f32.mrf.mxu0
  %v9293 = vadd.f32 0.0, %v9292
  %v9294 = vpop.f32.mrf.mxu0
  %v9295 = vadd.f32 0.0, %v9294
  %9296 = vmatmul.bf16.gmra.mxu0 %v8482
  %v9297 = vpop.f32.mrf.mxu0
  %v9298 = vadd.f32 0.0, %v9297
  %v9299 = vpop.f32.mrf.mxu0
  %v9300 = vadd.f32 0.0, %v9299
  %9301 = vmatmul.bf16.gmra.mxu0 %v8485
  %v9302 = vpop.f32.mrf.mxu0
  %v9303 = vadd.f32 0.0, %v9302
  %v9304 = vpop.f32.mrf.mxu0
  %v9305 = vadd.f32 0.0, %v9304
  %9306 = vmatmul.bf16.gmra.mxu0 %v8488
  %v9307 = vpop.f32.mrf.mxu0
  %v9308 = vadd.f32 0.0, %v9307
  %v9309 = vpop.f32.mrf.mxu0
  %v9310 = vadd.f32 0.0, %v9309
  %9311 = vmatmul.bf16.gmra.mxu0 %v8491
  %v9312 = vpop.f32.mrf.mxu0
  %v9313 = vadd.f32 0.0, %v9312
  %v9314 = vpop.f32.mrf.mxu0
  %v9315 = vadd.f32 0.0, %v9314
  %9316 = vmatmul.bf16.gmra.mxu0 %v8494
  %v9317 = vpop.f32.mrf.mxu0
  %v9318 = vadd.f32 0.0, %v9317
  %v9319 = vpop.f32.mrf.mxu0
  %v9320 = vadd.f32 0.0, %v9319
  %9321 = vmatmul.bf16.gmra.mxu0 %v8497
  %v9322 = vpop.f32.mrf.mxu0
  %v9323 = vadd.f32 0.0, %v9322
  %v9324 = vpop.f32.mrf.mxu0
  %v9325 = vadd.f32 0.0, %v9324
  %9326 = vmatmul.bf16.gmra.mxu0 %v8500
  %v9327 = vpop.f32.mrf.mxu0
  %v9328 = vadd.f32 0.0, %v9327
  %v9329 = vpop.f32.mrf.mxu0
  %v9330 = vadd.f32 0.0, %v9329
  %9331 = vmatmul.bf16.gmra.mxu0 %v8503
  %v9332 = vpop.f32.mrf.mxu0
  %v9333 = vadd.f32 0.0, %v9332
  %v9334 = vpop.f32.mrf.mxu0
  %v9335 = vadd.f32 0.0, %v9334
  %9336 = vmatmul.bf16.gmra.mxu0 %v8506
  %v9337 = vpop.f32.mrf.mxu0
  %v9338 = vadd.f32 0.0, %v9337
  %v9339 = vpop.f32.mrf.mxu0
  %v9340 = vadd.f32 0.0, %v9339
  %9341 = vmatmul.bf16.gmra.mxu0 %v8509
  %v9342 = vpop.f32.mrf.mxu0
  %v9343 = vadd.f32 0.0, %v9342
  %v9344 = vpop.f32.mrf.mxu0
  %v9345 = vadd.f32 0.0, %v9344
  %9346 = vmatmul.bf16.gmra.mxu0 %v8512
  %v9347 = vpop.f32.mrf.mxu0
  %v9348 = vadd.f32 0.0, %v9347
  %v9349 = vpop.f32.mrf.mxu0
  %v9350 = vadd.f32 0.0, %v9349
  %9351 = vmatmul.bf16.gmra.mxu0 %v8515
  %v9352 = vpop.f32.mrf.mxu0
  %v9353 = vadd.f32 0.0, %v9352
  %v9354 = vpop.f32.mrf.mxu0
  %v9355 = vadd.f32 0.0, %v9354
  %9356 = vmatmul.bf16.gmra.mxu0 %v8518
  %v9357 = vpop.f32.mrf.mxu0
  %v9358 = vadd.f32 0.0, %v9357
  %v9359 = vpop.f32.mrf.mxu0
  %v9360 = vadd.f32 0.0, %v9359
  %9361 = vmatmul.bf16.gmra.mxu0 %v8521
  %v9362 = vpop.f32.mrf.mxu0
  %v9363 = vadd.f32 0.0, %v9362
  %v9364 = vpop.f32.mrf.mxu0
  %v9365 = vadd.f32 0.0, %v9364
  %9366 = vmatmul.bf16.gmra.mxu0 %v8524
  %v9367 = vpop.f32.mrf.mxu0
  %v9368 = vadd.f32 0.0, %v9367
  %v9369 = vpop.f32.mrf.mxu0
  %v9370 = vadd.f32 0.0, %v9369
  %9371 = vmatmul.bf16.gmra.mxu0 %v8527
  %v9372 = vpop.f32.mrf.mxu0
  %v9373 = vadd.f32 0.0, %v9372
  %v9374 = vpop.f32.mrf.mxu0
  %v9375 = vadd.f32 0.0, %v9374
  %9376 = vmatmul.bf16.gmra.mxu0 %v8530
  %v9377 = vpop.f32.mrf.mxu0
  %v9378 = vadd.f32 0.0, %v9377
  %v9379 = vpop.f32.mrf.mxu0
  %v9380 = vadd.f32 0.0, %v9379
  %9381 = vmatmul.bf16.gmra.mxu0 %v8533
  %v9382 = vpop.f32.mrf.mxu0
  %v9383 = vadd.f32 0.0, %v9382
  %v9384 = vpop.f32.mrf.mxu0
  %v9385 = vadd.f32 0.0, %v9384
  %9386 = vmatmul.bf16.gmra.mxu0 %v8536
  %v9387 = vpop.f32.mrf.mxu0
  %v9388 = vadd.f32 0.0, %v9387
  %v9389 = vpop.f32.mrf.mxu0
  %v9390 = vadd.f32 0.0, %v9389
  %9391 = vmatmul.bf16.gmra.mxu0 %v8539
  %v9392 = vpop.f32.mrf.mxu0
  %v9393 = vadd.f32 0.0, %v9392
  %v9394 = vpop.f32.mrf.mxu0
  %v9395 = vadd.f32 0.0, %v9394
  %9396 = vmatmul.bf16.gmra.mxu0 %v8542
  %v9397 = vpop.f32.mrf.mxu0
  %v9398 = vadd.f32 0.0, %v9397
  %v9399 = vpop.f32.mrf.mxu0
  %v9400 = vadd.f32 0.0, %v9399
  %9401 = vmatmul.bf16.gmra.mxu0 %v8545
  %v9402 = vpop.f32.mrf.mxu0
  %v9403 = vadd.f32 0.0, %v9402
  %v9404 = vpop.f32.mrf.mxu0
  %v9405 = vadd.f32 0.0, %v9404
  %9406 = vmatmul.bf16.gmra.mxu0 %v8548
  %v9407 = vpop.f32.mrf.mxu0
  %v9408 = vadd.f32 0.0, %v9407
  %v9409 = vpop.f32.mrf.mxu0
  %v9410 = vadd.f32 0.0, %v9409
  %9411 = vmatmul.bf16.gmra.mxu0 %v8551
  %v9412 = vpop.f32.mrf.mxu0
  %v9413 = vadd.f32 0.0, %v9412
  %v9414 = vpop.f32.mrf.mxu0
  %v9415 = vadd.f32 0.0, %v9414
  %9416 = vmatmul.bf16.gmra.mxu0 %v8554
  %v9417 = vpop.f32.mrf.mxu0
  %v9418 = vadd.f32 0.0, %v9417
  %v9419 = vpop.f32.mrf.mxu0
  %v9420 = vadd.f32 0.0, %v9419
  %9421 = vmatmul.bf16.gmra.mxu0 %v8557
  %v9422 = vpop.f32.mrf.mxu0
  %v9423 = vadd.f32 0.0, %v9422
  %v9424 = vpop.f32.mrf.mxu0
  %v9425 = vadd.f32 0.0, %v9424
  %9426 = vmatmul.bf16.gmra.mxu0 %v8560
  %v9427 = vpop.f32.mrf.mxu0
  %v9428 = vadd.f32 0.0, %v9427
  %v9429 = vpop.f32.mrf.mxu0
  %v9430 = vadd.f32 0.0, %v9429
  %9431 = vmatmul.bf16.gmra.mxu0 %v8563
  %v9432 = vpop.f32.mrf.mxu0
  %v9433 = vadd.f32 0.0, %v9432
  %v9434 = vpop.f32.mrf.mxu0
  %v9435 = vadd.f32 0.0, %v9434
  %9436 = vmatmul.bf16.gmra.mxu0 %v8566
  %v9437 = vpop.f32.mrf.mxu0
  %v9438 = vadd.f32 0.0, %v9437
  %v9439 = vpop.f32.mrf.mxu0
  %v9440 = vadd.f32 0.0, %v9439
  %9441 = vmatmul.bf16.gmra.mxu0 %v8569
  %v9442 = vpop.f32.mrf.mxu0
  %v9443 = vadd.f32 0.0, %v9442
  %v9444 = vpop.f32.mrf.mxu0
  %v9445 = vadd.f32 0.0, %v9444
  %9446 = vmatmul.bf16.gmra.mxu0 %v8572
  %v9447 = vpop.f32.mrf.mxu0
  %v9448 = vadd.f32 0.0, %v9447
  %v9449 = vpop.f32.mrf.mxu0
  %v9450 = vadd.f32 0.0, %v9449
  %9451 = vmatmul.bf16.gmra.mxu0 %v8575
  %v9452 = vpop.f32.mrf.mxu0
  %v9453 = vadd.f32 0.0, %v9452
  %v9454 = vpop.f32.mrf.mxu0
  %v9455 = vadd.f32 0.0, %v9454
  %9456 = vmatmul.bf16.gmra.mxu0 %v8578
  %v9457 = vpop.f32.mrf.mxu0
  %v9458 = vadd.f32 0.0, %v9457
  %v9459 = vpop.f32.mrf.mxu0
  %v9460 = vadd.f32 0.0, %v9459
  %9461 = vmatmul.bf16.gmra.mxu0 %v8581
  %v9462 = vpop.f32.mrf.mxu0
  %v9463 = vadd.f32 0.0, %v9462
  %v9464 = vpop.f32.mrf.mxu0
  %v9465 = vadd.f32 0.0, %v9464
  %9466 = vmatmul.bf16.gmra.mxu0 %v8584
  %v9467 = vpop.f32.mrf.mxu0
  %v9468 = vadd.f32 0.0, %v9467
  %v9469 = vpop.f32.mrf.mxu0
  %v9470 = vadd.f32 0.0, %v9469
  %9471 = vmatmul.bf16.gmra.mxu0 %v8587
  %v9472 = vpop.f32.mrf.mxu0
  %v9473 = vadd.f32 0.0, %v9472
  %v9474 = vpop.f32.mrf.mxu0
  %v9475 = vadd.f32 0.0, %v9474
  %9476 = vmatmul.bf16.gmra.mxu0 %v8590
  %v9477 = vpop.f32.mrf.mxu0
  %v9478 = vadd.f32 0.0, %v9477
  %v9479 = vpop.f32.mrf.mxu0
  %v9480 = vadd.f32 0.0, %v9479
  %9481 = vmatmul.bf16.gmra.mxu0 %v8593
  %v9482 = vpop.f32.mrf.mxu0
  %v9483 = vadd.f32 0.0, %v9482
  %v9484 = vpop.f32.mrf.mxu0
  %v9485 = vadd.f32 0.0, %v9484
  %9486 = vmatmul.bf16.gmra.mxu0 %v8596
  %v9487 = vpop.f32.mrf.mxu0
  %v9488 = vadd.f32 0.0, %v9487
  %v9489 = vpop.f32.mrf.mxu0
  %v9490 = vadd.f32 0.0, %v9489
  %9491 = vmatmul.bf16.gmra.mxu0 %v8599
  %v9492 = vpop.f32.mrf.mxu0
  %v9493 = vadd.f32 0.0, %v9492
  %v9494 = vpop.f32.mrf.mxu0
  %v9495 = vadd.f32 0.0, %v9494
  %9496 = vmatmul.bf16.gmra.mxu0 %v8602
  %v9497 = vpop.f32.mrf.mxu0
  %v9498 = vadd.f32 0.0, %v9497
  %v9499 = vpop.f32.mrf.mxu0
  %v9500 = vadd.f32 0.0, %v9499
  %9501 = vmatmul.bf16.gmra.mxu0 %v8605
  %v9502 = vpop.f32.mrf.mxu0
  %v9503 = vadd.f32 0.0, %v9502
  %v9504 = vpop.f32.mrf.mxu0
  %v9505 = vadd.f32 0.0, %v9504
  %9506 = vmatmul.bf16.gmra.mxu0 %v8608
  %v9507 = vpop.f32.mrf.mxu0
  %v9508 = vadd.f32 0.0, %v9507
  %v9509 = vpop.f32.mrf.mxu0
  %v9510 = vadd.f32 0.0, %v9509
  %9511 = vmatmul.bf16.gmra.mxu0 %v8611
  %v9512 = vpop.f32.mrf.mxu0
  %v9513 = vadd.f32 0.0, %v9512
  %v9514 = vpop.f32.mrf.mxu0
  %v9515 = vadd.f32 0.0, %v9514
  %9516 = vmatmul.bf16.gmra.mxu0 %v8614
  %v9517 = vpop.f32.mrf.mxu0
  %v9518 = vadd.f32 0.0, %v9517
  %v9519 = vpop.f32.mrf.mxu0
  %v9520 = vadd.f32 0.0, %v9519
  %9521 = vmatmul.bf16.gmra.mxu0 %v8617
  %v9522 = vpop.f32.mrf.mxu0
  %v9523 = vadd.f32 0.0, %v9522
  %v9524 = vpop.f32.mrf.mxu0
  %v9525 = vadd.f32 0.0, %v9524
  %9526 = vmatmul.bf16.gmra.mxu0 %v8620
  %v9527 = vpop.f32.mrf.mxu0
  %v9528 = vadd.f32 0.0, %v9527
  %v9529 = vpop.f32.mrf.mxu0
  %v9530 = vadd.f32 0.0, %v9529
  %9531 = vmatmul.bf16.gmra.mxu0 %v8623
  %v9532 = vpop.f32.mrf.mxu0
  %v9533 = vadd.f32 0.0, %v9532
  %v9534 = vpop.f32.mrf.mxu0
  %v9535 = vadd.f32 0.0, %v9534
  %9536 = vmatmul.bf16.gmra.mxu0 %v8626
  %v9537 = vpop.f32.mrf.mxu0
  %v9538 = vadd.f32 0.0, %v9537
  %v9539 = vpop.f32.mrf.mxu0
  %v9540 = vadd.f32 0.0, %v9539
  %9541 = vmatmul.bf16.gmra.mxu0 %v8629
  %v9542 = vpop.f32.mrf.mxu0
  %v9543 = vadd.f32 0.0, %v9542
  %v9544 = vpop.f32.mrf.mxu0
  %v9545 = vadd.f32 0.0, %v9544
  %9546 = vmatmul.bf16.gmra.mxu0 %v8632
  %v9547 = vpop.f32.mrf.mxu0
  %v9548 = vadd.f32 0.0, %v9547
  %v9549 = vpop.f32.mrf.mxu0
  %v9550 = vadd.f32 0.0, %v9549
  %9551 = vmatmul.bf16.gmra.mxu0 %v8635
  %v9552 = vpop.f32.mrf.mxu0
  %v9553 = vadd.f32 0.0, %v9552
  %v9554 = vpop.f32.mrf.mxu0
  %v9555 = vadd.f32 0.0, %v9554
  %9556 = vmatmul.bf16.gmra.mxu0 %v8638
  %v9557 = vpop.f32.mrf.mxu0
  %v9558 = vadd.f32 0.0, %v9557
  %v9559 = vpop.f32.mrf.mxu0
  %v9560 = vadd.f32 0.0, %v9559
  %9561 = vmatmul.bf16.gmra.mxu0 %v8641
  %v9562 = vpop.f32.mrf.mxu0
  %v9563 = vadd.f32 0.0, %v9562
  %v9564 = vpop.f32.mrf.mxu0
  %v9565 = vadd.f32 0.0, %v9564
  %9566 = vmatmul.bf16.gmra.mxu0 %v8644
  %v9567 = vpop.f32.mrf.mxu0
  %v9568 = vadd.f32 0.0, %v9567
  %v9569 = vpop.f32.mrf.mxu0
  %v9570 = vadd.f32 0.0, %v9569
  %9571 = vmatmul.bf16.gmra.mxu0 %v8647
  %v9572 = vpop.f32.mrf.mxu0
  %v9573 = vadd.f32 0.0, %v9572
  %v9574 = vpop.f32.mrf.mxu0
  %v9575 = vadd.f32 0.0, %v9574
  %9576 = vmatmul.bf16.gmra.mxu0 %v8650
  %v9577 = vpop.f32.mrf.mxu0
  %v9578 = vadd.f32 0.0, %v9577
  %v9579 = vpop.f32.mrf.mxu0
  %v9580 = vadd.f32 0.0, %v9579
  %9581 = vmatmul.bf16.gmra.mxu0 %v8653
  %v9582 = vpop.f32.mrf.mxu0
  %v9583 = vadd.f32 0.0, %v9582
  %v9584 = vpop.f32.mrf.mxu0
  %v9585 = vadd.f32 0.0, %v9584
  %9586 = vmatmul.bf16.gmra.mxu0 %v8656
  %v9587 = vpop.f32.mrf.mxu0
  %v9588 = vadd.f32 0.0, %v9587
  %v9589 = vpop.f32.mrf.mxu0
  %v9590 = vadd.f32 0.0, %v9589
  %9591 = vmatmul.bf16.gmra.mxu0 %v8659
  %v9592 = vpop.f32.mrf.mxu0
  %v9593 = vadd.f32 0.0, %v9592
  %v9594 = vpop.f32.mrf.mxu0
  %v9595 = vadd.f32 0.0, %v9594
  %9596 = vmatmul.bf16.gmra.mxu0 %v8662
  %v9597 = vpop.f32.mrf.mxu0
  %v9598 = vadd.f32 0.0, %v9597
  %v9599 = vpop.f32.mrf.mxu0
  %v9600 = vadd.f32 0.0, %v9599
  %9601 = vmatmul.bf16.gmra.mxu0 %v8665
  %v9602 = vpop.f32.mrf.mxu0
  %v9603 = vadd.f32 0.0, %v9602
  %v9604 = vpop.f32.mrf.mxu0
  %v9605 = vadd.f32 0.0, %v9604
  %9606 = vmatmul.bf16.gmra.mxu0 %v8668
  %v9607 = vpop.f32.mrf.mxu0
  %v9608 = vadd.f32 0.0, %v9607
  %v9609 = vpop.f32.mrf.mxu0
  %v9610 = vadd.f32 0.0, %v9609
  %9611 = vmatmul.bf16.gmra.mxu0 %v8671
  %v9612 = vpop.f32.mrf.mxu0
  %v9613 = vadd.f32 0.0, %v9612
  %v9614 = vpop.f32.mrf.mxu0
  %v9615 = vadd.f32 0.0, %v9614
  %9616 = vmatmul.bf16.gmra.mxu0 %v8674
  %v9617 = vpop.f32.mrf.mxu0
  %v9618 = vadd.f32 0.0, %v9617
  %v9619 = vpop.f32.mrf.mxu0
  %v9620 = vadd.f32 0.0, %v9619
  %9621 = vmatmul.bf16.gmra.mxu0 %v8677
  %v9622 = vpop.f32.mrf.mxu0
  %v9623 = vadd.f32 0.0, %v9622
  %v9624 = vpop.f32.mrf.mxu0
  %v9625 = vadd.f32 0.0, %v9624
  %9626 = vmatmul.bf16.gmra.mxu0 %v8680
  %v9627 = vpop.f32.mrf.mxu0
  %v9628 = vadd.f32 0.0, %v9627
  %v9629 = vpop.f32.mrf.mxu0
  %v9630 = vadd.f32 0.0, %v9629
  %9631 = vmatmul.bf16.gmra.mxu0 %v8683
  %v9632 = vpop.f32.mrf.mxu0
  %v9633 = vadd.f32 0.0, %v9632
  %v9634 = vpop.f32.mrf.mxu0
  %v9635 = vadd.f32 0.0, %v9634
  %9636 = vmatmul.bf16.gmra.mxu0 %v8686
  %v9637 = vpop.f32.mrf.mxu0
  %v9638 = vadd.f32 0.0, %v9637
  %v9639 = vpop.f32.mrf.mxu0
  %v9640 = vadd.f32 0.0, %v9639
  %9641 = vmatmul.bf16.gmra.mxu0 %v8689
  %v9642 = vpop.f32.mrf.mxu0
  %v9643 = vadd.f32 0.0, %v9642
  %v9644 = vpop.f32.mrf.mxu0
  %v9645 = vadd.f32 0.0, %v9644
  %9646 = vmatmul.bf16.gmra.mxu0 %v8692
  %v9647 = vpop.f32.mrf.mxu0
  %v9648 = vadd.f32 0.0, %v9647
  %v9649 = vpop.f32.mrf.mxu0
  %v9650 = vadd.f32 0.0, %v9649
  %9651 = vmatmul.bf16.gmra.mxu0 %v8695
  %v9652 = vpop.f32.mrf.mxu0
  %v9653 = vadd.f32 0.0, %v9652
  %v9654 = vpop.f32.mrf.mxu0
  %v9655 = vadd.f32 0.0, %v9654
  %9656 = vmatmul.bf16.gmra.mxu0 %v8698
  %v9657 = vpop.f32.mrf.mxu0
  %v9658 = vadd.f32 0.0, %v9657
  %v9659 = vpop.f32.mrf.mxu0
  %v9660 = vadd.f32 0.0, %v9659
  %9661 = vmatmul.bf16.gmra.mxu0 %v8701
  %v9662 = vpop.f32.mrf.mxu0
  %v9663 = vadd.f32 0.0, %v9662
  %v9664 = vpop.f32.mrf.mxu0
  %v9665 = vadd.f32 0.0, %v9664
  %9666 = vmatmul.bf16.gmra.mxu0 %v8704
  %v9667 = vpop.f32.mrf.mxu0
  %v9668 = vadd.f32 0.0, %v9667
  %v9669 = vpop.f32.mrf.mxu0
  %v9670 = vadd.f32 0.0, %v9669
  %9671 = vmatmul.bf16.gmra.mxu0 %v8707
  %v9672 = vpop.f32.mrf.mxu0
  %v9673 = vadd.f32 0.0, %v9672
  %v9674 = vpop.f32.mrf.mxu0
  %v9675 = vadd.f32 0.0, %v9674
  %9676 = vmatmul.bf16.gmra.mxu0 %v8710
  %v9677 = vpop.f32.mrf.mxu0
  %v9678 = vadd.f32 0.0, %v9677
  %v9679 = vpop.f32.mrf.mxu0
  %v9680 = vadd.f32 0.0, %v9679
  %9681 = vmatmul.bf16.gmra.mxu0 %v8713
  %v9682 = vpop.f32.mrf.mxu0
  %v9683 = vadd.f32 0.0, %v9682
  %v9684 = vpop.f32.mrf.mxu0
  %v9685 = vadd.f32 0.0, %v9684
  %9686 = vmatmul.bf16.gmra.mxu0 %v8716
  %v9687 = vpop.f32.mrf.mxu0
  %v9688 = vadd.f32 0.0, %v9687
  %v9689 = vpop.f32.mrf.mxu0
  %v9690 = vadd.f32 0.0, %v9689
  %9691 = vmatmul.bf16.gmra.mxu0 %v8719
  %v9692 = vpop.f32.mrf.mxu0
  %v9693 = vadd.f32 0.0, %v9692
  %v9694 = vpop.f32.mrf.mxu0
  %v9695 = vadd.f32 0.0, %v9694
  %9696 = vmatmul.bf16.gmra.mxu0 %v8722
  %v9697 = vpop.f32.mrf.mxu0
  %v9698 = vadd.f32 0.0, %v9697
  %v9699 = vpop.f32.mrf.mxu0
  %v9700 = vadd.f32 0.0, %v9699
  %9701 = vmatmul.bf16.gmra.mxu0 %v8725
  %v9702 = vpop.f32.mrf.mxu0
  %v9703 = vadd.f32 0.0, %v9702
  %v9704 = vpop.f32.mrf.mxu0
  %v9705 = vadd.f32 0.0, %v9704
  %9706 = vmatmul.bf16.gmra.mxu0 %v8728
  %v9707 = vpop.f32.mrf.mxu0
  %v9708 = vadd.f32 0.0, %v9707
  %v9709 = vpop.f32.mrf.mxu0
  %v9710 = vadd.f32 0.0, %v9709
  %9711 = vmatmul.bf16.gmra.mxu0 %v8731
  %v9712 = vpop.f32.mrf.mxu0
  %v9713 = vadd.f32 0.0, %v9712
  %v9714 = vpop.f32.mrf.mxu0
  %v9715 = vadd.f32 0.0, %v9714
  %9716 = vdwg.mxu0
  %v9717 = vadd.f32 %v7366, %v8749
  %v9718 = vadd.f32 %v7367, %v9238
  %v9719 = vadd.f32 %v7368, %v8751
  %v9720 = vadd.f32 %v7369, %v9240
  %v9721 = vadd.f32 %v7370, %v8754
  %v9722 = vadd.f32 %v7371, %v9243
  %v9723 = vadd.f32 %v7372, %v8756
  %v9724 = vadd.f32 %v7373, %v9245
  %v9725 = vadd.f32 %v7374, %v8759
  %v9726 = vadd.f32 %v7375, %v9248
  %v9727 = vadd.f32 %v7376, %v8761
  %v9728 = vadd.f32 %v7377, %v9250
  %v9729 = vadd.f32 %v7378, %v8764
  %v9730 = vadd.f32 %v7379, %v9253
  %v9731 = vadd.f32 %v7380, %v8766
  %v9732 = vadd.f32 %v7381, %v9255
  %v9733 = vadd.f32 %v7382, %v8769
  %v9734 = vadd.f32 %v7383, %v9258
  %v9735 = vadd.f32 %v7384, %v8771
  %v9736 = vadd.f32 %v7385, %v9260
  %v9737 = vadd.f32 %v7386, %v8774
  %v9738 = vadd.f32 %v7387, %v9263
  %v9739 = vadd.f32 %v7388, %v8776
  %v9740 = vadd.f32 %v7389, %v9265
  %v9741 = vadd.f32 %v7390, %v8779
  %v9742 = vadd.f32 %v7391, %v9268
  %v9743 = vadd.f32 %v7392, %v8781
  %v9744 = vadd.f32 %v7393, %v9270
  %v9745 = vadd.f32 %v7394, %v8784
  %v9746 = vadd.f32 %v7395, %v9273
  %v9747 = vadd.f32 %v7396, %v8786
  %v9748 = vadd.f32 %v7397, %v9275
  %v9749 = vadd.f32 %v7398, %v8789
  %v9750 = vadd.f32 %v7399, %v9278
  %v9751 = vadd.f32 %v7400, %v8791
  %v9752 = vadd.f32 %v7401, %v9280
  %v9753 = vadd.f32 %v7402, %v8794
  %v9754 = vadd.f32 %v7403, %v9283
  %v9755 = vadd.f32 %v7404, %v8796
  %v9756 = vadd.f32 %v7405, %v9285
  %v9757 = vadd.f32 %v7406, %v8799
  %v9758 = vadd.f32 %v7407, %v9288
  %v9759 = vadd.f32 %v7408, %v8801
  %v9760 = vadd.f32 %v7409, %v9290
  %v9761 = vadd.f32 %v7410, %v8804
  %v9762 = vadd.f32 %v7411, %v9293
  %v9763 = vadd.f32 %v7412, %v8806
  %v9764 = vadd.f32 %v7413, %v9295
  %v9765 = vadd.f32 %v7414, %v8809
  %v9766 = vadd.f32 %v7415, %v9298
  %v9767 = vadd.f32 %v7416, %v8811
  %v9768 = vadd.f32 %v7417, %v9300
  %v9769 = vadd.f32 %v7418, %v8814
  %v9770 = vadd.f32 %v7419, %v9303
  %v9771 = vadd.f32 %v7420, %v8816
  %v9772 = vadd.f32 %v7421, %v9305
  %v9773 = vadd.f32 %v7422, %v8819
  %v9774 = vadd.f32 %v7423, %v9308
  %v9775 = vadd.f32 %v7424, %v8821
  %v9776 = vadd.f32 %v7425, %v9310
  %v9777 = vadd.f32 %v7426, %v8824
  %v9778 = vadd.f32 %v7427, %v9313
  %v9779 = vadd.f32 %v7428, %v8826
  %v9780 = vadd.f32 %v7429, %v9315
  %v9781 = vadd.f32 %v7430, %v8829
  %v9782 = vadd.f32 %v7431, %v9318
  %v9783 = vadd.f32 %v7432, %v8831
  %v9784 = vadd.f32 %v7433, %v9320
  %v9785 = vadd.f32 %v7434, %v8834
  %v9786 = vadd.f32 %v7435, %v9323
  %v9787 = vadd.f32 %v7436, %v8836
  %v9788 = vadd.f32 %v7437, %v9325
  %v9789 = vadd.f32 %v7438, %v8839
  %v9790 = vadd.f32 %v7439, %v9328
  %v9791 = vadd.f32 %v7440, %v8841
  %v9792 = vadd.f32 %v7441, %v9330
  %v9793 = vadd.f32 %v7442, %v8844
  %v9794 = vadd.f32 %v7443, %v9333
  %v9795 = vadd.f32 %v7444, %v8846
  %v9796 = vadd.f32 %v7445, %v9335
  %v9797 = vadd.f32 %v7446, %v8849
  %v9798 = vadd.f32 %v7447, %v9338
  %v9799 = vadd.f32 %v7448, %v8851
  %v9800 = vadd.f32 %v7449, %v9340
  %v9801 = vadd.f32 %v7450, %v8854
  %v9802 = vadd.f32 %v7451, %v9343
  %v9803 = vadd.f32 %v7452, %v8856
  %v9804 = vadd.f32 %v7453, %v9345
  %v9805 = vadd.f32 %v7454, %v8859
  %v9806 = vadd.f32 %v7455, %v9348
  %v9807 = vadd.f32 %v7456, %v8861
  %v9808 = vadd.f32 %v7457, %v9350
  %v9809 = vadd.f32 %v7458, %v8864
  %v9810 = vadd.f32 %v7459, %v9353
  %v9811 = vadd.f32 %v7460, %v8866
  %v9812 = vadd.f32 %v7461, %v9355
  %v9813 = vadd.f32 %v7462, %v8869
  %v9814 = vadd.f32 %v7463, %v9358
  %v9815 = vadd.f32 %v7464, %v8871
  %v9816 = vadd.f32 %v7465, %v9360
  %v9817 = vadd.f32 %v7466, %v8874
  %v9818 = vadd.f32 %v7467, %v9363
  %v9819 = vadd.f32 %v7468, %v8876
  %v9820 = vadd.f32 %v7469, %v9365
  %v9821 = vadd.f32 %v7470, %v8879
  %v9822 = vadd.f32 %v7471, %v9368
  %v9823 = vadd.f32 %v7472, %v8881
  %v9824 = vadd.f32 %v7473, %v9370
  %v9825 = vadd.f32 %v7474, %v8884
  %v9826 = vadd.f32 %v7475, %v9373
  %v9827 = vadd.f32 %v7476, %v8886
  %v9828 = vadd.f32 %v7477, %v9375
  %v9829 = vadd.f32 %v7478, %v8889
  %v9830 = vadd.f32 %v7479, %v9378
  %v9831 = vadd.f32 %v7480, %v8891
  %v9832 = vadd.f32 %v7481, %v9380
  %v9833 = vadd.f32 %v7482, %v8894
  %v9834 = vadd.f32 %v7483, %v9383
  %v9835 = vadd.f32 %v7484, %v8896
  %v9836 = vadd.f32 %v7485, %v9385
  %v9837 = vadd.f32 %v7486, %v8899
  %v9838 = vadd.f32 %v7487, %v9388
  %v9839 = vadd.f32 %v7488, %v8901
  %v9840 = vadd.f32 %v7489, %v9390
  %v9841 = vadd.f32 %v7490, %v8904
  %v9842 = vadd.f32 %v7491, %v9393
  %v9843 = vadd.f32 %v7492, %v8906
  %v9844 = vadd.f32 %v7493, %v9395
  %v9845 = vadd.f32 %v7494, %v8909
  %v9846 = vadd.f32 %v7495, %v9398
  %v9847 = vadd.f32 %v7496, %v8911
  %v9848 = vadd.f32 %v7497, %v9400
  %v9849 = vadd.f32 %v7498, %v8914
  %v9850 = vadd.f32 %v7499, %v9403
  %v9851 = vadd.f32 %v7500, %v8916
  %v9852 = vadd.f32 %v7501, %v9405
  %v9853 = vadd.f32 %v7502, %v8919
  %v9854 = vadd.f32 %v7503, %v9408
  %v9855 = vadd.f32 %v7504, %v8921
  %v9856 = vadd.f32 %v7505, %v9410
  %v9857 = vadd.f32 %v7506, %v8924
  %v9858 = vadd.f32 %v7507, %v9413
  %v9859 = vadd.f32 %v7508, %v8926
  %v9860 = vadd.f32 %v7509, %v9415
  %v9861 = vadd.f32 %v7510, %v8929
  %v9862 = vadd.f32 %v7511, %v9418
  %v9863 = vadd.f32 %v7512, %v8931
  %v9864 = vadd.f32 %v7513, %v9420
  %v9865 = vadd.f32 %v7514, %v8934
  %v9866 = vadd.f32 %v7515, %v9423
  %v9867 = vadd.f32 %v7516, %v8936
  %v9868 = vadd.f32 %v7517, %v9425
  %v9869 = vadd.f32 %v7518, %v8939
  %v9870 = vadd.f32 %v7519, %v9428
  %v9871 = vadd.f32 %v7520, %v8941
  %v9872 = vadd.f32 %v7521, %v9430
  %v9873 = vadd.f32 %v7522, %v8944
  %v9874 = vadd.f32 %v7523, %v9433
  %v9875 = vadd.f32 %v7524, %v8946
  %v9876 = vadd.f32 %v7525, %v9435
  %v9877 = vadd.f32 %v7526, %v8949
  %v9878 = vadd.f32 %v7527, %v9438
  %v9879 = vadd.f32 %v7528, %v8951
  %v9880 = vadd.f32 %v7529, %v9440
  %v9881 = vadd.f32 %v7530, %v8954
  %v9882 = vadd.f32 %v7531, %v9443
  %v9883 = vadd.f32 %v7532, %v8956
  %v9884 = vadd.f32 %v7533, %v9445
  %v9885 = vadd.f32 %v7534, %v8959
  %v9886 = vadd.f32 %v7535, %v9448
  %v9887 = vadd.f32 %v7536, %v8961
  %v9888 = vadd.f32 %v7537, %v9450
  %v9889 = vadd.f32 %v7538, %v8964
  %v9890 = vadd.f32 %v7539, %v9453
  %v9891 = vadd.f32 %v7540, %v8966
  %v9892 = vadd.f32 %v7541, %v9455
  %v9893 = vadd.f32 %v7542, %v8969
  %v9894 = vadd.f32 %v7543, %v9458
  %v9895 = vadd.f32 %v7544, %v8971
  %v9896 = vadd.f32 %v7545, %v9460
  %v9897 = vadd.f32 %v7546, %v8974
  %v9898 = vadd.f32 %v7547, %v9463
  %v9899 = vadd.f32 %v7548, %v8976
  %v9900 = vadd.f32 %v7549, %v9465
  %v9901 = vadd.f32 %v7550, %v8979
  %v9902 = vadd.f32 %v7551, %v9468
  %v9903 = vadd.f32 %v7552, %v8981
  %v9904 = vadd.f32 %v7553, %v9470
  %v9905 = vadd.f32 %v7554, %v8984
  %v9906 = vadd.f32 %v7555, %v9473
  %v9907 = vadd.f32 %v7556, %v8986
  %v9908 = vadd.f32 %v7557, %v9475
  %v9909 = vadd.f32 %v7558, %v8989
  %v9910 = vadd.f32 %v7559, %v9478
  %v9911 = vadd.f32 %v7560, %v8991
  %v9912 = vadd.f32 %v7561, %v9480
  %v9913 = vadd.f32 %v7562, %v8994
  %v9914 = vadd.f32 %v7563, %v9483
  %v9915 = vadd.f32 %v7564, %v8996
  %v9916 = vadd.f32 %v7565, %v9485
  %v9917 = vadd.f32 %v7566, %v8999
  %v9918 = vadd.f32 %v7567, %v9488
  %v9919 = vadd.f32 %v7568, %v9001
  %v9920 = vadd.f32 %v7569, %v9490
  %v9921 = vadd.f32 %v7570, %v9004
  %v9922 = vadd.f32 %v7571, %v9493
  %v9923 = vadd.f32 %v7572, %v9006
  %v9924 = vadd.f32 %v7573, %v9495
  %v9925 = vadd.f32 %v7574, %v9009
  %v9926 = vadd.f32 %v7575, %v9498
  %v9927 = vadd.f32 %v7576, %v9011
  %v9928 = vadd.f32 %v7577, %v9500
  %v9929 = vadd.f32 %v7578, %v9014
  %v9930 = vadd.f32 %v7579, %v9503
  %v9931 = vadd.f32 %v7580, %v9016
  %v9932 = vadd.f32 %v7581, %v9505
  %v9933 = vadd.f32 %v7582, %v9019
  %v9934 = vadd.f32 %v7583, %v9508
  %v9935 = vadd.f32 %v7584, %v9021
  %v9936 = vadd.f32 %v7585, %v9510
  %v9937 = vadd.f32 %v7586, %v9024
  %v9938 = vadd.f32 %v7587, %v9513
  %v9939 = vadd.f32 %v7588, %v9026
  %v9940 = vadd.f32 %v7589, %v9515
  %v9941 = vadd.f32 %v7590, %v9029
  %v9942 = vadd.f32 %v7591, %v9518
  %v9943 = vadd.f32 %v7592, %v9031
  %v9944 = vadd.f32 %v7593, %v9520
  %v9945 = vadd.f32 %v7594, %v9034
  %v9946 = vadd.f32 %v7595, %v9523
  %v9947 = vadd.f32 %v7596, %v9036
  %v9948 = vadd.f32 %v7597, %v9525
  %v9949 = vadd.f32 %v7598, %v9039
  %v9950 = vadd.f32 %v7599, %v9528
  %v9951 = vadd.f32 %v7600, %v9041
  %v9952 = vadd.f32 %v7601, %v9530
  %v9953 = vadd.f32 %v7602, %v9044
  %v9954 = vadd.f32 %v7603, %v9533
  %v9955 = vadd.f32 %v7604, %v9046
  %v9956 = vadd.f32 %v7605, %v9535
  %v9957 = vadd.f32 %v7606, %v9049
  %v9958 = vadd.f32 %v7607, %v9538
  %v9959 = vadd.f32 %v7608, %v9051
  %v9960 = vadd.f32 %v7609, %v9540
  %v9961 = vadd.f32 %v7610, %v9054
  %v9962 = vadd.f32 %v7611, %v9543
  %v9963 = vadd.f32 %v7612, %v9056
  %v9964 = vadd.f32 %v7613, %v9545
  %v9965 = vadd.f32 %v7614, %v9059
  %v9966 = vadd.f32 %v7615, %v9548
  %v9967 = vadd.f32 %v7616, %v9061
  %v9968 = vadd.f32 %v7617, %v9550
  %v9969 = vadd.f32 %v7618, %v9064
  %v9970 = vadd.f32 %v7619, %v9553
  %v9971 = vadd.f32 %v7620, %v9066
  %v9972 = vadd.f32 %v7621, %v9555
  %v9973 = vadd.f32 %v7622, %v9069
  %v9974 = vadd.f32 %v7623, %v9558
  %v9975 = vadd.f32 %v7624, %v9071
  %v9976 = vadd.f32 %v7625, %v9560
  %v9977 = vadd.f32 %v7626, %v9074
  %v9978 = vadd.f32 %v7627, %v9563
  %v9979 = vadd.f32 %v7628, %v9076
  %v9980 = vadd.f32 %v7629, %v9565
  %v9981 = vadd.f32 %v7630, %v9079
  %v9982 = vadd.f32 %v7631, %v9568
  %v9983 = vadd.f32 %v7632, %v9081
  %v9984 = vadd.f32 %v7633, %v9570
  %v9985 = vadd.f32 %v7634, %v9084
  %v9986 = vadd.f32 %v7635, %v9573
  %v9987 = vadd.f32 %v7636, %v9086
  %v9988 = vadd.f32 %v7637, %v9575
  %v9989 = vadd.f32 %v7638, %v9089
  %v9990 = vadd.f32 %v7639, %v9578
  %v9991 = vadd.f32 %v7640, %v9091
  %v9992 = vadd.f32 %v7641, %v9580
  %v9993 = vadd.f32 %v7642, %v9094
  %v9994 = vadd.f32 %v7643, %v9583
  %v9995 = vadd.f32 %v7644, %v9096
  %v9996 = vadd.f32 %v7645, %v9585
  %v9997 = vadd.f32 %v7646, %v9099
  %v9998 = vadd.f32 %v7647, %v9588
  %v9999 = vadd.f32 %v7648, %v9101
  %v10000 = vadd.f32 %v7649, %v9590
  %v10001 = vadd.f32 %v7650, %v9104
  %v10002 = vadd.f32 %v7651, %v9593
  %v10003 = vadd.f32 %v7652, %v9106
  %v10004 = vadd.f32 %v7653, %v9595
  %v10005 = vadd.f32 %v7654, %v9109
  %v10006 = vadd.f32 %v7655, %v9598
  %v10007 = vadd.f32 %v7656, %v9111
  %v10008 = vadd.f32 %v7657, %v9600
  %v10009 = vadd.f32 %v7658, %v9114
  %v10010 = vadd.f32 %v7659, %v9603
  %v10011 = vadd.f32 %v7660, %v9116
  %v10012 = vadd.f32 %v7661, %v9605
  %v10013 = vadd.f32 %v7662, %v9119
  %v10014 = vadd.f32 %v7663, %v9608
  %v10015 = vadd.f32 %v7664, %v9121
  %v10016 = vadd.f32 %v7665, %v9610
  %v10017 = vadd.f32 %v7666, %v9124
  %v10018 = vadd.f32 %v7667, %v9613
  %v10019 = vadd.f32 %v7668, %v9126
  %v10020 = vadd.f32 %v7669, %v9615
  %v10021 = vadd.f32 %v7670, %v9129
  %v10022 = vadd.f32 %v7671, %v9618
  %v10023 = vadd.f32 %v7672, %v9131
  %v10024 = vadd.f32 %v7673, %v9620
  %v10025 = vadd.f32 %v7674, %v9134
  %v10026 = vadd.f32 %v7675, %v9623
  %v10027 = vadd.f32 %v7676, %v9136
  %v10028 = vadd.f32 %v7677, %v9625
  %v10029 = vadd.f32 %v7678, %v9139
  %v10030 = vadd.f32 %v7679, %v9628
  %v10031 = vadd.f32 %v7680, %v9141
  %v10032 = vadd.f32 %v7681, %v9630
  %v10033 = vadd.f32 %v7682, %v9144
  %v10034 = vadd.f32 %v7683, %v9633
  %v10035 = vadd.f32 %v7684, %v9146
  %v10036 = vadd.f32 %v7685, %v9635
  %v10037 = vadd.f32 %v7686, %v9149
  %v10038 = vadd.f32 %v7687, %v9638
  %v10039 = vadd.f32 %v7688, %v9151
  %v10040 = vadd.f32 %v7689, %v9640
  %v10041 = vadd.f32 %v7690, %v9154
  %v10042 = vadd.f32 %v7691, %v9643
  %v10043 = vadd.f32 %v7692, %v9156
  %v10044 = vadd.f32 %v7693, %v9645
  %v10045 = vadd.f32 %v7694, %v9159
  %v10046 = vadd.f32 %v7695, %v9648
  %v10047 = vadd.f32 %v7696, %v9161
  %v10048 = vadd.f32 %v7697, %v9650
  %v10049 = vadd.f32 %v7698, %v9164
  %v10050 = vadd.f32 %v7699, %v9653
  %v10051 = vadd.f32 %v7700, %v9166
  %v10052 = vadd.f32 %v7701, %v9655
  %v10053 = vadd.f32 %v7702, %v9169
  %v10054 = vadd.f32 %v7703, %v9658
  %v10055 = vadd.f32 %v7704, %v9171
  %v10056 = vadd.f32 %v7705, %v9660
  %v10057 = vadd.f32 %v7706, %v9174
  %v10058 = vadd.f32 %v7707, %v9663
  %v10059 = vadd.f32 %v7708, %v9176
  %v10060 = vadd.f32 %v7709, %v9665
  %v10061 = vadd.f32 %v7710, %v9179
  %v10062 = vadd.f32 %v7711, %v9668
  %v10063 = vadd.f32 %v7712, %v9181
  %v10064 = vadd.f32 %v7713, %v9670
  %v10065 = vadd.f32 %v7714, %v9184
  %v10066 = vadd.f32 %v7715, %v9673
  %v10067 = vadd.f32 %v7716, %v9186
  %v10068 = vadd.f32 %v7717, %v9675
  %v10069 = vadd.f32 %v7718, %v9189
  %v10070 = vadd.f32 %v7719, %v9678
  %v10071 = vadd.f32 %v7720, %v9191
  %v10072 = vadd.f32 %v7721, %v9680
  %v10073 = vadd.f32 %v7722, %v9194
  %v10074 = vadd.f32 %v7723, %v9683
  %v10075 = vadd.f32 %v7724, %v9196
  %v10076 = vadd.f32 %v7725, %v9685
  %v10077 = vadd.f32 %v7726, %v9199
  %v10078 = vadd.f32 %v7727, %v9688
  %v10079 = vadd.f32 %v7728, %v9201
  %v10080 = vadd.f32 %v7729, %v9690
  %v10081 = vadd.f32 %v7730, %v9204
  %v10082 = vadd.f32 %v7731, %v9693
  %v10083 = vadd.f32 %v7732, %v9206
  %v10084 = vadd.f32 %v7733, %v9695
  %v10085 = vadd.f32 %v7734, %v9209
  %v10086 = vadd.f32 %v7735, %v9698
  %v10087 = vadd.f32 %v7736, %v9211
  %v10088 = vadd.f32 %v7737, %v9700
  %v10089 = vadd.f32 %v7738, %v9214
  %v10090 = vadd.f32 %v7739, %v9703
  %v10091 = vadd.f32 %v7740, %v9216
  %v10092 = vadd.f32 %v7741, %v9705
  %v10093 = vadd.f32 %v7742, %v9219
  %v10094 = vadd.f32 %v7743, %v9708
  %v10095 = vadd.f32 %v7744, %v9221
  %v10096 = vadd.f32 %v7745, %v9710
  %v10097 = vadd.f32 %v7746, %v9224
  %v10098 = vadd.f32 %v7747, %v9713
  %v10099 = vadd.f32 %v7748, %v9226
  %v10100 = vadd.f32 %v7749, %v9715
  %v10101 = vmax.f32 %v9717, %v9718
  %v10102 = vmax.f32 %v9719, %v9720
  %v10103 = vmax.f32 %v9721, %v9722
  %v10104 = vmax.f32 %v9723, %v9724
  %v10105 = vmax.f32 %v9725, %v9726
  %v10106 = vmax.f32 %v9727, %v9728
  %v10107 = vmax.f32 %v9729, %v9730
  %v10108 = vmax.f32 %v9731, %v9732
  %v10109 = vmax.f32 %v9733, %v9734
  %v10110 = vmax.f32 %v9735, %v9736
  %v10111 = vmax.f32 %v9737, %v9738
  %v10112 = vmax.f32 %v9739, %v9740
  %v10113 = vmax.f32 %v9741, %v9742
  %v10114 = vmax.f32 %v9743, %v9744
  %v10115 = vmax.f32 %v9745, %v9746
  %v10116 = vmax.f32 %v9747, %v9748
  %v10117 = vmax.f32 %v9749, %v9750
  %v10118 = vmax.f32 %v9751, %v9752
  %v10119 = vmax.f32 %v9753, %v9754
  %v10120 = vmax.f32 %v9755, %v9756
  %v10121 = vmax.f32 %v9757, %v9758
  %v10122 = vmax.f32 %v9759, %v9760
  %v10123 = vmax.f32 %v9761, %v9762
  %v10124 = vmax.f32 %v9763, %v9764
  %v10125 = vmax.f32 %v9765, %v9766
  %v10126 = vmax.f32 %v9767, %v9768
  %v10127 = vmax.f32 %v9769, %v9770
  %v10128 = vmax.f32 %v9771, %v9772
  %v10129 = vmax.f32 %v9773, %v9774
  %v10130 = vmax.f32 %v9775, %v9776
  %v10131 = vmax.f32 %v9777, %v9778
  %v10132 = vmax.f32 %v9779, %v9780
  %v10133 = vmax.f32 %v9781, %v9782
  %v10134 = vmax.f32 %v9783, %v9784
  %v10135 = vmax.f32 %v9785, %v9786
  %v10136 = vmax.f32 %v9787, %v9788
  %v10137 = vmax.f32 %v9789, %v9790
  %v10138 = vmax.f32 %v9791, %v9792
  %v10139 = vmax.f32 %v9793, %v9794
  %v10140 = vmax.f32 %v9795, %v9796
  %v10141 = vmax.f32 %v9797, %v9798
  %v10142 = vmax.f32 %v9799, %v9800
  %v10143 = vmax.f32 %v9801, %v9802
  %v10144 = vmax.f32 %v9803, %v9804
  %v10145 = vmax.f32 %v9805, %v9806
  %v10146 = vmax.f32 %v9807, %v9808
  %v10147 = vmax.f32 %v9809, %v9810
  %v10148 = vmax.f32 %v9811, %v9812
  %v10149 = vmax.f32 %v9813, %v9814
  %v10150 = vmax.f32 %v9815, %v9816
  %v10151 = vmax.f32 %v9817, %v9818
  %v10152 = vmax.f32 %v9819, %v9820
  %v10153 = vmax.f32 %v9821, %v9822
  %v10154 = vmax.f32 %v9823, %v9824
  %v10155 = vmax.f32 %v9825, %v9826
  %v10156 = vmax.f32 %v9827, %v9828
  %v10157 = vmax.f32 %v9829, %v9830
  %v10158 = vmax.f32 %v9831, %v9832
  %v10159 = vmax.f32 %v9833, %v9834
  %v10160 = vmax.f32 %v9835, %v9836
  %v10161 = vmax.f32 %v9837, %v9838
  %v10162 = vmax.f32 %v9839, %v9840
  %v10163 = vmax.f32 %v9841, %v9842
  %v10164 = vmax.f32 %v9843, %v9844
  %v10165 = vmax.f32 %v9845, %v9846
  %v10166 = vmax.f32 %v9847, %v9848
  %v10167 = vmax.f32 %v9849, %v9850
  %v10168 = vmax.f32 %v9851, %v9852
  %v10169 = vmax.f32 %v9853, %v9854
  %v10170 = vmax.f32 %v9855, %v9856
  %v10171 = vmax.f32 %v9857, %v9858
  %v10172 = vmax.f32 %v9859, %v9860
  %v10173 = vmax.f32 %v9861, %v9862
  %v10174 = vmax.f32 %v9863, %v9864
  %v10175 = vmax.f32 %v9865, %v9866
  %v10176 = vmax.f32 %v9867, %v9868
  %v10177 = vmax.f32 %v9869, %v9870
  %v10178 = vmax.f32 %v9871, %v9872
  %v10179 = vmax.f32 %v9873, %v9874
  %v10180 = vmax.f32 %v9875, %v9876
  %v10181 = vmax.f32 %v9877, %v9878
  %v10182 = vmax.f32 %v9879, %v9880
  %v10183 = vmax.f32 %v9881, %v9882
  %v10184 = vmax.f32 %v9883, %v9884
  %v10185 = vmax.f32 %v9885, %v9886
  %v10186 = vmax.f32 %v9887, %v9888
  %v10187 = vmax.f32 %v9889, %v9890
  %v10188 = vmax.f32 %v9891, %v9892
  %v10189 = vmax.f32 %v9893, %v9894
  %v10190 = vmax.f32 %v9895, %v9896
  %v10191 = vmax.f32 %v9897, %v9898
  %v10192 = vmax.f32 %v9899, %v9900
  %v10193 = vmax.f32 %v9901, %v9902
  %v10194 = vmax.f32 %v9903, %v9904
  %v10195 = vmax.f32 %v9905, %v9906
  %v10196 = vmax.f32 %v9907, %v9908
  %v10197 = vmax.f32 %v9909, %v9910
  %v10198 = vmax.f32 %v9911, %v9912
  %v10199 = vmax.f32 %v9913, %v9914
  %v10200 = vmax.f32 %v9915, %v9916
  %v10201 = vmax.f32 %v9917, %v9918
  %v10202 = vmax.f32 %v9919, %v9920
  %v10203 = vmax.f32 %v9921, %v9922
  %v10204 = vmax.f32 %v9923, %v9924
  %v10205 = vmax.f32 %v9925, %v9926
  %v10206 = vmax.f32 %v9927, %v9928
  %v10207 = vmax.f32 %v9929, %v9930
  %v10208 = vmax.f32 %v9931, %v9932
  %v10209 = vmax.f32 %v9933, %v9934
  %v10210 = vmax.f32 %v9935, %v9936
  %v10211 = vmax.f32 %v9937, %v9938
  %v10212 = vmax.f32 %v9939, %v9940
  %v10213 = vmax.f32 %v9941, %v9942
  %v10214 = vmax.f32 %v9943, %v9944
  %v10215 = vmax.f32 %v9945, %v9946
  %v10216 = vmax.f32 %v9947, %v9948
  %v10217 = vmax.f32 %v9949, %v9950
  %v10218 = vmax.f32 %v9951, %v9952
  %v10219 = vmax.f32 %v9953, %v9954
  %v10220 = vmax.f32 %v9955, %v9956
  %v10221 = vmax.f32 %v9957, %v9958
  %v10222 = vmax.f32 %v9959, %v9960
  %v10223 = vmax.f32 %v9961, %v9962
  %v10224 = vmax.f32 %v9963, %v9964
  %v10225 = vmax.f32 %v9965, %v9966
  %v10226 = vmax.f32 %v9967, %v9968
  %v10227 = vmax.f32 %v9969, %v9970
  %v10228 = vmax.f32 %v9971, %v9972
  %v10229 = vmax.f32 %v9973, %v9974
  %v10230 = vmax.f32 %v9975, %v9976
  %v10231 = vmax.f32 %v9977, %v9978
  %v10232 = vmax.f32 %v9979, %v9980
  %v10233 = vmax.f32 %v9981, %v9982
  %v10234 = vmax.f32 %v9983, %v9984
  %v10235 = vmax.f32 %v9985, %v9986
  %v10236 = vmax.f32 %v9987, %v9988
  %v10237 = vmax.f32 %v9989, %v9990
  %v10238 = vmax.f32 %v9991, %v9992
  %v10239 = vmax.f32 %v9993, %v9994
  %v10240 = vmax.f32 %v9995, %v9996
  %v10241 = vmax.f32 %v9997, %v9998
  %v10242 = vmax.f32 %v9999, %v10000
  %v10243 = vmax.f32 %v10001, %v10002
  %v10244 = vmax.f32 %v10003, %v10004
  %v10245 = vmax.f32 %v10005, %v10006
  %v10246 = vmax.f32 %v10007, %v10008
  %v10247 = vmax.f32 %v10009, %v10010
  %v10248 = vmax.f32 %v10011, %v10012
  %v10249 = vmax.f32 %v10013, %v10014
  %v10250 = vmax.f32 %v10015, %v10016
  %v10251 = vmax.f32 %v10017, %v10018
  %v10252 = vmax.f32 %v10019, %v10020
  %v10253 = vmax.f32 %v10021, %v10022
  %v10254 = vmax.f32 %v10023, %v10024
  %v10255 = vmax.f32 %v10025, %v10026
  %v10256 = vmax.f32 %v10027, %v10028
  %v10257 = vmax.f32 %v10029, %v10030
  %v10258 = vmax.f32 %v10031, %v10032
  %v10259 = vmax.f32 %v10033, %v10034
  %v10260 = vmax.f32 %v10035, %v10036
  %v10261 = vmax.f32 %v10037, %v10038
  %v10262 = vmax.f32 %v10039, %v10040
  %v10263 = vmax.f32 %v10041, %v10042
  %v10264 = vmax.f32 %v10043, %v10044
  %v10265 = vmax.f32 %v10045, %v10046
  %v10266 = vmax.f32 %v10047, %v10048
  %v10267 = vmax.f32 %v10049, %v10050
  %v10268 = vmax.f32 %v10051, %v10052
  %v10269 = vmax.f32 %v10053, %v10054
  %v10270 = vmax.f32 %v10055, %v10056
  %v10271 = vmax.f32 %v10057, %v10058
  %v10272 = vmax.f32 %v10059, %v10060
  %v10273 = vmax.f32 %v10061, %v10062
  %v10274 = vmax.f32 %v10063, %v10064
  %v10275 = vmax.f32 %v10065, %v10066
  %v10276 = vmax.f32 %v10067, %v10068
  %v10277 = vmax.f32 %v10069, %v10070
  %v10278 = vmax.f32 %v10071, %v10072
  %v10279 = vmax.f32 %v10073, %v10074
  %v10280 = vmax.f32 %v10075, %v10076
  %v10281 = vmax.f32 %v10077, %v10078
  %v10282 = vmax.f32 %v10079, %v10080
  %v10283 = vmax.f32 %v10081, %v10082
  %v10284 = vmax.f32 %v10083, %v10084
  %v10285 = vmax.f32 %v10085, %v10086
  %v10286 = vmax.f32 %v10087, %v10088
  %v10287 = vmax.f32 %v10089, %v10090
  %v10288 = vmax.f32 %v10091, %v10092
  %v10289 = vmax.f32 %v10093, %v10094
  %v10290 = vmax.f32 %v10095, %v10096
  %v10291 = vmax.f32 %v10097, %v10098
  %v10292 = vmax.f32 %v10099, %v10100
  %v10293 = vld [vmem:[%s2] sm:$0x1]
  %v10295 = vperm.slane %v10293, 0
  %v10297 = vadd.f32 %v10101, %v10295
  %v10298 = vadd.f32 %v10102, %v10295
  %v10299 = vadd.f32 %v10103, %v10295
  %v10300 = vadd.f32 %v10104, %v10295
  %v10301 = vadd.f32 %v10105, %v10295
  %v10302 = vadd.f32 %v10106, %v10295
  %v10303 = vadd.f32 %v10107, %v10295
  %v10304 = vadd.f32 %v10108, %v10295
  %v10305 = vadd.f32 %v10109, %v10295
  %v10306 = vadd.f32 %v10110, %v10295
  %v10307 = vadd.f32 %v10111, %v10295
  %v10308 = vadd.f32 %v10112, %v10295
  %v10309 = vadd.f32 %v10113, %v10295
  %v10310 = vadd.f32 %v10114, %v10295
  %v10311 = vadd.f32 %v10115, %v10295
  %v10312 = vadd.f32 %v10116, %v10295
  %v10313 = vadd.f32 %v10117, %v10295
  %v10314 = vadd.f32 %v10118, %v10295
  %v10315 = vadd.f32 %v10119, %v10295
  %v10316 = vadd.f32 %v10120, %v10295
  %v10317 = vadd.f32 %v10121, %v10295
  %v10318 = vadd.f32 %v10122, %v10295
  %v10319 = vadd.f32 %v10123, %v10295
  %v10320 = vadd.f32 %v10124, %v10295
  %v10321 = vadd.f32 %v10125, %v10295
  %v10322 = vadd.f32 %v10126, %v10295
  %v10323 = vadd.f32 %v10127, %v10295
  %v10324 = vadd.f32 %v10128, %v10295
  %v10325 = vadd.f32 %v10129, %v10295
  %v10326 = vadd.f32 %v10130, %v10295
  %v10327 = vadd.f32 %v10131, %v10295
  %v10328 = vadd.f32 %v10132, %v10295
  %v10329 = vadd.f32 %v10133, %v10295
  %v10330 = vadd.f32 %v10134, %v10295
  %v10331 = vadd.f32 %v10135, %v10295
  %v10332 = vadd.f32 %v10136, %v10295
  %v10333 = vadd.f32 %v10137, %v10295
  %v10334 = vadd.f32 %v10138, %v10295
  %v10335 = vadd.f32 %v10139, %v10295
  %v10336 = vadd.f32 %v10140, %v10295
  %v10337 = vadd.f32 %v10141, %v10295
  %v10338 = vadd.f32 %v10142, %v10295
  %v10339 = vadd.f32 %v10143, %v10295
  %v10340 = vadd.f32 %v10144, %v10295
  %v10341 = vadd.f32 %v10145, %v10295
  %v10342 = vadd.f32 %v10146, %v10295
  %v10343 = vadd.f32 %v10147, %v10295
  %v10344 = vadd.f32 %v10148, %v10295
  %v10345 = vadd.f32 %v10149, %v10295
  %v10346 = vadd.f32 %v10150, %v10295
  %v10347 = vadd.f32 %v10151, %v10295
  %v10348 = vadd.f32 %v10152, %v10295
  %v10349 = vadd.f32 %v10153, %v10295
  %v10350 = vadd.f32 %v10154, %v10295
  %v10351 = vadd.f32 %v10155, %v10295
  %v10352 = vadd.f32 %v10156, %v10295
  %v10353 = vadd.f32 %v10157, %v10295
  %v10354 = vadd.f32 %v10158, %v10295
  %v10355 = vadd.f32 %v10159, %v10295
  %v10356 = vadd.f32 %v10160, %v10295
  %v10357 = vadd.f32 %v10161, %v10295
  %v10358 = vadd.f32 %v10162, %v10295
  %v10359 = vadd.f32 %v10163, %v10295
  %v10360 = vadd.f32 %v10164, %v10295
  %v10361 = vadd.f32 %v10165, %v10295
  %v10362 = vadd.f32 %v10166, %v10295
  %v10363 = vadd.f32 %v10167, %v10295
  %v10364 = vadd.f32 %v10168, %v10295
  %v10365 = vadd.f32 %v10169, %v10295
  %v10366 = vadd.f32 %v10170, %v10295
  %v10367 = vadd.f32 %v10171, %v10295
  %v10368 = vadd.f32 %v10172, %v10295
  %v10369 = vadd.f32 %v10173, %v10295
  %v10370 = vadd.f32 %v10174, %v10295
  %v10371 = vadd.f32 %v10175, %v10295
  %v10372 = vadd.f32 %v10176, %v10295
  %v10373 = vadd.f32 %v10177, %v10295
  %v10374 = vadd.f32 %v10178, %v10295
  %v10375 = vadd.f32 %v10179, %v10295
  %v10376 = vadd.f32 %v10180, %v10295
  %v10377 = vadd.f32 %v10181, %v10295
  %v10378 = vadd.f32 %v10182, %v10295
  %v10379 = vadd.f32 %v10183, %v10295
  %v10380 = vadd.f32 %v10184, %v10295
  %v10381 = vadd.f32 %v10185, %v10295
  %v10382 = vadd.f32 %v10186, %v10295
  %v10383 = vadd.f32 %v10187, %v10295
  %v10384 = vadd.f32 %v10188, %v10295
  %v10385 = vadd.f32 %v10189, %v10295
  %v10386 = vadd.f32 %v10190, %v10295
  %v10387 = vadd.f32 %v10191, %v10295
  %v10388 = vadd.f32 %v10192, %v10295
  %v10389 = vadd.f32 %v10193, %v10295
  %v10390 = vadd.f32 %v10194, %v10295
  %v10391 = vadd.f32 %v10195, %v10295
  %v10392 = vadd.f32 %v10196, %v10295
  %v10393 = vadd.f32 %v10197, %v10295
  %v10394 = vadd.f32 %v10198, %v10295
  %v10395 = vadd.f32 %v10199, %v10295
  %v10396 = vadd.f32 %v10200, %v10295
  %v10397 = vadd.f32 %v10201, %v10295
  %v10398 = vadd.f32 %v10202, %v10295
  %v10399 = vadd.f32 %v10203, %v10295
  %v10400 = vadd.f32 %v10204, %v10295
  %v10401 = vadd.f32 %v10205, %v10295
  %v10402 = vadd.f32 %v10206, %v10295
  %v10403 = vadd.f32 %v10207, %v10295
  %v10404 = vadd.f32 %v10208, %v10295
  %v10405 = vadd.f32 %v10209, %v10295
  %v10406 = vadd.f32 %v10210, %v10295
  %v10407 = vadd.f32 %v10211, %v10295
  %v10408 = vadd.f32 %v10212, %v10295
  %v10409 = vadd.f32 %v10213, %v10295
  %v10410 = vadd.f32 %v10214, %v10295
  %v10411 = vadd.f32 %v10215, %v10295
  %v10412 = vadd.f32 %v10216, %v10295
  %v10413 = vadd.f32 %v10217, %v10295
  %v10414 = vadd.f32 %v10218, %v10295
  %v10415 = vadd.f32 %v10219, %v10295
  %v10416 = vadd.f32 %v10220, %v10295
  %v10417 = vadd.f32 %v10221, %v10295
  %v10418 = vadd.f32 %v10222, %v10295
  %v10419 = vadd.f32 %v10223, %v10295
  %v10420 = vadd.f32 %v10224, %v10295
  %v10421 = vadd.f32 %v10225, %v10295
  %v10422 = vadd.f32 %v10226, %v10295
  %v10423 = vadd.f32 %v10227, %v10295
  %v10424 = vadd.f32 %v10228, %v10295
  %v10425 = vadd.f32 %v10229, %v10295
  %v10426 = vadd.f32 %v10230, %v10295
  %v10427 = vadd.f32 %v10231, %v10295
  %v10428 = vadd.f32 %v10232, %v10295
  %v10429 = vadd.f32 %v10233, %v10295
  %v10430 = vadd.f32 %v10234, %v10295
  %v10431 = vadd.f32 %v10235, %v10295
  %v10432 = vadd.f32 %v10236, %v10295
  %v10433 = vadd.f32 %v10237, %v10295
  %v10434 = vadd.f32 %v10238, %v10295
  %v10435 = vadd.f32 %v10239, %v10295
  %v10436 = vadd.f32 %v10240, %v10295
  %v10437 = vadd.f32 %v10241, %v10295
  %v10438 = vadd.f32 %v10242, %v10295
  %v10439 = vadd.f32 %v10243, %v10295
  %v10440 = vadd.f32 %v10244, %v10295
  %v10441 = vadd.f32 %v10245, %v10295
  %v10442 = vadd.f32 %v10246, %v10295
  %v10443 = vadd.f32 %v10247, %v10295
  %v10444 = vadd.f32 %v10248, %v10295
  %v10445 = vadd.f32 %v10249, %v10295
  %v10446 = vadd.f32 %v10250, %v10295
  %v10447 = vadd.f32 %v10251, %v10295
  %v10448 = vadd.f32 %v10252, %v10295
  %v10449 = vadd.f32 %v10253, %v10295
  %v10450 = vadd.f32 %v10254, %v10295
  %v10451 = vadd.f32 %v10255, %v10295
  %v10452 = vadd.f32 %v10256, %v10295
  %v10453 = vadd.f32 %v10257, %v10295
  %v10454 = vadd.f32 %v10258, %v10295
  %v10455 = vadd.f32 %v10259, %v10295
  %v10456 = vadd.f32 %v10260, %v10295
  %v10457 = vadd.f32 %v10261, %v10295
  %v10458 = vadd.f32 %v10262, %v10295
  %v10459 = vadd.f32 %v10263, %v10295
  %v10460 = vadd.f32 %v10264, %v10295
  %v10461 = vadd.f32 %v10265, %v10295
  %v10462 = vadd.f32 %v10266, %v10295
  %v10463 = vadd.f32 %v10267, %v10295
  %v10464 = vadd.f32 %v10268, %v10295
  %v10465 = vadd.f32 %v10269, %v10295
  %v10466 = vadd.f32 %v10270, %v10295
  %v10467 = vadd.f32 %v10271, %v10295
  %v10468 = vadd.f32 %v10272, %v10295
  %v10469 = vadd.f32 %v10273, %v10295
  %v10470 = vadd.f32 %v10274, %v10295
  %v10471 = vadd.f32 %v10275, %v10295
  %v10472 = vadd.f32 %v10276, %v10295
  %v10473 = vadd.f32 %v10277, %v10295
  %v10474 = vadd.f32 %v10278, %v10295
  %v10475 = vadd.f32 %v10279, %v10295
  %v10476 = vadd.f32 %v10280, %v10295
  %v10477 = vadd.f32 %v10281, %v10295
  %v10478 = vadd.f32 %v10282, %v10295
  %v10479 = vadd.f32 %v10283, %v10295
  %v10480 = vadd.f32 %v10284, %v10295
  %v10481 = vadd.f32 %v10285, %v10295
  %v10482 = vadd.f32 %v10286, %v10295
  %v10483 = vadd.f32 %v10287, %v10295
  %v10484 = vadd.f32 %v10288, %v10295
  %v10485 = vadd.f32 %v10289, %v10295
  %v10486 = vadd.f32 %v10290, %v10295
  %v10487 = vadd.f32 %v10291, %v10295
  %v10488 = vadd.f32 %v10292, %v10295
  %v10489 = vmax.f32 %v10297, %v10305
  %v10490 = vmax.f32 %v10298, %v10306
  %v10491 = vmax.f32 %v10299, %v10307
  %v10492 = vmax.f32 %v10300, %v10308
  %v10493 = vmax.f32 %v10301, %v10309
  %v10494 = vmax.f32 %v10302, %v10310
  %v10495 = vmax.f32 %v10303, %v10311
  %v10496 = vmax.f32 %v10304, %v10312
  %v10497 = vmax.f32 %v10313, %v10321
  %v10498 = vmax.f32 %v10314, %v10322
  %v10499 = vmax.f32 %v10315, %v10323
  %v10500 = vmax.f32 %v10316, %v10324
  %v10501 = vmax.f32 %v10317, %v10325
  %v10502 = vmax.f32 %v10318, %v10326
  %v10503 = vmax.f32 %v10319, %v10327
  %v10504 = vmax.f32 %v10320, %v10328
  %v10505 = vmax.f32 %v10329, %v10337
  %v10506 = vmax.f32 %v10330, %v10338
  %v10507 = vmax.f32 %v10331, %v10339
  %v10508 = vmax.f32 %v10332, %v10340
  %v10509 = vmax.f32 %v10333, %v10341
  %v10510 = vmax.f32 %v10334, %v10342
  %v10511 = vmax.f32 %v10335, %v10343
  %v10512 = vmax.f32 %v10336, %v10344
  %v10513 = vmax.f32 %v10345, %v10353
  %v10514 = vmax.f32 %v10346, %v10354
  %v10515 = vmax.f32 %v10347, %v10355
  %v10516 = vmax.f32 %v10348, %v10356
  %v10517 = vmax.f32 %v10349, %v10357
  %v10518 = vmax.f32 %v10350, %v10358
  %v10519 = vmax.f32 %v10351, %v10359
  %v10520 = vmax.f32 %v10352, %v10360
  %v10521 = vmax.f32 %v10361, %v10369
  %v10522 = vmax.f32 %v10362, %v10370
  %v10523 = vmax.f32 %v10363, %v10371
  %v10524 = vmax.f32 %v10364, %v10372
  %v10525 = vmax.f32 %v10365, %v10373
  %v10526 = vmax.f32 %v10366, %v10374
  %v10527 = vmax.f32 %v10367, %v10375
  %v10528 = vmax.f32 %v10368, %v10376
  %v10529 = vmax.f32 %v10377, %v10385
  %v10530 = vmax.f32 %v10378, %v10386
  %v10531 = vmax.f32 %v10379, %v10387
  %v10532 = vmax.f32 %v10380, %v10388
  %v10533 = vmax.f32 %v10381, %v10389
  %v10534 = vmax.f32 %v10382, %v10390
  %v10535 = vmax.f32 %v10383, %v10391
  %v10536 = vmax.f32 %v10384, %v10392
  %v10537 = vmax.f32 %v10393, %v10401
  %v10538 = vmax.f32 %v10394, %v10402
  %v10539 = vmax.f32 %v10395, %v10403
  %v10540 = vmax.f32 %v10396, %v10404
  %v10541 = vmax.f32 %v10397, %v10405
  %v10542 = vmax.f32 %v10398, %v10406
  %v10543 = vmax.f32 %v10399, %v10407
  %v10544 = vmax.f32 %v10400, %v10408
  %v10545 = vmax.f32 %v10409, %v10417
  %v10546 = vmax.f32 %v10410, %v10418
  %v10547 = vmax.f32 %v10411, %v10419
  %v10548 = vmax.f32 %v10412, %v10420
  %v10549 = vmax.f32 %v10413, %v10421
  %v10550 = vmax.f32 %v10414, %v10422
  %v10551 = vmax.f32 %v10415, %v10423
  %v10552 = vmax.f32 %v10416, %v10424
  %v10553 = vmax.f32 %v10425, %v10433
  %v10554 = vmax.f32 %v10426, %v10434
  %v10555 = vmax.f32 %v10427, %v10435
  %v10556 = vmax.f32 %v10428, %v10436
  %v10557 = vmax.f32 %v10429, %v10437
  %v10558 = vmax.f32 %v10430, %v10438
  %v10559 = vmax.f32 %v10431, %v10439
  %v10560 = vmax.f32 %v10432, %v10440
  %v10561 = vmax.f32 %v10441, %v10449
  %v10562 = vmax.f32 %v10442, %v10450
  %v10563 = vmax.f32 %v10443, %v10451
  %v10564 = vmax.f32 %v10444, %v10452
  %v10565 = vmax.f32 %v10445, %v10453
  %v10566 = vmax.f32 %v10446, %v10454
  %v10567 = vmax.f32 %v10447, %v10455
  %v10568 = vmax.f32 %v10448, %v10456
  %v10569 = vmax.f32 %v10457, %v10465
  %v10570 = vmax.f32 %v10458, %v10466
  %v10571 = vmax.f32 %v10459, %v10467
  %v10572 = vmax.f32 %v10460, %v10468
  %v10573 = vmax.f32 %v10461, %v10469
  %v10574 = vmax.f32 %v10462, %v10470
  %v10575 = vmax.f32 %v10463, %v10471
  %v10576 = vmax.f32 %v10464, %v10472
  %v10577 = vmax.f32 %v10473, %v10481
  %v10578 = vmax.f32 %v10474, %v10482
  %v10579 = vmax.f32 %v10475, %v10483
  %v10580 = vmax.f32 %v10476, %v10484
  %v10581 = vmax.f32 %v10477, %v10485
  %v10582 = vmax.f32 %v10478, %v10486
  %v10583 = vmax.f32 %v10479, %v10487
  %v10584 = vmax.f32 %v10480, %v10488
  %v10585 = vmax.f32 %v10489, 0.0
  %v10586 = vmax.f32 %v10490, 0.0
  %v10587 = vmax.f32 %v10491, 0.0
  %v10588 = vmax.f32 %v10492, 0.0
  %v10589 = vmax.f32 %v10493, 0.0
  %v10590 = vmax.f32 %v10494, 0.0
  %v10591 = vmax.f32 %v10495, 0.0
  %v10592 = vmax.f32 %v10496, 0.0
  %v10593 = vmax.f32 %v10497, 0.0
  %v10594 = vmax.f32 %v10498, 0.0
  %v10595 = vmax.f32 %v10499, 0.0
  %v10596 = vmax.f32 %v10500, 0.0
  %v10597 = vmax.f32 %v10501, 0.0
  %v10598 = vmax.f32 %v10502, 0.0
  %v10599 = vmax.f32 %v10503, 0.0
  %v10600 = vmax.f32 %v10504, 0.0
  %v10601 = vmax.f32 %v10505, 0.0
  %v10602 = vmax.f32 %v10506, 0.0
  %v10603 = vmax.f32 %v10507, 0.0
  %v10604 = vmax.f32 %v10508, 0.0
  %v10605 = vmax.f32 %v10509, 0.0
  %v10606 = vmax.f32 %v10510, 0.0
  %v10607 = vmax.f32 %v10511, 0.0
  %v10608 = vmax.f32 %v10512, 0.0
  %v10609 = vmax.f32 %v10513, 0.0
  %v10610 = vmax.f32 %v10514, 0.0
  %v10611 = vmax.f32 %v10515, 0.0
  %v10612 = vmax.f32 %v10516, 0.0
  %v10613 = vmax.f32 %v10517, 0.0
  %v10614 = vmax.f32 %v10518, 0.0
  %v10615 = vmax.f32 %v10519, 0.0
  %v10616 = vmax.f32 %v10520, 0.0
  %v10617 = vmax.f32 %v10521, 0.0
  %v10618 = vmax.f32 %v10522, 0.0
  %v10619 = vmax.f32 %v10523, 0.0
  %v10620 = vmax.f32 %v10524, 0.0
  %v10621 = vmax.f32 %v10525, 0.0
  %v10622 = vmax.f32 %v10526, 0.0
  %v10623 = vmax.f32 %v10527, 0.0
  %v10624 = vmax.f32 %v10528, 0.0
  %v10625 = vmax.f32 %v10529, 0.0
  %v10626 = vmax.f32 %v10530, 0.0
  %v10627 = vmax.f32 %v10531, 0.0
  %v10628 = vmax.f32 %v10532, 0.0
  %v10629 = vmax.f32 %v10533, 0.0
  %v10630 = vmax.f32 %v10534, 0.0
  %v10631 = vmax.f32 %v10535, 0.0
  %v10632 = vmax.f32 %v10536, 0.0
  %v10633 = vmax.f32 %v10537, 0.0
  %v10634 = vmax.f32 %v10538, 0.0
  %v10635 = vmax.f32 %v10539, 0.0
  %v10636 = vmax.f32 %v10540, 0.0
  %v10637 = vmax.f32 %v10541, 0.0
  %v10638 = vmax.f32 %v10542, 0.0
  %v10639 = vmax.f32 %v10543, 0.0
  %v10640 = vmax.f32 %v10544, 0.0
  %v10641 = vmax.f32 %v10545, 0.0
  %v10642 = vmax.f32 %v10546, 0.0
  %v10643 = vmax.f32 %v10547, 0.0
  %v10644 = vmax.f32 %v10548, 0.0
  %v10645 = vmax.f32 %v10549, 0.0
  %v10646 = vmax.f32 %v10550, 0.0
  %v10647 = vmax.f32 %v10551, 0.0
  %v10648 = vmax.f32 %v10552, 0.0
  %v10649 = vmax.f32 %v10553, 0.0
  %v10650 = vmax.f32 %v10554, 0.0
  %v10651 = vmax.f32 %v10555, 0.0
  %v10652 = vmax.f32 %v10556, 0.0
  %v10653 = vmax.f32 %v10557, 0.0
  %v10654 = vmax.f32 %v10558, 0.0
  %v10655 = vmax.f32 %v10559, 0.0
  %v10656 = vmax.f32 %v10560, 0.0
  %v10657 = vmax.f32 %v10561, 0.0
  %v10658 = vmax.f32 %v10562, 0.0
  %v10659 = vmax.f32 %v10563, 0.0
  %v10660 = vmax.f32 %v10564, 0.0
  %v10661 = vmax.f32 %v10565, 0.0
  %v10662 = vmax.f32 %v10566, 0.0
  %v10663 = vmax.f32 %v10567, 0.0
  %v10664 = vmax.f32 %v10568, 0.0
  %v10665 = vmax.f32 %v10569, 0.0
  %v10666 = vmax.f32 %v10570, 0.0
  %v10667 = vmax.f32 %v10571, 0.0
  %v10668 = vmax.f32 %v10572, 0.0
  %v10669 = vmax.f32 %v10573, 0.0
  %v10670 = vmax.f32 %v10574, 0.0
  %v10671 = vmax.f32 %v10575, 0.0
  %v10672 = vmax.f32 %v10576, 0.0
  %v10673 = vmax.f32 %v10577, 0.0
  %v10674 = vmax.f32 %v10578, 0.0
  %v10675 = vmax.f32 %v10579, 0.0
  %v10676 = vmax.f32 %v10580, 0.0
  %v10677 = vmax.f32 %v10581, 0.0
  %v10678 = vmax.f32 %v10582, 0.0
  %v10679 = vmax.f32 %v10583, 0.0
  %v10680 = vmax.f32 %v10584, 0.0
  %v10681 = vpack.c.bf16 %v10585, %v10585
  %v10682 = vpack.c.bf16 %v10586, %v10586
  %v10683 = vpack.c.bf16 %v10587, %v10587
  %v10684 = vpack.c.bf16 %v10588, %v10588
  %v10685 = vpack.c.bf16 %v10589, %v10589
  %v10686 = vpack.c.bf16 %v10590, %v10590
  %v10687 = vpack.c.bf16 %v10591, %v10591
  %v10688 = vpack.c.bf16 %v10592, %v10592
  %v10689 = vpack.c.bf16 %v10593, %v10593
  %v10690 = vpack.c.bf16 %v10594, %v10594
  %v10691 = vpack.c.bf16 %v10595, %v10595
  %v10692 = vpack.c.bf16 %v10596, %v10596
  %v10693 = vpack.c.bf16 %v10597, %v10597
  %v10694 = vpack.c.bf16 %v10598, %v10598
  %v10695 = vpack.c.bf16 %v10599, %v10599
  %v10696 = vpack.c.bf16 %v10600, %v10600
  %v10697 = vpack.c.bf16 %v10601, %v10601
  %v10698 = vpack.c.bf16 %v10602, %v10602
  %v10699 = vpack.c.bf16 %v10603, %v10603
  %v10700 = vpack.c.bf16 %v10604, %v10604
  %v10701 = vpack.c.bf16 %v10605, %v10605
  %v10702 = vpack.c.bf16 %v10606, %v10606
  %v10703 = vpack.c.bf16 %v10607, %v10607
  %v10704 = vpack.c.bf16 %v10608, %v10608
  %v10705 = vpack.c.bf16 %v10609, %v10609
  %v10706 = vpack.c.bf16 %v10610, %v10610
  %v10707 = vpack.c.bf16 %v10611, %v10611
  %v10708 = vpack.c.bf16 %v10612, %v10612
  %v10709 = vpack.c.bf16 %v10613, %v10613
  %v10710 = vpack.c.bf16 %v10614, %v10614
  %v10711 = vpack.c.bf16 %v10615, %v10615
  %v10712 = vpack.c.bf16 %v10616, %v10616
  %v10713 = vpack.c.bf16 %v10617, %v10617
  %v10714 = vpack.c.bf16 %v10618, %v10618
  %v10715 = vpack.c.bf16 %v10619, %v10619
  %v10716 = vpack.c.bf16 %v10620, %v10620
  %v10717 = vpack.c.bf16 %v10621, %v10621
  %v10718 = vpack.c.bf16 %v10622, %v10622
  %v10719 = vpack.c.bf16 %v10623, %v10623
  %v10720 = vpack.c.bf16 %v10624, %v10624
  %v10721 = vpack.c.bf16 %v10625, %v10625
  %v10722 = vpack.c.bf16 %v10626, %v10626
  %v10723 = vpack.c.bf16 %v10627, %v10627
  %v10724 = vpack.c.bf16 %v10628, %v10628
  %v10725 = vpack.c.bf16 %v10629, %v10629
  %v10726 = vpack.c.bf16 %v10630, %v10630
  %v10727 = vpack.c.bf16 %v10631, %v10631
  %v10728 = vpack.c.bf16 %v10632, %v10632
  %v10729 = vpack.c.bf16 %v10633, %v10633
  %v10730 = vpack.c.bf16 %v10634, %v10634
  %v10731 = vpack.c.bf16 %v10635, %v10635
  %v10732 = vpack.c.bf16 %v10636, %v10636
  %v10733 = vpack.c.bf16 %v10637, %v10637
  %v10734 = vpack.c.bf16 %v10638, %v10638
  %v10735 = vpack.c.bf16 %v10639, %v10639
  %v10736 = vpack.c.bf16 %v10640, %v10640
  %v10737 = vpack.c.bf16 %v10641, %v10641
  %v10738 = vpack.c.bf16 %v10642, %v10642
  %v10739 = vpack.c.bf16 %v10643, %v10643
  %v10740 = vpack.c.bf16 %v10644, %v10644
  %v10741 = vpack.c.bf16 %v10645, %v10645
  %v10742 = vpack.c.bf16 %v10646, %v10646
  %v10743 = vpack.c.bf16 %v10647, %v10647
  %v10744 = vpack.c.bf16 %v10648, %v10648
  %v10745 = vpack.c.bf16 %v10649, %v10649
  %v10746 = vpack.c.bf16 %v10650, %v10650
  %v10747 = vpack.c.bf16 %v10651, %v10651
  %v10748 = vpack.c.bf16 %v10652, %v10652
  %v10749 = vpack.c.bf16 %v10653, %v10653
  %v10750 = vpack.c.bf16 %v10654, %v10654
  %v10751 = vpack.c.bf16 %v10655, %v10655
  %v10752 = vpack.c.bf16 %v10656, %v10656
  %v10753 = vpack.c.bf16 %v10657, %v10657
  %v10754 = vpack.c.bf16 %v10658, %v10658
  %v10755 = vpack.c.bf16 %v10659, %v10659
  %v10756 = vpack.c.bf16 %v10660, %v10660
  %v10757 = vpack.c.bf16 %v10661, %v10661
  %v10758 = vpack.c.bf16 %v10662, %v10662
  %v10759 = vpack.c.bf16 %v10663, %v10663
  %v10760 = vpack.c.bf16 %v10664, %v10664
  %v10761 = vpack.c.bf16 %v10665, %v10665
  %v10762 = vpack.c.bf16 %v10666, %v10666
  %v10763 = vpack.c.bf16 %v10667, %v10667
  %v10764 = vpack.c.bf16 %v10668, %v10668
  %v10765 = vpack.c.bf16 %v10669, %v10669
  %v10766 = vpack.c.bf16 %v10670, %v10670
  %v10767 = vpack.c.bf16 %v10671, %v10671
  %v10768 = vpack.c.bf16 %v10672, %v10672
  %v10769 = vpack.c.bf16 %v10673, %v10673
  %v10770 = vpack.c.bf16 %v10674, %v10674
  %v10771 = vpack.c.bf16 %v10675, %v10675
  %v10772 = vpack.c.bf16 %v10676, %v10676
  %v10773 = vpack.c.bf16 %v10677, %v10677
  %v10774 = vpack.c.bf16 %v10678, %v10678
  %v10775 = vpack.c.bf16 %v10679, %v10679
  %v10776 = vpack.c.bf16 %v10680, %v10680
  %v10777 = vld [vmem:[%s3] sm:$0xff]
  %v10778 = vld [vmem:[%s3 + $0x8] sm:$0xff]
  %v10779 = vld [vmem:[%s3 + $0x10] sm:$0xff]
  %v10780 = vld [vmem:[%s3 + $0x18] sm:$0xff]
  %v10781 = vld [vmem:[%s3 + $0x20] sm:$0xff]
  %v10782 = vld [vmem:[%s3 + $0x28] sm:$0xff]
  %v10783 = vld [vmem:[%s3 + $0x30] sm:$0xff]
  %v10784 = vld [vmem:[%s3 + $0x38] sm:$0xff]
  %v10785 = vld [vmem:[%s3 + $0x40] sm:$0xff]
  %v10786 = vld [vmem:[%s3 + $0x48] sm:$0xff]
  %v10787 = vld [vmem:[%s3 + $0x50] sm:$0xff]
  %v10788 = vld [vmem:[%s3 + $0x58] sm:$0xff]
  %v10789 = vld [vmem:[%s3 + $0x60] sm:$0xff]
  %v10790 = vld [vmem:[%s3 + $0x68] sm:$0xff]
  %v10791 = vld [vmem:[%s3 + $0x70] sm:$0xff]
  %v10792 = vld [vmem:[%s3 + $0x78] sm:$0xff]
  %s10793 = scalar_lea.vmem %s3, 128
  %v10794 = vld [vmem:[%s10793] sm:$0xff]
  %v10795 = vld [vmem:[%s10793 + $0x8] sm:$0xff]
  %v10796 = vld [vmem:[%s10793 + $0x10] sm:$0xff]
  %v10797 = vld [vmem:[%s10793 + $0x18] sm:$0xff]
  %v10798 = vld [vmem:[%s10793 + $0x20] sm:$0xff]
  %v10799 = vld [vmem:[%s10793 + $0x28] sm:$0xff]
  %v10800 = vld [vmem:[%s10793 + $0x30] sm:$0xff]
  %v10801 = vld [vmem:[%s10793 + $0x38] sm:$0xff]
  %v10802 = vld [vmem:[%s10793 + $0x40] sm:$0xff]
  %v10803 = vld [vmem:[%s10793 + $0x48] sm:$0xff]
  %v10804 = vld [vmem:[%s10793 + $0x50] sm:$0xff]
  %v10805 = vld [vmem:[%s10793 + $0x58] sm:$0xff]
  %v10806 = vld [vmem:[%s10793 + $0x60] sm:$0xff]
  %v10807 = vld [vmem:[%s10793 + $0x68] sm:$0xff]
  %v10808 = vld [vmem:[%s10793 + $0x70] sm:$0xff]
  %v10809 = vld [vmem:[%s10793 + $0x78] sm:$0xff]
  %v10874 = vunpack.c.l.b16 %v10689
  %v10875 = vunpack.c.l.b16 %v10690
  %v10876 = vunpack.c.l.b16 %v10691
  %v10877 = vunpack.c.l.b16 %v10692
  %v10878 = vunpack.c.l.b16 %v10693
  %v10879 = vunpack.c.l.b16 %v10694
  %v10880 = vunpack.c.l.b16 %v10695
  %v10881 = vunpack.c.l.b16 %v10696
  %v10882 = vunpack.c.l.b16 %v10697
  %v10883 = vunpack.c.l.b16 %v10698
  %v10884 = vunpack.c.l.b16 %v10699
  %v10885 = vunpack.c.l.b16 %v10700
  %v10886 = vunpack.c.l.b16 %v10701
  %v10887 = vunpack.c.l.b16 %v10702
  %v10888 = vunpack.c.l.b16 %v10703
  %v10889 = vunpack.c.l.b16 %v10704
  %v10890 = vunpack.c.l.b16 %v10705
  %v10891 = vunpack.c.l.b16 %v10706
  %v10892 = vunpack.c.l.b16 %v10707
  %v10893 = vunpack.c.l.b16 %v10708
  %v10894 = vunpack.c.l.b16 %v10709
  %v10895 = vunpack.c.l.b16 %v10710
  %v10896 = vunpack.c.l.b16 %v10711
  %v10897 = vunpack.c.l.b16 %v10712
  %v10898 = vunpack.c.l.b16 %v10713
  %v10899 = vunpack.c.l.b16 %v10714
  %v10900 = vunpack.c.l.b16 %v10715
  %v10901 = vunpack.c.l.b16 %v10716
  %v10902 = vunpack.c.l.b16 %v10717
  %v10903 = vunpack.c.l.b16 %v10718
  %v10904 = vunpack.c.l.b16 %v10719
  %v10905 = vunpack.c.l.b16 %v10720
  %v10906 = vunpack.c.l.b16 %v10721
  %v10907 = vunpack.c.l.b16 %v10722
  %v10908 = vunpack.c.l.b16 %v10723
  %v10909 = vunpack.c.l.b16 %v10724
  %v10910 = vunpack.c.l.b16 %v10725
  %v10911 = vunpack.c.l.b16 %v10726
  %v10912 = vunpack.c.l.b16 %v10727
  %v10913 = vunpack.c.l.b16 %v10728
  %v10914 = vunpack.c.l.b16 %v10729
  %v10915 = vunpack.c.l.b16 %v10730
  %v10916 = vunpack.c.l.b16 %v10731
  %v10917 = vunpack.c.l.b16 %v10732
  %v10918 = vunpack.c.l.b16 %v10733
  %v10919 = vunpack.c.l.b16 %v10734
  %v10920 = vunpack.c.l.b16 %v10735
  %v10921 = vunpack.c.l.b16 %v10736
  %v10922 = vunpack.c.l.b16 %v10737
  %v10923 = vunpack.c.l.b16 %v10738
  %v10924 = vunpack.c.l.b16 %v10739
  %v10925 = vunpack.c.l.b16 %v10740
  %v10926 = vunpack.c.l.b16 %v10741
  %v10927 = vunpack.c.l.b16 %v10742
  %v10928 = vunpack.c.l.b16 %v10743
  %v10929 = vunpack.c.l.b16 %v10744
  %v10930 = vunpack.c.l.b16 %v10745
  %v10931 = vunpack.c.l.b16 %v10746
  %v10932 = vunpack.c.l.b16 %v10747
  %v10933 = vunpack.c.l.b16 %v10748
  %v10934 = vunpack.c.l.b16 %v10749
  %v10935 = vunpack.c.l.b16 %v10750
  %v10936 = vunpack.c.l.b16 %v10751
  %v10937 = vunpack.c.l.b16 %v10752
  %v10938 = vpack.c.b16 %v10875, %v10874
  %v10939 = vpack.c.b16 %v10877, %v10876
  %v10940 = vpack.c.b16 %v10879, %v10878
  %v10941 = vpack.c.b16 %v10881, %v10880
  %v10942 = vpack.c.b16 %v10883, %v10882
  %v10943 = vpack.c.b16 %v10885, %v10884
  %v10944 = vpack.c.b16 %v10887, %v10886
  %v10945 = vpack.c.b16 %v10889, %v10888
  %v10946 = vpack.c.b16 %v10891, %v10890
  %v10947 = vpack.c.b16 %v10893, %v10892
  %v10948 = vpack.c.b16 %v10895, %v10894
  %v10949 = vpack.c.b16 %v10897, %v10896
  %v10950 = vpack.c.b16 %v10899, %v10898
  %v10951 = vpack.c.b16 %v10901, %v10900
  %v10952 = vpack.c.b16 %v10903, %v10902
  %v10953 = vpack.c.b16 %v10905, %v10904
  %v10954 = vpack.c.b16 %v10907, %v10906
  %v10955 = vpack.c.b16 %v10909, %v10908
  %v10956 = vpack.c.b16 %v10911, %v10910
  %v10957 = vpack.c.b16 %v10913, %v10912
  %v10958 = vpack.c.b16 %v10915, %v10914
  %v10959 = vpack.c.b16 %v10917, %v10916
  %v10960 = vpack.c.b16 %v10919, %v10918
  %v10961 = vpack.c.b16 %v10921, %v10920
  %v10962 = vpack.c.b16 %v10923, %v10922
  %v10963 = vpack.c.b16 %v10925, %v10924
  %v10964 = vpack.c.b16 %v10927, %v10926
  %v10965 = vpack.c.b16 %v10929, %v10928
  %v10966 = vpack.c.b16 %v10931, %v10930
  %v10967 = vpack.c.b16 %v10933, %v10932
  %v10968 = vpack.c.b16 %v10935, %v10934
  %v10969 = vpack.c.b16 %v10937, %v10936
  %v11018 = vunpack.c.l.b16 %v10794
  %v11019 = vunpack.c.h.b16 %v10794
  %v11020 = vunpack.c.l.b16 %v10795
  %v11021 = vunpack.c.h.b16 %v10795
  %v11022 = vunpack.c.l.b16 %v10796
  %v11023 = vunpack.c.h.b16 %v10796
  %v11024 = vunpack.c.l.b16 %v10797
  %v11025 = vunpack.c.h.b16 %v10797
  %v11026 = vunpack.c.l.b16 %v10798
  %v11027 = vunpack.c.h.b16 %v10798
  %v11028 = vunpack.c.l.b16 %v10799
  %v11029 = vunpack.c.h.b16 %v10799
  %v11030 = vunpack.c.l.b16 %v10800
  %v11031 = vunpack.c.h.b16 %v10800
  %v11032 = vunpack.c.l.b16 %v10801
  %v11033 = vunpack.c.h.b16 %v10801
  %v11034 = vunpack.c.l.b16 %v10802
  %v11035 = vunpack.c.h.b16 %v10802
  %v11036 = vunpack.c.l.b16 %v10803
  %v11037 = vunpack.c.h.b16 %v10803
  %v11038 = vunpack.c.l.b16 %v10804
  %v11039 = vunpack.c.h.b16 %v10804
  %v11040 = vunpack.c.l.b16 %v10805
  %v11041 = vunpack.c.h.b16 %v10805
  %v11042 = vunpack.c.l.b16 %v10806
  %v11043 = vunpack.c.h.b16 %v10806
  %v11044 = vunpack.c.l.b16 %v10807
  %v11045 = vunpack.c.h.b16 %v10807
  %v11046 = vunpack.c.l.b16 %v10808
  %v11047 = vunpack.c.h.b16 %v10808
  %v11048 = vunpack.c.l.b16 %v10809
  %v11049 = vunpack.c.h.b16 %v10809
  %v11050 = vpack.c.b16 %v11020, %v11018
  %v11051 = vpack.c.b16 %v11021, %v11019
  %v11052 = vpack.c.b16 %v11024, %v11022
  %v11053 = vpack.c.b16 %v11025, %v11023
  %v11054 = vpack.c.b16 %v11028, %v11026
  %v11055 = vpack.c.b16 %v11029, %v11027
  %v11056 = vpack.c.b16 %v11032, %v11030
  %v11057 = vpack.c.b16 %v11033, %v11031
  %v11058 = vpack.c.b16 %v11036, %v11034
  %v11059 = vpack.c.b16 %v11037, %v11035
  %v11060 = vpack.c.b16 %v11040, %v11038
  %v11061 = vpack.c.b16 %v11041, %v11039
  %v11062 = vpack.c.b16 %v11044, %v11042
  %v11063 = vpack.c.b16 %v11045, %v11043
  %v11064 = vpack.c.b16 %v11048, %v11046
  %v11065 = vpack.c.b16 %v11049, %v11047
  %11082 = vmatpush.bf16.msra.mxu0 %v11064
  %11083 = vmatpush.bf16.msra.mxu0 %v11062
  %11084 = vmatpush.bf16.msra.mxu0 %v11060
  %11085 = vmatpush.bf16.msra.mxu0 %v11058
  %11086 = vmatpush.bf16.msra.mxu0 %v11056
  %11087 = vmatpush.bf16.msra.mxu0 %v11054
  %11088 = vmatpush.bf16.msra.mxu0 %v11052
  %11089 = vmatpush.bf16.msra.mxu0 %v11050
  %11090 = vmatmul.bf16.gmra.mxu0 %v10938
  %v11091 = vpop.f32.mrf.mxu0
  %v11092 = vadd.f32 0.0, %v11091
  %v11093 = vpop.f32.mrf.mxu0
  %v11094 = vadd.f32 0.0, %v11093
  %11095 = vmatmul.bf16.gmra.mxu0 %v10939
  %v11096 = vpop.f32.mrf.mxu0
  %v11097 = vadd.f32 0.0, %v11096
  %v11098 = vpop.f32.mrf.mxu0
  %v11099 = vadd.f32 0.0, %v11098
  %11100 = vmatmul.bf16.gmra.mxu0 %v10940
  %v11101 = vpop.f32.mrf.mxu0
  %v11102 = vadd.f32 0.0, %v11101
  %v11103 = vpop.f32.mrf.mxu0
  %v11104 = vadd.f32 0.0, %v11103
  %11105 = vmatmul.bf16.gmra.mxu0 %v10941
  %v11106 = vpop.f32.mrf.mxu0
  %v11107 = vadd.f32 0.0, %v11106
  %v11108 = vpop.f32.mrf.mxu0
  %v11109 = vadd.f32 0.0, %v11108
  %11110 = vmatmul.bf16.gmra.mxu0 %v10942
  %v11111 = vpop.f32.mrf.mxu0
  %v11112 = vadd.f32 0.0, %v11111
  %v11113 = vpop.f32.mrf.mxu0
  %v11114 = vadd.f32 0.0, %v11113
  %11115 = vmatmul.bf16.gmra.mxu0 %v10943
  %v11116 = vpop.f32.mrf.mxu0
  %v11117 = vadd.f32 0.0, %v11116
  %v11118 = vpop.f32.mrf.mxu0
  %v11119 = vadd.f32 0.0, %v11118
  %11120 = vmatmul.bf16.gmra.mxu0 %v10944
  %v11121 = vpop.f32.mrf.mxu0
  %v11122 = vadd.f32 0.0, %v11121
  %v11123 = vpop.f32.mrf.mxu0
  %v11124 = vadd.f32 0.0, %v11123
  %11125 = vmatmul.bf16.gmra.mxu0 %v10945
  %v11126 = vpop.f32.mrf.mxu0
  %v11127 = vadd.f32 0.0, %v11126
  %v11128 = vpop.f32.mrf.mxu0
  %v11129 = vadd.f32 0.0, %v11128
  %11130 = vmatmul.bf16.gmra.mxu0 %v10946
  %v11131 = vpop.f32.mrf.mxu0
  %v11132 = vadd.f32 0.0, %v11131
  %v11133 = vpop.f32.mrf.mxu0
  %v11134 = vadd.f32 0.0, %v11133
  %11135 = vmatmul.bf16.gmra.mxu0 %v10947
  %v11136 = vpop.f32.mrf.mxu0
  %v11137 = vadd.f32 0.0, %v11136
  %v11138 = vpop.f32.mrf.mxu0
  %v11139 = vadd.f32 0.0, %v11138
  %11140 = vmatmul.bf16.gmra.mxu0 %v10948
  %v11141 = vpop.f32.mrf.mxu0
  %v11142 = vadd.f32 0.0, %v11141
  %v11143 = vpop.f32.mrf.mxu0
  %v11144 = vadd.f32 0.0, %v11143
  %11145 = vmatmul.bf16.gmra.mxu0 %v10949
  %v11146 = vpop.f32.mrf.mxu0
  %v11147 = vadd.f32 0.0, %v11146
  %v11148 = vpop.f32.mrf.mxu0
  %v11149 = vadd.f32 0.0, %v11148
  %11150 = vmatmul.bf16.gmra.mxu0 %v10950
  %v11151 = vpop.f32.mrf.mxu0
  %v11152 = vadd.f32 0.0, %v11151
  %v11153 = vpop.f32.mrf.mxu0
  %v11154 = vadd.f32 0.0, %v11153
  %11155 = vmatmul.bf16.gmra.mxu0 %v10951
  %v11156 = vpop.f32.mrf.mxu0
  %v11157 = vadd.f32 0.0, %v11156
  %v11158 = vpop.f32.mrf.mxu0
  %v11159 = vadd.f32 0.0, %v11158
  %11160 = vmatmul.bf16.gmra.mxu0 %v10952
  %v11161 = vpop.f32.mrf.mxu0
  %v11162 = vadd.f32 0.0, %v11161
  %v11163 = vpop.f32.mrf.mxu0
  %v11164 = vadd.f32 0.0, %v11163
  %11165 = vmatmul.bf16.gmra.mxu0 %v10953
  %v11166 = vpop.f32.mrf.mxu0
  %v11167 = vadd.f32 0.0, %v11166
  %v11168 = vpop.f32.mrf.mxu0
  %v11169 = vadd.f32 0.0, %v11168
  %11170 = vmatmul.bf16.gmra.mxu0 %v10954
  %v11171 = vpop.f32.mrf.mxu0
  %v11172 = vadd.f32 0.0, %v11171
  %v11173 = vpop.f32.mrf.mxu0
  %v11174 = vadd.f32 0.0, %v11173
  %11175 = vmatmul.bf16.gmra.mxu0 %v10955
  %v11176 = vpop.f32.mrf.mxu0
  %v11177 = vadd.f32 0.0, %v11176
  %v11178 = vpop.f32.mrf.mxu0
  %v11179 = vadd.f32 0.0, %v11178
  %11180 = vmatmul.bf16.gmra.mxu0 %v10956
  %v11181 = vpop.f32.mrf.mxu0
  %v11182 = vadd.f32 0.0, %v11181
  %v11183 = vpop.f32.mrf.mxu0
  %v11184 = vadd.f32 0.0, %v11183
  %11185 = vmatmul.bf16.gmra.mxu0 %v10957
  %v11186 = vpop.f32.mrf.mxu0
  %v11187 = vadd.f32 0.0, %v11186
  %v11188 = vpop.f32.mrf.mxu0
  %v11189 = vadd.f32 0.0, %v11188
  %11190 = vmatmul.bf16.gmra.mxu0 %v10958
  %v11191 = vpop.f32.mrf.mxu0
  %v11192 = vadd.f32 0.0, %v11191
  %v11193 = vpop.f32.mrf.mxu0
  %v11194 = vadd.f32 0.0, %v11193
  %11195 = vmatmul.bf16.gmra.mxu0 %v10959
  %v11196 = vpop.f32.mrf.mxu0
  %v11197 = vadd.f32 0.0, %v11196
  %v11198 = vpop.f32.mrf.mxu0
  %v11199 = vadd.f32 0.0, %v11198
  %11200 = vmatmul.bf16.gmra.mxu0 %v10960
  %v11201 = vpop.f32.mrf.mxu0
  %v11202 = vadd.f32 0.0, %v11201
  %v11203 = vpop.f32.mrf.mxu0
  %v11204 = vadd.f32 0.0, %v11203
  %11205 = vmatmul.bf16.gmra.mxu0 %v10961
  %v11206 = vpop.f32.mrf.mxu0
  %v11207 = vadd.f32 0.0, %v11206
  %v11208 = vpop.f32.mrf.mxu0
  %v11209 = vadd.f32 0.0, %v11208
  %11210 = vmatmul.bf16.gmra.mxu0 %v10962
  %v11211 = vpop.f32.mrf.mxu0
  %v11212 = vadd.f32 0.0, %v11211
  %v11213 = vpop.f32.mrf.mxu0
  %v11214 = vadd.f32 0.0, %v11213
  %11215 = vmatmul.bf16.gmra.mxu0 %v10963
  %v11216 = vpop.f32.mrf.mxu0
  %v11217 = vadd.f32 0.0, %v11216
  %v11218 = vpop.f32.mrf.mxu0
  %v11219 = vadd.f32 0.0, %v11218
  %11220 = vmatmul.bf16.gmra.mxu0 %v10964
  %v11221 = vpop.f32.mrf.mxu0
  %v11222 = vadd.f32 0.0, %v11221
  %v11223 = vpop.f32.mrf.mxu0
  %v11224 = vadd.f32 0.0, %v11223
  %11225 = vmatmul.bf16.gmra.mxu0 %v10965
  %v11226 = vpop.f32.mrf.mxu0
  %v11227 = vadd.f32 0.0, %v11226
  %v11228 = vpop.f32.mrf.mxu0
  %v11229 = vadd.f32 0.0, %v11228
  %11230 = vmatmul.bf16.gmra.mxu0 %v10966
  %v11231 = vpop.f32.mrf.mxu0
  %v11232 = vadd.f32 0.0, %v11231
  %v11233 = vpop.f32.mrf.mxu0
  %v11234 = vadd.f32 0.0, %v11233
  %11235 = vmatmul.bf16.gmra.mxu0 %v10967
  %v11236 = vpop.f32.mrf.mxu0
  %v11237 = vadd.f32 0.0, %v11236
  %v11238 = vpop.f32.mrf.mxu0
  %v11239 = vadd.f32 0.0, %v11238
  %11240 = vmatmul.bf16.gmra.mxu0 %v10968
  %v11241 = vpop.f32.mrf.mxu0
  %v11242 = vadd.f32 0.0, %v11241
  %v11243 = vpop.f32.mrf.mxu0
  %v11244 = vadd.f32 0.0, %v11243
  %11245 = vmatmul.bf16.gmra.mxu0 %v10969
  %v11246 = vpop.f32.mrf.mxu0
  %v11247 = vadd.f32 0.0, %v11246
  %v11248 = vpop.f32.mrf.mxu0
  %v11249 = vadd.f32 0.0, %v11248
  %11250 = vdwg.mxu0
  %11251 = vmatpush.bf16.msra.mxu0 %v11065
  %11252 = vmatpush.bf16.msra.mxu0 %v11063
  %11253 = vmatpush.bf16.msra.mxu0 %v11061
  %11254 = vmatpush.bf16.msra.mxu0 %v11059
  %11255 = vmatpush.bf16.msra.mxu0 %v11057
  %11256 = vmatpush.bf16.msra.mxu0 %v11055
  %11257 = vmatpush.bf16.msra.mxu0 %v11053
  %11258 = vmatpush.bf16.msra.mxu0 %v11051
  %11259 = vmatmul.bf16.gmra.mxu0 %v10938
  %v11260 = vpop.f32.mrf.mxu0
  %v11261 = vadd.f32 0.0, %v11260
  %v11262 = vpop.f32.mrf.mxu0
  %v11263 = vadd.f32 0.0, %v11262
  %11264 = vmatmul.bf16.gmra.mxu0 %v10939
  %v11265 = vpop.f32.mrf.mxu0
  %v11266 = vadd.f32 0.0, %v11265
  %v11267 = vpop.f32.mrf.mxu0
  %v11268 = vadd.f32 0.0, %v11267
  %11269 = vmatmul.bf16.gmra.mxu0 %v10940
  %v11270 = vpop.f32.mrf.mxu0
  %v11271 = vadd.f32 0.0, %v11270
  %v11272 = vpop.f32.mrf.mxu0
  %v11273 = vadd.f32 0.0, %v11272
  %11274 = vmatmul.bf16.gmra.mxu0 %v10941
  %v11275 = vpop.f32.mrf.mxu0
  %v11276 = vadd.f32 0.0, %v11275
  %v11277 = vpop.f32.mrf.mxu0
  %v11278 = vadd.f32 0.0, %v11277
  %11279 = vmatmul.bf16.gmra.mxu0 %v10942
  %v11280 = vpop.f32.mrf.mxu0
  %v11281 = vadd.f32 0.0, %v11280
  %v11282 = vpop.f32.mrf.mxu0
  %v11283 = vadd.f32 0.0, %v11282
  %11284 = vmatmul.bf16.gmra.mxu0 %v10943
  %v11285 = vpop.f32.mrf.mxu0
  %v11286 = vadd.f32 0.0, %v11285
  %v11287 = vpop.f32.mrf.mxu0
  %v11288 = vadd.f32 0.0, %v11287
  %11289 = vmatmul.bf16.gmra.mxu0 %v10944
  %v11290 = vpop.f32.mrf.mxu0
  %v11291 = vadd.f32 0.0, %v11290
  %v11292 = vpop.f32.mrf.mxu0
  %v11293 = vadd.f32 0.0, %v11292
  %11294 = vmatmul.bf16.gmra.mxu0 %v10945
  %v11295 = vpop.f32.mrf.mxu0
  %v11296 = vadd.f32 0.0, %v11295
  %v11297 = vpop.f32.mrf.mxu0
  %v11298 = vadd.f32 0.0, %v11297
  %11299 = vmatmul.bf16.gmra.mxu0 %v10946
  %v11300 = vpop.f32.mrf.mxu0
  %v11301 = vadd.f32 0.0, %v11300
  %v11302 = vpop.f32.mrf.mxu0
  %v11303 = vadd.f32 0.0, %v11302
  %11304 = vmatmul.bf16.gmra.mxu0 %v10947
  %v11305 = vpop.f32.mrf.mxu0
  %v11306 = vadd.f32 0.0, %v11305
  %v11307 = vpop.f32.mrf.mxu0
  %v11308 = vadd.f32 0.0, %v11307
  %11309 = vmatmul.bf16.gmra.mxu0 %v10948
  %v11310 = vpop.f32.mrf.mxu0
  %v11311 = vadd.f32 0.0, %v11310
  %v11312 = vpop.f32.mrf.mxu0
  %v11313 = vadd.f32 0.0, %v11312
  %11314 = vmatmul.bf16.gmra.mxu0 %v10949
  %v11315 = vpop.f32.mrf.mxu0
  %v11316 = vadd.f32 0.0, %v11315
  %v11317 = vpop.f32.mrf.mxu0
  %v11318 = vadd.f32 0.0, %v11317
  %11319 = vmatmul.bf16.gmra.mxu0 %v10950
  %v11320 = vpop.f32.mrf.mxu0
  %v11321 = vadd.f32 0.0, %v11320
  %v11322 = vpop.f32.mrf.mxu0
  %v11323 = vadd.f32 0.0, %v11322
  %11324 = vmatmul.bf16.gmra.mxu0 %v10951
  %v11325 = vpop.f32.mrf.mxu0
  %v11326 = vadd.f32 0.0, %v11325
  %v11327 = vpop.f32.mrf.mxu0
  %v11328 = vadd.f32 0.0, %v11327
  %11329 = vmatmul.bf16.gmra.mxu0 %v10952
  %v11330 = vpop.f32.mrf.mxu0
  %v11331 = vadd.f32 0.0, %v11330
  %v11332 = vpop.f32.mrf.mxu0
  %v11333 = vadd.f32 0.0, %v11332
  %11334 = vmatmul.bf16.gmra.mxu0 %v10953
  %v11335 = vpop.f32.mrf.mxu0
  %v11336 = vadd.f32 0.0, %v11335
  %v11337 = vpop.f32.mrf.mxu0
  %v11338 = vadd.f32 0.0, %v11337
  %11339 = vmatmul.bf16.gmra.mxu0 %v10954
  %v11340 = vpop.f32.mrf.mxu0
  %v11341 = vadd.f32 0.0, %v11340
  %v11342 = vpop.f32.mrf.mxu0
  %v11343 = vadd.f32 0.0, %v11342
  %11344 = vmatmul.bf16.gmra.mxu0 %v10955
  %v11345 = vpop.f32.mrf.mxu0
  %v11346 = vadd.f32 0.0, %v11345
  %v11347 = vpop.f32.mrf.mxu0
  %v11348 = vadd.f32 0.0, %v11347
  %11349 = vmatmul.bf16.gmra.mxu0 %v10956
  %v11350 = vpop.f32.mrf.mxu0
  %v11351 = vadd.f32 0.0, %v11350
  %v11352 = vpop.f32.mrf.mxu0
  %v11353 = vadd.f32 0.0, %v11352
  %11354 = vmatmul.bf16.gmra.mxu0 %v10957
  %v11355 = vpop.f32.mrf.mxu0
  %v11356 = vadd.f32 0.0, %v11355
  %v11357 = vpop.f32.mrf.mxu0
  %v11358 = vadd.f32 0.0, %v11357
  %11359 = vmatmul.bf16.gmra.mxu0 %v10958
  %v11360 = vpop.f32.mrf.mxu0
  %v11361 = vadd.f32 0.0, %v11360
  %v11362 = vpop.f32.mrf.mxu0
  %v11363 = vadd.f32 0.0, %v11362
  %11364 = vmatmul.bf16.gmra.mxu0 %v10959
  %v11365 = vpop.f32.mrf.mxu0
  %v11366 = vadd.f32 0.0, %v11365
  %v11367 = vpop.f32.mrf.mxu0
  %v11368 = vadd.f32 0.0, %v11367
  %11369 = vmatmul.bf16.gmra.mxu0 %v10960
  %v11370 = vpop.f32.mrf.mxu0
  %v11371 = vadd.f32 0.0, %v11370
  %v11372 = vpop.f32.mrf.mxu0
  %v11373 = vadd.f32 0.0, %v11372
  %11374 = vmatmul.bf16.gmra.mxu0 %v10961
  %v11375 = vpop.f32.mrf.mxu0
  %v11376 = vadd.f32 0.0, %v11375
  %v11377 = vpop.f32.mrf.mxu0
  %v11378 = vadd.f32 0.0, %v11377
  %11379 = vmatmul.bf16.gmra.mxu0 %v10962
  %v11380 = vpop.f32.mrf.mxu0
  %v11381 = vadd.f32 0.0, %v11380
  %v11382 = vpop.f32.mrf.mxu0
  %v11383 = vadd.f32 0.0, %v11382
  %11384 = vmatmul.bf16.gmra.mxu0 %v10963
  %v11385 = vpop.f32.mrf.mxu0
  %v11386 = vadd.f32 0.0, %v11385
  %v11387 = vpop.f32.mrf.mxu0
  %v11388 = vadd.f32 0.0, %v11387
  %11389 = vmatmul.bf16.gmra.mxu0 %v10964
  %v11390 = vpop.f32.mrf.mxu0
  %v11391 = vadd.f32 0.0, %v11390
  %v11392 = vpop.f32.mrf.mxu0
  %v11393 = vadd.f32 0.0, %v11392
  %11394 = vmatmul.bf16.gmra.mxu0 %v10965
  %v11395 = vpop.f32.mrf.mxu0
  %v11396 = vadd.f32 0.0, %v11395
  %v11397 = vpop.f32.mrf.mxu0
  %v11398 = vadd.f32 0.0, %v11397
  %11399 = vmatmul.bf16.gmra.mxu0 %v10966
  %v11400 = vpop.f32.mrf.mxu0
  %v11401 = vadd.f32 0.0, %v11400
  %v11402 = vpop.f32.mrf.mxu0
  %v11403 = vadd.f32 0.0, %v11402
  %11404 = vmatmul.bf16.gmra.mxu0 %v10967
  %v11405 = vpop.f32.mrf.mxu0
  %v11406 = vadd.f32 0.0, %v11405
  %v11407 = vpop.f32.mrf.mxu0
  %v11408 = vadd.f32 0.0, %v11407
  %11409 = vmatmul.bf16.gmra.mxu0 %v10968
  %v11410 = vpop.f32.mrf.mxu0
  %v11411 = vadd.f32 0.0, %v11410
  %v11412 = vpop.f32.mrf.mxu0
  %v11413 = vadd.f32 0.0, %v11412
  %11414 = vmatmul.bf16.gmra.mxu0 %v10969
  %v11415 = vpop.f32.mrf.mxu0
  %v11416 = vadd.f32 0.0, %v11415
  %v11417 = vpop.f32.mrf.mxu0
  %v11418 = vadd.f32 0.0, %v11417
  %11419 = vdwg.mxu0
  %v11428 = vunpack.c.l.b16 %v10681
  %v11429 = vunpack.c.l.b16 %v10682
  %v11430 = vunpack.c.l.b16 %v10683
  %v11431 = vunpack.c.l.b16 %v10684
  %v11432 = vunpack.c.l.b16 %v10685
  %v11433 = vunpack.c.l.b16 %v10686
  %v11434 = vunpack.c.l.b16 %v10687
  %v11435 = vunpack.c.l.b16 %v10688
  %v11436 = vpack.c.b16 %v11429, %v11428
  %v11437 = vpack.c.b16 %v11431, %v11430
  %v11438 = vpack.c.b16 %v11433, %v11432
  %v11439 = vpack.c.b16 %v11435, %v11434
  %v11460 = vunpack.c.l.b16 %v10777
  %v11461 = vunpack.c.h.b16 %v10777
  %v11462 = vunpack.c.l.b16 %v10778
  %v11463 = vunpack.c.h.b16 %v10778
  %v11464 = vunpack.c.l.b16 %v10779
  %v11465 = vunpack.c.h.b16 %v10779
  %v11466 = vunpack.c.l.b16 %v10780
  %v11467 = vunpack.c.h.b16 %v10780
  %v11468 = vunpack.c.l.b16 %v10781
  %v11469 = vunpack.c.h.b16 %v10781
  %v11470 = vunpack.c.l.b16 %v10782
  %v11471 = vunpack.c.h.b16 %v10782
  %v11472 = vunpack.c.l.b16 %v10783
  %v11473 = vunpack.c.h.b16 %v10783
  %v11474 = vunpack.c.l.b16 %v10784
  %v11475 = vunpack.c.h.b16 %v10784
  %v11476 = vunpack.c.l.b16 %v10785
  %v11477 = vunpack.c.h.b16 %v10785
  %v11478 = vunpack.c.l.b16 %v10786
  %v11479 = vunpack.c.h.b16 %v10786
  %v11480 = vunpack.c.l.b16 %v10787
  %v11481 = vunpack.c.h.b16 %v10787
  %v11482 = vunpack.c.l.b16 %v10788
  %v11483 = vunpack.c.h.b16 %v10788
  %v11484 = vunpack.c.l.b16 %v10789
  %v11485 = vunpack.c.h.b16 %v10789
  %v11486 = vunpack.c.l.b16 %v10790
  %v11487 = vunpack.c.h.b16 %v10790
  %v11488 = vunpack.c.l.b16 %v10791
  %v11489 = vunpack.c.h.b16 %v10791
  %v11490 = vunpack.c.l.b16 %v10792
  %v11491 = vunpack.c.h.b16 %v10792
  %v11492 = vpack.c.b16 %v11462, %v11460
  %v11493 = vpack.c.b16 %v11463, %v11461
  %v11494 = vpack.c.b16 %v11466, %v11464
  %v11495 = vpack.c.b16 %v11467, %v11465
  %v11496 = vpack.c.b16 %v11470, %v11468
  %v11497 = vpack.c.b16 %v11471, %v11469
  %v11498 = vpack.c.b16 %v11474, %v11472
  %v11499 = vpack.c.b16 %v11475, %v11473
  %v11500 = vpack.c.b16 %v11478, %v11476
  %v11501 = vpack.c.b16 %v11479, %v11477
  %v11502 = vpack.c.b16 %v11482, %v11480
  %v11503 = vpack.c.b16 %v11483, %v11481
  %v11504 = vpack.c.b16 %v11486, %v11484
  %v11505 = vpack.c.b16 %v11487, %v11485
  %v11506 = vpack.c.b16 %v11490, %v11488
  %v11507 = vpack.c.b16 %v11491, %v11489
  %11524 = vmatpush.bf16.msra.mxu0 %v11506
  %11525 = vmatpush.bf16.msra.mxu0 %v11504
  %11526 = vmatpush.bf16.msra.mxu0 %v11502
  %11527 = vmatpush.bf16.msra.mxu0 %v11500
  %11528 = vmatpush.bf16.msra.mxu0 %v11498
  %11529 = vmatpush.bf16.msra.mxu0 %v11496
  %11530 = vmatpush.bf16.msra.mxu0 %v11494
  %11531 = vmatpush.bf16.msra.mxu0 %v11492
  %11532 = vmatmul.bf16.gmra.mxu0 %v11436
  %v11533 = vpop.f32.mrf.mxu0
  %v11534 = vadd.f32 %v11092, %v11533
  %v11535 = vpop.f32.mrf.mxu0
  %v11536 = vadd.f32 %v11094, %v11535
  %11537 = vmatmul.bf16.gmra.mxu0 %v11437
  %v11538 = vpop.f32.mrf.mxu0
  %v11539 = vadd.f32 %v11097, %v11538
  %v11540 = vpop.f32.mrf.mxu0
  %v11541 = vadd.f32 %v11099, %v11540
  %11542 = vmatmul.bf16.gmra.mxu0 %v11438
  %v11543 = vpop.f32.mrf.mxu0
  %v11544 = vadd.f32 %v11102, %v11543
  %v11545 = vpop.f32.mrf.mxu0
  %v11546 = vadd.f32 %v11104, %v11545
  %11547 = vmatmul.bf16.gmra.mxu0 %v11439
  %v11548 = vpop.f32.mrf.mxu0
  %v11549 = vadd.f32 %v11107, %v11548
  %v11550 = vpop.f32.mrf.mxu0
  %v11551 = vadd.f32 %v11109, %v11550
  %11552 = vmatmul.bf16.gmra.mxu0 %v10938
  %v11553 = vpop.f32.mrf.mxu0
  %v11554 = vadd.f32 %v11112, %v11553
  %v11555 = vpop.f32.mrf.mxu0
  %v11556 = vadd.f32 %v11114, %v11555
  %11557 = vmatmul.bf16.gmra.mxu0 %v10939
  %v11558 = vpop.f32.mrf.mxu0
  %v11559 = vadd.f32 %v11117, %v11558
  %v11560 = vpop.f32.mrf.mxu0
  %v11561 = vadd.f32 %v11119, %v11560
  %11562 = vmatmul.bf16.gmra.mxu0 %v10940
  %v11563 = vpop.f32.mrf.mxu0
  %v11564 = vadd.f32 %v11122, %v11563
  %v11565 = vpop.f32.mrf.mxu0
  %v11566 = vadd.f32 %v11124, %v11565
  %11567 = vmatmul.bf16.gmra.mxu0 %v10941
  %v11568 = vpop.f32.mrf.mxu0
  %v11569 = vadd.f32 %v11127, %v11568
  %v11570 = vpop.f32.mrf.mxu0
  %v11571 = vadd.f32 %v11129, %v11570
  %11572 = vmatmul.bf16.gmra.mxu0 %v10942
  %v11573 = vpop.f32.mrf.mxu0
  %v11574 = vadd.f32 %v11132, %v11573
  %v11575 = vpop.f32.mrf.mxu0
  %v11576 = vadd.f32 %v11134, %v11575
  %11577 = vmatmul.bf16.gmra.mxu0 %v10943
  %v11578 = vpop.f32.mrf.mxu0
  %v11579 = vadd.f32 %v11137, %v11578
  %v11580 = vpop.f32.mrf.mxu0
  %v11581 = vadd.f32 %v11139, %v11580
  %11582 = vmatmul.bf16.gmra.mxu0 %v10944
  %v11583 = vpop.f32.mrf.mxu0
  %v11584 = vadd.f32 %v11142, %v11583
  %v11585 = vpop.f32.mrf.mxu0
  %v11586 = vadd.f32 %v11144, %v11585
  %11587 = vmatmul.bf16.gmra.mxu0 %v10945
  %v11588 = vpop.f32.mrf.mxu0
  %v11589 = vadd.f32 %v11147, %v11588
  %v11590 = vpop.f32.mrf.mxu0
  %v11591 = vadd.f32 %v11149, %v11590
  %11592 = vmatmul.bf16.gmra.mxu0 %v10946
  %v11593 = vpop.f32.mrf.mxu0
  %v11594 = vadd.f32 %v11152, %v11593
  %v11595 = vpop.f32.mrf.mxu0
  %v11596 = vadd.f32 %v11154, %v11595
  %11597 = vmatmul.bf16.gmra.mxu0 %v10947
  %v11598 = vpop.f32.mrf.mxu0
  %v11599 = vadd.f32 %v11157, %v11598
  %v11600 = vpop.f32.mrf.mxu0
  %v11601 = vadd.f32 %v11159, %v11600
  %11602 = vmatmul.bf16.gmra.mxu0 %v10948
  %v11603 = vpop.f32.mrf.mxu0
  %v11604 = vadd.f32 %v11162, %v11603
  %v11605 = vpop.f32.mrf.mxu0
  %v11606 = vadd.f32 %v11164, %v11605
  %11607 = vmatmul.bf16.gmra.mxu0 %v10949
  %v11608 = vpop.f32.mrf.mxu0
  %v11609 = vadd.f32 %v11167, %v11608
  %v11610 = vpop.f32.mrf.mxu0
  %v11611 = vadd.f32 %v11169, %v11610
  %11612 = vmatmul.bf16.gmra.mxu0 %v10950
  %v11613 = vpop.f32.mrf.mxu0
  %v11614 = vadd.f32 %v11172, %v11613
  %v11615 = vpop.f32.mrf.mxu0
  %v11616 = vadd.f32 %v11174, %v11615
  %11617 = vmatmul.bf16.gmra.mxu0 %v10951
  %v11618 = vpop.f32.mrf.mxu0
  %v11619 = vadd.f32 %v11177, %v11618
  %v11620 = vpop.f32.mrf.mxu0
  %v11621 = vadd.f32 %v11179, %v11620
  %11622 = vmatmul.bf16.gmra.mxu0 %v10952
  %v11623 = vpop.f32.mrf.mxu0
  %v11624 = vadd.f32 %v11182, %v11623
  %v11625 = vpop.f32.mrf.mxu0
  %v11626 = vadd.f32 %v11184, %v11625
  %11627 = vmatmul.bf16.gmra.mxu0 %v10953
  %v11628 = vpop.f32.mrf.mxu0
  %v11629 = vadd.f32 %v11187, %v11628
  %v11630 = vpop.f32.mrf.mxu0
  %v11631 = vadd.f32 %v11189, %v11630
  %11632 = vmatmul.bf16.gmra.mxu0 %v10954
  %v11633 = vpop.f32.mrf.mxu0
  %v11634 = vadd.f32 %v11192, %v11633
  %v11635 = vpop.f32.mrf.mxu0
  %v11636 = vadd.f32 %v11194, %v11635
  %11637 = vmatmul.bf16.gmra.mxu0 %v10955
  %v11638 = vpop.f32.mrf.mxu0
  %v11639 = vadd.f32 %v11197, %v11638
  %v11640 = vpop.f32.mrf.mxu0
  %v11641 = vadd.f32 %v11199, %v11640
  %11642 = vmatmul.bf16.gmra.mxu0 %v10956
  %v11643 = vpop.f32.mrf.mxu0
  %v11644 = vadd.f32 %v11202, %v11643
  %v11645 = vpop.f32.mrf.mxu0
  %v11646 = vadd.f32 %v11204, %v11645
  %11647 = vmatmul.bf16.gmra.mxu0 %v10957
  %v11648 = vpop.f32.mrf.mxu0
  %v11649 = vadd.f32 %v11207, %v11648
  %v11650 = vpop.f32.mrf.mxu0
  %v11651 = vadd.f32 %v11209, %v11650
  %11652 = vmatmul.bf16.gmra.mxu0 %v10958
  %v11653 = vpop.f32.mrf.mxu0
  %v11654 = vadd.f32 %v11212, %v11653
  %v11655 = vpop.f32.mrf.mxu0
  %v11656 = vadd.f32 %v11214, %v11655
  %11657 = vmatmul.bf16.gmra.mxu0 %v10959
  %v11658 = vpop.f32.mrf.mxu0
  %v11659 = vadd.f32 %v11217, %v11658
  %v11660 = vpop.f32.mrf.mxu0
  %v11661 = vadd.f32 %v11219, %v11660
  %11662 = vmatmul.bf16.gmra.mxu0 %v10960
  %v11663 = vpop.f32.mrf.mxu0
  %v11664 = vadd.f32 %v11222, %v11663
  %v11665 = vpop.f32.mrf.mxu0
  %v11666 = vadd.f32 %v11224, %v11665
  %11667 = vmatmul.bf16.gmra.mxu0 %v10961
  %v11668 = vpop.f32.mrf.mxu0
  %v11669 = vadd.f32 %v11227, %v11668
  %v11670 = vpop.f32.mrf.mxu0
  %v11671 = vadd.f32 %v11229, %v11670
  %11672 = vmatmul.bf16.gmra.mxu0 %v10962
  %v11673 = vpop.f32.mrf.mxu0
  %v11674 = vadd.f32 %v11232, %v11673
  %v11675 = vpop.f32.mrf.mxu0
  %v11676 = vadd.f32 %v11234, %v11675
  %11677 = vmatmul.bf16.gmra.mxu0 %v10963
  %v11678 = vpop.f32.mrf.mxu0
  %v11679 = vadd.f32 %v11237, %v11678
  %v11680 = vpop.f32.mrf.mxu0
  %v11681 = vadd.f32 %v11239, %v11680
  %11682 = vmatmul.bf16.gmra.mxu0 %v10964
  %v11683 = vpop.f32.mrf.mxu0
  %v11684 = vadd.f32 %v11242, %v11683
  %v11685 = vpop.f32.mrf.mxu0
  %v11686 = vadd.f32 %v11244, %v11685
  %11687 = vmatmul.bf16.gmra.mxu0 %v10965
  %v11688 = vpop.f32.mrf.mxu0
  %v11689 = vadd.f32 %v11247, %v11688
  %v11690 = vpop.f32.mrf.mxu0
  %v11691 = vadd.f32 %v11249, %v11690
  %11692 = vdwg.mxu0
  %11693 = vmatpush.bf16.msra.mxu0 %v11507
  %11694 = vmatpush.bf16.msra.mxu0 %v11505
  %11695 = vmatpush.bf16.msra.mxu0 %v11503
  %11696 = vmatpush.bf16.msra.mxu0 %v11501
  %11697 = vmatpush.bf16.msra.mxu0 %v11499
  %11698 = vmatpush.bf16.msra.mxu0 %v11497
  %11699 = vmatpush.bf16.msra.mxu0 %v11495
  %11700 = vmatpush.bf16.msra.mxu0 %v11493
  %11701 = vmatmul.bf16.gmra.mxu0 %v11436
  %v11702 = vpop.f32.mrf.mxu0
  %v11703 = vadd.f32 %v11261, %v11702
  %v11704 = vpop.f32.mrf.mxu0
  %v11705 = vadd.f32 %v11263, %v11704
  %11706 = vmatmul.bf16.gmra.mxu0 %v11437
  %v11707 = vpop.f32.mrf.mxu0
  %v11708 = vadd.f32 %v11266, %v11707
  %v11709 = vpop.f32.mrf.mxu0
  %v11710 = vadd.f32 %v11268, %v11709
  %11711 = vmatmul.bf16.gmra.mxu0 %v11438
  %v11712 = vpop.f32.mrf.mxu0
  %v11713 = vadd.f32 %v11271, %v11712
  %v11714 = vpop.f32.mrf.mxu0
  %v11715 = vadd.f32 %v11273, %v11714
  %11716 = vmatmul.bf16.gmra.mxu0 %v11439
  %v11717 = vpop.f32.mrf.mxu0
  %v11718 = vadd.f32 %v11276, %v11717
  %v11719 = vpop.f32.mrf.mxu0
  %v11720 = vadd.f32 %v11278, %v11719
  %11721 = vmatmul.bf16.gmra.mxu0 %v10938
  %v11722 = vpop.f32.mrf.mxu0
  %v11723 = vadd.f32 %v11281, %v11722
  %v11724 = vpop.f32.mrf.mxu0
  %v11725 = vadd.f32 %v11283, %v11724
  %11726 = vmatmul.bf16.gmra.mxu0 %v10939
  %v11727 = vpop.f32.mrf.mxu0
  %v11728 = vadd.f32 %v11286, %v11727
  %v11729 = vpop.f32.mrf.mxu0
  %v11730 = vadd.f32 %v11288, %v11729
  %11731 = vmatmul.bf16.gmra.mxu0 %v10940
  %v11732 = vpop.f32.mrf.mxu0
  %v11733 = vadd.f32 %v11291, %v11732
  %v11734 = vpop.f32.mrf.mxu0
  %v11735 = vadd.f32 %v11293, %v11734
  %11736 = vmatmul.bf16.gmra.mxu0 %v10941
  %v11737 = vpop.f32.mrf.mxu0
  %v11738 = vadd.f32 %v11296, %v11737
  %v11739 = vpop.f32.mrf.mxu0
  %v11740 = vadd.f32 %v11298, %v11739
  %11741 = vmatmul.bf16.gmra.mxu0 %v10942
  %v11742 = vpop.f32.mrf.mxu0
  %v11743 = vadd.f32 %v11301, %v11742
  %v11744 = vpop.f32.mrf.mxu0
  %v11745 = vadd.f32 %v11303, %v11744
  %11746 = vmatmul.bf16.gmra.mxu0 %v10943
  %v11747 = vpop.f32.mrf.mxu0
  %v11748 = vadd.f32 %v11306, %v11747
  %v11749 = vpop.f32.mrf.mxu0
  %v11750 = vadd.f32 %v11308, %v11749
  %11751 = vmatmul.bf16.gmra.mxu0 %v10944
  %v11752 = vpop.f32.mrf.mxu0
  %v11753 = vadd.f32 %v11311, %v11752
  %v11754 = vpop.f32.mrf.mxu0
  %v11755 = vadd.f32 %v11313, %v11754
  %11756 = vmatmul.bf16.gmra.mxu0 %v10945
  %v11757 = vpop.f32.mrf.mxu0
  %v11758 = vadd.f32 %v11316, %v11757
  %v11759 = vpop.f32.mrf.mxu0
  %v11760 = vadd.f32 %v11318, %v11759
  %11761 = vmatmul.bf16.gmra.mxu0 %v10946
  %v11762 = vpop.f32.mrf.mxu0
  %v11763 = vadd.f32 %v11321, %v11762
  %v11764 = vpop.f32.mrf.mxu0
  %v11765 = vadd.f32 %v11323, %v11764
  %11766 = vmatmul.bf16.gmra.mxu0 %v10947
  %v11767 = vpop.f32.mrf.mxu0
  %v11768 = vadd.f32 %v11326, %v11767
  %v11769 = vpop.f32.mrf.mxu0
  %v11770 = vadd.f32 %v11328, %v11769
  %11771 = vmatmul.bf16.gmra.mxu0 %v10948
  %v11772 = vpop.f32.mrf.mxu0
  %v11773 = vadd.f32 %v11331, %v11772
  %v11774 = vpop.f32.mrf.mxu0
  %v11775 = vadd.f32 %v11333, %v11774
  %11776 = vmatmul.bf16.gmra.mxu0 %v10949
  %v11777 = vpop.f32.mrf.mxu0
  %v11778 = vadd.f32 %v11336, %v11777
  %v11779 = vpop.f32.mrf.mxu0
  %v11780 = vadd.f32 %v11338, %v11779
  %11781 = vmatmul.bf16.gmra.mxu0 %v10950
  %v11782 = vpop.f32.mrf.mxu0
  %v11783 = vadd.f32 %v11341, %v11782
  %v11784 = vpop.f32.mrf.mxu0
  %v11785 = vadd.f32 %v11343, %v11784
  %11786 = vmatmul.bf16.gmra.mxu0 %v10951
  %v11787 = vpop.f32.mrf.mxu0
  %v11788 = vadd.f32 %v11346, %v11787
  %v11789 = vpop.f32.mrf.mxu0
  %v11790 = vadd.f32 %v11348, %v11789
  %11791 = vmatmul.bf16.gmra.mxu0 %v10952
  %v11792 = vpop.f32.mrf.mxu0
  %v11793 = vadd.f32 %v11351, %v11792
  %v11794 = vpop.f32.mrf.mxu0
  %v11795 = vadd.f32 %v11353, %v11794
  %11796 = vmatmul.bf16.gmra.mxu0 %v10953
  %v11797 = vpop.f32.mrf.mxu0
  %v11798 = vadd.f32 %v11356, %v11797
  %v11799 = vpop.f32.mrf.mxu0
  %v11800 = vadd.f32 %v11358, %v11799
  %11801 = vmatmul.bf16.gmra.mxu0 %v10954
  %v11802 = vpop.f32.mrf.mxu0
  %v11803 = vadd.f32 %v11361, %v11802
  %v11804 = vpop.f32.mrf.mxu0
  %v11805 = vadd.f32 %v11363, %v11804
  %11806 = vmatmul.bf16.gmra.mxu0 %v10955
  %v11807 = vpop.f32.mrf.mxu0
  %v11808 = vadd.f32 %v11366, %v11807
  %v11809 = vpop.f32.mrf.mxu0
  %v11810 = vadd.f32 %v11368, %v11809
  %11811 = vmatmul.bf16.gmra.mxu0 %v10956
  %v11812 = vpop.f32.mrf.mxu0
  %v11813 = vadd.f32 %v11371, %v11812
  %v11814 = vpop.f32.mrf.mxu0
  %v11815 = vadd.f32 %v11373, %v11814
  %11816 = vmatmul.bf16.gmra.mxu0 %v10957
  %v11817 = vpop.f32.mrf.mxu0
  %v11818 = vadd.f32 %v11376, %v11817
  %v11819 = vpop.f32.mrf.mxu0
  %v11820 = vadd.f32 %v11378, %v11819
  %11821 = vmatmul.bf16.gmra.mxu0 %v10958
  %v11822 = vpop.f32.mrf.mxu0
  %v11823 = vadd.f32 %v11381, %v11822
  %v11824 = vpop.f32.mrf.mxu0
  %v11825 = vadd.f32 %v11383, %v11824
  %11826 = vmatmul.bf16.gmra.mxu0 %v10959
  %v11827 = vpop.f32.mrf.mxu0
  %v11828 = vadd.f32 %v11386, %v11827
  %v11829 = vpop.f32.mrf.mxu0
  %v11830 = vadd.f32 %v11388, %v11829
  %11831 = vmatmul.bf16.gmra.mxu0 %v10960
  %v11832 = vpop.f32.mrf.mxu0
  %v11833 = vadd.f32 %v11391, %v11832
  %v11834 = vpop.f32.mrf.mxu0
  %v11835 = vadd.f32 %v11393, %v11834
  %11836 = vmatmul.bf16.gmra.mxu0 %v10961
  %v11837 = vpop.f32.mrf.mxu0
  %v11838 = vadd.f32 %v11396, %v11837
  %v11839 = vpop.f32.mrf.mxu0
  %v11840 = vadd.f32 %v11398, %v11839
  %11841 = vmatmul.bf16.gmra.mxu0 %v10962
  %v11842 = vpop.f32.mrf.mxu0
  %v11843 = vadd.f32 %v11401, %v11842
  %v11844 = vpop.f32.mrf.mxu0
  %v11845 = vadd.f32 %v11403, %v11844
  %11846 = vmatmul.bf16.gmra.mxu0 %v10963
  %v11847 = vpop.f32.mrf.mxu0
  %v11848 = vadd.f32 %v11406, %v11847
  %v11849 = vpop.f32.mrf.mxu0
  %v11850 = vadd.f32 %v11408, %v11849
  %11851 = vmatmul.bf16.gmra.mxu0 %v10964
  %v11852 = vpop.f32.mrf.mxu0
  %v11853 = vadd.f32 %v11411, %v11852
  %v11854 = vpop.f32.mrf.mxu0
  %v11855 = vadd.f32 %v11413, %v11854
  %11856 = vmatmul.bf16.gmra.mxu0 %v10965
  %v11857 = vpop.f32.mrf.mxu0
  %v11858 = vadd.f32 %v11416, %v11857
  %v11859 = vpop.f32.mrf.mxu0
  %v11860 = vadd.f32 %v11418, %v11859
  %11861 = vdwg.mxu0
  %s11862 = scalar_lea.vmem %s3, 256
  %v11863 = vld [vmem:[%s11862] sm:$0xff]
  %v11864 = vld [vmem:[%s11862 + $0x8] sm:$0xff]
  %v11865 = vld [vmem:[%s11862 + $0x10] sm:$0xff]
  %v11866 = vld [vmem:[%s11862 + $0x18] sm:$0xff]
  %v11867 = vld [vmem:[%s11862 + $0x20] sm:$0xff]
  %v11868 = vld [vmem:[%s11862 + $0x28] sm:$0xff]
  %v11869 = vld [vmem:[%s11862 + $0x30] sm:$0xff]
  %v11870 = vld [vmem:[%s11862 + $0x38] sm:$0xff]
  %v11871 = vld [vmem:[%s11862 + $0x40] sm:$0xff]
  %v11872 = vld [vmem:[%s11862 + $0x48] sm:$0xff]
  %v11873 = vld [vmem:[%s11862 + $0x50] sm:$0xff]
  %v11874 = vld [vmem:[%s11862 + $0x58] sm:$0xff]
  %v11875 = vld [vmem:[%s11862 + $0x60] sm:$0xff]
  %v11876 = vld [vmem:[%s11862 + $0x68] sm:$0xff]
  %v11877 = vld [vmem:[%s11862 + $0x70] sm:$0xff]
  %v11878 = vld [vmem:[%s11862 + $0x78] sm:$0xff]
  %v11887 = vunpack.c.l.b16 %v10753
  %v11888 = vunpack.c.l.b16 %v10754
  %v11889 = vunpack.c.l.b16 %v10755
  %v11890 = vunpack.c.l.b16 %v10756
  %v11891 = vunpack.c.l.b16 %v10757
  %v11892 = vunpack.c.l.b16 %v10758
  %v11893 = vunpack.c.l.b16 %v10759
  %v11894 = vunpack.c.l.b16 %v10760
  %v11895 = vpack.c.b16 %v11888, %v11887
  %v11896 = vpack.c.b16 %v11890, %v11889
  %v11897 = vpack.c.b16 %v11892, %v11891
  %v11898 = vpack.c.b16 %v11894, %v11893
  %v11919 = vunpack.c.l.b16 %v11863
  %v11920 = vunpack.c.h.b16 %v11863
  %v11921 = vunpack.c.l.b16 %v11864
  %v11922 = vunpack.c.h.b16 %v11864
  %v11923 = vunpack.c.l.b16 %v11865
  %v11924 = vunpack.c.h.b16 %v11865
  %v11925 = vunpack.c.l.b16 %v11866
  %v11926 = vunpack.c.h.b16 %v11866
  %v11927 = vunpack.c.l.b16 %v11867
  %v11928 = vunpack.c.h.b16 %v11867
  %v11929 = vunpack.c.l.b16 %v11868
  %v11930 = vunpack.c.h.b16 %v11868
  %v11931 = vunpack.c.l.b16 %v11869
  %v11932 = vunpack.c.h.b16 %v11869
  %v11933 = vunpack.c.l.b16 %v11870
  %v11934 = vunpack.c.h.b16 %v11870
  %v11935 = vunpack.c.l.b16 %v11871
  %v11936 = vunpack.c.h.b16 %v11871
  %v11937 = vunpack.c.l.b16 %v11872
  %v11938 = vunpack.c.h.b16 %v11872
  %v11939 = vunpack.c.l.b16 %v11873
  %v11940 = vunpack.c.h.b16 %v11873
  %v11941 = vunpack.c.l.b16 %v11874
  %v11942 = vunpack.c.h.b16 %v11874
  %v11943 = vunpack.c.l.b16 %v11875
  %v11944 = vunpack.c.h.b16 %v11875
  %v11945 = vunpack.c.l.b16 %v11876
  %v11946 = vunpack.c.h.b16 %v11876
  %v11947 = vunpack.c.l.b16 %v11877
  %v11948 = vunpack.c.h.b16 %v11877
  %v11949 = vunpack.c.l.b16 %v11878
  %v11950 = vunpack.c.h.b16 %v11878
  %v11951 = vpack.c.b16 %v11921, %v11919
  %v11952 = vpack.c.b16 %v11922, %v11920
  %v11953 = vpack.c.b16 %v11925, %v11923
  %v11954 = vpack.c.b16 %v11926, %v11924
  %v11955 = vpack.c.b16 %v11929, %v11927
  %v11956 = vpack.c.b16 %v11930, %v11928
  %v11957 = vpack.c.b16 %v11933, %v11931
  %v11958 = vpack.c.b16 %v11934, %v11932
  %v11959 = vpack.c.b16 %v11937, %v11935
  %v11960 = vpack.c.b16 %v11938, %v11936
  %v11961 = vpack.c.b16 %v11941, %v11939
  %v11962 = vpack.c.b16 %v11942, %v11940
  %v11963 = vpack.c.b16 %v11945, %v11943
  %v11964 = vpack.c.b16 %v11946, %v11944
  %v11965 = vpack.c.b16 %v11949, %v11947
  %v11966 = vpack.c.b16 %v11950, %v11948
  %11983 = vmatpush.bf16.msra.mxu0 %v11965
  %11984 = vmatpush.bf16.msra.mxu0 %v11963
  %11985 = vmatpush.bf16.msra.mxu0 %v11961
  %11986 = vmatpush.bf16.msra.mxu0 %v11959
  %11987 = vmatpush.bf16.msra.mxu0 %v11957
  %11988 = vmatpush.bf16.msra.mxu0 %v11955
  %11989 = vmatpush.bf16.msra.mxu0 %v11953
  %11990 = vmatpush.bf16.msra.mxu0 %v11951
  %11991 = vmatmul.bf16.gmra.mxu0 %v10942
  %v11992 = vpop.f32.mrf.mxu0
  %v11993 = vadd.f32 0.0, %v11992
  %v11994 = vpop.f32.mrf.mxu0
  %v11995 = vadd.f32 0.0, %v11994
  %11996 = vmatmul.bf16.gmra.mxu0 %v10943
  %v11997 = vpop.f32.mrf.mxu0
  %v11998 = vadd.f32 0.0, %v11997
  %v11999 = vpop.f32.mrf.mxu0
  %v12000 = vadd.f32 0.0, %v11999
  %12001 = vmatmul.bf16.gmra.mxu0 %v10944
  %v12002 = vpop.f32.mrf.mxu0
  %v12003 = vadd.f32 0.0, %v12002
  %v12004 = vpop.f32.mrf.mxu0
  %v12005 = vadd.f32 0.0, %v12004
  %12006 = vmatmul.bf16.gmra.mxu0 %v10945
  %v12007 = vpop.f32.mrf.mxu0
  %v12008 = vadd.f32 0.0, %v12007
  %v12009 = vpop.f32.mrf.mxu0
  %v12010 = vadd.f32 0.0, %v12009
  %12011 = vmatmul.bf16.gmra.mxu0 %v10946
  %v12012 = vpop.f32.mrf.mxu0
  %v12013 = vadd.f32 0.0, %v12012
  %v12014 = vpop.f32.mrf.mxu0
  %v12015 = vadd.f32 0.0, %v12014
  %12016 = vmatmul.bf16.gmra.mxu0 %v10947
  %v12017 = vpop.f32.mrf.mxu0
  %v12018 = vadd.f32 0.0, %v12017
  %v12019 = vpop.f32.mrf.mxu0
  %v12020 = vadd.f32 0.0, %v12019
  %12021 = vmatmul.bf16.gmra.mxu0 %v10948
  %v12022 = vpop.f32.mrf.mxu0
  %v12023 = vadd.f32 0.0, %v12022
  %v12024 = vpop.f32.mrf.mxu0
  %v12025 = vadd.f32 0.0, %v12024
  %12026 = vmatmul.bf16.gmra.mxu0 %v10949
  %v12027 = vpop.f32.mrf.mxu0
  %v12028 = vadd.f32 0.0, %v12027
  %v12029 = vpop.f32.mrf.mxu0
  %v12030 = vadd.f32 0.0, %v12029
  %12031 = vmatmul.bf16.gmra.mxu0 %v10950
  %v12032 = vpop.f32.mrf.mxu0
  %v12033 = vadd.f32 0.0, %v12032
  %v12034 = vpop.f32.mrf.mxu0
  %v12035 = vadd.f32 0.0, %v12034
  %12036 = vmatmul.bf16.gmra.mxu0 %v10951
  %v12037 = vpop.f32.mrf.mxu0
  %v12038 = vadd.f32 0.0, %v12037
  %v12039 = vpop.f32.mrf.mxu0
  %v12040 = vadd.f32 0.0, %v12039
  %12041 = vmatmul.bf16.gmra.mxu0 %v10952
  %v12042 = vpop.f32.mrf.mxu0
  %v12043 = vadd.f32 0.0, %v12042
  %v12044 = vpop.f32.mrf.mxu0
  %v12045 = vadd.f32 0.0, %v12044
  %12046 = vmatmul.bf16.gmra.mxu0 %v10953
  %v12047 = vpop.f32.mrf.mxu0
  %v12048 = vadd.f32 0.0, %v12047
  %v12049 = vpop.f32.mrf.mxu0
  %v12050 = vadd.f32 0.0, %v12049
  %12051 = vmatmul.bf16.gmra.mxu0 %v10954
  %v12052 = vpop.f32.mrf.mxu0
  %v12053 = vadd.f32 0.0, %v12052
  %v12054 = vpop.f32.mrf.mxu0
  %v12055 = vadd.f32 0.0, %v12054
  %12056 = vmatmul.bf16.gmra.mxu0 %v10955
  %v12057 = vpop.f32.mrf.mxu0
  %v12058 = vadd.f32 0.0, %v12057
  %v12059 = vpop.f32.mrf.mxu0
  %v12060 = vadd.f32 0.0, %v12059
  %12061 = vmatmul.bf16.gmra.mxu0 %v10956
  %v12062 = vpop.f32.mrf.mxu0
  %v12063 = vadd.f32 0.0, %v12062
  %v12064 = vpop.f32.mrf.mxu0
  %v12065 = vadd.f32 0.0, %v12064
  %12066 = vmatmul.bf16.gmra.mxu0 %v10957
  %v12067 = vpop.f32.mrf.mxu0
  %v12068 = vadd.f32 0.0, %v12067
  %v12069 = vpop.f32.mrf.mxu0
  %v12070 = vadd.f32 0.0, %v12069
  %12071 = vmatmul.bf16.gmra.mxu0 %v10958
  %v12072 = vpop.f32.mrf.mxu0
  %v12073 = vadd.f32 0.0, %v12072
  %v12074 = vpop.f32.mrf.mxu0
  %v12075 = vadd.f32 0.0, %v12074
  %12076 = vmatmul.bf16.gmra.mxu0 %v10959
  %v12077 = vpop.f32.mrf.mxu0
  %v12078 = vadd.f32 0.0, %v12077
  %v12079 = vpop.f32.mrf.mxu0
  %v12080 = vadd.f32 0.0, %v12079
  %12081 = vmatmul.bf16.gmra.mxu0 %v10960
  %v12082 = vpop.f32.mrf.mxu0
  %v12083 = vadd.f32 0.0, %v12082
  %v12084 = vpop.f32.mrf.mxu0
  %v12085 = vadd.f32 0.0, %v12084
  %12086 = vmatmul.bf16.gmra.mxu0 %v10961
  %v12087 = vpop.f32.mrf.mxu0
  %v12088 = vadd.f32 0.0, %v12087
  %v12089 = vpop.f32.mrf.mxu0
  %v12090 = vadd.f32 0.0, %v12089
  %12091 = vmatmul.bf16.gmra.mxu0 %v10962
  %v12092 = vpop.f32.mrf.mxu0
  %v12093 = vadd.f32 0.0, %v12092
  %v12094 = vpop.f32.mrf.mxu0
  %v12095 = vadd.f32 0.0, %v12094
  %12096 = vmatmul.bf16.gmra.mxu0 %v10963
  %v12097 = vpop.f32.mrf.mxu0
  %v12098 = vadd.f32 0.0, %v12097
  %v12099 = vpop.f32.mrf.mxu0
  %v12100 = vadd.f32 0.0, %v12099
  %12101 = vmatmul.bf16.gmra.mxu0 %v10964
  %v12102 = vpop.f32.mrf.mxu0
  %v12103 = vadd.f32 0.0, %v12102
  %v12104 = vpop.f32.mrf.mxu0
  %v12105 = vadd.f32 0.0, %v12104
  %12106 = vmatmul.bf16.gmra.mxu0 %v10965
  %v12107 = vpop.f32.mrf.mxu0
  %v12108 = vadd.f32 0.0, %v12107
  %v12109 = vpop.f32.mrf.mxu0
  %v12110 = vadd.f32 0.0, %v12109
  %12111 = vmatmul.bf16.gmra.mxu0 %v10966
  %v12112 = vpop.f32.mrf.mxu0
  %v12113 = vadd.f32 0.0, %v12112
  %v12114 = vpop.f32.mrf.mxu0
  %v12115 = vadd.f32 0.0, %v12114
  %12116 = vmatmul.bf16.gmra.mxu0 %v10967
  %v12117 = vpop.f32.mrf.mxu0
  %v12118 = vadd.f32 0.0, %v12117
  %v12119 = vpop.f32.mrf.mxu0
  %v12120 = vadd.f32 0.0, %v12119
  %12121 = vmatmul.bf16.gmra.mxu0 %v10968
  %v12122 = vpop.f32.mrf.mxu0
  %v12123 = vadd.f32 0.0, %v12122
  %v12124 = vpop.f32.mrf.mxu0
  %v12125 = vadd.f32 0.0, %v12124
  %12126 = vmatmul.bf16.gmra.mxu0 %v10969
  %v12127 = vpop.f32.mrf.mxu0
  %v12128 = vadd.f32 0.0, %v12127
  %v12129 = vpop.f32.mrf.mxu0
  %v12130 = vadd.f32 0.0, %v12129
  %12131 = vmatmul.bf16.gmra.mxu0 %v11895
  %v12132 = vpop.f32.mrf.mxu0
  %v12133 = vadd.f32 0.0, %v12132
  %v12134 = vpop.f32.mrf.mxu0
  %v12135 = vadd.f32 0.0, %v12134
  %12136 = vmatmul.bf16.gmra.mxu0 %v11896
  %v12137 = vpop.f32.mrf.mxu0
  %v12138 = vadd.f32 0.0, %v12137
  %v12139 = vpop.f32.mrf.mxu0
  %v12140 = vadd.f32 0.0, %v12139
  %12141 = vmatmul.bf16.gmra.mxu0 %v11897
  %v12142 = vpop.f32.mrf.mxu0
  %v12143 = vadd.f32 0.0, %v12142
  %v12144 = vpop.f32.mrf.mxu0
  %v12145 = vadd.f32 0.0, %v12144
  %12146 = vmatmul.bf16.gmra.mxu0 %v11898
  %v12147 = vpop.f32.mrf.mxu0
  %v12148 = vadd.f32 0.0, %v12147
  %v12149 = vpop.f32.mrf.mxu0
  %v12150 = vadd.f32 0.0, %v12149
  %12151 = vdwg.mxu0
  %12152 = vmatpush.bf16.msra.mxu0 %v11966
  %12153 = vmatpush.bf16.msra.mxu0 %v11964
  %12154 = vmatpush.bf16.msra.mxu0 %v11962
  %12155 = vmatpush.bf16.msra.mxu0 %v11960
  %12156 = vmatpush.bf16.msra.mxu0 %v11958
  %12157 = vmatpush.bf16.msra.mxu0 %v11956
  %12158 = vmatpush.bf16.msra.mxu0 %v11954
  %12159 = vmatpush.bf16.msra.mxu0 %v11952
  %12160 = vmatmul.bf16.gmra.mxu0 %v10942
  %v12161 = vpop.f32.mrf.mxu0
  %v12162 = vadd.f32 0.0, %v12161
  %v12163 = vpop.f32.mrf.mxu0
  %v12164 = vadd.f32 0.0, %v12163
  %12165 = vmatmul.bf16.gmra.mxu0 %v10943
  %v12166 = vpop.f32.mrf.mxu0
  %v12167 = vadd.f32 0.0, %v12166
  %v12168 = vpop.f32.mrf.mxu0
  %v12169 = vadd.f32 0.0, %v12168
  %12170 = vmatmul.bf16.gmra.mxu0 %v10944
  %v12171 = vpop.f32.mrf.mxu0
  %v12172 = vadd.f32 0.0, %v12171
  %v12173 = vpop.f32.mrf.mxu0
  %v12174 = vadd.f32 0.0, %v12173
  %12175 = vmatmul.bf16.gmra.mxu0 %v10945
  %v12176 = vpop.f32.mrf.mxu0
  %v12177 = vadd.f32 0.0, %v12176
  %v12178 = vpop.f32.mrf.mxu0
  %v12179 = vadd.f32 0.0, %v12178
  %12180 = vmatmul.bf16.gmra.mxu0 %v10946
  %v12181 = vpop.f32.mrf.mxu0
  %v12182 = vadd.f32 0.0, %v12181
  %v12183 = vpop.f32.mrf.mxu0
  %v12184 = vadd.f32 0.0, %v12183
  %12185 = vmatmul.bf16.gmra.mxu0 %v10947
  %v12186 = vpop.f32.mrf.mxu0
  %v12187 = vadd.f32 0.0, %v12186
  %v12188 = vpop.f32.mrf.mxu0
  %v12189 = vadd.f32 0.0, %v12188
  %12190 = vmatmul.bf16.gmra.mxu0 %v10948
  %v12191 = vpop.f32.mrf.mxu0
  %v12192 = vadd.f32 0.0, %v12191
  %v12193 = vpop.f32.mrf.mxu0
  %v12194 = vadd.f32 0.0, %v12193
  %12195 = vmatmul.bf16.gmra.mxu0 %v10949
  %v12196 = vpop.f32.mrf.mxu0
  %v12197 = vadd.f32 0.0, %v12196
  %v12198 = vpop.f32.mrf.mxu0
  %v12199 = vadd.f32 0.0, %v12198
  %12200 = vmatmul.bf16.gmra.mxu0 %v10950
  %v12201 = vpop.f32.mrf.mxu0
  %v12202 = vadd.f32 0.0, %v12201
  %v12203 = vpop.f32.mrf.mxu0
  %v12204 = vadd.f32 0.0, %v12203
  %12205 = vmatmul.bf16.gmra.mxu0 %v10951
  %v12206 = vpop.f32.mrf.mxu0
  %v12207 = vadd.f32 0.0, %v12206
  %v12208 = vpop.f32.mrf.mxu0
  %v12209 = vadd.f32 0.0, %v12208
  %12210 = vmatmul.bf16.gmra.mxu0 %v10952
  %v12211 = vpop.f32.mrf.mxu0
  %v12212 = vadd.f32 0.0, %v12211
  %v12213 = vpop.f32.mrf.mxu0
  %v12214 = vadd.f32 0.0, %v12213
  %12215 = vmatmul.bf16.gmra.mxu0 %v10953
  %v12216 = vpop.f32.mrf.mxu0
  %v12217 = vadd.f32 0.0, %v12216
  %v12218 = vpop.f32.mrf.mxu0
  %v12219 = vadd.f32 0.0, %v12218
  %12220 = vmatmul.bf16.gmra.mxu0 %v10954
  %v12221 = vpop.f32.mrf.mxu0
  %v12222 = vadd.f32 0.0, %v12221
  %v12223 = vpop.f32.mrf.mxu0
  %v12224 = vadd.f32 0.0, %v12223
  %12225 = vmatmul.bf16.gmra.mxu0 %v10955
  %v12226 = vpop.f32.mrf.mxu0
  %v12227 = vadd.f32 0.0, %v12226
  %v12228 = vpop.f32.mrf.mxu0
  %v12229 = vadd.f32 0.0, %v12228
  %12230 = vmatmul.bf16.gmra.mxu0 %v10956
  %v12231 = vpop.f32.mrf.mxu0
  %v12232 = vadd.f32 0.0, %v12231
  %v12233 = vpop.f32.mrf.mxu0
  %v12234 = vadd.f32 0.0, %v12233
  %12235 = vmatmul.bf16.gmra.mxu0 %v10957
  %v12236 = vpop.f32.mrf.mxu0
  %v12237 = vadd.f32 0.0, %v12236
  %v12238 = vpop.f32.mrf.mxu0
  %v12239 = vadd.f32 0.0, %v12238
  %12240 = vmatmul.bf16.gmra.mxu0 %v10958
  %v12241 = vpop.f32.mrf.mxu0
  %v12242 = vadd.f32 0.0, %v12241
  %v12243 = vpop.f32.mrf.mxu0
  %v12244 = vadd.f32 0.0, %v12243
  %12245 = vmatmul.bf16.gmra.mxu0 %v10959
  %v12246 = vpop.f32.mrf.mxu0
  %v12247 = vadd.f32 0.0, %v12246
  %v12248 = vpop.f32.mrf.mxu0
  %v12249 = vadd.f32 0.0, %v12248
  %12250 = vmatmul.bf16.gmra.mxu0 %v10960
  %v12251 = vpop.f32.mrf.mxu0
  %v12252 = vadd.f32 0.0, %v12251
  %v12253 = vpop.f32.mrf.mxu0
  %v12254 = vadd.f32 0.0, %v12253
  %12255 = vmatmul.bf16.gmra.mxu0 %v10961
  %v12256 = vpop.f32.mrf.mxu0
  %v12257 = vadd.f32 0.0, %v12256
  %v12258 = vpop.f32.mrf.mxu0
  %v12259 = vadd.f32 0.0, %v12258
  %12260 = vmatmul.bf16.gmra.mxu0 %v10962
  %v12261 = vpop.f32.mrf.mxu0
  %v12262 = vadd.f32 0.0, %v12261
  %v12263 = vpop.f32.mrf.mxu0
  %v12264 = vadd.f32 0.0, %v12263
  %12265 = vmatmul.bf16.gmra.mxu0 %v10963
  %v12266 = vpop.f32.mrf.mxu0
  %v12267 = vadd.f32 0.0, %v12266
  %v12268 = vpop.f32.mrf.mxu0
  %v12269 = vadd.f32 0.0, %v12268
  %12270 = vmatmul.bf16.gmra.mxu0 %v10964
  %v12271 = vpop.f32.mrf.mxu0
  %v12272 = vadd.f32 0.0, %v12271
  %v12273 = vpop.f32.mrf.mxu0
  %v12274 = vadd.f32 0.0, %v12273
  %12275 = vmatmul.bf16.gmra.mxu0 %v10965
  %v12276 = vpop.f32.mrf.mxu0
  %v12277 = vadd.f32 0.0, %v12276
  %v12278 = vpop.f32.mrf.mxu0
  %v12279 = vadd.f32 0.0, %v12278
  %12280 = vmatmul.bf16.gmra.mxu0 %v10966
  %v12281 = vpop.f32.mrf.mxu0
  %v12282 = vadd.f32 0.0, %v12281
  %v12283 = vpop.f32.mrf.mxu0
  %v12284 = vadd.f32 0.0, %v12283
  %12285 = vmatmul.bf16.gmra.mxu0 %v10967
  %v12286 = vpop.f32.mrf.mxu0
  %v12287 = vadd.f32 0.0, %v12286
  %v12288 = vpop.f32.mrf.mxu0
  %v12289 = vadd.f32 0.0, %v12288
  %12290 = vmatmul.bf16.gmra.mxu0 %v10968
  %v12291 = vpop.f32.mrf.mxu0
  %v12292 = vadd.f32 0.0, %v12291
  %v12293 = vpop.f32.mrf.mxu0
  %v12294 = vadd.f32 0.0, %v12293
  %12295 = vmatmul.bf16.gmra.mxu0 %v10969
  %v12296 = vpop.f32.mrf.mxu0
  %v12297 = vadd.f32 0.0, %v12296
  %v12298 = vpop.f32.mrf.mxu0
  %v12299 = vadd.f32 0.0, %v12298
  %12300 = vmatmul.bf16.gmra.mxu0 %v11895
  %v12301 = vpop.f32.mrf.mxu0
  %v12302 = vadd.f32 0.0, %v12301
  %v12303 = vpop.f32.mrf.mxu0
  %v12304 = vadd.f32 0.0, %v12303
  %12305 = vmatmul.bf16.gmra.mxu0 %v11896
  %v12306 = vpop.f32.mrf.mxu0
  %v12307 = vadd.f32 0.0, %v12306
  %v12308 = vpop.f32.mrf.mxu0
  %v12309 = vadd.f32 0.0, %v12308
  %12310 = vmatmul.bf16.gmra.mxu0 %v11897
  %v12311 = vpop.f32.mrf.mxu0
  %v12312 = vadd.f32 0.0, %v12311
  %v12313 = vpop.f32.mrf.mxu0
  %v12314 = vadd.f32 0.0, %v12313
  %12315 = vmatmul.bf16.gmra.mxu0 %v11898
  %v12316 = vpop.f32.mrf.mxu0
  %v12317 = vadd.f32 0.0, %v12316
  %v12318 = vpop.f32.mrf.mxu0
  %v12319 = vadd.f32 0.0, %v12318
  %12320 = vdwg.mxu0
  %v12321 = vadd.f32 %v11534, %v11993
  %v12322 = vadd.f32 %v11703, %v12162
  %v12323 = vadd.f32 %v11536, %v11995
  %v12324 = vadd.f32 %v11705, %v12164
  %v12325 = vadd.f32 %v11539, %v11998
  %v12326 = vadd.f32 %v11708, %v12167
  %v12327 = vadd.f32 %v11541, %v12000
  %v12328 = vadd.f32 %v11710, %v12169
  %v12329 = vadd.f32 %v11544, %v12003
  %v12330 = vadd.f32 %v11713, %v12172
  %v12331 = vadd.f32 %v11546, %v12005
  %v12332 = vadd.f32 %v11715, %v12174
  %v12333 = vadd.f32 %v11549, %v12008
  %v12334 = vadd.f32 %v11718, %v12177
  %v12335 = vadd.f32 %v11551, %v12010
  %v12336 = vadd.f32 %v11720, %v12179
  %v12337 = vadd.f32 %v11554, %v12013
  %v12338 = vadd.f32 %v11723, %v12182
  %v12339 = vadd.f32 %v11556, %v12015
  %v12340 = vadd.f32 %v11725, %v12184
  %v12341 = vadd.f32 %v11559, %v12018
  %v12342 = vadd.f32 %v11728, %v12187
  %v12343 = vadd.f32 %v11561, %v12020
  %v12344 = vadd.f32 %v11730, %v12189
  %v12345 = vadd.f32 %v11564, %v12023
  %v12346 = vadd.f32 %v11733, %v12192
  %v12347 = vadd.f32 %v11566, %v12025
  %v12348 = vadd.f32 %v11735, %v12194
  %v12349 = vadd.f32 %v11569, %v12028
  %v12350 = vadd.f32 %v11738, %v12197
  %v12351 = vadd.f32 %v11571, %v12030
  %v12352 = vadd.f32 %v11740, %v12199
  %v12353 = vadd.f32 %v11574, %v12033
  %v12354 = vadd.f32 %v11743, %v12202
  %v12355 = vadd.f32 %v11576, %v12035
  %v12356 = vadd.f32 %v11745, %v12204
  %v12357 = vadd.f32 %v11579, %v12038
  %v12358 = vadd.f32 %v11748, %v12207
  %v12359 = vadd.f32 %v11581, %v12040
  %v12360 = vadd.f32 %v11750, %v12209
  %v12361 = vadd.f32 %v11584, %v12043
  %v12362 = vadd.f32 %v11753, %v12212
  %v12363 = vadd.f32 %v11586, %v12045
  %v12364 = vadd.f32 %v11755, %v12214
  %v12365 = vadd.f32 %v11589, %v12048
  %v12366 = vadd.f32 %v11758, %v12217
  %v12367 = vadd.f32 %v11591, %v12050
  %v12368 = vadd.f32 %v11760, %v12219
  %v12369 = vadd.f32 %v11594, %v12053
  %v12370 = vadd.f32 %v11763, %v12222
  %v12371 = vadd.f32 %v11596, %v12055
  %v12372 = vadd.f32 %v11765, %v12224
  %v12373 = vadd.f32 %v11599, %v12058
  %v12374 = vadd.f32 %v11768, %v12227
  %v12375 = vadd.f32 %v11601, %v12060
  %v12376 = vadd.f32 %v11770, %v12229
  %v12377 = vadd.f32 %v11604, %v12063
  %v12378 = vadd.f32 %v11773, %v12232
  %v12379 = vadd.f32 %v11606, %v12065
  %v12380 = vadd.f32 %v11775, %v12234
  %v12381 = vadd.f32 %v11609, %v12068
  %v12382 = vadd.f32 %v11778, %v12237
  %v12383 = vadd.f32 %v11611, %v12070
  %v12384 = vadd.f32 %v11780, %v12239
  %v12385 = vadd.f32 %v11614, %v12073
  %v12386 = vadd.f32 %v11783, %v12242
  %v12387 = vadd.f32 %v11616, %v12075
  %v12388 = vadd.f32 %v11785, %v12244
  %v12389 = vadd.f32 %v11619, %v12078
  %v12390 = vadd.f32 %v11788, %v12247
  %v12391 = vadd.f32 %v11621, %v12080
  %v12392 = vadd.f32 %v11790, %v12249
  %v12393 = vadd.f32 %v11624, %v12083
  %v12394 = vadd.f32 %v11793, %v12252
  %v12395 = vadd.f32 %v11626, %v12085
  %v12396 = vadd.f32 %v11795, %v12254
  %v12397 = vadd.f32 %v11629, %v12088
  %v12398 = vadd.f32 %v11798, %v12257
  %v12399 = vadd.f32 %v11631, %v12090
  %v12400 = vadd.f32 %v11800, %v12259
  %v12401 = vadd.f32 %v11634, %v12093
  %v12402 = vadd.f32 %v11803, %v12262
  %v12403 = vadd.f32 %v11636, %v12095
  %v12404 = vadd.f32 %v11805, %v12264
  %v12405 = vadd.f32 %v11639, %v12098
  %v12406 = vadd.f32 %v11808, %v12267
  %v12407 = vadd.f32 %v11641, %v12100
  %v12408 = vadd.f32 %v11810, %v12269
  %v12409 = vadd.f32 %v11644, %v12103
  %v12410 = vadd.f32 %v11813, %v12272
  %v12411 = vadd.f32 %v11646, %v12105
  %v12412 = vadd.f32 %v11815, %v12274
  %v12413 = vadd.f32 %v11649, %v12108
  %v12414 = vadd.f32 %v11818, %v12277
  %v12415 = vadd.f32 %v11651, %v12110
  %v12416 = vadd.f32 %v11820, %v12279
  %v12417 = vadd.f32 %v11654, %v12113
  %v12418 = vadd.f32 %v11823, %v12282
  %v12419 = vadd.f32 %v11656, %v12115
  %v12420 = vadd.f32 %v11825, %v12284
  %v12421 = vadd.f32 %v11659, %v12118
  %v12422 = vadd.f32 %v11828, %v12287
  %v12423 = vadd.f32 %v11661, %v12120
  %v12424 = vadd.f32 %v11830, %v12289
  %v12425 = vadd.f32 %v11664, %v12123
  %v12426 = vadd.f32 %v11833, %v12292
  %v12427 = vadd.f32 %v11666, %v12125
  %v12428 = vadd.f32 %v11835, %v12294
  %v12429 = vadd.f32 %v11669, %v12128
  %v12430 = vadd.f32 %v11838, %v12297
  %v12431 = vadd.f32 %v11671, %v12130
  %v12432 = vadd.f32 %v11840, %v12299
  %v12433 = vadd.f32 %v11674, %v12133
  %v12434 = vadd.f32 %v11843, %v12302
  %v12435 = vadd.f32 %v11676, %v12135
  %v12436 = vadd.f32 %v11845, %v12304
  %v12437 = vadd.f32 %v11679, %v12138
  %v12438 = vadd.f32 %v11848, %v12307
  %v12439 = vadd.f32 %v11681, %v12140
  %v12440 = vadd.f32 %v11850, %v12309
  %v12441 = vadd.f32 %v11684, %v12143
  %v12442 = vadd.f32 %v11853, %v12312
  %v12443 = vadd.f32 %v11686, %v12145
  %v12444 = vadd.f32 %v11855, %v12314
  %v12445 = vadd.f32 %v11689, %v12148
  %v12446 = vadd.f32 %v11858, %v12317
  %v12447 = vadd.f32 %v11691, %v12150
  %v12448 = vadd.f32 %v11860, %v12319
  %s12449 = scalar_lea.vmem %s3, 384
  %v12450 = vld [vmem:[%s12449] sm:$0xff]
  %v12451 = vld [vmem:[%s12449 + $0x8] sm:$0xff]
  %v12452 = vld [vmem:[%s12449 + $0x10] sm:$0xff]
  %v12453 = vld [vmem:[%s12449 + $0x18] sm:$0xff]
  %v12454 = vld [vmem:[%s12449 + $0x20] sm:$0xff]
  %v12455 = vld [vmem:[%s12449 + $0x28] sm:$0xff]
  %v12456 = vld [vmem:[%s12449 + $0x30] sm:$0xff]
  %v12457 = vld [vmem:[%s12449 + $0x38] sm:$0xff]
  %v12458 = vld [vmem:[%s12449 + $0x40] sm:$0xff]
  %v12459 = vld [vmem:[%s12449 + $0x48] sm:$0xff]
  %v12460 = vld [vmem:[%s12449 + $0x50] sm:$0xff]
  %v12461 = vld [vmem:[%s12449 + $0x58] sm:$0xff]
  %v12462 = vld [vmem:[%s12449 + $0x60] sm:$0xff]
  %v12463 = vld [vmem:[%s12449 + $0x68] sm:$0xff]
  %v12464 = vld [vmem:[%s12449 + $0x70] sm:$0xff]
  %v12465 = vld [vmem:[%s12449 + $0x78] sm:$0xff]
  %v12474 = vunpack.c.l.b16 %v10761
  %v12475 = vunpack.c.l.b16 %v10762
  %v12476 = vunpack.c.l.b16 %v10763
  %v12477 = vunpack.c.l.b16 %v10764
  %v12478 = vunpack.c.l.b16 %v10765
  %v12479 = vunpack.c.l.b16 %v10766
  %v12480 = vunpack.c.l.b16 %v10767
  %v12481 = vunpack.c.l.b16 %v10768
  %v12482 = vpack.c.b16 %v12475, %v12474
  %v12483 = vpack.c.b16 %v12477, %v12476
  %v12484 = vpack.c.b16 %v12479, %v12478
  %v12485 = vpack.c.b16 %v12481, %v12480
  %v12506 = vunpack.c.l.b16 %v12450
  %v12507 = vunpack.c.h.b16 %v12450
  %v12508 = vunpack.c.l.b16 %v12451
  %v12509 = vunpack.c.h.b16 %v12451
  %v12510 = vunpack.c.l.b16 %v12452
  %v12511 = vunpack.c.h.b16 %v12452
  %v12512 = vunpack.c.l.b16 %v12453
  %v12513 = vunpack.c.h.b16 %v12453
  %v12514 = vunpack.c.l.b16 %v12454
  %v12515 = vunpack.c.h.b16 %v12454
  %v12516 = vunpack.c.l.b16 %v12455
  %v12517 = vunpack.c.h.b16 %v12455
  %v12518 = vunpack.c.l.b16 %v12456
  %v12519 = vunpack.c.h.b16 %v12456
  %v12520 = vunpack.c.l.b16 %v12457
  %v12521 = vunpack.c.h.b16 %v12457
  %v12522 = vunpack.c.l.b16 %v12458
  %v12523 = vunpack.c.h.b16 %v12458
  %v12524 = vunpack.c.l.b16 %v12459
  %v12525 = vunpack.c.h.b16 %v12459
  %v12526 = vunpack.c.l.b16 %v12460
  %v12527 = vunpack.c.h.b16 %v12460
  %v12528 = vunpack.c.l.b16 %v12461
  %v12529 = vunpack.c.h.b16 %v12461
  %v12530 = vunpack.c.l.b16 %v12462
  %v12531 = vunpack.c.h.b16 %v12462
  %v12532 = vunpack.c.l.b16 %v12463
  %v12533 = vunpack.c.h.b16 %v12463
  %v12534 = vunpack.c.l.b16 %v12464
  %v12535 = vunpack.c.h.b16 %v12464
  %v12536 = vunpack.c.l.b16 %v12465
  %v12537 = vunpack.c.h.b16 %v12465
  %v12538 = vpack.c.b16 %v12508, %v12506
  %v12539 = vpack.c.b16 %v12509, %v12507
  %v12540 = vpack.c.b16 %v12512, %v12510
  %v12541 = vpack.c.b16 %v12513, %v12511
  %v12542 = vpack.c.b16 %v12516, %v12514
  %v12543 = vpack.c.b16 %v12517, %v12515
  %v12544 = vpack.c.b16 %v12520, %v12518
  %v12545 = vpack.c.b16 %v12521, %v12519
  %v12546 = vpack.c.b16 %v12524, %v12522
  %v12547 = vpack.c.b16 %v12525, %v12523
  %v12548 = vpack.c.b16 %v12528, %v12526
  %v12549 = vpack.c.b16 %v12529, %v12527
  %v12550 = vpack.c.b16 %v12532, %v12530
  %v12551 = vpack.c.b16 %v12533, %v12531
  %v12552 = vpack.c.b16 %v12536, %v12534
  %v12553 = vpack.c.b16 %v12537, %v12535
  %12570 = vmatpush.bf16.msra.mxu0 %v12552
  %12571 = vmatpush.bf16.msra.mxu0 %v12550
  %12572 = vmatpush.bf16.msra.mxu0 %v12548
  %12573 = vmatpush.bf16.msra.mxu0 %v12546
  %12574 = vmatpush.bf16.msra.mxu0 %v12544
  %12575 = vmatpush.bf16.msra.mxu0 %v12542
  %12576 = vmatpush.bf16.msra.mxu0 %v12540
  %12577 = vmatpush.bf16.msra.mxu0 %v12538
  %12578 = vmatmul.bf16.gmra.mxu0 %v10946
  %v12579 = vpop.f32.mrf.mxu0
  %v12580 = vadd.f32 0.0, %v12579
  %v12581 = vpop.f32.mrf.mxu0
  %v12582 = vadd.f32 0.0, %v12581
  %12583 = vmatmul.bf16.gmra.mxu0 %v10947
  %v12584 = vpop.f32.mrf.mxu0
  %v12585 = vadd.f32 0.0, %v12584
  %v12586 = vpop.f32.mrf.mxu0
  %v12587 = vadd.f32 0.0, %v12586
  %12588 = vmatmul.bf16.gmra.mxu0 %v10948
  %v12589 = vpop.f32.mrf.mxu0
  %v12590 = vadd.f32 0.0, %v12589
  %v12591 = vpop.f32.mrf.mxu0
  %v12592 = vadd.f32 0.0, %v12591
  %12593 = vmatmul.bf16.gmra.mxu0 %v10949
  %v12594 = vpop.f32.mrf.mxu0
  %v12595 = vadd.f32 0.0, %v12594
  %v12596 = vpop.f32.mrf.mxu0
  %v12597 = vadd.f32 0.0, %v12596
  %12598 = vmatmul.bf16.gmra.mxu0 %v10950
  %v12599 = vpop.f32.mrf.mxu0
  %v12600 = vadd.f32 0.0, %v12599
  %v12601 = vpop.f32.mrf.mxu0
  %v12602 = vadd.f32 0.0, %v12601
  %12603 = vmatmul.bf16.gmra.mxu0 %v10951
  %v12604 = vpop.f32.mrf.mxu0
  %v12605 = vadd.f32 0.0, %v12604
  %v12606 = vpop.f32.mrf.mxu0
  %v12607 = vadd.f32 0.0, %v12606
  %12608 = vmatmul.bf16.gmra.mxu0 %v10952
  %v12609 = vpop.f32.mrf.mxu0
  %v12610 = vadd.f32 0.0, %v12609
  %v12611 = vpop.f32.mrf.mxu0
  %v12612 = vadd.f32 0.0, %v12611
  %12613 = vmatmul.bf16.gmra.mxu0 %v10953
  %v12614 = vpop.f32.mrf.mxu0
  %v12615 = vadd.f32 0.0, %v12614
  %v12616 = vpop.f32.mrf.mxu0
  %v12617 = vadd.f32 0.0, %v12616
  %12618 = vmatmul.bf16.gmra.mxu0 %v10954
  %v12619 = vpop.f32.mrf.mxu0
  %v12620 = vadd.f32 0.0, %v12619
  %v12621 = vpop.f32.mrf.mxu0
  %v12622 = vadd.f32 0.0, %v12621
  %12623 = vmatmul.bf16.gmra.mxu0 %v10955
  %v12624 = vpop.f32.mrf.mxu0
  %v12625 = vadd.f32 0.0, %v12624
  %v12626 = vpop.f32.mrf.mxu0
  %v12627 = vadd.f32 0.0, %v12626
  %12628 = vmatmul.bf16.gmra.mxu0 %v10956
  %v12629 = vpop.f32.mrf.mxu0
  %v12630 = vadd.f32 0.0, %v12629
  %v12631 = vpop.f32.mrf.mxu0
  %v12632 = vadd.f32 0.0, %v12631
  %12633 = vmatmul.bf16.gmra.mxu0 %v10957
  %v12634 = vpop.f32.mrf.mxu0
  %v12635 = vadd.f32 0.0, %v12634
  %v12636 = vpop.f32.mrf.mxu0
  %v12637 = vadd.f32 0.0, %v12636
  %12638 = vmatmul.bf16.gmra.mxu0 %v10958
  %v12639 = vpop.f32.mrf.mxu0
  %v12640 = vadd.f32 0.0, %v12639
  %v12641 = vpop.f32.mrf.mxu0
  %v12642 = vadd.f32 0.0, %v12641
  %12643 = vmatmul.bf16.gmra.mxu0 %v10959
  %v12644 = vpop.f32.mrf.mxu0
  %v12645 = vadd.f32 0.0, %v12644
  %v12646 = vpop.f32.mrf.mxu0
  %v12647 = vadd.f32 0.0, %v12646
  %12648 = vmatmul.bf16.gmra.mxu0 %v10960
  %v12649 = vpop.f32.mrf.mxu0
  %v12650 = vadd.f32 0.0, %v12649
  %v12651 = vpop.f32.mrf.mxu0
  %v12652 = vadd.f32 0.0, %v12651
  %12653 = vmatmul.bf16.gmra.mxu0 %v10961
  %v12654 = vpop.f32.mrf.mxu0
  %v12655 = vadd.f32 0.0, %v12654
  %v12656 = vpop.f32.mrf.mxu0
  %v12657 = vadd.f32 0.0, %v12656
  %12658 = vmatmul.bf16.gmra.mxu0 %v10962
  %v12659 = vpop.f32.mrf.mxu0
  %v12660 = vadd.f32 0.0, %v12659
  %v12661 = vpop.f32.mrf.mxu0
  %v12662 = vadd.f32 0.0, %v12661
  %12663 = vmatmul.bf16.gmra.mxu0 %v10963
  %v12664 = vpop.f32.mrf.mxu0
  %v12665 = vadd.f32 0.0, %v12664
  %v12666 = vpop.f32.mrf.mxu0
  %v12667 = vadd.f32 0.0, %v12666
  %12668 = vmatmul.bf16.gmra.mxu0 %v10964
  %v12669 = vpop.f32.mrf.mxu0
  %v12670 = vadd.f32 0.0, %v12669
  %v12671 = vpop.f32.mrf.mxu0
  %v12672 = vadd.f32 0.0, %v12671
  %12673 = vmatmul.bf16.gmra.mxu0 %v10965
  %v12674 = vpop.f32.mrf.mxu0
  %v12675 = vadd.f32 0.0, %v12674
  %v12676 = vpop.f32.mrf.mxu0
  %v12677 = vadd.f32 0.0, %v12676
  %12678 = vmatmul.bf16.gmra.mxu0 %v10966
  %v12679 = vpop.f32.mrf.mxu0
  %v12680 = vadd.f32 0.0, %v12679
  %v12681 = vpop.f32.mrf.mxu0
  %v12682 = vadd.f32 0.0, %v12681
  %12683 = vmatmul.bf16.gmra.mxu0 %v10967
  %v12684 = vpop.f32.mrf.mxu0
  %v12685 = vadd.f32 0.0, %v12684
  %v12686 = vpop.f32.mrf.mxu0
  %v12687 = vadd.f32 0.0, %v12686
  %12688 = vmatmul.bf16.gmra.mxu0 %v10968
  %v12689 = vpop.f32.mrf.mxu0
  %v12690 = vadd.f32 0.0, %v12689
  %v12691 = vpop.f32.mrf.mxu0
  %v12692 = vadd.f32 0.0, %v12691
  %12693 = vmatmul.bf16.gmra.mxu0 %v10969
  %v12694 = vpop.f32.mrf.mxu0
  %v12695 = vadd.f32 0.0, %v12694
  %v12696 = vpop.f32.mrf.mxu0
  %v12697 = vadd.f32 0.0, %v12696
  %12698 = vmatmul.bf16.gmra.mxu0 %v11895
  %v12699 = vpop.f32.mrf.mxu0
  %v12700 = vadd.f32 0.0, %v12699
  %v12701 = vpop.f32.mrf.mxu0
  %v12702 = vadd.f32 0.0, %v12701
  %12703 = vmatmul.bf16.gmra.mxu0 %v11896
  %v12704 = vpop.f32.mrf.mxu0
  %v12705 = vadd.f32 0.0, %v12704
  %v12706 = vpop.f32.mrf.mxu0
  %v12707 = vadd.f32 0.0, %v12706
  %12708 = vmatmul.bf16.gmra.mxu0 %v11897
  %v12709 = vpop.f32.mrf.mxu0
  %v12710 = vadd.f32 0.0, %v12709
  %v12711 = vpop.f32.mrf.mxu0
  %v12712 = vadd.f32 0.0, %v12711
  %12713 = vmatmul.bf16.gmra.mxu0 %v11898
  %v12714 = vpop.f32.mrf.mxu0
  %v12715 = vadd.f32 0.0, %v12714
  %v12716 = vpop.f32.mrf.mxu0
  %v12717 = vadd.f32 0.0, %v12716
  %12718 = vmatmul.bf16.gmra.mxu0 %v12482
  %v12719 = vpop.f32.mrf.mxu0
  %v12720 = vadd.f32 0.0, %v12719
  %v12721 = vpop.f32.mrf.mxu0
  %v12722 = vadd.f32 0.0, %v12721
  %12723 = vmatmul.bf16.gmra.mxu0 %v12483
  %v12724 = vpop.f32.mrf.mxu0
  %v12725 = vadd.f32 0.0, %v12724
  %v12726 = vpop.f32.mrf.mxu0
  %v12727 = vadd.f32 0.0, %v12726
  %12728 = vmatmul.bf16.gmra.mxu0 %v12484
  %v12729 = vpop.f32.mrf.mxu0
  %v12730 = vadd.f32 0.0, %v12729
  %v12731 = vpop.f32.mrf.mxu0
  %v12732 = vadd.f32 0.0, %v12731
  %12733 = vmatmul.bf16.gmra.mxu0 %v12485
  %v12734 = vpop.f32.mrf.mxu0
  %v12735 = vadd.f32 0.0, %v12734
  %v12736 = vpop.f32.mrf.mxu0
  %v12737 = vadd.f32 0.0, %v12736
  %12738 = vdwg.mxu0
  %12739 = vmatpush.bf16.msra.mxu0 %v12553
  %12740 = vmatpush.bf16.msra.mxu0 %v12551
  %12741 = vmatpush.bf16.msra.mxu0 %v12549
  %12742 = vmatpush.bf16.msra.mxu0 %v12547
  %12743 = vmatpush.bf16.msra.mxu0 %v12545
  %12744 = vmatpush.bf16.msra.mxu0 %v12543
  %12745 = vmatpush.bf16.msra.mxu0 %v12541
  %12746 = vmatpush.bf16.msra.mxu0 %v12539
  %12747 = vmatmul.bf16.gmra.mxu0 %v10946
  %v12748 = vpop.f32.mrf.mxu0
  %v12749 = vadd.f32 0.0, %v12748
  %v12750 = vpop.f32.mrf.mxu0
  %v12751 = vadd.f32 0.0, %v12750
  %12752 = vmatmul.bf16.gmra.mxu0 %v10947
  %v12753 = vpop.f32.mrf.mxu0
  %v12754 = vadd.f32 0.0, %v12753
  %v12755 = vpop.f32.mrf.mxu0
  %v12756 = vadd.f32 0.0, %v12755
  %12757 = vmatmul.bf16.gmra.mxu0 %v10948
  %v12758 = vpop.f32.mrf.mxu0
  %v12759 = vadd.f32 0.0, %v12758
  %v12760 = vpop.f32.mrf.mxu0
  %v12761 = vadd.f32 0.0, %v12760
  %12762 = vmatmul.bf16.gmra.mxu0 %v10949
  %v12763 = vpop.f32.mrf.mxu0
  %v12764 = vadd.f32 0.0, %v12763
  %v12765 = vpop.f32.mrf.mxu0
  %v12766 = vadd.f32 0.0, %v12765
  %12767 = vmatmul.bf16.gmra.mxu0 %v10950
  %v12768 = vpop.f32.mrf.mxu0
  %v12769 = vadd.f32 0.0, %v12768
  %v12770 = vpop.f32.mrf.mxu0
  %v12771 = vadd.f32 0.0, %v12770
  %12772 = vmatmul.bf16.gmra.mxu0 %v10951
  %v12773 = vpop.f32.mrf.mxu0
  %v12774 = vadd.f32 0.0, %v12773
  %v12775 = vpop.f32.mrf.mxu0
  %v12776 = vadd.f32 0.0, %v12775
  %12777 = vmatmul.bf16.gmra.mxu0 %v10952
  %v12778 = vpop.f32.mrf.mxu0
  %v12779 = vadd.f32 0.0, %v12778
  %v12780 = vpop.f32.mrf.mxu0
  %v12781 = vadd.f32 0.0, %v12780
  %12782 = vmatmul.bf16.gmra.mxu0 %v10953
  %v12783 = vpop.f32.mrf.mxu0
  %v12784 = vadd.f32 0.0, %v12783
  %v12785 = vpop.f32.mrf.mxu0
  %v12786 = vadd.f32 0.0, %v12785
  %12787 = vmatmul.bf16.gmra.mxu0 %v10954
  %v12788 = vpop.f32.mrf.mxu0
  %v12789 = vadd.f32 0.0, %v12788
  %v12790 = vpop.f32.mrf.mxu0
  %v12791 = vadd.f32 0.0, %v12790
  %12792 = vmatmul.bf16.gmra.mxu0 %v10955
  %v12793 = vpop.f32.mrf.mxu0
  %v12794 = vadd.f32 0.0, %v12793
  %v12795 = vpop.f32.mrf.mxu0
  %v12796 = vadd.f32 0.0, %v12795
  %12797 = vmatmul.bf16.gmra.mxu0 %v10956
  %v12798 = vpop.f32.mrf.mxu0
  %v12799 = vadd.f32 0.0, %v12798
  %v12800 = vpop.f32.mrf.mxu0
  %v12801 = vadd.f32 0.0, %v12800
  %12802 = vmatmul.bf16.gmra.mxu0 %v10957
  %v12803 = vpop.f32.mrf.mxu0
  %v12804 = vadd.f32 0.0, %v12803
  %v12805 = vpop.f32.mrf.mxu0
  %v12806 = vadd.f32 0.0, %v12805
  %12807 = vmatmul.bf16.gmra.mxu0 %v10958
  %v12808 = vpop.f32.mrf.mxu0
  %v12809 = vadd.f32 0.0, %v12808
  %v12810 = vpop.f32.mrf.mxu0
  %v12811 = vadd.f32 0.0, %v12810
  %12812 = vmatmul.bf16.gmra.mxu0 %v10959
  %v12813 = vpop.f32.mrf.mxu0
  %v12814 = vadd.f32 0.0, %v12813
  %v12815 = vpop.f32.mrf.mxu0
  %v12816 = vadd.f32 0.0, %v12815
  %12817 = vmatmul.bf16.gmra.mxu0 %v10960
  %v12818 = vpop.f32.mrf.mxu0
  %v12819 = vadd.f32 0.0, %v12818
  %v12820 = vpop.f32.mrf.mxu0
  %v12821 = vadd.f32 0.0, %v12820
  %12822 = vmatmul.bf16.gmra.mxu0 %v10961
  %v12823 = vpop.f32.mrf.mxu0
  %v12824 = vadd.f32 0.0, %v12823
  %v12825 = vpop.f32.mrf.mxu0
  %v12826 = vadd.f32 0.0, %v12825
  %12827 = vmatmul.bf16.gmra.mxu0 %v10962
  %v12828 = vpop.f32.mrf.mxu0
  %v12829 = vadd.f32 0.0, %v12828
  %v12830 = vpop.f32.mrf.mxu0
  %v12831 = vadd.f32 0.0, %v12830
  %12832 = vmatmul.bf16.gmra.mxu0 %v10963
  %v12833 = vpop.f32.mrf.mxu0
  %v12834 = vadd.f32 0.0, %v12833
  %v12835 = vpop.f32.mrf.mxu0
  %v12836 = vadd.f32 0.0, %v12835
  %12837 = vmatmul.bf16.gmra.mxu0 %v10964
  %v12838 = vpop.f32.mrf.mxu0
  %v12839 = vadd.f32 0.0, %v12838
  %v12840 = vpop.f32.mrf.mxu0
  %v12841 = vadd.f32 0.0, %v12840
  %12842 = vmatmul.bf16.gmra.mxu0 %v10965
  %v12843 = vpop.f32.mrf.mxu0
  %v12844 = vadd.f32 0.0, %v12843
  %v12845 = vpop.f32.mrf.mxu0
  %v12846 = vadd.f32 0.0, %v12845
  %12847 = vmatmul.bf16.gmra.mxu0 %v10966
  %v12848 = vpop.f32.mrf.mxu0
  %v12849 = vadd.f32 0.0, %v12848
  %v12850 = vpop.f32.mrf.mxu0
  %v12851 = vadd.f32 0.0, %v12850
  %12852 = vmatmul.bf16.gmra.mxu0 %v10967
  %v12853 = vpop.f32.mrf.mxu0
  %v12854 = vadd.f32 0.0, %v12853
  %v12855 = vpop.f32.mrf.mxu0
  %v12856 = vadd.f32 0.0, %v12855
  %12857 = vmatmul.bf16.gmra.mxu0 %v10968
  %v12858 = vpop.f32.mrf.mxu0
  %v12859 = vadd.f32 0.0, %v12858
  %v12860 = vpop.f32.mrf.mxu0
  %v12861 = vadd.f32 0.0, %v12860
  %12862 = vmatmul.bf16.gmra.mxu0 %v10969
  %v12863 = vpop.f32.mrf.mxu0
  %v12864 = vadd.f32 0.0, %v12863
  %v12865 = vpop.f32.mrf.mxu0
  %v12866 = vadd.f32 0.0, %v12865
  %12867 = vmatmul.bf16.gmra.mxu0 %v11895
  %v12868 = vpop.f32.mrf.mxu0
  %v12869 = vadd.f32 0.0, %v12868
  %v12870 = vpop.f32.mrf.mxu0
  %v12871 = vadd.f32 0.0, %v12870
  %12872 = vmatmul.bf16.gmra.mxu0 %v11896
  %v12873 = vpop.f32.mrf.mxu0
  %v12874 = vadd.f32 0.0, %v12873
  %v12875 = vpop.f32.mrf.mxu0
  %v12876 = vadd.f32 0.0, %v12875
  %12877 = vmatmul.bf16.gmra.mxu0 %v11897
  %v12878 = vpop.f32.mrf.mxu0
  %v12879 = vadd.f32 0.0, %v12878
  %v12880 = vpop.f32.mrf.mxu0
  %v12881 = vadd.f32 0.0, %v12880
  %12882 = vmatmul.bf16.gmra.mxu0 %v11898
  %v12883 = vpop.f32.mrf.mxu0
  %v12884 = vadd.f32 0.0, %v12883
  %v12885 = vpop.f32.mrf.mxu0
  %v12886 = vadd.f32 0.0, %v12885
  %12887 = vmatmul.bf16.gmra.mxu0 %v12482
  %v12888 = vpop.f32.mrf.mxu0
  %v12889 = vadd.f32 0.0, %v12888
  %v12890 = vpop.f32.mrf.mxu0
  %v12891 = vadd.f32 0.0, %v12890
  %12892 = vmatmul.bf16.gmra.mxu0 %v12483
  %v12893 = vpop.f32.mrf.mxu0
  %v12894 = vadd.f32 0.0, %v12893
  %v12895 = vpop.f32.mrf.mxu0
  %v12896 = vadd.f32 0.0, %v12895
  %12897 = vmatmul.bf16.gmra.mxu0 %v12484
  %v12898 = vpop.f32.mrf.mxu0
  %v12899 = vadd.f32 0.0, %v12898
  %v12900 = vpop.f32.mrf.mxu0
  %v12901 = vadd.f32 0.0, %v12900
  %12902 = vmatmul.bf16.gmra.mxu0 %v12485
  %v12903 = vpop.f32.mrf.mxu0
  %v12904 = vadd.f32 0.0, %v12903
  %v12905 = vpop.f32.mrf.mxu0
  %v12906 = vadd.f32 0.0, %v12905
  %12907 = vdwg.mxu0
  %v12908 = vadd.f32 %v12321, %v12580
  %v12909 = vadd.f32 %v12322, %v12749
  %v12910 = vadd.f32 %v12323, %v12582
  %v12911 = vadd.f32 %v12324, %v12751
  %v12912 = vadd.f32 %v12325, %v12585
  %v12913 = vadd.f32 %v12326, %v12754
  %v12914 = vadd.f32 %v12327, %v12587
  %v12915 = vadd.f32 %v12328, %v12756
  %v12916 = vadd.f32 %v12329, %v12590
  %v12917 = vadd.f32 %v12330, %v12759
  %v12918 = vadd.f32 %v12331, %v12592
  %v12919 = vadd.f32 %v12332, %v12761
  %v12920 = vadd.f32 %v12333, %v12595
  %v12921 = vadd.f32 %v12334, %v12764
  %v12922 = vadd.f32 %v12335, %v12597
  %v12923 = vadd.f32 %v12336, %v12766
  %v12924 = vadd.f32 %v12337, %v12600
  %v12925 = vadd.f32 %v12338, %v12769
  %v12926 = vadd.f32 %v12339, %v12602
  %v12927 = vadd.f32 %v12340, %v12771
  %v12928 = vadd.f32 %v12341, %v12605
  %v12929 = vadd.f32 %v12342, %v12774
  %v12930 = vadd.f32 %v12343, %v12607
  %v12931 = vadd.f32 %v12344, %v12776
  %v12932 = vadd.f32 %v12345, %v12610
  %v12933 = vadd.f32 %v12346, %v12779
  %v12934 = vadd.f32 %v12347, %v12612
  %v12935 = vadd.f32 %v12348, %v12781
  %v12936 = vadd.f32 %v12349, %v12615
  %v12937 = vadd.f32 %v12350, %v12784
  %v12938 = vadd.f32 %v12351, %v12617
  %v12939 = vadd.f32 %v12352, %v12786
  %v12940 = vadd.f32 %v12353, %v12620
  %v12941 = vadd.f32 %v12354, %v12789
  %v12942 = vadd.f32 %v12355, %v12622
  %v12943 = vadd.f32 %v12356, %v12791
  %v12944 = vadd.f32 %v12357, %v12625
  %v12945 = vadd.f32 %v12358, %v12794
  %v12946 = vadd.f32 %v12359, %v12627
  %v12947 = vadd.f32 %v12360, %v12796
  %v12948 = vadd.f32 %v12361, %v12630
  %v12949 = vadd.f32 %v12362, %v12799
  %v12950 = vadd.f32 %v12363, %v12632
  %v12951 = vadd.f32 %v12364, %v12801
  %v12952 = vadd.f32 %v12365, %v12635
  %v12953 = vadd.f32 %v12366, %v12804
  %v12954 = vadd.f32 %v12367, %v12637
  %v12955 = vadd.f32 %v12368, %v12806
  %v12956 = vadd.f32 %v12369, %v12640
  %v12957 = vadd.f32 %v12370, %v12809
  %v12958 = vadd.f32 %v12371, %v12642
  %v12959 = vadd.f32 %v12372, %v12811
  %v12960 = vadd.f32 %v12373, %v12645
  %v12961 = vadd.f32 %v12374, %v12814
  %v12962 = vadd.f32 %v12375, %v12647
  %v12963 = vadd.f32 %v12376, %v12816
  %v12964 = vadd.f32 %v12377, %v12650
  %v12965 = vadd.f32 %v12378, %v12819
  %v12966 = vadd.f32 %v12379, %v12652
  %v12967 = vadd.f32 %v12380, %v12821
  %v12968 = vadd.f32 %v12381, %v12655
  %v12969 = vadd.f32 %v12382, %v12824
  %v12970 = vadd.f32 %v12383, %v12657
  %v12971 = vadd.f32 %v12384, %v12826
  %v12972 = vadd.f32 %v12385, %v12660
  %v12973 = vadd.f32 %v12386, %v12829
  %v12974 = vadd.f32 %v12387, %v12662
  %v12975 = vadd.f32 %v12388, %v12831
  %v12976 = vadd.f32 %v12389, %v12665
  %v12977 = vadd.f32 %v12390, %v12834
  %v12978 = vadd.f32 %v12391, %v12667
  %v12979 = vadd.f32 %v12392, %v12836
  %v12980 = vadd.f32 %v12393, %v12670
  %v12981 = vadd.f32 %v12394, %v12839
  %v12982 = vadd.f32 %v12395, %v12672
  %v12983 = vadd.f32 %v12396, %v12841
  %v12984 = vadd.f32 %v12397, %v12675
  %v12985 = vadd.f32 %v12398, %v12844
  %v12986 = vadd.f32 %v12399, %v12677
  %v12987 = vadd.f32 %v12400, %v12846
  %v12988 = vadd.f32 %v12401, %v12680
  %v12989 = vadd.f32 %v12402, %v12849
  %v12990 = vadd.f32 %v12403, %v12682
  %v12991 = vadd.f32 %v12404, %v12851
  %v12992 = vadd.f32 %v12405, %v12685
  %v12993 = vadd.f32 %v12406, %v12854
  %v12994 = vadd.f32 %v12407, %v12687
  %v12995 = vadd.f32 %v12408, %v12856
  %v12996 = vadd.f32 %v12409, %v12690
  %v12997 = vadd.f32 %v12410, %v12859
  %v12998 = vadd.f32 %v12411, %v12692
  %v12999 = vadd.f32 %v12412, %v12861
  %v13000 = vadd.f32 %v12413, %v12695
  %v13001 = vadd.f32 %v12414, %v12864
  %v13002 = vadd.f32 %v12415, %v12697
  %v13003 = vadd.f32 %v12416, %v12866
  %v13004 = vadd.f32 %v12417, %v12700
  %v13005 = vadd.f32 %v12418, %v12869
  %v13006 = vadd.f32 %v12419, %v12702
  %v13007 = vadd.f32 %v12420, %v12871
  %v13008 = vadd.f32 %v12421, %v12705
  %v13009 = vadd.f32 %v12422, %v12874
  %v13010 = vadd.f32 %v12423, %v12707
  %v13011 = vadd.f32 %v12424, %v12876
  %v13012 = vadd.f32 %v12425, %v12710
  %v13013 = vadd.f32 %v12426, %v12879
  %v13014 = vadd.f32 %v12427, %v12712
  %v13015 = vadd.f32 %v12428, %v12881
  %v13016 = vadd.f32 %v12429, %v12715
  %v13017 = vadd.f32 %v12430, %v12884
  %v13018 = vadd.f32 %v12431, %v12717
  %v13019 = vadd.f32 %v12432, %v12886
  %v13020 = vadd.f32 %v12433, %v12720
  %v13021 = vadd.f32 %v12434, %v12889
  %v13022 = vadd.f32 %v12435, %v12722
  %v13023 = vadd.f32 %v12436, %v12891
  %v13024 = vadd.f32 %v12437, %v12725
  %v13025 = vadd.f32 %v12438, %v12894
  %v13026 = vadd.f32 %v12439, %v12727
  %v13027 = vadd.f32 %v12440, %v12896
  %v13028 = vadd.f32 %v12441, %v12730
  %v13029 = vadd.f32 %v12442, %v12899
  %v13030 = vadd.f32 %v12443, %v12732
  %v13031 = vadd.f32 %v12444, %v12901
  %v13032 = vadd.f32 %v12445, %v12735
  %v13033 = vadd.f32 %v12446, %v12904
  %v13034 = vadd.f32 %v12447, %v12737
  %v13035 = vadd.f32 %v12448, %v12906
  %s13036 = scalar_lea.vmem %s3, 512
  %v13037 = vld [vmem:[%s13036] sm:$0xff]
  %v13038 = vld [vmem:[%s13036 + $0x8] sm:$0xff]
  %v13039 = vld [vmem:[%s13036 + $0x10] sm:$0xff]
  %v13040 = vld [vmem:[%s13036 + $0x18] sm:$0xff]
  %v13041 = vld [vmem:[%s13036 + $0x20] sm:$0xff]
  %v13042 = vld [vmem:[%s13036 + $0x28] sm:$0xff]
  %v13043 = vld [vmem:[%s13036 + $0x30] sm:$0xff]
  %v13044 = vld [vmem:[%s13036 + $0x38] sm:$0xff]
  %v13045 = vld [vmem:[%s13036 + $0x40] sm:$0xff]
  %v13046 = vld [vmem:[%s13036 + $0x48] sm:$0xff]
  %v13047 = vld [vmem:[%s13036 + $0x50] sm:$0xff]
  %v13048 = vld [vmem:[%s13036 + $0x58] sm:$0xff]
  %v13049 = vld [vmem:[%s13036 + $0x60] sm:$0xff]
  %v13050 = vld [vmem:[%s13036 + $0x68] sm:$0xff]
  %v13051 = vld [vmem:[%s13036 + $0x70] sm:$0xff]
  %v13052 = vld [vmem:[%s13036 + $0x78] sm:$0xff]
  %v13061 = vunpack.c.l.b16 %v10769
  %v13062 = vunpack.c.l.b16 %v10770
  %v13063 = vunpack.c.l.b16 %v10771
  %v13064 = vunpack.c.l.b16 %v10772
  %v13065 = vunpack.c.l.b16 %v10773
  %v13066 = vunpack.c.l.b16 %v10774
  %v13067 = vunpack.c.l.b16 %v10775
  %v13068 = vunpack.c.l.b16 %v10776
  %v13069 = vpack.c.b16 %v13062, %v13061
  %v13070 = vpack.c.b16 %v13064, %v13063
  %v13071 = vpack.c.b16 %v13066, %v13065
  %v13072 = vpack.c.b16 %v13068, %v13067
  %v13093 = vunpack.c.l.b16 %v13037
  %v13094 = vunpack.c.h.b16 %v13037
  %v13095 = vunpack.c.l.b16 %v13038
  %v13096 = vunpack.c.h.b16 %v13038
  %v13097 = vunpack.c.l.b16 %v13039
  %v13098 = vunpack.c.h.b16 %v13039
  %v13099 = vunpack.c.l.b16 %v13040
  %v13100 = vunpack.c.h.b16 %v13040
  %v13101 = vunpack.c.l.b16 %v13041
  %v13102 = vunpack.c.h.b16 %v13041
  %v13103 = vunpack.c.l.b16 %v13042
  %v13104 = vunpack.c.h.b16 %v13042
  %v13105 = vunpack.c.l.b16 %v13043
  %v13106 = vunpack.c.h.b16 %v13043
  %v13107 = vunpack.c.l.b16 %v13044
  %v13108 = vunpack.c.h.b16 %v13044
  %v13109 = vunpack.c.l.b16 %v13045
  %v13110 = vunpack.c.h.b16 %v13045
  %v13111 = vunpack.c.l.b16 %v13046
  %v13112 = vunpack.c.h.b16 %v13046
  %v13113 = vunpack.c.l.b16 %v13047
  %v13114 = vunpack.c.h.b16 %v13047
  %v13115 = vunpack.c.l.b16 %v13048
  %v13116 = vunpack.c.h.b16 %v13048
  %v13117 = vunpack.c.l.b16 %v13049
  %v13118 = vunpack.c.h.b16 %v13049
  %v13119 = vunpack.c.l.b16 %v13050
  %v13120 = vunpack.c.h.b16 %v13050
  %v13121 = vunpack.c.l.b16 %v13051
  %v13122 = vunpack.c.h.b16 %v13051
  %v13123 = vunpack.c.l.b16 %v13052
  %v13124 = vunpack.c.h.b16 %v13052
  %v13125 = vpack.c.b16 %v13095, %v13093
  %v13126 = vpack.c.b16 %v13096, %v13094
  %v13127 = vpack.c.b16 %v13099, %v13097
  %v13128 = vpack.c.b16 %v13100, %v13098
  %v13129 = vpack.c.b16 %v13103, %v13101
  %v13130 = vpack.c.b16 %v13104, %v13102
  %v13131 = vpack.c.b16 %v13107, %v13105
  %v13132 = vpack.c.b16 %v13108, %v13106
  %v13133 = vpack.c.b16 %v13111, %v13109
  %v13134 = vpack.c.b16 %v13112, %v13110
  %v13135 = vpack.c.b16 %v13115, %v13113
  %v13136 = vpack.c.b16 %v13116, %v13114
  %v13137 = vpack.c.b16 %v13119, %v13117
  %v13138 = vpack.c.b16 %v13120, %v13118
  %v13139 = vpack.c.b16 %v13123, %v13121
  %v13140 = vpack.c.b16 %v13124, %v13122
  %13157 = vmatpush.bf16.msra.mxu0 %v13139
  %13158 = vmatpush.bf16.msra.mxu0 %v13137
  %13159 = vmatpush.bf16.msra.mxu0 %v13135
  %13160 = vmatpush.bf16.msra.mxu0 %v13133
  %13161 = vmatpush.bf16.msra.mxu0 %v13131
  %13162 = vmatpush.bf16.msra.mxu0 %v13129
  %13163 = vmatpush.bf16.msra.mxu0 %v13127
  %13164 = vmatpush.bf16.msra.mxu0 %v13125
  %13165 = vmatmul.bf16.gmra.mxu0 %v10950
  %v13166 = vpop.f32.mrf.mxu0
  %v13167 = vadd.f32 0.0, %v13166
  %v13168 = vpop.f32.mrf.mxu0
  %v13169 = vadd.f32 0.0, %v13168
  %13170 = vmatmul.bf16.gmra.mxu0 %v10951
  %v13171 = vpop.f32.mrf.mxu0
  %v13172 = vadd.f32 0.0, %v13171
  %v13173 = vpop.f32.mrf.mxu0
  %v13174 = vadd.f32 0.0, %v13173
  %13175 = vmatmul.bf16.gmra.mxu0 %v10952
  %v13176 = vpop.f32.mrf.mxu0
  %v13177 = vadd.f32 0.0, %v13176
  %v13178 = vpop.f32.mrf.mxu0
  %v13179 = vadd.f32 0.0, %v13178
  %13180 = vmatmul.bf16.gmra.mxu0 %v10953
  %v13181 = vpop.f32.mrf.mxu0
  %v13182 = vadd.f32 0.0, %v13181
  %v13183 = vpop.f32.mrf.mxu0
  %v13184 = vadd.f32 0.0, %v13183
  %13185 = vmatmul.bf16.gmra.mxu0 %v10954
  %v13186 = vpop.f32.mrf.mxu0
  %v13187 = vadd.f32 0.0, %v13186
  %v13188 = vpop.f32.mrf.mxu0
  %v13189 = vadd.f32 0.0, %v13188
  %13190 = vmatmul.bf16.gmra.mxu0 %v10955
  %v13191 = vpop.f32.mrf.mxu0
  %v13192 = vadd.f32 0.0, %v13191
  %v13193 = vpop.f32.mrf.mxu0
  %v13194 = vadd.f32 0.0, %v13193
  %13195 = vmatmul.bf16.gmra.mxu0 %v10956
  %v13196 = vpop.f32.mrf.mxu0
  %v13197 = vadd.f32 0.0, %v13196
  %v13198 = vpop.f32.mrf.mxu0
  %v13199 = vadd.f32 0.0, %v13198
  %13200 = vmatmul.bf16.gmra.mxu0 %v10957
  %v13201 = vpop.f32.mrf.mxu0
  %v13202 = vadd.f32 0.0, %v13201
  %v13203 = vpop.f32.mrf.mxu0
  %v13204 = vadd.f32 0.0, %v13203
  %13205 = vmatmul.bf16.gmra.mxu0 %v10958
  %v13206 = vpop.f32.mrf.mxu0
  %v13207 = vadd.f32 0.0, %v13206
  %v13208 = vpop.f32.mrf.mxu0
  %v13209 = vadd.f32 0.0, %v13208
  %13210 = vmatmul.bf16.gmra.mxu0 %v10959
  %v13211 = vpop.f32.mrf.mxu0
  %v13212 = vadd.f32 0.0, %v13211
  %v13213 = vpop.f32.mrf.mxu0
  %v13214 = vadd.f32 0.0, %v13213
  %13215 = vmatmul.bf16.gmra.mxu0 %v10960
  %v13216 = vpop.f32.mrf.mxu0
  %v13217 = vadd.f32 0.0, %v13216
  %v13218 = vpop.f32.mrf.mxu0
  %v13219 = vadd.f32 0.0, %v13218
  %13220 = vmatmul.bf16.gmra.mxu0 %v10961
  %v13221 = vpop.f32.mrf.mxu0
  %v13222 = vadd.f32 0.0, %v13221
  %v13223 = vpop.f32.mrf.mxu0
  %v13224 = vadd.f32 0.0, %v13223
  %13225 = vmatmul.bf16.gmra.mxu0 %v10962
  %v13226 = vpop.f32.mrf.mxu0
  %v13227 = vadd.f32 0.0, %v13226
  %v13228 = vpop.f32.mrf.mxu0
  %v13229 = vadd.f32 0.0, %v13228
  %13230 = vmatmul.bf16.gmra.mxu0 %v10963
  %v13231 = vpop.f32.mrf.mxu0
  %v13232 = vadd.f32 0.0, %v13231
  %v13233 = vpop.f32.mrf.mxu0
  %v13234 = vadd.f32 0.0, %v13233
  %13235 = vmatmul.bf16.gmra.mxu0 %v10964
  %v13236 = vpop.f32.mrf.mxu0
  %v13237 = vadd.f32 0.0, %v13236
  %v13238 = vpop.f32.mrf.mxu0
  %v13239 = vadd.f32 0.0, %v13238
  %13240 = vmatmul.bf16.gmra.mxu0 %v10965
  %v13241 = vpop.f32.mrf.mxu0
  %v13242 = vadd.f32 0.0, %v13241
  %v13243 = vpop.f32.mrf.mxu0
  %v13244 = vadd.f32 0.0, %v13243
  %13245 = vmatmul.bf16.gmra.mxu0 %v10966
  %v13246 = vpop.f32.mrf.mxu0
  %v13247 = vadd.f32 0.0, %v13246
  %v13248 = vpop.f32.mrf.mxu0
  %v13249 = vadd.f32 0.0, %v13248
  %13250 = vmatmul.bf16.gmra.mxu0 %v10967
  %v13251 = vpop.f32.mrf.mxu0
  %v13252 = vadd.f32 0.0, %v13251
  %v13253 = vpop.f32.mrf.mxu0
  %v13254 = vadd.f32 0.0, %v13253
  %13255 = vmatmul.bf16.gmra.mxu0 %v10968
  %v13256 = vpop.f32.mrf.mxu0
  %v13257 = vadd.f32 0.0, %v13256
  %v13258 = vpop.f32.mrf.mxu0
  %v13259 = vadd.f32 0.0, %v13258
  %13260 = vmatmul.bf16.gmra.mxu0 %v10969
  %v13261 = vpop.f32.mrf.mxu0
  %v13262 = vadd.f32 0.0, %v13261
  %v13263 = vpop.f32.mrf.mxu0
  %v13264 = vadd.f32 0.0, %v13263
  %13265 = vmatmul.bf16.gmra.mxu0 %v11895
  %v13266 = vpop.f32.mrf.mxu0
  %v13267 = vadd.f32 0.0, %v13266
  %v13268 = vpop.f32.mrf.mxu0
  %v13269 = vadd.f32 0.0, %v13268
  %13270 = vmatmul.bf16.gmra.mxu0 %v11896
  %v13271 = vpop.f32.mrf.mxu0
  %v13272 = vadd.f32 0.0, %v13271
  %v13273 = vpop.f32.mrf.mxu0
  %v13274 = vadd.f32 0.0, %v13273
  %13275 = vmatmul.bf16.gmra.mxu0 %v11897
  %v13276 = vpop.f32.mrf.mxu0
  %v13277 = vadd.f32 0.0, %v13276
  %v13278 = vpop.f32.mrf.mxu0
  %v13279 = vadd.f32 0.0, %v13278
  %13280 = vmatmul.bf16.gmra.mxu0 %v11898
  %v13281 = vpop.f32.mrf.mxu0
  %v13282 = vadd.f32 0.0, %v13281
  %v13283 = vpop.f32.mrf.mxu0
  %v13284 = vadd.f32 0.0, %v13283
  %13285 = vmatmul.bf16.gmra.mxu0 %v12482
  %v13286 = vpop.f32.mrf.mxu0
  %v13287 = vadd.f32 0.0, %v13286
  %v13288 = vpop.f32.mrf.mxu0
  %v13289 = vadd.f32 0.0, %v13288
  %13290 = vmatmul.bf16.gmra.mxu0 %v12483
  %v13291 = vpop.f32.mrf.mxu0
  %v13292 = vadd.f32 0.0, %v13291
  %v13293 = vpop.f32.mrf.mxu0
  %v13294 = vadd.f32 0.0, %v13293
  %13295 = vmatmul.bf16.gmra.mxu0 %v12484
  %v13296 = vpop.f32.mrf.mxu0
  %v13297 = vadd.f32 0.0, %v13296
  %v13298 = vpop.f32.mrf.mxu0
  %v13299 = vadd.f32 0.0, %v13298
  %13300 = vmatmul.bf16.gmra.mxu0 %v12485
  %v13301 = vpop.f32.mrf.mxu0
  %v13302 = vadd.f32 0.0, %v13301
  %v13303 = vpop.f32.mrf.mxu0
  %v13304 = vadd.f32 0.0, %v13303
  %13305 = vmatmul.bf16.gmra.mxu0 %v13069
  %v13306 = vpop.f32.mrf.mxu0
  %v13307 = vadd.f32 0.0, %v13306
  %v13308 = vpop.f32.mrf.mxu0
  %v13309 = vadd.f32 0.0, %v13308
  %13310 = vmatmul.bf16.gmra.mxu0 %v13070
  %v13311 = vpop.f32.mrf.mxu0
  %v13312 = vadd.f32 0.0, %v13311
  %v13313 = vpop.f32.mrf.mxu0
  %v13314 = vadd.f32 0.0, %v13313
  %13315 = vmatmul.bf16.gmra.mxu0 %v13071
  %v13316 = vpop.f32.mrf.mxu0
  %v13317 = vadd.f32 0.0, %v13316
  %v13318 = vpop.f32.mrf.mxu0
  %v13319 = vadd.f32 0.0, %v13318
  %13320 = vmatmul.bf16.gmra.mxu0 %v13072
  %v13321 = vpop.f32.mrf.mxu0
  %v13322 = vadd.f32 0.0, %v13321
  %v13323 = vpop.f32.mrf.mxu0
  %v13324 = vadd.f32 0.0, %v13323
  %13325 = vdwg.mxu0
  %13326 = vmatpush.bf16.msra.mxu0 %v13140
  %13327 = vmatpush.bf16.msra.mxu0 %v13138
  %13328 = vmatpush.bf16.msra.mxu0 %v13136
  %13329 = vmatpush.bf16.msra.mxu0 %v13134
  %13330 = vmatpush.bf16.msra.mxu0 %v13132
  %13331 = vmatpush.bf16.msra.mxu0 %v13130
  %13332 = vmatpush.bf16.msra.mxu0 %v13128
  %13333 = vmatpush.bf16.msra.mxu0 %v13126
  %13334 = vmatmul.bf16.gmra.mxu0 %v10950
  %v13335 = vpop.f32.mrf.mxu0
  %v13336 = vadd.f32 0.0, %v13335
  %v13337 = vpop.f32.mrf.mxu0
  %v13338 = vadd.f32 0.0, %v13337
  %13339 = vmatmul.bf16.gmra.mxu0 %v10951
  %v13340 = vpop.f32.mrf.mxu0
  %v13341 = vadd.f32 0.0, %v13340
  %v13342 = vpop.f32.mrf.mxu0
  %v13343 = vadd.f32 0.0, %v13342
  %13344 = vmatmul.bf16.gmra.mxu0 %v10952
  %v13345 = vpop.f32.mrf.mxu0
  %v13346 = vadd.f32 0.0, %v13345
  %v13347 = vpop.f32.mrf.mxu0
  %v13348 = vadd.f32 0.0, %v13347
  %13349 = vmatmul.bf16.gmra.mxu0 %v10953
  %v13350 = vpop.f32.mrf.mxu0
  %v13351 = vadd.f32 0.0, %v13350
  %v13352 = vpop.f32.mrf.mxu0
  %v13353 = vadd.f32 0.0, %v13352
  %13354 = vmatmul.bf16.gmra.mxu0 %v10954
  %v13355 = vpop.f32.mrf.mxu0
  %v13356 = vadd.f32 0.0, %v13355
  %v13357 = vpop.f32.mrf.mxu0
  %v13358 = vadd.f32 0.0, %v13357
  %13359 = vmatmul.bf16.gmra.mxu0 %v10955
  %v13360 = vpop.f32.mrf.mxu0
  %v13361 = vadd.f32 0.0, %v13360
  %v13362 = vpop.f32.mrf.mxu0
  %v13363 = vadd.f32 0.0, %v13362
  %13364 = vmatmul.bf16.gmra.mxu0 %v10956
  %v13365 = vpop.f32.mrf.mxu0
  %v13366 = vadd.f32 0.0, %v13365
  %v13367 = vpop.f32.mrf.mxu0
  %v13368 = vadd.f32 0.0, %v13367
  %13369 = vmatmul.bf16.gmra.mxu0 %v10957
  %v13370 = vpop.f32.mrf.mxu0
  %v13371 = vadd.f32 0.0, %v13370
  %v13372 = vpop.f32.mrf.mxu0
  %v13373 = vadd.f32 0.0, %v13372
  %13374 = vmatmul.bf16.gmra.mxu0 %v10958
  %v13375 = vpop.f32.mrf.mxu0
  %v13376 = vadd.f32 0.0, %v13375
  %v13377 = vpop.f32.mrf.mxu0
  %v13378 = vadd.f32 0.0, %v13377
  %13379 = vmatmul.bf16.gmra.mxu0 %v10959
  %v13380 = vpop.f32.mrf.mxu0
  %v13381 = vadd.f32 0.0, %v13380
  %v13382 = vpop.f32.mrf.mxu0
  %v13383 = vadd.f32 0.0, %v13382
  %13384 = vmatmul.bf16.gmra.mxu0 %v10960
  %v13385 = vpop.f32.mrf.mxu0
  %v13386 = vadd.f32 0.0, %v13385
  %v13387 = vpop.f32.mrf.mxu0
  %v13388 = vadd.f32 0.0, %v13387
  %13389 = vmatmul.bf16.gmra.mxu0 %v10961
  %v13390 = vpop.f32.mrf.mxu0
  %v13391 = vadd.f32 0.0, %v13390
  %v13392 = vpop.f32.mrf.mxu0
  %v13393 = vadd.f32 0.0, %v13392
  %13394 = vmatmul.bf16.gmra.mxu0 %v10962
  %v13395 = vpop.f32.mrf.mxu0
  %v13396 = vadd.f32 0.0, %v13395
  %v13397 = vpop.f32.mrf.mxu0
  %v13398 = vadd.f32 0.0, %v13397
  %13399 = vmatmul.bf16.gmra.mxu0 %v10963
  %v13400 = vpop.f32.mrf.mxu0
  %v13401 = vadd.f32 0.0, %v13400
  %v13402 = vpop.f32.mrf.mxu0
  %v13403 = vadd.f32 0.0, %v13402
  %13404 = vmatmul.bf16.gmra.mxu0 %v10964
  %v13405 = vpop.f32.mrf.mxu0
  %v13406 = vadd.f32 0.0, %v13405
  %v13407 = vpop.f32.mrf.mxu0
  %v13408 = vadd.f32 0.0, %v13407
  %13409 = vmatmul.bf16.gmra.mxu0 %v10965
  %v13410 = vpop.f32.mrf.mxu0
  %v13411 = vadd.f32 0.0, %v13410
  %v13412 = vpop.f32.mrf.mxu0
  %v13413 = vadd.f32 0.0, %v13412
  %13414 = vmatmul.bf16.gmra.mxu0 %v10966
  %v13415 = vpop.f32.mrf.mxu0
  %v13416 = vadd.f32 0.0, %v13415
  %v13417 = vpop.f32.mrf.mxu0
  %v13418 = vadd.f32 0.0, %v13417
  %13419 = vmatmul.bf16.gmra.mxu0 %v10967
  %v13420 = vpop.f32.mrf.mxu0
  %v13421 = vadd.f32 0.0, %v13420
  %v13422 = vpop.f32.mrf.mxu0
  %v13423 = vadd.f32 0.0, %v13422
  %13424 = vmatmul.bf16.gmra.mxu0 %v10968
  %v13425 = vpop.f32.mrf.mxu0
  %v13426 = vadd.f32 0.0, %v13425
  %v13427 = vpop.f32.mrf.mxu0
  %v13428 = vadd.f32 0.0, %v13427
  %13429 = vmatmul.bf16.gmra.mxu0 %v10969
  %v13430 = vpop.f32.mrf.mxu0
  %v13431 = vadd.f32 0.0, %v13430
  %v13432 = vpop.f32.mrf.mxu0
  %v13433 = vadd.f32 0.0, %v13432
  %13434 = vmatmul.bf16.gmra.mxu0 %v11895
  %v13435 = vpop.f32.mrf.mxu0
  %v13436 = vadd.f32 0.0, %v13435
  %v13437 = vpop.f32.mrf.mxu0
  %v13438 = vadd.f32 0.0, %v13437
  %13439 = vmatmul.bf16.gmra.mxu0 %v11896
  %v13440 = vpop.f32.mrf.mxu0
  %v13441 = vadd.f32 0.0, %v13440
  %v13442 = vpop.f32.mrf.mxu0
  %v13443 = vadd.f32 0.0, %v13442
  %13444 = vmatmul.bf16.gmra.mxu0 %v11897
  %v13445 = vpop.f32.mrf.mxu0
  %v13446 = vadd.f32 0.0, %v13445
  %v13447 = vpop.f32.mrf.mxu0
  %v13448 = vadd.f32 0.0, %v13447
  %13449 = vmatmul.bf16.gmra.mxu0 %v11898
  %v13450 = vpop.f32.mrf.mxu0
  %v13451 = vadd.f32 0.0, %v13450
  %v13452 = vpop.f32.mrf.mxu0
  %v13453 = vadd.f32 0.0, %v13452
  %13454 = vmatmul.bf16.gmra.mxu0 %v12482
  %v13455 = vpop.f32.mrf.mxu0
  %v13456 = vadd.f32 0.0, %v13455
  %v13457 = vpop.f32.mrf.mxu0
  %v13458 = vadd.f32 0.0, %v13457
  %13459 = vmatmul.bf16.gmra.mxu0 %v12483
  %v13460 = vpop.f32.mrf.mxu0
  %v13461 = vadd.f32 0.0, %v13460
  %v13462 = vpop.f32.mrf.mxu0
  %v13463 = vadd.f32 0.0, %v13462
  %13464 = vmatmul.bf16.gmra.mxu0 %v12484
  %v13465 = vpop.f32.mrf.mxu0
  %v13466 = vadd.f32 0.0, %v13465
  %v13467 = vpop.f32.mrf.mxu0
  %v13468 = vadd.f32 0.0, %v13467
  %13469 = vmatmul.bf16.gmra.mxu0 %v12485
  %v13470 = vpop.f32.mrf.mxu0
  %v13471 = vadd.f32 0.0, %v13470
  %v13472 = vpop.f32.mrf.mxu0
  %v13473 = vadd.f32 0.0, %v13472
  %13474 = vmatmul.bf16.gmra.mxu0 %v13069
  %v13475 = vpop.f32.mrf.mxu0
  %v13476 = vadd.f32 0.0, %v13475
  %v13477 = vpop.f32.mrf.mxu0
  %v13478 = vadd.f32 0.0, %v13477
  %13479 = vmatmul.bf16.gmra.mxu0 %v13070
  %v13480 = vpop.f32.mrf.mxu0
  %v13481 = vadd.f32 0.0, %v13480
  %v13482 = vpop.f32.mrf.mxu0
  %v13483 = vadd.f32 0.0, %v13482
  %13484 = vmatmul.bf16.gmra.mxu0 %v13071
  %v13485 = vpop.f32.mrf.mxu0
  %v13486 = vadd.f32 0.0, %v13485
  %v13487 = vpop.f32.mrf.mxu0
  %v13488 = vadd.f32 0.0, %v13487
  %13489 = vmatmul.bf16.gmra.mxu0 %v13072
  %v13490 = vpop.f32.mrf.mxu0
  %v13491 = vadd.f32 0.0, %v13490
  %v13492 = vpop.f32.mrf.mxu0
  %v13493 = vadd.f32 0.0, %v13492
  %13494 = vdwg.mxu0
  %v13495 = vadd.f32 %v12908, %v13167
  %v13496 = vadd.f32 %v12909, %v13336
  %v13497 = vadd.f32 %v12910, %v13169
  %v13498 = vadd.f32 %v12911, %v13338
  %v13499 = vadd.f32 %v12912, %v13172
  %v13500 = vadd.f32 %v12913, %v13341
  %v13501 = vadd.f32 %v12914, %v13174
  %v13502 = vadd.f32 %v12915, %v13343
  %v13503 = vadd.f32 %v12916, %v13177
  %v13504 = vadd.f32 %v12917, %v13346
  %v13505 = vadd.f32 %v12918, %v13179
  %v13506 = vadd.f32 %v12919, %v13348
  %v13507 = vadd.f32 %v12920, %v13182
  %v13508 = vadd.f32 %v12921, %v13351
  %v13509 = vadd.f32 %v12922, %v13184
  %v13510 = vadd.f32 %v12923, %v13353
  %v13511 = vadd.f32 %v12924, %v13187
  %v13512 = vadd.f32 %v12925, %v13356
  %v13513 = vadd.f32 %v12926, %v13189
  %v13514 = vadd.f32 %v12927, %v13358
  %v13515 = vadd.f32 %v12928, %v13192
  %v13516 = vadd.f32 %v12929, %v13361
  %v13517 = vadd.f32 %v12930, %v13194
  %v13518 = vadd.f32 %v12931, %v13363
  %v13519 = vadd.f32 %v12932, %v13197
  %v13520 = vadd.f32 %v12933, %v13366
  %v13521 = vadd.f32 %v12934, %v13199
  %v13522 = vadd.f32 %v12935, %v13368
  %v13523 = vadd.f32 %v12936, %v13202
  %v13524 = vadd.f32 %v12937, %v13371
  %v13525 = vadd.f32 %v12938, %v13204
  %v13526 = vadd.f32 %v12939, %v13373
  %v13527 = vadd.f32 %v12940, %v13207
  %v13528 = vadd.f32 %v12941, %v13376
  %v13529 = vadd.f32 %v12942, %v13209
  %v13530 = vadd.f32 %v12943, %v13378
  %v13531 = vadd.f32 %v12944, %v13212
  %v13532 = vadd.f32 %v12945, %v13381
  %v13533 = vadd.f32 %v12946, %v13214
  %v13534 = vadd.f32 %v12947, %v13383
  %v13535 = vadd.f32 %v12948, %v13217
  %v13536 = vadd.f32 %v12949, %v13386
  %v13537 = vadd.f32 %v12950, %v13219
  %v13538 = vadd.f32 %v12951, %v13388
  %v13539 = vadd.f32 %v12952, %v13222
  %v13540 = vadd.f32 %v12953, %v13391
  %v13541 = vadd.f32 %v12954, %v13224
  %v13542 = vadd.f32 %v12955, %v13393
  %v13543 = vadd.f32 %v12956, %v13227
  %v13544 = vadd.f32 %v12957, %v13396
  %v13545 = vadd.f32 %v12958, %v13229
  %v13546 = vadd.f32 %v12959, %v13398
  %v13547 = vadd.f32 %v12960, %v13232
  %v13548 = vadd.f32 %v12961, %v13401
  %v13549 = vadd.f32 %v12962, %v13234
  %v13550 = vadd.f32 %v12963, %v13403
  %v13551 = vadd.f32 %v12964, %v13237
  %v13552 = vadd.f32 %v12965, %v13406
  %v13553 = vadd.f32 %v12966, %v13239
  %v13554 = vadd.f32 %v12967, %v13408
  %v13555 = vadd.f32 %v12968, %v13242
  %v13556 = vadd.f32 %v12969, %v13411
  %v13557 = vadd.f32 %v12970, %v13244
  %v13558 = vadd.f32 %v12971, %v13413
  %v13559 = vadd.f32 %v12972, %v13247
  %v13560 = vadd.f32 %v12973, %v13416
  %v13561 = vadd.f32 %v12974, %v13249
  %v13562 = vadd.f32 %v12975, %v13418
  %v13563 = vadd.f32 %v12976, %v13252
  %v13564 = vadd.f32 %v12977, %v13421
  %v13565 = vadd.f32 %v12978, %v13254
  %v13566 = vadd.f32 %v12979, %v13423
  %v13567 = vadd.f32 %v12980, %v13257
  %v13568 = vadd.f32 %v12981, %v13426
  %v13569 = vadd.f32 %v12982, %v13259
  %v13570 = vadd.f32 %v12983, %v13428
  %v13571 = vadd.f32 %v12984, %v13262
  %v13572 = vadd.f32 %v12985, %v13431
  %v13573 = vadd.f32 %v12986, %v13264
  %v13574 = vadd.f32 %v12987, %v13433
  %v13575 = vadd.f32 %v12988, %v13267
  %v13576 = vadd.f32 %v12989, %v13436
  %v13577 = vadd.f32 %v12990, %v13269
  %v13578 = vadd.f32 %v12991, %v13438
  %v13579 = vadd.f32 %v12992, %v13272
  %v13580 = vadd.f32 %v12993, %v13441
  %v13581 = vadd.f32 %v12994, %v13274
  %v13582 = vadd.f32 %v12995, %v13443
  %v13583 = vadd.f32 %v12996, %v13277
  %v13584 = vadd.f32 %v12997, %v13446
  %v13585 = vadd.f32 %v12998, %v13279
  %v13586 = vadd.f32 %v12999, %v13448
  %v13587 = vadd.f32 %v13000, %v13282
  %v13588 = vadd.f32 %v13001, %v13451
  %v13589 = vadd.f32 %v13002, %v13284
  %v13590 = vadd.f32 %v13003, %v13453
  %v13591 = vadd.f32 %v13004, %v13287
  %v13592 = vadd.f32 %v13005, %v13456
  %v13593 = vadd.f32 %v13006, %v13289
  %v13594 = vadd.f32 %v13007, %v13458
  %v13595 = vadd.f32 %v13008, %v13292
  %v13596 = vadd.f32 %v13009, %v13461
  %v13597 = vadd.f32 %v13010, %v13294
  %v13598 = vadd.f32 %v13011, %v13463
  %v13599 = vadd.f32 %v13012, %v13297
  %v13600 = vadd.f32 %v13013, %v13466
  %v13601 = vadd.f32 %v13014, %v13299
  %v13602 = vadd.f32 %v13015, %v13468
  %v13603 = vadd.f32 %v13016, %v13302
  %v13604 = vadd.f32 %v13017, %v13471
  %v13605 = vadd.f32 %v13018, %v13304
  %v13606 = vadd.f32 %v13019, %v13473
  %v13607 = vadd.f32 %v13020, %v13307
  %v13608 = vadd.f32 %v13021, %v13476
  %v13609 = vadd.f32 %v13022, %v13309
  %v13610 = vadd.f32 %v13023, %v13478
  %v13611 = vadd.f32 %v13024, %v13312
  %v13612 = vadd.f32 %v13025, %v13481
  %v13613 = vadd.f32 %v13026, %v13314
  %v13614 = vadd.f32 %v13027, %v13483
  %v13615 = vadd.f32 %v13028, %v13317
  %v13616 = vadd.f32 %v13029, %v13486
  %v13617 = vadd.f32 %v13030, %v13319
  %v13618 = vadd.f32 %v13031, %v13488
  %v13619 = vadd.f32 %v13032, %v13322
  %v13620 = vadd.f32 %v13033, %v13491
  %v13621 = vadd.f32 %v13034, %v13324
  %v13622 = vadd.f32 %v13035, %v13493
  %v13623 = vmax.f32 %v13495, %v13496
  %v13624 = vmax.f32 %v13497, %v13498
  %v13625 = vmax.f32 %v13499, %v13500
  %v13626 = vmax.f32 %v13501, %v13502
  %v13627 = vmax.f32 %v13503, %v13504
  %v13628 = vmax.f32 %v13505, %v13506
  %v13629 = vmax.f32 %v13507, %v13508
  %v13630 = vmax.f32 %v13509, %v13510
  %v13631 = vmax.f32 %v13511, %v13512
  %v13632 = vmax.f32 %v13513, %v13514
  %v13633 = vmax.f32 %v13515, %v13516
  %v13634 = vmax.f32 %v13517, %v13518
  %v13635 = vmax.f32 %v13519, %v13520
  %v13636 = vmax.f32 %v13521, %v13522
  %v13637 = vmax.f32 %v13523, %v13524
  %v13638 = vmax.f32 %v13525, %v13526
  %v13639 = vmax.f32 %v13527, %v13528
  %v13640 = vmax.f32 %v13529, %v13530
  %v13641 = vmax.f32 %v13531, %v13532
  %v13642 = vmax.f32 %v13533, %v13534
  %v13643 = vmax.f32 %v13535, %v13536
  %v13644 = vmax.f32 %v13537, %v13538
  %v13645 = vmax.f32 %v13539, %v13540
  %v13646 = vmax.f32 %v13541, %v13542
  %v13647 = vmax.f32 %v13543, %v13544
  %v13648 = vmax.f32 %v13545, %v13546
  %v13649 = vmax.f32 %v13547, %v13548
  %v13650 = vmax.f32 %v13549, %v13550
  %v13651 = vmax.f32 %v13551, %v13552
  %v13652 = vmax.f32 %v13553, %v13554
  %v13653 = vmax.f32 %v13555, %v13556
  %v13654 = vmax.f32 %v13557, %v13558
  %v13655 = vmax.f32 %v13559, %v13560
  %v13656 = vmax.f32 %v13561, %v13562
  %v13657 = vmax.f32 %v13563, %v13564
  %v13658 = vmax.f32 %v13565, %v13566
  %v13659 = vmax.f32 %v13567, %v13568
  %v13660 = vmax.f32 %v13569, %v13570
  %v13661 = vmax.f32 %v13571, %v13572
  %v13662 = vmax.f32 %v13573, %v13574
  %v13663 = vmax.f32 %v13575, %v13576
  %v13664 = vmax.f32 %v13577, %v13578
  %v13665 = vmax.f32 %v13579, %v13580
  %v13666 = vmax.f32 %v13581, %v13582
  %v13667 = vmax.f32 %v13583, %v13584
  %v13668 = vmax.f32 %v13585, %v13586
  %v13669 = vmax.f32 %v13587, %v13588
  %v13670 = vmax.f32 %v13589, %v13590
  %v13671 = vmax.f32 %v13591, %v13592
  %v13672 = vmax.f32 %v13593, %v13594
  %v13673 = vmax.f32 %v13595, %v13596
  %v13674 = vmax.f32 %v13597, %v13598
  %v13675 = vmax.f32 %v13599, %v13600
  %v13676 = vmax.f32 %v13601, %v13602
  %v13677 = vmax.f32 %v13603, %v13604
  %v13678 = vmax.f32 %v13605, %v13606
  %v13679 = vmax.f32 %v13607, %v13608
  %v13680 = vmax.f32 %v13609, %v13610
  %v13681 = vmax.f32 %v13611, %v13612
  %v13682 = vmax.f32 %v13613, %v13614
  %v13683 = vmax.f32 %v13615, %v13616
  %v13684 = vmax.f32 %v13617, %v13618
  %v13685 = vmax.f32 %v13619, %v13620
  %v13686 = vmax.f32 %v13621, %v13622
  %v13687 = vld [vmem:[%s4] sm:$0x1]
  %v13689 = vperm.slane %v13687, 0
  %v13691 = vadd.f32 %v13623, %v13689
  %v13692 = vadd.f32 %v13624, %v13689
  %v13693 = vadd.f32 %v13625, %v13689
  %v13694 = vadd.f32 %v13626, %v13689
  %v13695 = vadd.f32 %v13627, %v13689
  %v13696 = vadd.f32 %v13628, %v13689
  %v13697 = vadd.f32 %v13629, %v13689
  %v13698 = vadd.f32 %v13630, %v13689
  %v13699 = vadd.f32 %v13631, %v13689
  %v13700 = vadd.f32 %v13632, %v13689
  %v13701 = vadd.f32 %v13633, %v13689
  %v13702 = vadd.f32 %v13634, %v13689
  %v13703 = vadd.f32 %v13635, %v13689
  %v13704 = vadd.f32 %v13636, %v13689
  %v13705 = vadd.f32 %v13637, %v13689
  %v13706 = vadd.f32 %v13638, %v13689
  %v13707 = vadd.f32 %v13639, %v13689
  %v13708 = vadd.f32 %v13640, %v13689
  %v13709 = vadd.f32 %v13641, %v13689
  %v13710 = vadd.f32 %v13642, %v13689
  %v13711 = vadd.f32 %v13643, %v13689
  %v13712 = vadd.f32 %v13644, %v13689
  %v13713 = vadd.f32 %v13645, %v13689
  %v13714 = vadd.f32 %v13646, %v13689
  %v13715 = vadd.f32 %v13647, %v13689
  %v13716 = vadd.f32 %v13648, %v13689
  %v13717 = vadd.f32 %v13649, %v13689
  %v13718 = vadd.f32 %v13650, %v13689
  %v13719 = vadd.f32 %v13651, %v13689
  %v13720 = vadd.f32 %v13652, %v13689
  %v13721 = vadd.f32 %v13653, %v13689
  %v13722 = vadd.f32 %v13654, %v13689
  %v13723 = vadd.f32 %v13655, %v13689
  %v13724 = vadd.f32 %v13656, %v13689
  %v13725 = vadd.f32 %v13657, %v13689
  %v13726 = vadd.f32 %v13658, %v13689
  %v13727 = vadd.f32 %v13659, %v13689
  %v13728 = vadd.f32 %v13660, %v13689
  %v13729 = vadd.f32 %v13661, %v13689
  %v13730 = vadd.f32 %v13662, %v13689
  %v13731 = vadd.f32 %v13663, %v13689
  %v13732 = vadd.f32 %v13664, %v13689
  %v13733 = vadd.f32 %v13665, %v13689
  %v13734 = vadd.f32 %v13666, %v13689
  %v13735 = vadd.f32 %v13667, %v13689
  %v13736 = vadd.f32 %v13668, %v13689
  %v13737 = vadd.f32 %v13669, %v13689
  %v13738 = vadd.f32 %v13670, %v13689
  %v13739 = vadd.f32 %v13671, %v13689
  %v13740 = vadd.f32 %v13672, %v13689
  %v13741 = vadd.f32 %v13673, %v13689
  %v13742 = vadd.f32 %v13674, %v13689
  %v13743 = vadd.f32 %v13675, %v13689
  %v13744 = vadd.f32 %v13676, %v13689
  %v13745 = vadd.f32 %v13677, %v13689
  %v13746 = vadd.f32 %v13678, %v13689
  %v13747 = vadd.f32 %v13679, %v13689
  %v13748 = vadd.f32 %v13680, %v13689
  %v13749 = vadd.f32 %v13681, %v13689
  %v13750 = vadd.f32 %v13682, %v13689
  %v13751 = vadd.f32 %v13683, %v13689
  %v13752 = vadd.f32 %v13684, %v13689
  %v13753 = vadd.f32 %v13685, %v13689
  %v13754 = vadd.f32 %v13686, %v13689
  %v13755 = vmax.f32 %v13691, %v13699
  %v13756 = vmax.f32 %v13692, %v13700
  %v13757 = vmax.f32 %v13693, %v13701
  %v13758 = vmax.f32 %v13694, %v13702
  %v13759 = vmax.f32 %v13695, %v13703
  %v13760 = vmax.f32 %v13696, %v13704
  %v13761 = vmax.f32 %v13697, %v13705
  %v13762 = vmax.f32 %v13698, %v13706
  %v13763 = vmax.f32 %v13707, %v13715
  %v13764 = vmax.f32 %v13708, %v13716
  %v13765 = vmax.f32 %v13709, %v13717
  %v13766 = vmax.f32 %v13710, %v13718
  %v13767 = vmax.f32 %v13711, %v13719
  %v13768 = vmax.f32 %v13712, %v13720
  %v13769 = vmax.f32 %v13713, %v13721
  %v13770 = vmax.f32 %v13714, %v13722
  %v13771 = vmax.f32 %v13723, %v13731
  %v13772 = vmax.f32 %v13724, %v13732
  %v13773 = vmax.f32 %v13725, %v13733
  %v13774 = vmax.f32 %v13726, %v13734
  %v13775 = vmax.f32 %v13727, %v13735
  %v13776 = vmax.f32 %v13728, %v13736
  %v13777 = vmax.f32 %v13729, %v13737
  %v13778 = vmax.f32 %v13730, %v13738
  %v13779 = vmax.f32 %v13739, %v13747
  %v13780 = vmax.f32 %v13740, %v13748
  %v13781 = vmax.f32 %v13741, %v13749
  %v13782 = vmax.f32 %v13742, %v13750
  %v13783 = vmax.f32 %v13743, %v13751
  %v13784 = vmax.f32 %v13744, %v13752
  %v13785 = vmax.f32 %v13745, %v13753
  %v13786 = vmax.f32 %v13746, %v13754
  %v13787 = vmax.f32 %v13755, 0.0
  %v13788 = vmax.f32 %v13756, 0.0
  %v13789 = vmax.f32 %v13757, 0.0
  %v13790 = vmax.f32 %v13758, 0.0
  %v13791 = vmax.f32 %v13759, 0.0
  %v13792 = vmax.f32 %v13760, 0.0
  %v13793 = vmax.f32 %v13761, 0.0
  %v13794 = vmax.f32 %v13762, 0.0
  %v13795 = vmax.f32 %v13763, 0.0
  %v13796 = vmax.f32 %v13764, 0.0
  %v13797 = vmax.f32 %v13765, 0.0
  %v13798 = vmax.f32 %v13766, 0.0
  %v13799 = vmax.f32 %v13767, 0.0
  %v13800 = vmax.f32 %v13768, 0.0
  %v13801 = vmax.f32 %v13769, 0.0
  %v13802 = vmax.f32 %v13770, 0.0
  %v13803 = vmax.f32 %v13771, 0.0
  %v13804 = vmax.f32 %v13772, 0.0
  %v13805 = vmax.f32 %v13773, 0.0
  %v13806 = vmax.f32 %v13774, 0.0
  %v13807 = vmax.f32 %v13775, 0.0
  %v13808 = vmax.f32 %v13776, 0.0
  %v13809 = vmax.f32 %v13777, 0.0
  %v13810 = vmax.f32 %v13778, 0.0
  %v13811 = vmax.f32 %v13779, 0.0
  %v13812 = vmax.f32 %v13780, 0.0
  %v13813 = vmax.f32 %v13781, 0.0
  %v13814 = vmax.f32 %v13782, 0.0
  %v13815 = vmax.f32 %v13783, 0.0
  %v13816 = vmax.f32 %v13784, 0.0
  %v13817 = vmax.f32 %v13785, 0.0
  %v13818 = vmax.f32 %v13786, 0.0
  %v13819 = vpack.c.bf16 %v13787, %v13787
  %v13820 = vpack.c.bf16 %v13788, %v13788
  %v13821 = vpack.c.bf16 %v13789, %v13789
  %v13822 = vpack.c.bf16 %v13790, %v13790
  %v13823 = vpack.c.bf16 %v13791, %v13791
  %v13824 = vpack.c.bf16 %v13792, %v13792
  %v13825 = vpack.c.bf16 %v13793, %v13793
  %v13826 = vpack.c.bf16 %v13794, %v13794
  %v13827 = vpack.c.bf16 %v13795, %v13795
  %v13828 = vpack.c.bf16 %v13796, %v13796
  %v13829 = vpack.c.bf16 %v13797, %v13797
  %v13830 = vpack.c.bf16 %v13798, %v13798
  %v13831 = vpack.c.bf16 %v13799, %v13799
  %v13832 = vpack.c.bf16 %v13800, %v13800
  %v13833 = vpack.c.bf16 %v13801, %v13801
  %v13834 = vpack.c.bf16 %v13802, %v13802
  %v13835 = vpack.c.bf16 %v13803, %v13803
  %v13836 = vpack.c.bf16 %v13804, %v13804
  %v13837 = vpack.c.bf16 %v13805, %v13805
  %v13838 = vpack.c.bf16 %v13806, %v13806
  %v13839 = vpack.c.bf16 %v13807, %v13807
  %v13840 = vpack.c.bf16 %v13808, %v13808
  %v13841 = vpack.c.bf16 %v13809, %v13809
  %v13842 = vpack.c.bf16 %v13810, %v13810
  %v13843 = vpack.c.bf16 %v13811, %v13811
  %v13844 = vpack.c.bf16 %v13812, %v13812
  %v13845 = vpack.c.bf16 %v13813, %v13813
  %v13846 = vpack.c.bf16 %v13814, %v13814
  %v13847 = vpack.c.bf16 %v13815, %v13815
  %v13848 = vpack.c.bf16 %v13816, %v13816
  %v13849 = vpack.c.bf16 %v13817, %v13817
  %v13850 = vpack.c.bf16 %v13818, %v13818
  %v13851 = vld [vmem:[%s5] sm:$0xf]
  %v13852 = vld [vmem:[%s5 + $0x4] sm:$0xf]
  %v13853 = vld [vmem:[%s5 + $0x8] sm:$0xf]
  %v13854 = vld [vmem:[%s5 + $0xc] sm:$0xf]
  %v13855 = vld [vmem:[%s5 + $0x10] sm:$0xf]
  %v13856 = vld [vmem:[%s5 + $0x14] sm:$0xf]
  %v13857 = vld [vmem:[%s5 + $0x18] sm:$0xf]
  %v13858 = vld [vmem:[%s5 + $0x1c] sm:$0xf]
  %v13859 = vld [vmem:[%s5 + $0x20] sm:$0xf]
  %v13860 = vld [vmem:[%s5 + $0x24] sm:$0xf]
  %v13861 = vld [vmem:[%s5 + $0x28] sm:$0xf]
  %v13862 = vld [vmem:[%s5 + $0x2c] sm:$0xf]
  %v13863 = vld [vmem:[%s5 + $0x30] sm:$0xf]
  %v13864 = vld [vmem:[%s5 + $0x34] sm:$0xf]
  %v13865 = vld [vmem:[%s5 + $0x38] sm:$0xf]
  %v13866 = vld [vmem:[%s5 + $0x3c] sm:$0xf]
  %s13867 = scalar_lea.vmem %s5, 64
  %v13868 = vld [vmem:[%s13867] sm:$0xf]
  %v13869 = vld [vmem:[%s13867 + $0x4] sm:$0xf]
  %v13870 = vld [vmem:[%s13867 + $0x8] sm:$0xf]
  %v13871 = vld [vmem:[%s13867 + $0xc] sm:$0xf]
  %v13872 = vld [vmem:[%s13867 + $0x10] sm:$0xf]
  %v13873 = vld [vmem:[%s13867 + $0x14] sm:$0xf]
  %v13874 = vld [vmem:[%s13867 + $0x18] sm:$0xf]
  %v13875 = vld [vmem:[%s13867 + $0x1c] sm:$0xf]
  %v13876 = vld [vmem:[%s13867 + $0x20] sm:$0xf]
  %v13877 = vld [vmem:[%s13867 + $0x24] sm:$0xf]
  %v13878 = vld [vmem:[%s13867 + $0x28] sm:$0xf]
  %v13879 = vld [vmem:[%s13867 + $0x2c] sm:$0xf]
  %v13880 = vld [vmem:[%s13867 + $0x30] sm:$0xf]
  %v13881 = vld [vmem:[%s13867 + $0x34] sm:$0xf]
  %v13882 = vld [vmem:[%s13867 + $0x38] sm:$0xf]
  %v13883 = vld [vmem:[%s13867 + $0x3c] sm:$0xf]
  %v13892 = vunpack.c.l.b16 %v13827
  %v13893 = vunpack.c.l.b16 %v13828
  %v13894 = vunpack.c.l.b16 %v13829
  %v13895 = vunpack.c.l.b16 %v13830
  %v13896 = vunpack.c.l.b16 %v13831
  %v13897 = vunpack.c.l.b16 %v13832
  %v13898 = vunpack.c.l.b16 %v13833
  %v13899 = vunpack.c.l.b16 %v13834
  %v13900 = vpack.c.b16 %v13893, %v13892
  %v13901 = vpack.c.b16 %v13895, %v13894
  %v13902 = vpack.c.b16 %v13897, %v13896
  %v13903 = vpack.c.b16 %v13899, %v13898
  %v13924 = vunpack.c.l.b16 %v13868
  %v13925 = vunpack.c.l.b16 %v13869
  %v13926 = vunpack.c.l.b16 %v13870
  %v13927 = vunpack.c.l.b16 %v13871
  %v13928 = vunpack.c.l.b16 %v13872
  %v13929 = vunpack.c.l.b16 %v13873
  %v13930 = vunpack.c.l.b16 %v13874
  %v13931 = vunpack.c.l.b16 %v13875
  %v13932 = vunpack.c.l.b16 %v13876
  %v13933 = vunpack.c.l.b16 %v13877
  %v13934 = vunpack.c.l.b16 %v13878
  %v13935 = vunpack.c.l.b16 %v13879
  %v13936 = vunpack.c.l.b16 %v13880
  %v13937 = vunpack.c.l.b16 %v13881
  %v13938 = vunpack.c.l.b16 %v13882
  %v13939 = vunpack.c.l.b16 %v13883
  %v13940 = vpack.c.b16 %v13925, %v13924
  %v13941 = vpack.c.b16 %v13927, %v13926
  %v13942 = vpack.c.b16 %v13929, %v13928
  %v13943 = vpack.c.b16 %v13931, %v13930
  %v13944 = vpack.c.b16 %v13933, %v13932
  %v13945 = vpack.c.b16 %v13935, %v13934
  %v13946 = vpack.c.b16 %v13937, %v13936
  %v13947 = vpack.c.b16 %v13939, %v13938
  %13956 = vmatpush.bf16.msra.mxu0 %v13947
  %13957 = vmatpush.bf16.msra.mxu0 %v13946
  %13958 = vmatpush.bf16.msra.mxu0 %v13945
  %13959 = vmatpush.bf16.msra.mxu0 %v13944
  %13960 = vmatpush.bf16.msra.mxu0 %v13943
  %13961 = vmatpush.bf16.msra.mxu0 %v13942
  %13962 = vmatpush.bf16.msra.mxu0 %v13941
  %13963 = vmatpush.bf16.msra.mxu0 %v13940
  %13964 = vmatmul.bf16.gmra.mxu0 %v13900
  %v13965 = vpop.f32.mrf.mxu0
  %v13966 = vadd.f32 0.0, %v13965
  %v13967 = vpop.f32.mrf.mxu0
  %v13968 = vadd.f32 0.0, %v13967
  %13969 = vmatmul.bf16.gmra.mxu0 %v13901
  %v13970 = vpop.f32.mrf.mxu0
  %v13971 = vadd.f32 0.0, %v13970
  %v13972 = vpop.f32.mrf.mxu0
  %v13973 = vadd.f32 0.0, %v13972
  %13974 = vmatmul.bf16.gmra.mxu0 %v13902
  %v13975 = vpop.f32.mrf.mxu0
  %v13976 = vadd.f32 0.0, %v13975
  %v13977 = vpop.f32.mrf.mxu0
  %v13978 = vadd.f32 0.0, %v13977
  %13979 = vmatmul.bf16.gmra.mxu0 %v13903
  %v13980 = vpop.f32.mrf.mxu0
  %v13981 = vadd.f32 0.0, %v13980
  %v13982 = vpop.f32.mrf.mxu0
  %v13983 = vadd.f32 0.0, %v13982
  %13984 = vdwg.mxu0
  %v13993 = vunpack.c.l.b16 %v13819
  %v13994 = vunpack.c.l.b16 %v13820
  %v13995 = vunpack.c.l.b16 %v13821
  %v13996 = vunpack.c.l.b16 %v13822
  %v13997 = vunpack.c.l.b16 %v13823
  %v13998 = vunpack.c.l.b16 %v13824
  %v13999 = vunpack.c.l.b16 %v13825
  %v14000 = vunpack.c.l.b16 %v13826
  %v14001 = vpack.c.b16 %v13994, %v13993
  %v14002 = vpack.c.b16 %v13996, %v13995
  %v14003 = vpack.c.b16 %v13998, %v13997
  %v14004 = vpack.c.b16 %v14000, %v13999
  %v14025 = vunpack.c.l.b16 %v13851
  %v14026 = vunpack.c.l.b16 %v13852
  %v14027 = vunpack.c.l.b16 %v13853
  %v14028 = vunpack.c.l.b16 %v13854
  %v14029 = vunpack.c.l.b16 %v13855
  %v14030 = vunpack.c.l.b16 %v13856
  %v14031 = vunpack.c.l.b16 %v13857
  %v14032 = vunpack.c.l.b16 %v13858
  %v14033 = vunpack.c.l.b16 %v13859
  %v14034 = vunpack.c.l.b16 %v13860
  %v14035 = vunpack.c.l.b16 %v13861
  %v14036 = vunpack.c.l.b16 %v13862
  %v14037 = vunpack.c.l.b16 %v13863
  %v14038 = vunpack.c.l.b16 %v13864
  %v14039 = vunpack.c.l.b16 %v13865
  %v14040 = vunpack.c.l.b16 %v13866
  %v14041 = vpack.c.b16 %v14026, %v14025
  %v14042 = vpack.c.b16 %v14028, %v14027
  %v14043 = vpack.c.b16 %v14030, %v14029
  %v14044 = vpack.c.b16 %v14032, %v14031
  %v14045 = vpack.c.b16 %v14034, %v14033
  %v14046 = vpack.c.b16 %v14036, %v14035
  %v14047 = vpack.c.b16 %v14038, %v14037
  %v14048 = vpack.c.b16 %v14040, %v14039
  %14057 = vmatpush.bf16.msra.mxu0 %v14048
  %14058 = vmatpush.bf16.msra.mxu0 %v14047
  %14059 = vmatpush.bf16.msra.mxu0 %v14046
  %14060 = vmatpush.bf16.msra.mxu0 %v14045
  %14061 = vmatpush.bf16.msra.mxu0 %v14044
  %14062 = vmatpush.bf16.msra.mxu0 %v14043
  %14063 = vmatpush.bf16.msra.mxu0 %v14042
  %14064 = vmatpush.bf16.msra.mxu0 %v14041
  %14065 = vmatmul.bf16.gmra.mxu0 %v14001
  %v14066 = vpop.f32.mrf.mxu0
  %v14067 = vadd.f32 %v13966, %v14066
  %v14068 = vpop.f32.mrf.mxu0
  %v14069 = vadd.f32 %v13968, %v14068
  %14070 = vmatmul.bf16.gmra.mxu0 %v14002
  %v14071 = vpop.f32.mrf.mxu0
  %v14072 = vadd.f32 %v13971, %v14071
  %v14073 = vpop.f32.mrf.mxu0
  %v14074 = vadd.f32 %v13973, %v14073
  %14075 = vmatmul.bf16.gmra.mxu0 %v14003
  %v14076 = vpop.f32.mrf.mxu0
  %v14077 = vadd.f32 %v13976, %v14076
  %v14078 = vpop.f32.mrf.mxu0
  %v14079 = vadd.f32 %v13978, %v14078
  %14080 = vmatmul.bf16.gmra.mxu0 %v14004
  %v14081 = vpop.f32.mrf.mxu0
  %v14082 = vadd.f32 %v13981, %v14081
  %v14083 = vpop.f32.mrf.mxu0
  %v14084 = vadd.f32 %v13983, %v14083
  %14085 = vdwg.mxu0
  %s14086 = scalar_lea.vmem %s5, 128
  %v14087 = vld [vmem:[%s14086] sm:$0xf]
  %v14088 = vld [vmem:[%s14086 + $0x4] sm:$0xf]
  %v14089 = vld [vmem:[%s14086 + $0x8] sm:$0xf]
  %v14090 = vld [vmem:[%s14086 + $0xc] sm:$0xf]
  %v14091 = vld [vmem:[%s14086 + $0x10] sm:$0xf]
  %v14092 = vld [vmem:[%s14086 + $0x14] sm:$0xf]
  %v14093 = vld [vmem:[%s14086 + $0x18] sm:$0xf]
  %v14094 = vld [vmem:[%s14086 + $0x1c] sm:$0xf]
  %v14095 = vld [vmem:[%s14086 + $0x20] sm:$0xf]
  %v14096 = vld [vmem:[%s14086 + $0x24] sm:$0xf]
  %v14097 = vld [vmem:[%s14086 + $0x28] sm:$0xf]
  %v14098 = vld [vmem:[%s14086 + $0x2c] sm:$0xf]
  %v14099 = vld [vmem:[%s14086 + $0x30] sm:$0xf]
  %v14100 = vld [vmem:[%s14086 + $0x34] sm:$0xf]
  %v14101 = vld [vmem:[%s14086 + $0x38] sm:$0xf]
  %v14102 = vld [vmem:[%s14086 + $0x3c] sm:$0xf]
  %v14111 = vunpack.c.l.b16 %v13835
  %v14112 = vunpack.c.l.b16 %v13836
  %v14113 = vunpack.c.l.b16 %v13837
  %v14114 = vunpack.c.l.b16 %v13838
  %v14115 = vunpack.c.l.b16 %v13839
  %v14116 = vunpack.c.l.b16 %v13840
  %v14117 = vunpack.c.l.b16 %v13841
  %v14118 = vunpack.c.l.b16 %v13842
  %v14119 = vpack.c.b16 %v14112, %v14111
  %v14120 = vpack.c.b16 %v14114, %v14113
  %v14121 = vpack.c.b16 %v14116, %v14115
  %v14122 = vpack.c.b16 %v14118, %v14117
  %v14143 = vunpack.c.l.b16 %v14087
  %v14144 = vunpack.c.l.b16 %v14088
  %v14145 = vunpack.c.l.b16 %v14089
  %v14146 = vunpack.c.l.b16 %v14090
  %v14147 = vunpack.c.l.b16 %v14091
  %v14148 = vunpack.c.l.b16 %v14092
  %v14149 = vunpack.c.l.b16 %v14093
  %v14150 = vunpack.c.l.b16 %v14094
  %v14151 = vunpack.c.l.b16 %v14095
  %v14152 = vunpack.c.l.b16 %v14096
  %v14153 = vunpack.c.l.b16 %v14097
  %v14154 = vunpack.c.l.b16 %v14098
  %v14155 = vunpack.c.l.b16 %v14099
  %v14156 = vunpack.c.l.b16 %v14100
  %v14157 = vunpack.c.l.b16 %v14101
  %v14158 = vunpack.c.l.b16 %v14102
  %v14159 = vpack.c.b16 %v14144, %v14143
  %v14160 = vpack.c.b16 %v14146, %v14145
  %v14161 = vpack.c.b16 %v14148, %v14147
  %v14162 = vpack.c.b16 %v14150, %v14149
  %v14163 = vpack.c.b16 %v14152, %v14151
  %v14164 = vpack.c.b16 %v14154, %v14153
  %v14165 = vpack.c.b16 %v14156, %v14155
  %v14166 = vpack.c.b16 %v14158, %v14157
  %14175 = vmatpush.bf16.msra.mxu0 %v14166
  %14176 = vmatpush.bf16.msra.mxu0 %v14165
  %14177 = vmatpush.bf16.msra.mxu0 %v14164
  %14178 = vmatpush.bf16.msra.mxu0 %v14163
  %14179 = vmatpush.bf16.msra.mxu0 %v14162
  %14180 = vmatpush.bf16.msra.mxu0 %v14161
  %14181 = vmatpush.bf16.msra.mxu0 %v14160
  %14182 = vmatpush.bf16.msra.mxu0 %v14159
  %14183 = vmatmul.bf16.gmra.mxu0 %v14119
  %v14184 = vpop.f32.mrf.mxu0
  %v14185 = vadd.f32 0.0, %v14184
  %v14186 = vpop.f32.mrf.mxu0
  %v14187 = vadd.f32 0.0, %v14186
  %14188 = vmatmul.bf16.gmra.mxu0 %v14120
  %v14189 = vpop.f32.mrf.mxu0
  %v14190 = vadd.f32 0.0, %v14189
  %v14191 = vpop.f32.mrf.mxu0
  %v14192 = vadd.f32 0.0, %v14191
  %14193 = vmatmul.bf16.gmra.mxu0 %v14121
  %v14194 = vpop.f32.mrf.mxu0
  %v14195 = vadd.f32 0.0, %v14194
  %v14196 = vpop.f32.mrf.mxu0
  %v14197 = vadd.f32 0.0, %v14196
  %14198 = vmatmul.bf16.gmra.mxu0 %v14122
  %v14199 = vpop.f32.mrf.mxu0
  %v14200 = vadd.f32 0.0, %v14199
  %v14201 = vpop.f32.mrf.mxu0
  %v14202 = vadd.f32 0.0, %v14201
  %14203 = vdwg.mxu0
  %v14204 = vadd.f32 %v14067, %v14185
  %v14205 = vadd.f32 %v14069, %v14187
  %v14206 = vadd.f32 %v14072, %v14190
  %v14207 = vadd.f32 %v14074, %v14192
  %v14208 = vadd.f32 %v14077, %v14195
  %v14209 = vadd.f32 %v14079, %v14197
  %v14210 = vadd.f32 %v14082, %v14200
  %v14211 = vadd.f32 %v14084, %v14202
  %s14212 = scalar_lea.vmem %s5, 192
  %v14213 = vld [vmem:[%s14212] sm:$0xf]
  %v14214 = vld [vmem:[%s14212 + $0x4] sm:$0xf]
  %v14215 = vld [vmem:[%s14212 + $0x8] sm:$0xf]
  %v14216 = vld [vmem:[%s14212 + $0xc] sm:$0xf]
  %v14217 = vld [vmem:[%s14212 + $0x10] sm:$0xf]
  %v14218 = vld [vmem:[%s14212 + $0x14] sm:$0xf]
  %v14219 = vld [vmem:[%s14212 + $0x18] sm:$0xf]
  %v14220 = vld [vmem:[%s14212 + $0x1c] sm:$0xf]
  %v14221 = vld [vmem:[%s14212 + $0x20] sm:$0xf]
  %v14222 = vld [vmem:[%s14212 + $0x24] sm:$0xf]
  %v14223 = vld [vmem:[%s14212 + $0x28] sm:$0xf]
  %v14224 = vld [vmem:[%s14212 + $0x2c] sm:$0xf]
  %v14225 = vld [vmem:[%s14212 + $0x30] sm:$0xf]
  %v14226 = vld [vmem:[%s14212 + $0x34] sm:$0xf]
  %v14227 = vld [vmem:[%s14212 + $0x38] sm:$0xf]
  %v14228 = vld [vmem:[%s14212 + $0x3c] sm:$0xf]
  %v14237 = vunpack.c.l.b16 %v13843
  %v14238 = vunpack.c.l.b16 %v13844
  %v14239 = vunpack.c.l.b16 %v13845
  %v14240 = vunpack.c.l.b16 %v13846
  %v14241 = vunpack.c.l.b16 %v13847
  %v14242 = vunpack.c.l.b16 %v13848
  %v14243 = vunpack.c.l.b16 %v13849
  %v14244 = vunpack.c.l.b16 %v13850
  %v14245 = vpack.c.b16 %v14238, %v14237
  %v14246 = vpack.c.b16 %v14240, %v14239
  %v14247 = vpack.c.b16 %v14242, %v14241
  %v14248 = vpack.c.b16 %v14244, %v14243
  %v14269 = vunpack.c.l.b16 %v14213
  %v14270 = vunpack.c.l.b16 %v14214
  %v14271 = vunpack.c.l.b16 %v14215
  %v14272 = vunpack.c.l.b16 %v14216
  %v14273 = vunpack.c.l.b16 %v14217
  %v14274 = vunpack.c.l.b16 %v14218
  %v14275 = vunpack.c.l.b16 %v14219
  %v14276 = vunpack.c.l.b16 %v14220
  %v14277 = vunpack.c.l.b16 %v14221
  %v14278 = vunpack.c.l.b16 %v14222
  %v14279 = vunpack.c.l.b16 %v14223
  %v14280 = vunpack.c.l.b16 %v14224
  %v14281 = vunpack.c.l.b16 %v14225
  %v14282 = vunpack.c.l.b16 %v14226
  %v14283 = vunpack.c.l.b16 %v14227
  %v14284 = vunpack.c.l.b16 %v14228
  %v14285 = vpack.c.b16 %v14270, %v14269
  %v14286 = vpack.c.b16 %v14272, %v14271
  %v14287 = vpack.c.b16 %v14274, %v14273
  %v14288 = vpack.c.b16 %v14276, %v14275
  %v14289 = vpack.c.b16 %v14278, %v14277
  %v14290 = vpack.c.b16 %v14280, %v14279
  %v14291 = vpack.c.b16 %v14282, %v14281
  %v14292 = vpack.c.b16 %v14284, %v14283
  %14301 = vmatpush.bf16.msra.mxu0 %v14292
  %14302 = vmatpush.bf16.msra.mxu0 %v14291
  %14303 = vmatpush.bf16.msra.mxu0 %v14290
  %14304 = vmatpush.bf16.msra.mxu0 %v14289
  %14305 = vmatpush.bf16.msra.mxu0 %v14288
  %14306 = vmatpush.bf16.msra.mxu0 %v14287
  %14307 = vmatpush.bf16.msra.mxu0 %v14286
  %14308 = vmatpush.bf16.msra.mxu0 %v14285
  %14309 = vmatmul.bf16.gmra.mxu0 %v14245
  %v14310 = vpop.f32.mrf.mxu0
  %v14311 = vadd.f32 0.0, %v14310
  %v14312 = vpop.f32.mrf.mxu0
  %v14313 = vadd.f32 0.0, %v14312
  %14314 = vmatmul.bf16.gmra.mxu0 %v14246
  %v14315 = vpop.f32.mrf.mxu0
  %v14316 = vadd.f32 0.0, %v14315
  %v14317 = vpop.f32.mrf.mxu0
  %v14318 = vadd.f32 0.0, %v14317
  %14319 = vmatmul.bf16.gmra.mxu0 %v14247
  %v14320 = vpop.f32.mrf.mxu0
  %v14321 = vadd.f32 0.0, %v14320
  %v14322 = vpop.f32.mrf.mxu0
  %v14323 = vadd.f32 0.0, %v14322
  %14324 = vmatmul.bf16.gmra.mxu0 %v14248
  %v14325 = vpop.f32.mrf.mxu0
  %v14326 = vadd.f32 0.0, %v14325
  %v14327 = vpop.f32.mrf.mxu0
  %v14328 = vadd.f32 0.0, %v14327
  %14329 = vdwg.mxu0
  %v14330 = vadd.f32 %v14204, %v14311
  %v14331 = vadd.f32 %v14205, %v14313
  %v14332 = vadd.f32 %v14206, %v14316
  %v14333 = vadd.f32 %v14207, %v14318
  %v14334 = vadd.f32 %v14208, %v14321
  %v14335 = vadd.f32 %v14209, %v14323
  %v14336 = vadd.f32 %v14210, %v14326
  %v14337 = vadd.f32 %v14211, %v14328
  %v14338 = vld [vmem:[%s6] sm:$0x1]
  %v14340 = vperm.slane %v14338, 0
  %v14342 = vadd.f32 %v14330, %v14340
  %v14343 = vadd.f32 %v14331, %v14340
  %v14344 = vadd.f32 %v14332, %v14340
  %v14345 = vadd.f32 %v14333, %v14340
  %v14346 = vadd.f32 %v14334, %v14340
  %v14347 = vadd.f32 %v14335, %v14340
  %v14348 = vadd.f32 %v14336, %v14340
  %v14349 = vadd.f32 %v14337, %v14340
  %v14350 = vmax.f32 %v14342, 0.0
  %v14351 = vmax.f32 %v14343, 0.0
  %v14352 = vmax.f32 %v14344, 0.0
  %v14353 = vmax.f32 %v14345, 0.0
  %v14354 = vmax.f32 %v14346, 0.0
  %v14355 = vmax.f32 %v14347, 0.0
  %v14356 = vmax.f32 %v14348, 0.0
  %v14357 = vmax.f32 %v14349, 0.0
  %v14358 = vpack.c.bf16 %v14351, %v14350
  %v14359 = vpack.c.bf16 %v14353, %v14352
  %v14360 = vpack.c.bf16 %v14355, %v14354
  %v14361 = vpack.c.bf16 %v14357, %v14356
  %v14362 = vld [vmem:[%s7] sm:$0xf]
  %v14363 = vld [vmem:[%s7 + $0x4] sm:$0xf]
  %v14364 = vld [vmem:[%s7 + $0x8] sm:$0xf]
  %v14365 = vld [vmem:[%s7 + $0xc] sm:$0xf]
  %v14366 = vld [vmem:[%s7 + $0x10] sm:$0xf]
  %v14367 = vld [vmem:[%s7 + $0x14] sm:$0xf]
  %v14368 = vld [vmem:[%s7 + $0x18] sm:$0xf]
  %v14369 = vld [vmem:[%s7 + $0x1c] sm:$0xf]
  %v14370 = vld [vmem:[%s7 + $0x20] sm:$0xf]
  %v14371 = vld [vmem:[%s7 + $0x24] sm:$0xf]
  %v14372 = vld [vmem:[%s7 + $0x28] sm:$0xf]
  %v14373 = vld [vmem:[%s7 + $0x2c] sm:$0xf]
  %v14374 = vld [vmem:[%s7 + $0x30] sm:$0xf]
  %v14375 = vld [vmem:[%s7 + $0x34] sm:$0xf]
  %v14376 = vld [vmem:[%s7 + $0x38] sm:$0xf]
  %v14377 = vld [vmem:[%s7 + $0x3c] sm:$0xf]
  %v14378 = vld [vmem:[%s8] sm:$0x1]
  %v14380 = vperm.slane %v14378, 0
  %v14398 = vunpack.c.l.b16 %v14362
  %v14399 = vunpack.c.l.b16 %v14363
  %v14400 = vunpack.c.l.b16 %v14364
  %v14401 = vunpack.c.l.b16 %v14365
  %v14402 = vunpack.c.l.b16 %v14366
  %v14403 = vunpack.c.l.b16 %v14367
  %v14404 = vunpack.c.l.b16 %v14368
  %v14405 = vunpack.c.l.b16 %v14369
  %v14406 = vunpack.c.l.b16 %v14370
  %v14407 = vunpack.c.l.b16 %v14371
  %v14408 = vunpack.c.l.b16 %v14372
  %v14409 = vunpack.c.l.b16 %v14373
  %v14410 = vunpack.c.l.b16 %v14374
  %v14411 = vunpack.c.l.b16 %v14375
  %v14412 = vunpack.c.l.b16 %v14376
  %v14413 = vunpack.c.l.b16 %v14377
  %v14414 = vpack.c.b16 %v14399, %v14398
  %v14415 = vpack.c.b16 %v14401, %v14400
  %v14416 = vpack.c.b16 %v14403, %v14402
  %v14417 = vpack.c.b16 %v14405, %v14404
  %v14418 = vpack.c.b16 %v14407, %v14406
  %v14419 = vpack.c.b16 %v14409, %v14408
  %v14420 = vpack.c.b16 %v14411, %v14410
  %v14421 = vpack.c.b16 %v14413, %v14412
  %14430 = vmatpush.bf16.msra.mxu0 %v14421
  %14431 = vmatpush.bf16.msra.mxu0 %v14420
  %14432 = vmatpush.bf16.msra.mxu0 %v14419
  %14433 = vmatpush.bf16.msra.mxu0 %v14418
  %14434 = vmatpush.bf16.msra.mxu0 %v14417
  %14435 = vmatpush.bf16.msra.mxu0 %v14416
  %14436 = vmatpush.bf16.msra.mxu0 %v14415
  %14437 = vmatpush.bf16.msra.mxu0 %v14414
  %14438 = vmatmul.bf16.gmra.mxu0 %v14358
  %v14439 = vpop.f32.mrf.mxu0
  %v14440 = vadd.f32 %v14380, %v14439
  %v14441 = vpop.f32.mrf.mxu0
  %v14442 = vadd.f32 %v14380, %v14441
  %14443 = vmatmul.bf16.gmra.mxu0 %v14359
  %v14444 = vpop.f32.mrf.mxu0
  %v14445 = vadd.f32 %v14380, %v14444
  %v14446 = vpop.f32.mrf.mxu0
  %v14447 = vadd.f32 %v14380, %v14446
  %14448 = vmatmul.bf16.gmra.mxu0 %v14360
  %v14449 = vpop.f32.mrf.mxu0
  %v14450 = vadd.f32 %v14380, %v14449
  %v14451 = vpop.f32.mrf.mxu0
  %v14452 = vadd.f32 %v14380, %v14451
  %14453 = vmatmul.bf16.gmra.mxu0 %v14361
  %v14454 = vpop.f32.mrf.mxu0
  %v14455 = vadd.f32 %v14380, %v14454
  %v14456 = vpop.f32.mrf.mxu0
  %v14457 = vadd.f32 %v14380, %v14456
  %14458 = vdwg.mxu0
  %14459 = vmax.xlane.f32.xlu0 %v14440
  %v14460 = vpop.xlane.xlu0 %14459
  %14461 = vmax.xlane.f32.xlu0 %v14442
  %v14462 = vpop.xlane.xlu0 %14461
  %14463 = vmax.xlane.f32.xlu0 %v14445
  %v14464 = vpop.xlane.xlu0 %14463
  %14465 = vmax.xlane.f32.xlu0 %v14447
  %v14466 = vpop.xlane.xlu0 %14465
  %14467 = vmax.xlane.f32.xlu0 %v14450
  %v14468 = vpop.xlane.xlu0 %14467
  %14469 = vmax.xlane.f32.xlu0 %v14452
  %v14470 = vpop.xlane.xlu0 %14469
  %14471 = vmax.xlane.f32.xlu0 %v14455
  %v14472 = vpop.xlane.xlu0 %14471
  %14473 = vmax.xlane.f32.xlu0 %v14457
  %v14474 = vpop.xlane.xlu0 %14473
  %v14475 = vsub.f32 %v14440, %v14460
  %v14476 = vsub.f32 %v14442, %v14462
  %v14477 = vsub.f32 %v14445, %v14464
  %v14478 = vsub.f32 %v14447, %v14466
  %v14479 = vsub.f32 %v14450, %v14468
  %v14480 = vsub.f32 %v14452, %v14470
  %v14481 = vsub.f32 %v14455, %v14472
  %v14482 = vsub.f32 %v14457, %v14474
  %v14483 = vmul.f32 %v14475, 1.442695
  %v14484 = vpow.pop %v14483
  %v14485 = vmul.f32 %v14476, 1.442695
  %v14486 = vpow.pop %v14485
  %v14487 = vmul.f32 %v14477, 1.442695
  %v14488 = vpow.pop %v14487
  %v14489 = vmul.f32 %v14478, 1.442695
  %v14490 = vpow.pop %v14489
  %v14491 = vmul.f32 %v14479, 1.442695
  %v14492 = vpow.pop %v14491
  %v14493 = vmul.f32 %v14480, 1.442695
  %v14494 = vpow.pop %v14493
  %v14495 = vmul.f32 %v14481, 1.442695
  %v14496 = vpow.pop %v14495
  %v14497 = vmul.f32 %v14482, 1.442695
  %v14498 = vpow.pop %v14497
  %14499 = vadd.xlane.f32.xlu0 %v14484
  %v14500 = vpop.xlane.xlu0 %14499
  %14501 = vadd.xlane.f32.xlu0 %v14486
  %v14502 = vpop.xlane.xlu0 %14501
  %14503 = vadd.xlane.f32.xlu0 %v14488
  %v14504 = vpop.xlane.xlu0 %14503
  %14505 = vadd.xlane.f32.xlu0 %v14490
  %v14506 = vpop.xlane.xlu0 %14505
  %14507 = vadd.xlane.f32.xlu0 %v14492
  %v14508 = vpop.xlane.xlu0 %14507
  %14509 = vadd.xlane.f32.xlu0 %v14494
  %v14510 = vpop.xlane.xlu0 %14509
  %14511 = vadd.xlane.f32.xlu0 %v14496
  %v14512 = vpop.xlane.xlu0 %14511
  %14513 = vadd.xlane.f32.xlu0 %v14498
  %v14514 = vpop.xlane.xlu0 %14513
  %v14515 = vlog2.pop %v14500
  %v14516 = vmul.f32 %v14515, 0.6931472
  %v14517 = vlog2.pop %v14502
  %v14518 = vmul.f32 %v14517, 0.6931472
  %v14519 = vlog2.pop %v14504
  %v14520 = vmul.f32 %v14519, 0.6931472
  %v14521 = vlog2.pop %v14506
  %v14522 = vmul.f32 %v14521, 0.6931472
  %v14523 = vlog2.pop %v14508
  %v14524 = vmul.f32 %v14523, 0.6931472
  %v14525 = vlog2.pop %v14510
  %v14526 = vmul.f32 %v14525, 0.6931472
  %v14527 = vlog2.pop %v14512
  %v14528 = vmul.f32 %v14527, 0.6931472
  %v14529 = vlog2.pop %v14514
  %v14530 = vmul.f32 %v14529, 0.6931472
  %v14531 = vsub.f32 %v14475, %v14516
  %v14532 = vsub.f32 %v14476, %v14518
  %v14533 = vsub.f32 %v14477, %v14520
  %v14534 = vsub.f32 %v14478, %v14522
  %v14535 = vsub.f32 %v14479, %v14524
  %v14536 = vsub.f32 %v14480, %v14526
  %v14537 = vsub.f32 %v14481, %v14528
  %v14538 = vsub.f32 %v14482, %v14530
  %14539 = vst [vmem:[%s9] sm:$0xff] %v14531
  %14540 = vst [vmem:[%s9 + $0x8] sm:$0xff] %v14532
  %14541 = vst [vmem:[%s9 + $0x10] sm:$0xff] %v14533
  %14542 = vst [vmem:[%s9 + $0x18] sm:$0xff] %v14534
  %14543 = vst [vmem:[%s9 + $0x20] sm:$0xff] %v14535
  %14544 = vst [vmem:[%s9 + $0x28] sm:$0xff] %v14536
  %14545 = vst [vmem:[%s9 + $0x30] sm:$0xff] %v14537
  %14546 = vst [vmem:[%s9 + $0x38] sm:$0xff] %v14538
  // Predicated region
  $region38: #{net_forward.1} parent=0 // pred_check
    _
  $region39: #{net_forward.1} parent=0 // pred_check_branch
    %14548 = sbr.rel (0) target = $region41
  $region40: #{net_forward.1} parent=0 // pred_region
    _
  $region41: #{net_forward.1} parent=0 // pred_fallthru
    _
  // Predicated region
  $region42: #{net_forward.1} parent=0 // pred_check
    _
  $region43: #{net_forward.1} parent=0 // pred_check_branch
    %14550 = sbr.rel (0) target = $region45
  $region44: #{net_forward.1} parent=0 // pred_region
    _
  $region45: #{net_forward.1} parent=0 // pred_fallthru
    _

</llo_original>
